<compile_context>
chip_gen: v6e
topology: v6e:2x2x1
jax: 0.10.0
libtpu: 0.0.40
codegen_flags: <defaults>
</compile_context>

<pallas_src>
import functools

import numpy as np
import jax
import jax.numpy as jnp
from jax.experimental import pallas as pl
from jax.experimental.pallas import tpu as pltpu

_EPS = 1e-5
# output parity (d) x tap (r)  ->  kernel index, for k=4 / stride=2 / pad=1
_KMAP = ((3, 1), (2, 0))


# ===========================================================================
# Kernel: the whole generator forward, grid-less, VMEM resident.
# ===========================================================================
def _generator_kernel(z_ref, w1_ref, s1_ref,
                      r2_ref, r3_ref, r4_ref, r5_ref,
                      l2_ref, l3_ref, l4_ref, l5_ref,
                      mbn_ref, gb_ref, b5_ref,
                      out_ref, *, n_batch):
    f32 = jnp.float32

    def mm(a, b):
        return jnp.dot(a, b, preferred_element_type=f32)

    def row_sum(x):
        # (P, Q) -> (1, Q) summed over rows, via the MXU (robust lowering).
        return mm(jnp.ones((1, x.shape[0]), f32), x)

    def bn_relu(x, mbn, gamma_b, beta_b, count):
        # nn.BatchNorm2d training mode: per-channel batch stats, biased var.
        # Two-pass (mean first, then centered variance) on a single slab.
        inv = 1.0 / float(count)
        mean_b = mm(row_sum(x), mbn) * inv           # (1, Q) chan mean, bcast
        d = x - mean_b
        var_b = mm(row_sum(d * d), mbn) * inv        # (1, Q) chan var, bcast
        scale = gamma_b * jax.lax.rsqrt(var_b + _EPS)
        return jnp.maximum(d * scale + beta_b, 0.0)

    gb = gb_ref[...]                                 # (8, Q) gamma/beta rows

    # -- layer 1: ConvTranspose2d(zdim -> C1, k=4, s=1, p=0) on 1x1 input ----
    #    out[n*4 + Y, X*C1 + co] = sum_z z[n, z] * W1[z, co, Y, X]
    z = z_ref[...]                                   # (N, zdim)
    acc = None
    for yy in range(4):
        part = mm(s1_ref[yy], mm(z, w1_ref[yy]))     # (N*4, 4*C1)
        acc = part if acc is None else acc + part
    act = bn_relu(acc, mbn_ref[0], gb[0:1, :], gb[1:2, :], n_batch * 16)

    # -- layers 2-4: ConvTranspose2d(k=4, s=2, p=1) + BN + ReLU --------------
    #    out = sum_k  L_k @ act @ R_k  (see wrapper table builders)
    stride2 = ((r2_ref, l2_ref), (r3_ref, l3_ref), (r4_ref, l4_ref))
    hw = 4
    for li, (r_ref, l_ref) in enumerate(stride2):
        hw *= 2
        nxt = None
        for t in range(4):
            part = mm(l_ref[t], mm(act, r_ref[t]))
            nxt = part if nxt is None else nxt + part
        act = bn_relu(nxt, mbn_ref[li + 1],
                      gb[2 * li + 2: 2 * li + 3, :],
                      gb[2 * li + 3: 2 * li + 4, :],
                      n_batch * hw * hw)

    # -- layer 5: ConvTranspose2d(C4 -> 1, k=4, s=2, p=1) + bias + tanh ------
    out = None
    for t in range(4):
        part = mm(l5_ref[t], mm(act, r5_ref[t]))
        out = part if out is None else out + part
    out_ref[...] = jnp.tanh(out + b5_ref[...])       # (N*64, 64)


# ===========================================================================
# Wrapper-side table builders (weight-only; structure tables are numpy and
# fold to compile-time constants under jit).
# ===========================================================================
def _make_s1(n):
    """(4, 4N, N): row scatter for layer 1 (output row = n*4 + Y)."""
    s1 = np.zeros((4, 4 * n, n), np.float32)
    for y in range(4):
        for b in range(n):
            s1[y, b * 4 + y, b] = 1.0
    return s1


def _make_l_tables(n, h):
    """(4, N*2H, N*H): per-term row scatter (y tap shift + boundary mask +
    stride-2 row interleave) for ConvTranspose2d(k=4, s=2, p=1)."""
    tab = np.zeros((4, n * 2 * h, n * h), np.float32)
    for dy in range(2):
        for r in range(2):
            k = 2 * dy + r
            a = dy + r - 1                           # source-row offset
            for b in range(n):
                for y in range(h):
                    i = y + a
                    if 0 <= i < h:
                        tab[k, b * 2 * h + 2 * y + dy, b * h + i] = 1.0
    return tab


def _make_r_tables(weight, h):
    """weight (Cin, Cout, 4, 4) -> (4, H*Cin, 2H*Cout) column tables folding
    x tap shift, boundary masking, stride-2 column interleave and the
    Cin->Cout contraction (term order k = 2*dy + r matches _make_l_tables)."""
    cin, cout = weight.shape[0], weight.shape[1]
    # pos[dx, s, j, X] = 1  iff  X == 2*(j - b) + dx  with  b = dx + s - 1
    # and the source column j - b inside [0, W).
    pos = np.zeros((2, 2, h, 2 * h), np.float32)
    for dx in range(2):
        for s in range(2):
            b = dx + s - 1
            for j in range(h):
                x = j - b
                if 0 <= x < h:
                    pos[dx, s, j, 2 * x + dx] = 1.0
    kmap = np.asarray(_KMAP)
    # taps[ci, co, dy, r, dx, s] = weight[ci, co, KMAP[dy][r], KMAP[dx][s]]
    taps = weight[:, :, kmap, :][:, :, :, :, kmap]
    r = jnp.einsum('asjx,iodras->drjixo', pos, taps)
    return r.reshape(4, h * cin, 2 * h * cout)


def _make_mbn(q, c):
    """(Q, Q) 0/1 channel-pooling matrix: sums all columns belonging to a
    channel and broadcasts the total back to every column of that channel."""
    i = np.arange(q)
    return np.equal.outer(i % c, i % c).astype(np.float32)


# ===========================================================================
# Generator
# ===========================================================================
def init_generator_params(key, inplanes=8, zdim=100, k=4):
    """Deterministic synthetic parameters matching the module's shapes."""
    chans = [zdim, inplanes * 8, inplanes * 4, inplanes * 2, inplanes, 1]
    params = []
    for li in range(5):
        key, kw, kb, kg, kbeta = jax.random.split(key, 5)
        cin, cout = chans[li], chans[li + 1]
        std = (2.0 / (cout * k * k)) ** 0.5            # kaiming_normal, fan_out
        params.append(dict(
            w=std * jax.random.normal(kw, (cin, cout, k, k), jnp.float32),
            b=0.01 * jax.random.normal(kb, (cout,), jnp.float32),
            gamma=1.0 + 0.1 * jax.random.normal(kg, (cout,), jnp.float32),
            beta=0.1 * jax.random.normal(kbeta, (cout,), jnp.float32),
        ))
    return params


def generator_forward(z_nchw, params):
    """z_nchw: (N, zdim, 1, 1) as in PyTorch; returns (N, 1, 64, 64) NCHW."""
    n, zdim = z_nchw.shape[0], z_nchw.shape[1]
    c1 = params[0]['w'].shape[1]                     # inplanes * 8
    q = 4 * c1                                       # column width of BN'd layers

    # ---- weight-only table prep (tiny; cacheable / hoistable across steps)
    w1 = jnp.transpose(params[0]['w'], (2, 0, 3, 1)).reshape(4, zdim, q)
    s1 = jnp.asarray(_make_s1(n))
    spatials = (4, 8, 16, 32)                        # input H=W of deconv2..5
    r_tabs = [_make_r_tables(params[li + 1]['w'], h)
              for li, h in enumerate(spatials)]
    l_tabs = [jnp.asarray(_make_l_tables(n, h)) for h in spatials]
    bn_chans = [params[li]['w'].shape[1] for li in range(4)]   # C1..C4
    mbn = jnp.asarray(np.stack([_make_mbn(q, c) for c in bn_chans], axis=0))
    gb = jnp.stack([jnp.tile(params[li][key], q // bn_chans[li])
                    for li in range(4) for key in ('gamma', 'beta')], axis=0)
    b5 = params[4]['b'].reshape(1, 1).astype(jnp.float32)
    # NOTE: biases of deconv1..4 are omitted on purpose -- with training-mode
    # BatchNorm they are cancelled exactly by the mean subtraction.

    z2d = z_nchw.reshape(n, zdim).astype(jnp.float32)

    vmem = pl.BlockSpec(memory_space=pltpu.MemorySpace.VMEM)
    out2d = pl.pallas_call(
        functools.partial(_generator_kernel, n_batch=n),
        out_shape=jax.ShapeDtypeStruct((n * 64, 64), jnp.float32),
        in_specs=[vmem] * 14,
        out_specs=vmem,
        compiler_params=pltpu.CompilerParams(
            vmem_limit_bytes=32 * 1024 * 1024),
    )(z2d, w1, s1,
      r_tabs[0], r_tabs[1], r_tabs[2], r_tabs[3],
      l_tabs[0], l_tabs[1], l_tabs[2], l_tabs[3],
      mbn, gb, b5)

    # TODO(synk): BatchNorm running-stat updates (training-time side effect)
    # are not modeled; they do not affect the forward output.
    # TODO(synk): for realistic batch sizes, grid the row axis (multiple of 8)
    # with dimension_semantics=("parallel",) so v7x's second TensorCore is
    # used; at N=2 per-step overhead would dominate, so the call is grid-less.
    return out2d.reshape(n, 64, 64)[:, None, :, :]   # (N, 1, 64, 64) NCHW


if __name__ == "__main__":
    key = jax.random.PRNGKey(0)
    kz, kp = jax.random.split(key)

    # small but faithful shapes: latent (N, 100, 1, 1), inplanes=8
    z = jax.random.normal(kz, (2, 100, 1, 1), jnp.float32)
    params = init_generator_params(kp, inplanes=8)

    out = jax.jit(generator_forward)(z, params)
    out = jax.block_until_ready(out)

    assert out.shape == (2, 1, 64, 64), out.shape
    assert out.dtype == jnp.float32
    assert bool(jnp.all(jnp.isfinite(out)))
    assert bool(jnp.all(jnp.abs(out) <= 1.0 + 1e-6))   # tanh range

    print("KERNEL_OK")
</pallas_src>

<mosaic_0001>
module attributes {stable_mosaic.version = 11 : i64} {
  func.func @_generator_kernel(%arg0: memref<2x100xf32, #tpu.memory_space<vmem>>, %arg1: memref<4x100x256xf32, #tpu.memory_space<vmem>>, %arg2: memref<4x8x2xf32, #tpu.memory_space<vmem>>, %arg3: memref<4x256x256xf32, #tpu.memory_space<vmem>>, %arg4: memref<4x256x256xf32, #tpu.memory_space<vmem>>, %arg5: memref<4x256x256xf32, #tpu.memory_space<vmem>>, %arg6: memref<4x256x64xf32, #tpu.memory_space<vmem>>, %arg7: memref<4x16x8xf32, #tpu.memory_space<vmem>>, %arg8: memref<4x32x16xf32, #tpu.memory_space<vmem>>, %arg9: memref<4x64x32xf32, #tpu.memory_space<vmem>>, %arg10: memref<4x128x64xf32, #tpu.memory_space<vmem>>, %arg11: memref<4x256x256xf32, #tpu.memory_space<vmem>>, %arg12: memref<8x256xf32, #tpu.memory_space<vmem>>, %arg13: memref<1x1xf32, #tpu.memory_space<vmem>>, %arg14: memref<128x64xf32, #tpu.memory_space<vmem>>) attributes {dimension_semantics = [], scalar_prefetch = 0 : i64, scratch_operands = 0 : i64, tpu.core_type = #tpu.core_type<tc>} {
    %c0 = arith.constant 0 : index
    %c0_0 = arith.constant 0 : index
    %0 = vector.load %arg12[%c0, %c0_0] : memref<8x256xf32, #tpu.memory_space<vmem>>, vector<8x256xf32>
    %c0_1 = arith.constant 0 : index
    %c0_2 = arith.constant 0 : index
    %1 = vector.load %arg0[%c0_1, %c0_2] : memref<2x100xf32, #tpu.memory_space<vmem>>, vector<2x100xf32>
    %c0_3 = arith.constant 0 : index
    %c0_4 = arith.constant 0 : index
    %c0_5 = arith.constant 0 : index
    %2 = vector.load %arg2[%c0_3, %c0_4, %c0_5] : memref<4x8x2xf32, #tpu.memory_space<vmem>>, vector<1x8x2xf32>
    %3 = vector.shape_cast %2 : vector<1x8x2xf32> to vector<8x2xf32>
    %c0_6 = arith.constant 0 : index
    %c0_7 = arith.constant 0 : index
    %c0_8 = arith.constant 0 : index
    %4 = vector.load %arg1[%c0_6, %c0_7, %c0_8] : memref<4x100x256xf32, #tpu.memory_space<vmem>>, vector<1x100x256xf32>
    %5 = vector.shape_cast %4 : vector<1x100x256xf32> to vector<100x256xf32>
    %cst = arith.constant dense<0.000000e+00> : vector<2x256xf32>
    %6 = tpu.matmul %1, %5, %cst {dimension_numbers = #tpu.dot_dimension_numbers<[1], [0], [0], [1], [0, 0, 1, 1], [], []>} : vector<2x100xf32>, vector<100x256xf32>, vector<2x256xf32> -> vector<2x256xf32>
    %cst_9 = arith.constant dense<0.000000e+00> : vector<8x256xf32>
    %7 = tpu.matmul %3, %6, %cst_9 {dimension_numbers = #tpu.dot_dimension_numbers<[1], [0], [0], [1], [0, 0, 1, 1], [], []>} : vector<8x2xf32>, vector<2x256xf32>, vector<8x256xf32> -> vector<8x256xf32>
    %c1 = arith.constant 1 : index
    %c0_10 = arith.constant 0 : index
    %c0_11 = arith.constant 0 : index
    %8 = vector.load %arg2[%c1, %c0_10, %c0_11] : memref<4x8x2xf32, #tpu.memory_space<vmem>>, vector<1x8x2xf32>
    %9 = vector.shape_cast %8 : vector<1x8x2xf32> to vector<8x2xf32>
    %c1_12 = arith.constant 1 : index
    %c0_13 = arith.constant 0 : index
    %c0_14 = arith.constant 0 : index
    %10 = vector.load %arg1[%c1_12, %c0_13, %c0_14] : memref<4x100x256xf32, #tpu.memory_space<vmem>>, vector<1x100x256xf32>
    %11 = vector.shape_cast %10 : vector<1x100x256xf32> to vector<100x256xf32>
    %cst_15 = arith.constant dense<0.000000e+00> : vector<2x256xf32>
    %12 = tpu.matmul %1, %11, %cst_15 {dimension_numbers = #tpu.dot_dimension_numbers<[1], [0], [0], [1], [0, 0, 1, 1], [], []>} : vector<2x100xf32>, vector<100x256xf32>, vector<2x256xf32> -> vector<2x256xf32>
    %cst_16 = arith.constant dense<0.000000e+00> : vector<8x256xf32>
    %13 = tpu.matmul %9, %12, %cst_16 {dimension_numbers = #tpu.dot_dimension_numbers<[1], [0], [0], [1], [0, 0, 1, 1], [], []>} : vector<8x2xf32>, vector<2x256xf32>, vector<8x256xf32> -> vector<8x256xf32>
    %14 = arith.addf %7, %13 : vector<8x256xf32>
    %c2 = arith.constant 2 : index
    %c0_17 = arith.constant 0 : index
    %c0_18 = arith.constant 0 : index
    %15 = vector.load %arg2[%c2, %c0_17, %c0_18] : memref<4x8x2xf32, #tpu.memory_space<vmem>>, vector<1x8x2xf32>
    %16 = vector.shape_cast %15 : vector<1x8x2xf32> to vector<8x2xf32>
    %c2_19 = arith.constant 2 : index
    %c0_20 = arith.constant 0 : index
    %c0_21 = arith.constant 0 : index
    %17 = vector.load %arg1[%c2_19, %c0_20, %c0_21] : memref<4x100x256xf32, #tpu.memory_space<vmem>>, vector<1x100x256xf32>
    %18 = vector.shape_cast %17 : vector<1x100x256xf32> to vector<100x256xf32>
    %cst_22 = arith.constant dense<0.000000e+00> : vector<2x256xf32>
    %19 = tpu.matmul %1, %18, %cst_22 {dimension_numbers = #tpu.dot_dimension_numbers<[1], [0], [0], [1], [0, 0, 1, 1], [], []>} : vector<2x100xf32>, vector<100x256xf32>, vector<2x256xf32> -> vector<2x256xf32>
    %cst_23 = arith.constant dense<0.000000e+00> : vector<8x256xf32>
    %20 = tpu.matmul %16, %19, %cst_23 {dimension_numbers = #tpu.dot_dimension_numbers<[1], [0], [0], [1], [0, 0, 1, 1], [], []>} : vector<8x2xf32>, vector<2x256xf32>, vector<8x256xf32> -> vector<8x256xf32>
    %21 = arith.addf %14, %20 : vector<8x256xf32>
    %c3 = arith.constant 3 : index
    %c0_24 = arith.constant 0 : index
    %c0_25 = arith.constant 0 : index
    %22 = vector.load %arg2[%c3, %c0_24, %c0_25] : memref<4x8x2xf32, #tpu.memory_space<vmem>>, vector<1x8x2xf32>
    %23 = vector.shape_cast %22 : vector<1x8x2xf32> to vector<8x2xf32>
    %c3_26 = arith.constant 3 : index
    %c0_27 = arith.constant 0 : index
    %c0_28 = arith.constant 0 : index
    %24 = vector.load %arg1[%c3_26, %c0_27, %c0_28] : memref<4x100x256xf32, #tpu.memory_space<vmem>>, vector<1x100x256xf32>
    %25 = vector.shape_cast %24 : vector<1x100x256xf32> to vector<100x256xf32>
    %cst_29 = arith.constant dense<0.000000e+00> : vector<2x256xf32>
    %26 = tpu.matmul %1, %25, %cst_29 {dimension_numbers = #tpu.dot_dimension_numbers<[1], [0], [0], [1], [0, 0, 1, 1], [], []>} : vector<2x100xf32>, vector<100x256xf32>, vector<2x256xf32> -> vector<2x256xf32>
    %cst_30 = arith.constant dense<0.000000e+00> : vector<8x256xf32>
    %27 = tpu.matmul %23, %26, %cst_30 {dimension_numbers = #tpu.dot_dimension_numbers<[1], [0], [0], [1], [0, 0, 1, 1], [], []>} : vector<8x2xf32>, vector<2x256xf32>, vector<8x256xf32> -> vector<8x256xf32>
    %28 = arith.addf %21, %27 : vector<8x256xf32>
    %c0_31 = arith.constant 0 : index
    %c0_32 = arith.constant 0 : index
    %c0_33 = arith.constant 0 : index
    %29 = vector.load %arg11[%c0_31, %c0_32, %c0_33] : memref<4x256x256xf32, #tpu.memory_space<vmem>>, vector<1x256x256xf32>
    %30 = vector.shape_cast %29 : vector<1x256x256xf32> to vector<256x256xf32>
    %31 = vector.extract_strided_slice %0 {offsets = [0, 0], sizes = [1, 256], strides = [1, 1]} : vector<8x256xf32> to vector<1x256xf32>
    %32 = vector.extract_strided_slice %0 {offsets = [1, 0], sizes = [1, 256], strides = [1, 1]} : vector<8x256xf32> to vector<1x256xf32>
    %cst_34 = arith.constant 1.000000e+00 : f32
    %33 = vector.broadcast %cst_34 : f32 to vector<1x8xf32>
    %cst_35 = arith.constant dense<0.000000e+00> : vector<1x256xf32>
    %34 = tpu.matmul %33, %28, %cst_35 {dimension_numbers = #tpu.dot_dimension_numbers<[1], [0], [0], [1], [0, 0, 1, 1], [], []>} : vector<1x8xf32>, vector<8x256xf32>, vector<1x256xf32> -> vector<1x256xf32>
    %cst_36 = arith.constant dense<0.000000e+00> : vector<1x256xf32>
    %35 = tpu.matmul %34, %30, %cst_36 {dimension_numbers = #tpu.dot_dimension_numbers<[1], [0], [0], [1], [0, 0, 1, 1], [], []>} : vector<1x256xf32>, vector<256x256xf32>, vector<1x256xf32> -> vector<1x256xf32>
    %cst_37 = arith.constant 3.125000e-02 : f32
    %36 = vector.broadcast %cst_37 : f32 to vector<1x256xf32>
    %37 = arith.mulf %35, %36 : vector<1x256xf32>
    %38 = vector.broadcast %37 : vector<1x256xf32> to vector<8x256xf32>
    %39 = arith.subf %28, %38 : vector<8x256xf32>
    %40 = arith.mulf %39, %39 : vector<8x256xf32>
    %cst_38 = arith.constant 1.000000e+00 : f32
    %41 = vector.broadcast %cst_38 : f32 to vector<1x8xf32>
    %cst_39 = arith.constant dense<0.000000e+00> : vector<1x256xf32>
    %42 = tpu.matmul %41, %40, %cst_39 {dimension_numbers = #tpu.dot_dimension_numbers<[1], [0], [0], [1], [0, 0, 1, 1], [], []>} : vector<1x8xf32>, vector<8x256xf32>, vector<1x256xf32> -> vector<1x256xf32>
    %cst_40 = arith.constant dense<0.000000e+00> : vector<1x256xf32>
    %43 = tpu.matmul %42, %30, %cst_40 {dimension_numbers = #tpu.dot_dimension_numbers<[1], [0], [0], [1], [0, 0, 1, 1], [], []>} : vector<1x256xf32>, vector<256x256xf32>, vector<1x256xf32> -> vector<1x256xf32>
    %cst_41 = arith.constant 3.125000e-02 : f32
    %44 = vector.broadcast %cst_41 : f32 to vector<1x256xf32>
    %45 = arith.mulf %43, %44 : vector<1x256xf32>
    %cst_42 = arith.constant 9.99999974E-6 : f32
    %46 = vector.broadcast %cst_42 : f32 to vector<1x256xf32>
    %47 = arith.addf %45, %46 : vector<1x256xf32>
    %48 = math.rsqrt %47 : vector<1x256xf32>
    %49 = arith.mulf %31, %48 : vector<1x256xf32>
    %50 = vector.broadcast %49 : vector<1x256xf32> to vector<8x256xf32>
    %51 = arith.mulf %39, %50 : vector<8x256xf32>
    %52 = vector.broadcast %32 : vector<1x256xf32> to vector<8x256xf32>
    %53 = arith.addf %51, %52 : vector<8x256xf32>
    %cst_43 = arith.constant 0.000000e+00 : f32
    %54 = vector.broadcast %cst_43 : f32 to vector<8x256xf32>
    %55 = arith.maximumf %53, %54 : vector<8x256xf32>
    %c0_44 = arith.constant 0 : index
    %c0_45 = arith.constant 0 : index
    %c0_46 = arith.constant 0 : index
    %56 = vector.load %arg7[%c0_44, %c0_45, %c0_46] : memref<4x16x8xf32, #tpu.memory_space<vmem>>, vector<1x16x8xf32>
    %57 = vector.shape_cast %56 : vector<1x16x8xf32> to vector<16x8xf32>
    %c0_47 = arith.constant 0 : index
    %c0_48 = arith.constant 0 : index
    %c0_49 = arith.constant 0 : index
    %58 = vector.load %arg3[%c0_47, %c0_48, %c0_49] : memref<4x256x256xf32, #tpu.memory_space<vmem>>, vector<1x256x256xf32>
    %59 = vector.shape_cast %58 : vector<1x256x256xf32> to vector<256x256xf32>
    %cst_50 = arith.constant dense<0.000000e+00> : vector<8x256xf32>
    %60 = tpu.matmul %55, %59, %cst_50 {dimension_numbers = #tpu.dot_dimension_numbers<[1], [0], [0], [1], [0, 0, 1, 1], [], []>} : vector<8x256xf32>, vector<256x256xf32>, vector<8x256xf32> -> vector<8x256xf32>
    %cst_51 = arith.constant dense<0.000000e+00> : vector<16x256xf32>
    %61 = tpu.matmul %57, %60, %cst_51 {dimension_numbers = #tpu.dot_dimension_numbers<[1], [0], [0], [1], [0, 0, 1, 1], [], []>} : vector<16x8xf32>, vector<8x256xf32>, vector<16x256xf32> -> vector<16x256xf32>
    %c1_52 = arith.constant 1 : index
    %c0_53 = arith.constant 0 : index
    %c0_54 = arith.constant 0 : index
    %62 = vector.load %arg7[%c1_52, %c0_53, %c0_54] : memref<4x16x8xf32, #tpu.memory_space<vmem>>, vector<1x16x8xf32>
    %63 = vector.shape_cast %62 : vector<1x16x8xf32> to vector<16x8xf32>
    %c1_55 = arith.constant 1 : index
    %c0_56 = arith.constant 0 : index
    %c0_57 = arith.constant 0 : index
    %64 = vector.load %arg3[%c1_55, %c0_56, %c0_57] : memref<4x256x256xf32, #tpu.memory_space<vmem>>, vector<1x256x256xf32>
    %65 = vector.shape_cast %64 : vector<1x256x256xf32> to vector<256x256xf32>
    %cst_58 = arith.constant dense<0.000000e+00> : vector<8x256xf32>
    %66 = tpu.matmul %55, %65, %cst_58 {dimension_numbers = #tpu.dot_dimension_numbers<[1], [0], [0], [1], [0, 0, 1, 1], [], []>} : vector<8x256xf32>, vector<256x256xf32>, vector<8x256xf32> -> vector<8x256xf32>
    %cst_59 = arith.constant dense<0.000000e+00> : vector<16x256xf32>
    %67 = tpu.matmul %63, %66, %cst_59 {dimension_numbers = #tpu.dot_dimension_numbers<[1], [0], [0], [1], [0, 0, 1, 1], [], []>} : vector<16x8xf32>, vector<8x256xf32>, vector<16x256xf32> -> vector<16x256xf32>
    %68 = arith.addf %61, %67 : vector<16x256xf32>
    %c2_60 = arith.constant 2 : index
    %c0_61 = arith.constant 0 : index
    %c0_62 = arith.constant 0 : index
    %69 = vector.load %arg7[%c2_60, %c0_61, %c0_62] : memref<4x16x8xf32, #tpu.memory_space<vmem>>, vector<1x16x8xf32>
    %70 = vector.shape_cast %69 : vector<1x16x8xf32> to vector<16x8xf32>
    %c2_63 = arith.constant 2 : index
    %c0_64 = arith.constant 0 : index
    %c0_65 = arith.constant 0 : index
    %71 = vector.load %arg3[%c2_63, %c0_64, %c0_65] : memref<4x256x256xf32, #tpu.memory_space<vmem>>, vector<1x256x256xf32>
    %72 = vector.shape_cast %71 : vector<1x256x256xf32> to vector<256x256xf32>
    %cst_66 = arith.constant dense<0.000000e+00> : vector<8x256xf32>
    %73 = tpu.matmul %55, %72, %cst_66 {dimension_numbers = #tpu.dot_dimension_numbers<[1], [0], [0], [1], [0, 0, 1, 1], [], []>} : vector<8x256xf32>, vector<256x256xf32>, vector<8x256xf32> -> vector<8x256xf32>
    %cst_67 = arith.constant dense<0.000000e+00> : vector<16x256xf32>
    %74 = tpu.matmul %70, %73, %cst_67 {dimension_numbers = #tpu.dot_dimension_numbers<[1], [0], [0], [1], [0, 0, 1, 1], [], []>} : vector<16x8xf32>, vector<8x256xf32>, vector<16x256xf32> -> vector<16x256xf32>
    %75 = arith.addf %68, %74 : vector<16x256xf32>
    %c3_68 = arith.constant 3 : index
    %c0_69 = arith.constant 0 : index
    %c0_70 = arith.constant 0 : index
    %76 = vector.load %arg7[%c3_68, %c0_69, %c0_70] : memref<4x16x8xf32, #tpu.memory_space<vmem>>, vector<1x16x8xf32>
    %77 = vector.shape_cast %76 : vector<1x16x8xf32> to vector<16x8xf32>
    %c3_71 = arith.constant 3 : index
    %c0_72 = arith.constant 0 : index
    %c0_73 = arith.constant 0 : index
    %78 = vector.load %arg3[%c3_71, %c0_72, %c0_73] : memref<4x256x256xf32, #tpu.memory_space<vmem>>, vector<1x256x256xf32>
    %79 = vector.shape_cast %78 : vector<1x256x256xf32> to vector<256x256xf32>
    %cst_74 = arith.constant dense<0.000000e+00> : vector<8x256xf32>
    %80 = tpu.matmul %55, %79, %cst_74 {dimension_numbers = #tpu.dot_dimension_numbers<[1], [0], [0], [1], [0, 0, 1, 1], [], []>} : vector<8x256xf32>, vector<256x256xf32>, vector<8x256xf32> -> vector<8x256xf32>
    %cst_75 = arith.constant dense<0.000000e+00> : vector<16x256xf32>
    %81 = tpu.matmul %77, %80, %cst_75 {dimension_numbers = #tpu.dot_dimension_numbers<[1], [0], [0], [1], [0, 0, 1, 1], [], []>} : vector<16x8xf32>, vector<8x256xf32>, vector<16x256xf32> -> vector<16x256xf32>
    %82 = arith.addf %75, %81 : vector<16x256xf32>
    %c1_76 = arith.constant 1 : index
    %c0_77 = arith.constant 0 : index
    %c0_78 = arith.constant 0 : index
    %83 = vector.load %arg11[%c1_76, %c0_77, %c0_78] : memref<4x256x256xf32, #tpu.memory_space<vmem>>, vector<1x256x256xf32>
    %84 = vector.shape_cast %83 : vector<1x256x256xf32> to vector<256x256xf32>
    %85 = vector.extract_strided_slice %0 {offsets = [2, 0], sizes = [1, 256], strides = [1, 1]} : vector<8x256xf32> to vector<1x256xf32>
    %86 = vector.extract_strided_slice %0 {offsets = [3, 0], sizes = [1, 256], strides = [1, 1]} : vector<8x256xf32> to vector<1x256xf32>
    %cst_79 = arith.constant 1.000000e+00 : f32
    %87 = vector.broadcast %cst_79 : f32 to vector<1x16xf32>
    %cst_80 = arith.constant dense<0.000000e+00> : vector<1x256xf32>
    %88 = tpu.matmul %87, %82, %cst_80 {dimension_numbers = #tpu.dot_dimension_numbers<[1], [0], [0], [1], [0, 0, 1, 1], [], []>} : vector<1x16xf32>, vector<16x256xf32>, vector<1x256xf32> -> vector<1x256xf32>
    %cst_81 = arith.constant dense<0.000000e+00> : vector<1x256xf32>
    %89 = tpu.matmul %88, %84, %cst_81 {dimension_numbers = #tpu.dot_dimension_numbers<[1], [0], [0], [1], [0, 0, 1, 1], [], []>} : vector<1x256xf32>, vector<256x256xf32>, vector<1x256xf32> -> vector<1x256xf32>
    %cst_82 = arith.constant 7.812500e-03 : f32
    %90 = vector.broadcast %cst_82 : f32 to vector<1x256xf32>
    %91 = arith.mulf %89, %90 : vector<1x256xf32>
    %92 = vector.broadcast %91 : vector<1x256xf32> to vector<16x256xf32>
    %93 = arith.subf %82, %92 : vector<16x256xf32>
    %94 = arith.mulf %93, %93 : vector<16x256xf32>
    %cst_83 = arith.constant 1.000000e+00 : f32
    %95 = vector.broadcast %cst_83 : f32 to vector<1x16xf32>
    %cst_84 = arith.constant dense<0.000000e+00> : vector<1x256xf32>
    %96 = tpu.matmul %95, %94, %cst_84 {dimension_numbers = #tpu.dot_dimension_numbers<[1], [0], [0], [1], [0, 0, 1, 1], [], []>} : vector<1x16xf32>, vector<16x256xf32>, vector<1x256xf32> -> vector<1x256xf32>
    %cst_85 = arith.constant dense<0.000000e+00> : vector<1x256xf32>
    %97 = tpu.matmul %96, %84, %cst_85 {dimension_numbers = #tpu.dot_dimension_numbers<[1], [0], [0], [1], [0, 0, 1, 1], [], []>} : vector<1x256xf32>, vector<256x256xf32>, vector<1x256xf32> -> vector<1x256xf32>
    %cst_86 = arith.constant 7.812500e-03 : f32
    %98 = vector.broadcast %cst_86 : f32 to vector<1x256xf32>
    %99 = arith.mulf %97, %98 : vector<1x256xf32>
    %cst_87 = arith.constant 9.99999974E-6 : f32
    %100 = vector.broadcast %cst_87 : f32 to vector<1x256xf32>
    %101 = arith.addf %99, %100 : vector<1x256xf32>
    %102 = math.rsqrt %101 : vector<1x256xf32>
    %103 = arith.mulf %85, %102 : vector<1x256xf32>
    %104 = vector.broadcast %103 : vector<1x256xf32> to vector<16x256xf32>
    %105 = arith.mulf %93, %104 : vector<16x256xf32>
    %106 = vector.broadcast %86 : vector<1x256xf32> to vector<16x256xf32>
    %107 = arith.addf %105, %106 : vector<16x256xf32>
    %cst_88 = arith.constant 0.000000e+00 : f32
    %108 = vector.broadcast %cst_88 : f32 to vector<16x256xf32>
    %109 = arith.maximumf %107, %108 : vector<16x256xf32>
    %c0_89 = arith.constant 0 : index
    %c0_90 = arith.constant 0 : index
    %c0_91 = arith.constant 0 : index
    %110 = vector.load %arg8[%c0_89, %c0_90, %c0_91] : memref<4x32x16xf32, #tpu.memory_space<vmem>>, vector<1x32x16xf32>
    %111 = vector.shape_cast %110 : vector<1x32x16xf32> to vector<32x16xf32>
    %c0_92 = arith.constant 0 : index
    %c0_93 = arith.constant 0 : index
    %c0_94 = arith.constant 0 : index
    %112 = vector.load %arg4[%c0_92, %c0_93, %c0_94] : memref<4x256x256xf32, #tpu.memory_space<vmem>>, vector<1x256x256xf32>
    %113 = vector.shape_cast %112 : vector<1x256x256xf32> to vector<256x256xf32>
    %cst_95 = arith.constant dense<0.000000e+00> : vector<16x256xf32>
    %114 = tpu.matmul %109, %113, %cst_95 {dimension_numbers = #tpu.dot_dimension_numbers<[1], [0], [0], [1], [0, 0, 1, 1], [], []>} : vector<16x256xf32>, vector<256x256xf32>, vector<16x256xf32> -> vector<16x256xf32>
    %cst_96 = arith.constant dense<0.000000e+00> : vector<32x256xf32>
    %115 = tpu.matmul %111, %114, %cst_96 {dimension_numbers = #tpu.dot_dimension_numbers<[1], [0], [0], [1], [0, 0, 1, 1], [], []>} : vector<32x16xf32>, vector<16x256xf32>, vector<32x256xf32> -> vector<32x256xf32>
    %c1_97 = arith.constant 1 : index
    %c0_98 = arith.constant 0 : index
    %c0_99 = arith.constant 0 : index
    %116 = vector.load %arg8[%c1_97, %c0_98, %c0_99] : memref<4x32x16xf32, #tpu.memory_space<vmem>>, vector<1x32x16xf32>
    %117 = vector.shape_cast %116 : vector<1x32x16xf32> to vector<32x16xf32>
    %c1_100 = arith.constant 1 : index
    %c0_101 = arith.constant 0 : index
    %c0_102 = arith.constant 0 : index
    %118 = vector.load %arg4[%c1_100, %c0_101, %c0_102] : memref<4x256x256xf32, #tpu.memory_space<vmem>>, vector<1x256x256xf32>
    %119 = vector.shape_cast %118 : vector<1x256x256xf32> to vector<256x256xf32>
    %cst_103 = arith.constant dense<0.000000e+00> : vector<16x256xf32>
    %120 = tpu.matmul %109, %119, %cst_103 {dimension_numbers = #tpu.dot_dimension_numbers<[1], [0], [0], [1], [0, 0, 1, 1], [], []>} : vector<16x256xf32>, vector<256x256xf32>, vector<16x256xf32> -> vector<16x256xf32>
    %cst_104 = arith.constant dense<0.000000e+00> : vector<32x256xf32>
    %121 = tpu.matmul %117, %120, %cst_104 {dimension_numbers = #tpu.dot_dimension_numbers<[1], [0], [0], [1], [0, 0, 1, 1], [], []>} : vector<32x16xf32>, vector<16x256xf32>, vector<32x256xf32> -> vector<32x256xf32>
    %122 = arith.addf %115, %121 : vector<32x256xf32>
    %c2_105 = arith.constant 2 : index
    %c0_106 = arith.constant 0 : index
    %c0_107 = arith.constant 0 : index
    %123 = vector.load %arg8[%c2_105, %c0_106, %c0_107] : memref<4x32x16xf32, #tpu.memory_space<vmem>>, vector<1x32x16xf32>
    %124 = vector.shape_cast %123 : vector<1x32x16xf32> to vector<32x16xf32>
    %c2_108 = arith.constant 2 : index
    %c0_109 = arith.constant 0 : index
    %c0_110 = arith.constant 0 : index
    %125 = vector.load %arg4[%c2_108, %c0_109, %c0_110] : memref<4x256x256xf32, #tpu.memory_space<vmem>>, vector<1x256x256xf32>
    %126 = vector.shape_cast %125 : vector<1x256x256xf32> to vector<256x256xf32>
    %cst_111 = arith.constant dense<0.000000e+00> : vector<16x256xf32>
    %127 = tpu.matmul %109, %126, %cst_111 {dimension_numbers = #tpu.dot_dimension_numbers<[1], [0], [0], [1], [0, 0, 1, 1], [], []>} : vector<16x256xf32>, vector<256x256xf32>, vector<16x256xf32> -> vector<16x256xf32>
    %cst_112 = arith.constant dense<0.000000e+00> : vector<32x256xf32>
    %128 = tpu.matmul %124, %127, %cst_112 {dimension_numbers = #tpu.dot_dimension_numbers<[1], [0], [0], [1], [0, 0, 1, 1], [], []>} : vector<32x16xf32>, vector<16x256xf32>, vector<32x256xf32> -> vector<32x256xf32>
    %129 = arith.addf %122, %128 : vector<32x256xf32>
    %c3_113 = arith.constant 3 : index
    %c0_114 = arith.constant 0 : index
    %c0_115 = arith.constant 0 : index
    %130 = vector.load %arg8[%c3_113, %c0_114, %c0_115] : memref<4x32x16xf32, #tpu.memory_space<vmem>>, vector<1x32x16xf32>
    %131 = vector.shape_cast %130 : vector<1x32x16xf32> to vector<32x16xf32>
    %c3_116 = arith.constant 3 : index
    %c0_117 = arith.constant 0 : index
    %c0_118 = arith.constant 0 : index
    %132 = vector.load %arg4[%c3_116, %c0_117, %c0_118] : memref<4x256x256xf32, #tpu.memory_space<vmem>>, vector<1x256x256xf32>
    %133 = vector.shape_cast %132 : vector<1x256x256xf32> to vector<256x256xf32>
    %cst_119 = arith.constant dense<0.000000e+00> : vector<16x256xf32>
    %134 = tpu.matmul %109, %133, %cst_119 {dimension_numbers = #tpu.dot_dimension_numbers<[1], [0], [0], [1], [0, 0, 1, 1], [], []>} : vector<16x256xf32>, vector<256x256xf32>, vector<16x256xf32> -> vector<16x256xf32>
    %cst_120 = arith.constant dense<0.000000e+00> : vector<32x256xf32>
    %135 = tpu.matmul %131, %134, %cst_120 {dimension_numbers = #tpu.dot_dimension_numbers<[1], [0], [0], [1], [0, 0, 1, 1], [], []>} : vector<32x16xf32>, vector<16x256xf32>, vector<32x256xf32> -> vector<32x256xf32>
    %136 = arith.addf %129, %135 : vector<32x256xf32>
    %c2_121 = arith.constant 2 : index
    %c0_122 = arith.constant 0 : index
    %c0_123 = arith.constant 0 : index
    %137 = vector.load %arg11[%c2_121, %c0_122, %c0_123] : memref<4x256x256xf32, #tpu.memory_space<vmem>>, vector<1x256x256xf32>
    %138 = vector.shape_cast %137 : vector<1x256x256xf32> to vector<256x256xf32>
    %139 = vector.extract_strided_slice %0 {offsets = [4, 0], sizes = [1, 256], strides = [1, 1]} : vector<8x256xf32> to vector<1x256xf32>
    %140 = vector.extract_strided_slice %0 {offsets = [5, 0], sizes = [1, 256], strides = [1, 1]} : vector<8x256xf32> to vector<1x256xf32>
    %cst_124 = arith.constant 1.000000e+00 : f32
    %141 = vector.broadcast %cst_124 : f32 to vector<1x32xf32>
    %cst_125 = arith.constant dense<0.000000e+00> : vector<1x256xf32>
    %142 = tpu.matmul %141, %136, %cst_125 {dimension_numbers = #tpu.dot_dimension_numbers<[1], [0], [0], [1], [0, 0, 1, 1], [], []>} : vector<1x32xf32>, vector<32x256xf32>, vector<1x256xf32> -> vector<1x256xf32>
    %cst_126 = arith.constant dense<0.000000e+00> : vector<1x256xf32>
    %143 = tpu.matmul %142, %138, %cst_126 {dimension_numbers = #tpu.dot_dimension_numbers<[1], [0], [0], [1], [0, 0, 1, 1], [], []>} : vector<1x256xf32>, vector<256x256xf32>, vector<1x256xf32> -> vector<1x256xf32>
    %cst_127 = arith.constant 0.001953125 : f32
    %144 = vector.broadcast %cst_127 : f32 to vector<1x256xf32>
    %145 = arith.mulf %143, %144 : vector<1x256xf32>
    %146 = vector.broadcast %145 : vector<1x256xf32> to vector<32x256xf32>
    %147 = arith.subf %136, %146 : vector<32x256xf32>
    %148 = arith.mulf %147, %147 : vector<32x256xf32>
    %cst_128 = arith.constant 1.000000e+00 : f32
    %149 = vector.broadcast %cst_128 : f32 to vector<1x32xf32>
    %cst_129 = arith.constant dense<0.000000e+00> : vector<1x256xf32>
    %150 = tpu.matmul %149, %148, %cst_129 {dimension_numbers = #tpu.dot_dimension_numbers<[1], [0], [0], [1], [0, 0, 1, 1], [], []>} : vector<1x32xf32>, vector<32x256xf32>, vector<1x256xf32> -> vector<1x256xf32>
    %cst_130 = arith.constant dense<0.000000e+00> : vector<1x256xf32>
    %151 = tpu.matmul %150, %138, %cst_130 {dimension_numbers = #tpu.dot_dimension_numbers<[1], [0], [0], [1], [0, 0, 1, 1], [], []>} : vector<1x256xf32>, vector<256x256xf32>, vector<1x256xf32> -> vector<1x256xf32>
    %cst_131 = arith.constant 0.001953125 : f32
    %152 = vector.broadcast %cst_131 : f32 to vector<1x256xf32>
    %153 = arith.mulf %151, %152 : vector<1x256xf32>
    %cst_132 = arith.constant 9.99999974E-6 : f32
    %154 = vector.broadcast %cst_132 : f32 to vector<1x256xf32>
    %155 = arith.addf %153, %154 : vector<1x256xf32>
    %156 = math.rsqrt %155 : vector<1x256xf32>
    %157 = arith.mulf %139, %156 : vector<1x256xf32>
    %158 = vector.broadcast %157 : vector<1x256xf32> to vector<32x256xf32>
    %159 = arith.mulf %147, %158 : vector<32x256xf32>
    %160 = vector.broadcast %140 : vector<1x256xf32> to vector<32x256xf32>
    %161 = arith.addf %159, %160 : vector<32x256xf32>
    %cst_133 = arith.constant 0.000000e+00 : f32
    %162 = vector.broadcast %cst_133 : f32 to vector<32x256xf32>
    %163 = arith.maximumf %161, %162 : vector<32x256xf32>
    %c0_134 = arith.constant 0 : index
    %c0_135 = arith.constant 0 : index
    %c0_136 = arith.constant 0 : index
    %164 = vector.load %arg9[%c0_134, %c0_135, %c0_136] : memref<4x64x32xf32, #tpu.memory_space<vmem>>, vector<1x64x32xf32>
    %165 = vector.shape_cast %164 : vector<1x64x32xf32> to vector<64x32xf32>
    %c0_137 = arith.constant 0 : index
    %c0_138 = arith.constant 0 : index
    %c0_139 = arith.constant 0 : index
    %166 = vector.load %arg5[%c0_137, %c0_138, %c0_139] : memref<4x256x256xf32, #tpu.memory_space<vmem>>, vector<1x256x256xf32>
    %167 = vector.shape_cast %166 : vector<1x256x256xf32> to vector<256x256xf32>
    %cst_140 = arith.constant dense<0.000000e+00> : vector<32x256xf32>
    %168 = tpu.matmul %163, %167, %cst_140 {dimension_numbers = #tpu.dot_dimension_numbers<[1], [0], [0], [1], [0, 0, 1, 1], [], []>} : vector<32x256xf32>, vector<256x256xf32>, vector<32x256xf32> -> vector<32x256xf32>
    %cst_141 = arith.constant dense<0.000000e+00> : vector<64x256xf32>
    %169 = tpu.matmul %165, %168, %cst_141 {dimension_numbers = #tpu.dot_dimension_numbers<[1], [0], [0], [1], [0, 0, 1, 1], [], []>} : vector<64x32xf32>, vector<32x256xf32>, vector<64x256xf32> -> vector<64x256xf32>
    %c1_142 = arith.constant 1 : index
    %c0_143 = arith.constant 0 : index
    %c0_144 = arith.constant 0 : index
    %170 = vector.load %arg9[%c1_142, %c0_143, %c0_144] : memref<4x64x32xf32, #tpu.memory_space<vmem>>, vector<1x64x32xf32>
    %171 = vector.shape_cast %170 : vector<1x64x32xf32> to vector<64x32xf32>
    %c1_145 = arith.constant 1 : index
    %c0_146 = arith.constant 0 : index
    %c0_147 = arith.constant 0 : index
    %172 = vector.load %arg5[%c1_145, %c0_146, %c0_147] : memref<4x256x256xf32, #tpu.memory_space<vmem>>, vector<1x256x256xf32>
    %173 = vector.shape_cast %172 : vector<1x256x256xf32> to vector<256x256xf32>
    %cst_148 = arith.constant dense<0.000000e+00> : vector<32x256xf32>
    %174 = tpu.matmul %163, %173, %cst_148 {dimension_numbers = #tpu.dot_dimension_numbers<[1], [0], [0], [1], [0, 0, 1, 1], [], []>} : vector<32x256xf32>, vector<256x256xf32>, vector<32x256xf32> -> vector<32x256xf32>
    %cst_149 = arith.constant dense<0.000000e+00> : vector<64x256xf32>
    %175 = tpu.matmul %171, %174, %cst_149 {dimension_numbers = #tpu.dot_dimension_numbers<[1], [0], [0], [1], [0, 0, 1, 1], [], []>} : vector<64x32xf32>, vector<32x256xf32>, vector<64x256xf32> -> vector<64x256xf32>
    %176 = arith.addf %169, %175 : vector<64x256xf32>
    %c2_150 = arith.constant 2 : index
    %c0_151 = arith.constant 0 : index
    %c0_152 = arith.constant 0 : index
    %177 = vector.load %arg9[%c2_150, %c0_151, %c0_152] : memref<4x64x32xf32, #tpu.memory_space<vmem>>, vector<1x64x32xf32>
    %178 = vector.shape_cast %177 : vector<1x64x32xf32> to vector<64x32xf32>
    %c2_153 = arith.constant 2 : index
    %c0_154 = arith.constant 0 : index
    %c0_155 = arith.constant 0 : index
    %179 = vector.load %arg5[%c2_153, %c0_154, %c0_155] : memref<4x256x256xf32, #tpu.memory_space<vmem>>, vector<1x256x256xf32>
    %180 = vector.shape_cast %179 : vector<1x256x256xf32> to vector<256x256xf32>
    %cst_156 = arith.constant dense<0.000000e+00> : vector<32x256xf32>
    %181 = tpu.matmul %163, %180, %cst_156 {dimension_numbers = #tpu.dot_dimension_numbers<[1], [0], [0], [1], [0, 0, 1, 1], [], []>} : vector<32x256xf32>, vector<256x256xf32>, vector<32x256xf32> -> vector<32x256xf32>
    %cst_157 = arith.constant dense<0.000000e+00> : vector<64x256xf32>
    %182 = tpu.matmul %178, %181, %cst_157 {dimension_numbers = #tpu.dot_dimension_numbers<[1], [0], [0], [1], [0, 0, 1, 1], [], []>} : vector<64x32xf32>, vector<32x256xf32>, vector<64x256xf32> -> vector<64x256xf32>
    %183 = arith.addf %176, %182 : vector<64x256xf32>
    %c3_158 = arith.constant 3 : index
    %c0_159 = arith.constant 0 : index
    %c0_160 = arith.constant 0 : index
    %184 = vector.load %arg9[%c3_158, %c0_159, %c0_160] : memref<4x64x32xf32, #tpu.memory_space<vmem>>, vector<1x64x32xf32>
    %185 = vector.shape_cast %184 : vector<1x64x32xf32> to vector<64x32xf32>
    %c3_161 = arith.constant 3 : index
    %c0_162 = arith.constant 0 : index
    %c0_163 = arith.constant 0 : index
    %186 = vector.load %arg5[%c3_161, %c0_162, %c0_163] : memref<4x256x256xf32, #tpu.memory_space<vmem>>, vector<1x256x256xf32>
    %187 = vector.shape_cast %186 : vector<1x256x256xf32> to vector<256x256xf32>
    %cst_164 = arith.constant dense<0.000000e+00> : vector<32x256xf32>
    %188 = tpu.matmul %163, %187, %cst_164 {dimension_numbers = #tpu.dot_dimension_numbers<[1], [0], [0], [1], [0, 0, 1, 1], [], []>} : vector<32x256xf32>, vector<256x256xf32>, vector<32x256xf32> -> vector<32x256xf32>
    %cst_165 = arith.constant dense<0.000000e+00> : vector<64x256xf32>
    %189 = tpu.matmul %185, %188, %cst_165 {dimension_numbers = #tpu.dot_dimension_numbers<[1], [0], [0], [1], [0, 0, 1, 1], [], []>} : vector<64x32xf32>, vector<32x256xf32>, vector<64x256xf32> -> vector<64x256xf32>
    %190 = arith.addf %183, %189 : vector<64x256xf32>
    %c3_166 = arith.constant 3 : index
    %c0_167 = arith.constant 0 : index
    %c0_168 = arith.constant 0 : index
    %191 = vector.load %arg11[%c3_166, %c0_167, %c0_168] : memref<4x256x256xf32, #tpu.memory_space<vmem>>, vector<1x256x256xf32>
    %192 = vector.shape_cast %191 : vector<1x256x256xf32> to vector<256x256xf32>
    %193 = vector.extract_strided_slice %0 {offsets = [6, 0], sizes = [1, 256], strides = [1, 1]} : vector<8x256xf32> to vector<1x256xf32>
    %194 = vector.extract_strided_slice %0 {offsets = [7, 0], sizes = [1, 256], strides = [1, 1]} : vector<8x256xf32> to vector<1x256xf32>
    %cst_169 = arith.constant 1.000000e+00 : f32
    %195 = vector.broadcast %cst_169 : f32 to vector<1x64xf32>
    %cst_170 = arith.constant dense<0.000000e+00> : vector<1x256xf32>
    %196 = tpu.matmul %195, %190, %cst_170 {dimension_numbers = #tpu.dot_dimension_numbers<[1], [0], [0], [1], [0, 0, 1, 1], [], []>} : vector<1x64xf32>, vector<64x256xf32>, vector<1x256xf32> -> vector<1x256xf32>
    %cst_171 = arith.constant dense<0.000000e+00> : vector<1x256xf32>
    %197 = tpu.matmul %196, %192, %cst_171 {dimension_numbers = #tpu.dot_dimension_numbers<[1], [0], [0], [1], [0, 0, 1, 1], [], []>} : vector<1x256xf32>, vector<256x256xf32>, vector<1x256xf32> -> vector<1x256xf32>
    %cst_172 = arith.constant 4.8828125E-4 : f32
    %198 = vector.broadcast %cst_172 : f32 to vector<1x256xf32>
    %199 = arith.mulf %197, %198 : vector<1x256xf32>
    %200 = vector.broadcast %199 : vector<1x256xf32> to vector<64x256xf32>
    %201 = arith.subf %190, %200 : vector<64x256xf32>
    %202 = arith.mulf %201, %201 : vector<64x256xf32>
    %cst_173 = arith.constant 1.000000e+00 : f32
    %203 = vector.broadcast %cst_173 : f32 to vector<1x64xf32>
    %cst_174 = arith.constant dense<0.000000e+00> : vector<1x256xf32>
    %204 = tpu.matmul %203, %202, %cst_174 {dimension_numbers = #tpu.dot_dimension_numbers<[1], [0], [0], [1], [0, 0, 1, 1], [], []>} : vector<1x64xf32>, vector<64x256xf32>, vector<1x256xf32> -> vector<1x256xf32>
    %cst_175 = arith.constant dense<0.000000e+00> : vector<1x256xf32>
    %205 = tpu.matmul %204, %192, %cst_175 {dimension_numbers = #tpu.dot_dimension_numbers<[1], [0], [0], [1], [0, 0, 1, 1], [], []>} : vector<1x256xf32>, vector<256x256xf32>, vector<1x256xf32> -> vector<1x256xf32>
    %cst_176 = arith.constant 4.8828125E-4 : f32
    %206 = vector.broadcast %cst_176 : f32 to vector<1x256xf32>
    %207 = arith.mulf %205, %206 : vector<1x256xf32>
    %cst_177 = arith.constant 9.99999974E-6 : f32
    %208 = vector.broadcast %cst_177 : f32 to vector<1x256xf32>
    %209 = arith.addf %207, %208 : vector<1x256xf32>
    %210 = math.rsqrt %209 : vector<1x256xf32>
    %211 = arith.mulf %193, %210 : vector<1x256xf32>
    %212 = vector.broadcast %211 : vector<1x256xf32> to vector<64x256xf32>
    %213 = arith.mulf %201, %212 : vector<64x256xf32>
    %214 = vector.broadcast %194 : vector<1x256xf32> to vector<64x256xf32>
    %215 = arith.addf %213, %214 : vector<64x256xf32>
    %cst_178 = arith.constant 0.000000e+00 : f32
    %216 = vector.broadcast %cst_178 : f32 to vector<64x256xf32>
    %217 = arith.maximumf %215, %216 : vector<64x256xf32>
    %c0_179 = arith.constant 0 : index
    %c0_180 = arith.constant 0 : index
    %c0_181 = arith.constant 0 : index
    %218 = vector.load %arg10[%c0_179, %c0_180, %c0_181] : memref<4x128x64xf32, #tpu.memory_space<vmem>>, vector<1x128x64xf32>
    %219 = vector.shape_cast %218 : vector<1x128x64xf32> to vector<128x64xf32>
    %c0_182 = arith.constant 0 : index
    %c0_183 = arith.constant 0 : index
    %c0_184 = arith.constant 0 : index
    %220 = vector.load %arg6[%c0_182, %c0_183, %c0_184] : memref<4x256x64xf32, #tpu.memory_space<vmem>>, vector<1x256x64xf32>
    %221 = vector.shape_cast %220 : vector<1x256x64xf32> to vector<256x64xf32>
    %cst_185 = arith.constant dense<0.000000e+00> : vector<64x64xf32>
    %222 = tpu.matmul %217, %221, %cst_185 {dimension_numbers = #tpu.dot_dimension_numbers<[1], [0], [0], [1], [0, 0, 1, 1], [], []>} : vector<64x256xf32>, vector<256x64xf32>, vector<64x64xf32> -> vector<64x64xf32>
    %cst_186 = arith.constant dense<0.000000e+00> : vector<128x64xf32>
    %223 = tpu.matmul %219, %222, %cst_186 {dimension_numbers = #tpu.dot_dimension_numbers<[1], [0], [0], [1], [0, 0, 1, 1], [], []>} : vector<128x64xf32>, vector<64x64xf32>, vector<128x64xf32> -> vector<128x64xf32>
    %c1_187 = arith.constant 1 : index
    %c0_188 = arith.constant 0 : index
    %c0_189 = arith.constant 0 : index
    %224 = vector.load %arg10[%c1_187, %c0_188, %c0_189] : memref<4x128x64xf32, #tpu.memory_space<vmem>>, vector<1x128x64xf32>
    %225 = vector.shape_cast %224 : vector<1x128x64xf32> to vector<128x64xf32>
    %c1_190 = arith.constant 1 : index
    %c0_191 = arith.constant 0 : index
    %c0_192 = arith.constant 0 : index
    %226 = vector.load %arg6[%c1_190, %c0_191, %c0_192] : memref<4x256x64xf32, #tpu.memory_space<vmem>>, vector<1x256x64xf32>
    %227 = vector.shape_cast %226 : vector<1x256x64xf32> to vector<256x64xf32>
    %cst_193 = arith.constant dense<0.000000e+00> : vector<64x64xf32>
    %228 = tpu.matmul %217, %227, %cst_193 {dimension_numbers = #tpu.dot_dimension_numbers<[1], [0], [0], [1], [0, 0, 1, 1], [], []>} : vector<64x256xf32>, vector<256x64xf32>, vector<64x64xf32> -> vector<64x64xf32>
    %cst_194 = arith.constant dense<0.000000e+00> : vector<128x64xf32>
    %229 = tpu.matmul %225, %228, %cst_194 {dimension_numbers = #tpu.dot_dimension_numbers<[1], [0], [0], [1], [0, 0, 1, 1], [], []>} : vector<128x64xf32>, vector<64x64xf32>, vector<128x64xf32> -> vector<128x64xf32>
    %230 = arith.addf %223, %229 : vector<128x64xf32>
    %c2_195 = arith.constant 2 : index
    %c0_196 = arith.constant 0 : index
    %c0_197 = arith.constant 0 : index
    %231 = vector.load %arg10[%c2_195, %c0_196, %c0_197] : memref<4x128x64xf32, #tpu.memory_space<vmem>>, vector<1x128x64xf32>
    %232 = vector.shape_cast %231 : vector<1x128x64xf32> to vector<128x64xf32>
    %c2_198 = arith.constant 2 : index
    %c0_199 = arith.constant 0 : index
    %c0_200 = arith.constant 0 : index
    %233 = vector.load %arg6[%c2_198, %c0_199, %c0_200] : memref<4x256x64xf32, #tpu.memory_space<vmem>>, vector<1x256x64xf32>
    %234 = vector.shape_cast %233 : vector<1x256x64xf32> to vector<256x64xf32>
    %cst_201 = arith.constant dense<0.000000e+00> : vector<64x64xf32>
    %235 = tpu.matmul %217, %234, %cst_201 {dimension_numbers = #tpu.dot_dimension_numbers<[1], [0], [0], [1], [0, 0, 1, 1], [], []>} : vector<64x256xf32>, vector<256x64xf32>, vector<64x64xf32> -> vector<64x64xf32>
    %cst_202 = arith.constant dense<0.000000e+00> : vector<128x64xf32>
    %236 = tpu.matmul %232, %235, %cst_202 {dimension_numbers = #tpu.dot_dimension_numbers<[1], [0], [0], [1], [0, 0, 1, 1], [], []>} : vector<128x64xf32>, vector<64x64xf32>, vector<128x64xf32> -> vector<128x64xf32>
    %237 = arith.addf %230, %236 : vector<128x64xf32>
    %c3_203 = arith.constant 3 : index
    %c0_204 = arith.constant 0 : index
    %c0_205 = arith.constant 0 : index
    %238 = vector.load %arg10[%c3_203, %c0_204, %c0_205] : memref<4x128x64xf32, #tpu.memory_space<vmem>>, vector<1x128x64xf32>
    %239 = vector.shape_cast %238 : vector<1x128x64xf32> to vector<128x64xf32>
    %c3_206 = arith.constant 3 : index
    %c0_207 = arith.constant 0 : index
    %c0_208 = arith.constant 0 : index
    %240 = vector.load %arg6[%c3_206, %c0_207, %c0_208] : memref<4x256x64xf32, #tpu.memory_space<vmem>>, vector<1x256x64xf32>
    %241 = vector.shape_cast %240 : vector<1x256x64xf32> to vector<256x64xf32>
    %cst_209 = arith.constant dense<0.000000e+00> : vector<64x64xf32>
    %242 = tpu.matmul %217, %241, %cst_209 {dimension_numbers = #tpu.dot_dimension_numbers<[1], [0], [0], [1], [0, 0, 1, 1], [], []>} : vector<64x256xf32>, vector<256x64xf32>, vector<64x64xf32> -> vector<64x64xf32>
    %cst_210 = arith.constant dense<0.000000e+00> : vector<128x64xf32>
    %243 = tpu.matmul %239, %242, %cst_210 {dimension_numbers = #tpu.dot_dimension_numbers<[1], [0], [0], [1], [0, 0, 1, 1], [], []>} : vector<128x64xf32>, vector<64x64xf32>, vector<128x64xf32> -> vector<128x64xf32>
    %244 = arith.addf %237, %243 : vector<128x64xf32>
    %c0_211 = arith.constant 0 : index
    %c0_212 = arith.constant 0 : index
    %245 = vector.load %arg13[%c0_211, %c0_212] : memref<1x1xf32, #tpu.memory_space<vmem>>, vector<1x1xf32>
    %246 = vector.broadcast %245 : vector<1x1xf32> to vector<128x64xf32>
    %247 = arith.addf %244, %246 : vector<128x64xf32>
    %248 = math.tanh %247 : vector<128x64xf32>
    %c0_213 = arith.constant 0 : index
    %c0_214 = arith.constant 0 : index
    %249 = vector.load %arg14[%c0_213, %c0_214] : memref<128x64xf32, #tpu.memory_space<vmem>>, vector<128x64xf32>
    tpu.vector_store %arg14[%c0_213, %c0_214], %248 {strides = array<i32>} : memref<128x64xf32, #tpu.memory_space<vmem>>, vector<128x64xf32>,
    return
  }
}

</mosaic_0001>

<llo_original>
// kernel: tile.67
$region0: #{tile.67}
  #allocation0 [shape = 's32[1]{0}', space=sflag, size = 0x4, scoped, tag = 'scoped memory for tile.67']
  %s0 = inlined_call_operand.vmem [shape: f32[8], index: 0, kind: input, shape index: {}]
  %s1 = inlined_call_operand.vmem [shape: f32[32,8], index: 1, kind: output, shape index: {}]
  // Predicated region
  $region2: #{tile.67} parent=0 // pred_check
    _
  $region3: #{tile.67} parent=0 // pred_check_branch
    %3 = sbr.rel (0) target = $region5
  $region4: #{tile.67} parent=0 // pred_region
    _
  $region5: #{tile.67} parent=0 // pred_fallthru
    _
  %v4 = vld [vmem:[%s0] ss:$0 sm:$0xff]
  %5 = vst [vmem:[%s1] sm:$0xff] %v4
  %s6 = scalar_lea.vmem %s1, 8
  %7 = vst [vmem:[%s6] sm:$0xff] %v4
  %s8 = scalar_lea.vmem %s1, 16
  %9 = vst [vmem:[%s8] sm:$0xff] %v4
  %s10 = scalar_lea.vmem %s1, 24
  %11 = vst [vmem:[%s10] sm:$0xff] %v4

// kernel: tile.78
$region0: #{tile.78}
  %s0 = inlined_call_operand.vmem [shape: f32[32,8], index: 0, kind: input, shape index: {}]
  %s1 = inlined_call_operand.vmem [shape: f32[1,256], index: 1, kind: output, shape index: {}]
  $region1: #{tile.78} parent=0
    #allocation0 [shape = 'u8[8192]{0}', space=vmem, size = 0x2000, scoped, tag = 'scoped mem for output reshape']
    %s2 = smov 3
    %v3 = vld [vmem:[%s0] ss:$16 sm:%s2]
    %vm4 = vcmask 64512
    %5 = vst.msk [vmem:[#allocation0] ss:$8 sm:$0x3] %vm4, %v3
    %s6 = scalar_lea.vmem %s0, 15
    %s7 = smov 3
    %v8 = vld [vmem:[%s6] ss:$16 sm:%s7]
    %9 = vrot.lane.b32.xlu0 %v8, 120
    %v10 = vpop.permute.xlu0 %9
    %vm11 = vcmask 1048512
    %12 = vst.msk [vmem:[#allocation0] ss:$8 sm:$0x3] %vm11, %v10
    %s13 = scalar_lea.vmem %s0, 14
    %s14 = smov 3
    %v15 = vld [vmem:[%s13] ss:$16 sm:%s14]
    %16 = vrot.lane.b32.xlu0 %v15, 112
    %v17 = vpop.permute.xlu0 %16
    %vm18 = vcmask 982912
    %19 = vst.msk [vmem:[#allocation0] ss:$8 sm:$0x3] %vm18, %v17
    %s20 = scalar_lea.vmem %s0, 13
    %s21 = smov 3
    %v22 = vld [vmem:[%s20] ss:$16 sm:%s21]
    %23 = vrot.lane.b32.xlu0 %v22, 104
    %v24 = vpop.permute.xlu0 %23
    %vm25 = vcmask 917312
    %26 = vst.msk [vmem:[#allocation0] ss:$8 sm:$0x3] %vm25, %v24
    %s27 = scalar_lea.vmem %s0, 12
    %s28 = smov 3
    %v29 = vld [vmem:[%s27] ss:$16 sm:%s28]
    %30 = vrot.lane.b32.xlu0 %v29, 96
    %v31 = vpop.permute.xlu0 %30
    %vm32 = vcmask 851712
    %33 = vst.msk [vmem:[#allocation0] ss:$8 sm:$0x3] %vm32, %v31
    %s34 = scalar_lea.vmem %s0, 11
    %s35 = smov 3
    %v36 = vld [vmem:[%s34] ss:$16 sm:%s35]
    %37 = vrot.lane.b32.xlu0 %v36, 88
    %v38 = vpop.permute.xlu0 %37
    %vm39 = vcmask 786112
    %40 = vst.msk [vmem:[#allocation0] ss:$8 sm:$0x3] %vm39, %v38
    %s41 = scalar_lea.vmem %s0, 10
    %s42 = smov 3
    %v43 = vld [vmem:[%s41] ss:$16 sm:%s42]
    %44 = vrot.lane.b32.xlu0 %v43, 80
    %v45 = vpop.permute.xlu0 %44
    %vm46 = vcmask 720512
    %47 = vst.msk [vmem:[#allocation0] ss:$8 sm:$0x3] %vm46, %v45
    %s48 = scalar_lea.vmem %s0, 9
    %s49 = smov 3
    %v50 = vld [vmem:[%s48] ss:$16 sm:%s49]
    %51 = vrot.lane.b32.xlu0 %v50, 72
    %v52 = vpop.permute.xlu0 %51
    %vm53 = vcmask 654912
    %54 = vst.msk [vmem:[#allocation0] ss:$8 sm:$0x3] %vm53, %v52
    %s55 = scalar_lea.vmem %s0, 8
    %s56 = smov 3
    %v57 = vld [vmem:[%s55] ss:$16 sm:%s56]
    %58 = vrot.lane.b32.xlu0 %v57, 64
    %v59 = vpop.permute.xlu0 %58
    %vm60 = vcmask 589312
    %61 = vst.msk [vmem:[#allocation0] ss:$8 sm:$0x3] %vm60, %v59
    %s62 = scalar_lea.vmem %s0, 7
    %s63 = smov 3
    %v64 = vld [vmem:[%s62] ss:$16 sm:%s63]
    %65 = vrot.lane.b32.xlu0 %v64, 56
    %v66 = vpop.permute.xlu0 %65
    %vm67 = vcmask 523712
    %68 = vst.msk [vmem:[#allocation0] ss:$8 sm:$0x3] %vm67, %v66
    %s69 = scalar_lea.vmem %s0, 6
    %s70 = smov 3
    %v71 = vld [vmem:[%s69] ss:$16 sm:%s70]
    %72 = vrot.lane.b32.xlu0 %v71, 48
    %v73 = vpop.permute.xlu0 %72
    %vm74 = vcmask 458112
    %75 = vst.msk [vmem:[#allocation0] ss:$8 sm:$0x3] %vm74, %v73
    %s76 = scalar_lea.vmem %s0, 5
    %s77 = smov 3
    %v78 = vld [vmem:[%s76] ss:$16 sm:%s77]
    %79 = vrot.lane.b32.xlu0 %v78, 40
    %v80 = vpop.permute.xlu0 %79
    %vm81 = vcmask 392512
    %82 = vst.msk [vmem:[#allocation0] ss:$8 sm:$0x3] %vm81, %v80
    %s83 = scalar_lea.vmem %s0, 4
    %s84 = smov 3
    %v85 = vld [vmem:[%s83] ss:$16 sm:%s84]
    %86 = vrot.lane.b32.xlu0 %v85, 32
    %v87 = vpop.permute.xlu0 %86
    %vm88 = vcmask 326912
    %89 = vst.msk [vmem:[#allocation0] ss:$8 sm:$0x3] %vm88, %v87
    %s90 = scalar_lea.vmem %s0, 3
    %s91 = smov 3
    %v92 = vld [vmem:[%s90] ss:$16 sm:%s91]
    %93 = vrot.lane.b32.xlu0 %v92, 24
    %v94 = vpop.permute.xlu0 %93
    %vm95 = vcmask 261312
    %96 = vst.msk [vmem:[#allocation0] ss:$8 sm:$0x3] %vm95, %v94
    %s97 = scalar_lea.vmem %s0, 2
    %s98 = smov 3
    %v99 = vld [vmem:[%s97] ss:$16 sm:%s98]
    %100 = vrot.lane.b32.xlu0 %v99, 16
    %v101 = vpop.permute.xlu0 %100
    %vm102 = vcmask 195712
    %103 = vst.msk [vmem:[#allocation0] ss:$8 sm:$0x3] %vm102, %v101
    %s104 = scalar_lea.vmem %s0, 1
    %s105 = smov 3
    %v106 = vld [vmem:[%s104] ss:$16 sm:%s105]
    %107 = vrot.lane.b32.xlu0 %v106, 8
    %v108 = vpop.permute.xlu0 %107
    %vm109 = vcmask 130112
    %110 = vst.msk [vmem:[#allocation0] ss:$8 sm:$0x3] %vm109, %v108
    %s112 = sshll.u32 1, 1
    %s113 = ssub.s32 %s112, 1
    %v115 = vld [vmem:[#allocation0] sm:%s113]
    %s116 = sshll.u32 1, 1
    %s117 = ssub.s32 %s116, 1
    %118 = vst [vmem:[%s1] sm:%s117] %v115
    %s119 = scalar_lea.vmem [#allocation0], 8
    %v120 = vld [vmem:[%s119] sm:%s113]
    %s121 = sshll.u32 1, 1
    %s122 = ssub.s32 %s121, 1
    %s123 = scalar_lea.vmem %s1, 1
    %124 = vst [vmem:[%s123] sm:%s122] %v120

// kernel: tile.59
$region0: #{tile.59}
  #allocation0 [shape = 's32[1]{0}', space=sflag, size = 0x4, scoped, tag = 'scoped memory for tile.59']
  %s0 = inlined_call_operand.vmem [shape: f32[16], index: 0, kind: input, shape index: {}]
  %s1 = inlined_call_operand.vmem [shape: f32[16,16], index: 1, kind: output, shape index: {}]
  // Predicated region
  $region2: #{tile.59} parent=0 // pred_check
    _
  $region3: #{tile.59} parent=0 // pred_check_branch
    %3 = sbr.rel (0) target = $region5
  $region4: #{tile.59} parent=0 // pred_region
    _
  $region5: #{tile.59} parent=0 // pred_fallthru
    _
  %v4 = vld [vmem:[%s0] ss:$0 sm:$0xff]
  %5 = vst [vmem:[%s1] sm:$0xff] %v4
  %s6 = scalar_lea.vmem %s1, 8
  %7 = vst [vmem:[%s6] sm:$0xff] %v4

// kernel: tile.76
$region0: #{tile.76}
  %s0 = inlined_call_operand.vmem [shape: f32[16,16], index: 0, kind: input, shape index: {}]
  %s1 = inlined_call_operand.vmem [shape: f32[1,256], index: 1, kind: output, shape index: {}]
  $region1: #{tile.76} parent=0
    #allocation0 [shape = 'u8[8192]{0}', space=vmem, size = 0x2000, scoped, tag = 'scoped mem for output reshape']
    %s2 = smov 3
    %v3 = vld [vmem:[%s0] ss:$8 sm:%s2]
    %vm4 = vcmask 130048
    %5 = vst.msk [vmem:[#allocation0] ss:$8 sm:$0x3] %vm4, %v3
    %s6 = scalar_lea.vmem %s0, 7
    %s7 = smov 3
    %v8 = vld [vmem:[%s6] ss:$8 sm:%s7]
    %9 = vrot.lane.b32.xlu0 %v8, 112
    %v10 = vpop.permute.xlu0 %9
    %vm11 = vcmask 1048448
    %12 = vst.msk [vmem:[#allocation0] ss:$8 sm:$0x3] %vm11, %v10
    %s13 = scalar_lea.vmem %s0, 6
    %s14 = smov 3
    %v15 = vld [vmem:[%s13] ss:$8 sm:%s14]
    %16 = vrot.lane.b32.xlu0 %v15, 96
    %v17 = vpop.permute.xlu0 %16
    %vm18 = vcmask 917248
    %19 = vst.msk [vmem:[#allocation0] ss:$8 sm:$0x3] %vm18, %v17
    %s20 = scalar_lea.vmem %s0, 5
    %s21 = smov 3
    %v22 = vld [vmem:[%s20] ss:$8 sm:%s21]
    %23 = vrot.lane.b32.xlu0 %v22, 80
    %v24 = vpop.permute.xlu0 %23
    %vm25 = vcmask 786048
    %26 = vst.msk [vmem:[#allocation0] ss:$8 sm:$0x3] %vm25, %v24
    %s27 = scalar_lea.vmem %s0, 4
    %s28 = smov 3
    %v29 = vld [vmem:[%s27] ss:$8 sm:%s28]
    %30 = vrot.lane.b32.xlu0 %v29, 64
    %v31 = vpop.permute.xlu0 %30
    %vm32 = vcmask 654848
    %33 = vst.msk [vmem:[#allocation0] ss:$8 sm:$0x3] %vm32, %v31
    %s34 = scalar_lea.vmem %s0, 3
    %s35 = smov 3
    %v36 = vld [vmem:[%s34] ss:$8 sm:%s35]
    %37 = vrot.lane.b32.xlu0 %v36, 48
    %v38 = vpop.permute.xlu0 %37
    %vm39 = vcmask 523648
    %40 = vst.msk [vmem:[#allocation0] ss:$8 sm:$0x3] %vm39, %v38
    %s41 = scalar_lea.vmem %s0, 2
    %s42 = smov 3
    %v43 = vld [vmem:[%s41] ss:$8 sm:%s42]
    %44 = vrot.lane.b32.xlu0 %v43, 32
    %v45 = vpop.permute.xlu0 %44
    %vm46 = vcmask 392448
    %47 = vst.msk [vmem:[#allocation0] ss:$8 sm:$0x3] %vm46, %v45
    %s48 = scalar_lea.vmem %s0, 1
    %s49 = smov 3
    %v50 = vld [vmem:[%s48] ss:$8 sm:%s49]
    %51 = vrot.lane.b32.xlu0 %v50, 16
    %v52 = vpop.permute.xlu0 %51
    %vm53 = vcmask 261248
    %54 = vst.msk [vmem:[#allocation0] ss:$8 sm:$0x3] %vm53, %v52
    %s56 = sshll.u32 1, 1
    %s57 = ssub.s32 %s56, 1
    %v59 = vld [vmem:[#allocation0] sm:%s57]
    %s60 = sshll.u32 1, 1
    %s61 = ssub.s32 %s60, 1
    %62 = vst [vmem:[%s1] sm:%s61] %v59
    %s63 = scalar_lea.vmem [#allocation0], 8
    %v64 = vld [vmem:[%s63] sm:%s57]
    %s65 = sshll.u32 1, 1
    %s66 = ssub.s32 %s65, 1
    %s67 = scalar_lea.vmem %s1, 1
    %68 = vst [vmem:[%s67] sm:%s66] %v64

// kernel: tile.51
$region0: #{tile.51}
  #allocation0 [shape = 's32[1]{0}', space=sflag, size = 0x4, scoped, tag = 'scoped memory for tile.51']
  %s0 = inlined_call_operand.vmem [shape: f32[32], index: 0, kind: input, shape index: {}]
  %s1 = inlined_call_operand.vmem [shape: f32[8,32], index: 1, kind: output, shape index: {}]
  // Predicated region
  $region2: #{tile.51} parent=0 // pred_check
    _
  $region3: #{tile.51} parent=0 // pred_check_branch
    %3 = sbr.rel (0) target = $region5
  $region4: #{tile.51} parent=0 // pred_region
    _
  $region5: #{tile.51} parent=0 // pred_fallthru
    _
  %v4 = vld [vmem:[%s0] ss:$0 sm:$0xff]
  %5 = vst [vmem:[%s1] sm:$0xff] %v4

// kernel: tile.74
$region0: #{tile.74}
  %s0 = inlined_call_operand.vmem [shape: f32[8,32], index: 0, kind: input, shape index: {}]
  %s1 = inlined_call_operand.vmem [shape: f32[1,256], index: 1, kind: output, shape index: {}]
  $region1: #{tile.74} parent=0
    #allocation0 [shape = 'u8[8192]{0}', space=vmem, size = 0x2000, scoped, tag = 'scoped mem for output reshape']
    %s2 = smov 3
    %v3 = vld [vmem:[%s0] ss:$4 sm:%s2]
    %vm4 = vcmask 261120
    %5 = vst.msk [vmem:[#allocation0] ss:$8 sm:$0x3] %vm4, %v3
    %s6 = scalar_lea.vmem %s0, 3
    %s7 = smov 3
    %v8 = vld [vmem:[%s6] ss:$4 sm:%s7]
    %9 = vrot.lane.b32.xlu0 %v8, 96
    %v10 = vpop.permute.xlu0 %9
    %vm11 = vcmask 1048320
    %12 = vst.msk [vmem:[#allocation0] ss:$8 sm:$0x3] %vm11, %v10
    %s13 = scalar_lea.vmem %s0, 2
    %s14 = smov 3
    %v15 = vld [vmem:[%s13] ss:$4 sm:%s14]
    %16 = vrot.lane.b32.xlu0 %v15, 64
    %v17 = vpop.permute.xlu0 %16
    %vm18 = vcmask 785920
    %19 = vst.msk [vmem:[#allocation0] ss:$8 sm:$0x3] %vm18, %v17
    %s20 = scalar_lea.vmem %s0, 1
    %s21 = smov 3
    %v22 = vld [vmem:[%s20] ss:$4 sm:%s21]
    %23 = vrot.lane.b32.xlu0 %v22, 32
    %v24 = vpop.permute.xlu0 %23
    %vm25 = vcmask 523520
    %26 = vst.msk [vmem:[#allocation0] ss:$8 sm:$0x3] %vm25, %v24
    %s28 = sshll.u32 1, 1
    %s29 = ssub.s32 %s28, 1
    %v31 = vld [vmem:[#allocation0] sm:%s29]
    %s32 = sshll.u32 1, 1
    %s33 = ssub.s32 %s32, 1
    %34 = vst [vmem:[%s1] sm:%s33] %v31
    %s35 = scalar_lea.vmem [#allocation0], 8
    %v36 = vld [vmem:[%s35] sm:%s29]
    %s37 = sshll.u32 1, 1
    %s38 = ssub.s32 %s37, 1
    %s39 = scalar_lea.vmem %s1, 1
    %40 = vst [vmem:[%s39] sm:%s38] %v36

// kernel: tile.43
$region0: #{tile.43}
  #allocation0 [shape = 's32[1]{0}', space=sflag, size = 0x4, scoped, tag = 'scoped memory for tile.43']
  %s0 = inlined_call_operand.vmem [shape: f32[64], index: 0, kind: input, shape index: {}]
  %s1 = inlined_call_operand.vmem [shape: f32[4,64], index: 1, kind: output, shape index: {}]
  // Predicated region
  $region2: #{tile.43} parent=0 // pred_check
    _
  $region3: #{tile.43} parent=0 // pred_check_branch
    %3 = sbr.rel (0) target = $region5
  $region4: #{tile.43} parent=0 // pred_region
    _
  $region5: #{tile.43} parent=0 // pred_fallthru
    _
  %v4 = vld [vmem:[%s0] ss:$0 sm:$0xff]
  %5 = vst [vmem:[%s1] sm:$0xf] %v4

// kernel: tile.72
$region0: #{tile.72}
  %s0 = inlined_call_operand.vmem [shape: f32[4,64], index: 0, kind: input, shape index: {}]
  %s1 = inlined_call_operand.vmem [shape: f32[1,256], index: 1, kind: output, shape index: {}]
  $region1: #{tile.72} parent=0
    #allocation0 [shape = 'u8[8192]{0}', space=vmem, size = 0x2000, scoped, tag = 'scoped mem for output reshape']
    #allocation1 [shape = 'u8[4096]{0}', space=vmem, size = 0x1000, scoped, tag = 'scoped mem for input reshape']
    %s3 = sshll.u32 1, 4
    %s4 = ssub.s32 %s3, 1
    %v5 = vld [vmem:[%s0] sm:%s4]
    %6 = vst [vmem:[#allocation1] sm:%s4] %v5
    %s7 = smov 3
    %v8 = vld [vmem:[#allocation1] ss:$2 sm:%s7]
    %vm9 = vcmask 523264
    %10 = vst.msk [vmem:[#allocation0] ss:$8 sm:$0x3] %vm9, %v8
    %s11 = scalar_lea.vmem [#allocation1], 1
    %s12 = smov 3
    %v13 = vld [vmem:[%s11] ss:$2 sm:%s12]
    %14 = vrot.lane.b32.xlu0 %v13, 64
    %v15 = vpop.permute.xlu0 %14
    %vm16 = vcmask 1048064
    %17 = vst.msk [vmem:[#allocation0] ss:$8 sm:$0x3] %vm16, %v15
    %s19 = sshll.u32 1, 1
    %s20 = ssub.s32 %s19, 1
    %v22 = vld [vmem:[#allocation0] sm:%s20]
    %s23 = sshll.u32 1, 1
    %s24 = ssub.s32 %s23, 1
    %25 = vst [vmem:[%s1] sm:%s24] %v22
    %s26 = scalar_lea.vmem [#allocation0], 8
    %v27 = vld [vmem:[%s26] sm:%s20]
    %s28 = sshll.u32 1, 1
    %s29 = ssub.s32 %s28, 1
    %s30 = scalar_lea.vmem %s1, 1
    %31 = vst [vmem:[%s30] sm:%s29] %v27

// kernel: generator_forward.1
$region0: #{generator_forward.1}
  #allocation0 [shape = 'u32[]', space=smem, size = 0x4, offset = 0x4, fixed_abs, tag = 'smem constant byte address 0x4 - core index']
  #allocation1 [shape = 'u32[144,128]{1,0:T(1,128)}', space=vmem, size = 0x12000, scoped, tag = 'internal scratch']
  #allocation2 [shape = 'f32[1,1]{1,0:T(1,128)S(1)}', space=vmem, size = 0x200, scoped, tag = 'scoped memory for generator_forward.1']
  %s0 = inlined_call_operand.vmem [shape: f32[2,100], index: 0, kind: input, shape index: {}]
  %s1 = inlined_call_operand.vmem [shape: f32[4,100,256], index: 1, kind: input, shape index: {}]
  %s2 = inlined_call_operand.vmem [shape: f32[4,8,2], index: 2, kind: input, shape index: {}]
  %s3 = inlined_call_operand.vmem [shape: f32[4,256,256], index: 3, kind: input, shape index: {}]
  %s4 = inlined_call_operand.vmem [shape: f32[4,256,256], index: 4, kind: input, shape index: {}]
  %s5 = inlined_call_operand.vmem [shape: f32[4,256,256], index: 5, kind: input, shape index: {}]
  %s6 = inlined_call_operand.vmem [shape: f32[4,256,64], index: 6, kind: input, shape index: {}]
  %s7 = inlined_call_operand.vmem [shape: f32[4,16,8], index: 7, kind: input, shape index: {}]
  %s8 = inlined_call_operand.vmem [shape: f32[4,32,16], index: 8, kind: input, shape index: {}]
  %s9 = inlined_call_operand.vmem [shape: f32[4,64,32], index: 9, kind: input, shape index: {}]
  %s10 = inlined_call_operand.vmem [shape: f32[4,128,64], index: 10, kind: input, shape index: {}]
  %s11 = inlined_call_operand.vmem [shape: f32[4,256,256], index: 11, kind: input, shape index: {}]
  %s12 = inlined_call_operand.vmem [shape: f32[8,256], index: 12, kind: input, shape index: {}]
  %s13 = inlined_call_operand.<no memory space> [shape: f32[1,1], index: 13, kind: input, shape index: {}]
  %s14 = inlined_call_operand.hbm [shape: f32[128,64], index: 14, kind: output, shape index: {}]
  %s15 = sld [smem:[#allocation0]]
  $region66: #{generator_forward.1} parent=0
    _
  %s17 = ssub.s32 1, %s15
  %s18 = scalar_select 0, %s17, %s15
  %v19 = vstv %s13
  %20 = vst [vmem:[#allocation2] sm:$0x1] %v19
  $region1: #{generator_forward.1} parent=0
    #allocation3 [shape = 'u8[65536]{0}', space=vmem, size = 0x10000, scoped, tag = 'output window, operand 0, single buffered']
    #allocation4 [shape = 's32[1]{0}', space=sflag, size = 0x4, scoped, tag = 'scoped memory for generator_forward.1']
    %21 = vsyncpa [#allocation4], 0
    // Predicated region
    $region2: #{generator_forward.1} parent=1 // pred_check
      _
    $region3: #{generator_forward.1} parent=1 // pred_check_branch
      %23 = sbr.rel (0) target = $region5
    $region4: #{generator_forward.1} parent=1 // pred_region
      _
    $region5: #{generator_forward.1} parent=1 // pred_fallthru
      _
    // Predicated region
    $region6: #{generator_forward.1} parent=1 // pred_check
      _
    $region7: #{generator_forward.1} parent=1 // pred_check_branch
      %25 = sbr.rel (0) target = $region9
    $region8: #{generator_forward.1} parent=1 // pred_region
      _
    $region9: #{generator_forward.1} parent=1 // pred_fallthru
      _
    // Predicated region
    $region10: #{generator_forward.1} parent=1 // pred_check
      _
    $region11: #{generator_forward.1} parent=1 // pred_check_branch
      %27 = sbr.rel (0) target = $region13
    $region12: #{generator_forward.1} parent=1 // pred_region
      _
    $region13: #{generator_forward.1} parent=1 // pred_fallthru
      _
    // Predicated region
    $region14: #{generator_forward.1} parent=1 // pred_check
      _
    $region15: #{generator_forward.1} parent=1 // pred_check_branch
      %29 = sbr.rel (0) target = $region17
    $region16: #{generator_forward.1} parent=1 // pred_region
      _
    $region17: #{generator_forward.1} parent=1 // pred_fallthru
      _
    // Predicated region
    $region18: #{generator_forward.1} parent=1 // pred_check
      _
    $region19: #{generator_forward.1} parent=1 // pred_check_branch
      %31 = sbr.rel (0) target = $region21
    $region20: #{generator_forward.1} parent=1 // pred_region
      _
    $region21: #{generator_forward.1} parent=1 // pred_fallthru
      _
    // Predicated region
    $region22: #{generator_forward.1} parent=1 // pred_check
      _
    $region23: #{generator_forward.1} parent=1 // pred_check_branch
      %33 = sbr.rel (0) target = $region25
    $region24: #{generator_forward.1} parent=1 // pred_region
      _
    $region25: #{generator_forward.1} parent=1 // pred_fallthru
      _
    // Predicated region
    $region26: #{generator_forward.1} parent=1 // pred_check
      _
    $region27: #{generator_forward.1} parent=1 // pred_check_branch
      %35 = sbr.rel (0) target = $region29
    $region28: #{generator_forward.1} parent=1 // pred_region
      _
    $region29: #{generator_forward.1} parent=1 // pred_fallthru
      _
    // Predicated region
    $region30: #{generator_forward.1} parent=1 // pred_check
      _
    $region31: #{generator_forward.1} parent=1 // pred_check_branch
      %37 = sbr.rel (0) target = $region33
    $region32: #{generator_forward.1} parent=1 // pred_region
      _
    $region33: #{generator_forward.1} parent=1 // pred_fallthru
      _
    // Predicated region
    $region34: #{generator_forward.1} parent=1 // pred_check
      _
    $region35: #{generator_forward.1} parent=1 // pred_check_branch
      %39 = sbr.rel (0) target = $region37
    $region36: #{generator_forward.1} parent=1 // pred_region
      _
    $region37: #{generator_forward.1} parent=1 // pred_fallthru
      _
    // Predicated region
    $region38: #{generator_forward.1} parent=1 // pred_check
      _
    $region39: #{generator_forward.1} parent=1 // pred_check_branch
      %41 = sbr.rel (0) target = $region41
    $region40: #{generator_forward.1} parent=1 // pred_region
      _
    $region41: #{generator_forward.1} parent=1 // pred_fallthru
      _
    // Predicated region
    $region42: #{generator_forward.1} parent=1 // pred_check
      _
    $region43: #{generator_forward.1} parent=1 // pred_check_branch
      %43 = sbr.rel (0) target = $region45
    $region44: #{generator_forward.1} parent=1 // pred_region
      _
    $region45: #{generator_forward.1} parent=1 // pred_fallthru
      _
    // Predicated region
    $region46: #{generator_forward.1} parent=1 // pred_check
      _
    $region47: #{generator_forward.1} parent=1 // pred_check_branch
      %45 = sbr.rel (0) target = $region49
    $region48: #{generator_forward.1} parent=1 // pred_region
      _
    $region49: #{generator_forward.1} parent=1 // pred_fallthru
      _
    // Predicated region
    $region50: #{generator_forward.1} parent=1 // pred_check
      _
    $region51: #{generator_forward.1} parent=1 // pred_check_branch
      %47 = sbr.rel (0) target = $region53
    $region52: #{generator_forward.1} parent=1 // pred_region
      _
    $region53: #{generator_forward.1} parent=1 // pred_fallthru
      _
    // Predicated region
    $region54: #{generator_forward.1} parent=1 // pred_check
      _
    $region55: #{generator_forward.1} parent=1 // pred_check_branch
      %49 = sbr.rel (0) target = $region57
    $region56: #{generator_forward.1} parent=1 // pred_region
      _
    $region57: #{generator_forward.1} parent=1 // pred_fallthru
      _
    %v50 = vld [vmem:[%s12] sm:$0xff]
    %v51 = vld [vmem:[%s12 + $0x8] sm:$0xff]
    %v52 = vld [vmem:[%s0] sm:$0x3]
    %v53 = vld [vmem:[%s2] sm:$0xff]
    %v54 = vld [vmem:[%s1] sm:$0xff]
    %v55 = vld [vmem:[%s1 + $0x8] sm:$0xff]
    %v56 = vld [vmem:[%s1 + $0x10] sm:$0xff]
    %v57 = vld [vmem:[%s1 + $0x18] sm:$0xff]
    %v58 = vld [vmem:[%s1 + $0x20] sm:$0xff]
    %v59 = vld [vmem:[%s1 + $0x28] sm:$0xff]
    %v60 = vld [vmem:[%s1 + $0x30] sm:$0xff]
    %v61 = vld [vmem:[%s1 + $0x38] sm:$0xff]
    %v62 = vld [vmem:[%s1 + $0x40] sm:$0xff]
    %v63 = vld [vmem:[%s1 + $0x48] sm:$0xff]
    %v64 = vld [vmem:[%s1 + $0x50] sm:$0xff]
    %v65 = vld [vmem:[%s1 + $0x58] sm:$0xff]
    %v66 = vld [vmem:[%s1 + $0x60] sm:$0xff]
    %v67 = vld [vmem:[%s1 + $0x68] sm:$0xff]
    %v68 = vld [vmem:[%s1 + $0x70] sm:$0xff]
    %v69 = vld [vmem:[%s1 + $0x78] sm:$0xff]
    %v70 = vld [vmem:[%s1 + $0x80] sm:$0xff]
    %v71 = vld [vmem:[%s1 + $0x88] sm:$0xff]
    %v72 = vld [vmem:[%s1 + $0x90] sm:$0xff]
    %v73 = vld [vmem:[%s1 + $0x98] sm:$0xff]
    %v74 = vld [vmem:[%s1 + $0xa0] sm:$0xff]
    %v75 = vld [vmem:[%s1 + $0xa8] sm:$0xff]
    %v76 = vld [vmem:[%s1 + $0xb0] sm:$0xff]
    %v77 = vld [vmem:[%s1 + $0xb8] sm:$0xff]
    %v78 = vld [vmem:[%s1 + $0xc0] sm:$0xf]
    %v79 = vld [vmem:[%s1 + $0xc8] sm:$0xf]
    %vm80 = vcmask 818176
    %v82 = vsel %vm80, %v52, 0
    %vm84 = vcmask 1043456
    %v86 = vsel %vm84, %v78, 0
    %v89 = vsel %vm84, %v79, 0
    %91 = vmatprep.subr.mxu0 0.0
    %92 = vmatpush1.msra.mxu0 0.0
    %93 = vmatprep.subr.mxu0 0.0
    %94 = vmatpush1.msra.mxu0 0.0
    %95 = vmatprep.subr.mxu0 0.0
    %96 = vmatpush1.msra.mxu0 0.0
    %97 = vmatprep.subr.mxu0 %v89
    %98 = vmatpush1.msra.mxu0 %v86
    %99 = vmatprep.subr.mxu0 %v77
    %100 = vmatpush1.msra.mxu0 %v76
    %101 = vmatprep.subr.mxu0 %v75
    %102 = vmatpush1.msra.mxu0 %v74
    %103 = vmatprep.subr.mxu0 %v73
    %104 = vmatpush1.msra.mxu0 %v72
    %105 = vmatprep.subr.mxu0 %v71
    %106 = vmatpush1.msra.mxu0 %v70
    %107 = vmatprep.subr.mxu0 %v69
    %108 = vmatpush1.msra.mxu0 %v68
    %109 = vmatprep.subr.mxu0 %v67
    %110 = vmatpush1.msra.mxu0 %v66
    %111 = vmatprep.subr.mxu0 %v65
    %112 = vmatpush1.msra.mxu0 %v64
    %113 = vmatprep.subr.mxu0 %v63
    %114 = vmatpush1.msra.mxu0 %v62
    %115 = vmatprep.subr.mxu0 %v61
    %116 = vmatpush1.msra.mxu0 %v60
    %117 = vmatprep.subr.mxu0 %v59
    %118 = vmatpush1.msra.mxu0 %v58
    %119 = vmatprep.subr.mxu0 %v57
    %120 = vmatpush1.msra.mxu0 %v56
    %121 = vmatprep.subr.mxu0 %v55
    %122 = vmatpush1.msra.mxu0 %v54
    %123 = vmatprep.subr.mxu0 0.0
    %124 = vmatpush2.msra.mxu0 0.0
    %125 = vmatprep.subr.mxu0 0.0
    %126 = vmatpush2.msra.mxu0 0.0
    %127 = vmatprep.subr.mxu0 0.0
    %128 = vmatpush2.msra.mxu0 0.0
    %129 = vmatprep.subr.mxu0 0.0
    %130 = vmatpush2.msra.mxu0 0.0
    %131 = vmatprep.subr.mxu0 0.0
    %132 = vmatpush2.msra.mxu0 0.0
    %133 = vmatprep.subr.mxu0 0.0
    %134 = vmatpush2.msra.mxu0 0.0
    %135 = vmatprep.subr.mxu0 0.0
    %136 = vmatpush2.msra.mxu0 0.0
    %137 = vmatprep.subr.mxu0 0.0
    %138 = vmatpush2.msra.mxu0 0.0
    %139 = vmatprep.subr.mxu0 0.0
    %140 = vmatpush2.msra.mxu0 0.0
    %141 = vmatprep.subr.mxu0 0.0
    %142 = vmatpush2.msra.mxu0 0.0
    %143 = vmatprep.subr.mxu0 0.0
    %144 = vmatpush2.msra.mxu0 0.0
    %145 = vmatprep.subr.mxu0 0.0
    %146 = vmatpush2.msra.mxu0 0.0
    %147 = vmatprep.subr.mxu0 0.0
    %148 = vmatpush2.msra.mxu0 0.0
    %149 = vmatprep.subr.mxu0 0.0
    %150 = vmatpush2.msra.mxu0 0.0
    %151 = vmatprep.subr.mxu0 0.0
    %152 = vmatpush2.msra.mxu0 0.0
    %153 = vmatprep.subr.mxu0 0.0
    %154 = vmatpush2.msra.mxu0 0.0
    %155 = vmatprep.mubr.f32.mxu0 0.0
    %156 = vmatmul.mubr.f32.gmra.mxu0 %v82
    %v157 = vpop.f32.mrf.mxu0
    %v158 = vadd.f32 0.0, %v157
    %v159 = vpop.f32.mrf.mxu0
    %v160 = vadd.f32 0.0, %v159
    %161 = vdwg.mxu0
    %s162 = scalar_lea.vmem %s2, 8
    %v163 = vld [vmem:[%s162] sm:$0xff]
    %s164 = scalar_lea.vmem %s1, 208
    %v165 = vld [vmem:[%s164] sm:$0xff]
    %v166 = vld [vmem:[%s164 + $0x8] sm:$0xff]
    %v167 = vld [vmem:[%s164 + $0x10] sm:$0xff]
    %v168 = vld [vmem:[%s164 + $0x18] sm:$0xff]
    %v169 = vld [vmem:[%s164 + $0x20] sm:$0xff]
    %v170 = vld [vmem:[%s164 + $0x28] sm:$0xff]
    %v171 = vld [vmem:[%s164 + $0x30] sm:$0xff]
    %v172 = vld [vmem:[%s164 + $0x38] sm:$0xff]
    %v173 = vld [vmem:[%s164 + $0x40] sm:$0xff]
    %v174 = vld [vmem:[%s164 + $0x48] sm:$0xff]
    %v175 = vld [vmem:[%s164 + $0x50] sm:$0xff]
    %v176 = vld [vmem:[%s164 + $0x58] sm:$0xff]
    %v177 = vld [vmem:[%s164 + $0x60] sm:$0xff]
    %v178 = vld [vmem:[%s164 + $0x68] sm:$0xff]
    %v179 = vld [vmem:[%s164 + $0x70] sm:$0xff]
    %v180 = vld [vmem:[%s164 + $0x78] sm:$0xff]
    %v181 = vld [vmem:[%s164 + $0x80] sm:$0xff]
    %v182 = vld [vmem:[%s164 + $0x88] sm:$0xff]
    %v183 = vld [vmem:[%s164 + $0x90] sm:$0xff]
    %v184 = vld [vmem:[%s164 + $0x98] sm:$0xff]
    %v185 = vld [vmem:[%s164 + $0xa0] sm:$0xff]
    %v186 = vld [vmem:[%s164 + $0xa8] sm:$0xff]
    %v187 = vld [vmem:[%s164 + $0xb0] sm:$0xff]
    %v188 = vld [vmem:[%s164 + $0xb8] sm:$0xff]
    %v189 = vld [vmem:[%s164 + $0xc0] sm:$0xf]
    %v190 = vld [vmem:[%s164 + $0xc8] sm:$0xf]
    %v192 = vsel %vm84, %v189, 0
    %v195 = vsel %vm84, %v190, 0
    %197 = vmatprep.subr.mxu0 0.0
    %198 = vmatpush1.msra.mxu0 0.0
    %199 = vmatprep.subr.mxu0 0.0
    %200 = vmatpush1.msra.mxu0 0.0
    %201 = vmatprep.subr.mxu0 0.0
    %202 = vmatpush1.msra.mxu0 0.0
    %203 = vmatprep.subr.mxu0 %v195
    %204 = vmatpush1.msra.mxu0 %v192
    %205 = vmatprep.subr.mxu0 %v188
    %206 = vmatpush1.msra.mxu0 %v187
    %207 = vmatprep.subr.mxu0 %v186
    %208 = vmatpush1.msra.mxu0 %v185
    %209 = vmatprep.subr.mxu0 %v184
    %210 = vmatpush1.msra.mxu0 %v183
    %211 = vmatprep.subr.mxu0 %v182
    %212 = vmatpush1.msra.mxu0 %v181
    %213 = vmatprep.subr.mxu0 %v180
    %214 = vmatpush1.msra.mxu0 %v179
    %215 = vmatprep.subr.mxu0 %v178
    %216 = vmatpush1.msra.mxu0 %v177
    %217 = vmatprep.subr.mxu0 %v176
    %218 = vmatpush1.msra.mxu0 %v175
    %219 = vmatprep.subr.mxu0 %v174
    %220 = vmatpush1.msra.mxu0 %v173
    %221 = vmatprep.subr.mxu0 %v172
    %222 = vmatpush1.msra.mxu0 %v171
    %223 = vmatprep.subr.mxu0 %v170
    %224 = vmatpush1.msra.mxu0 %v169
    %225 = vmatprep.subr.mxu0 %v168
    %226 = vmatpush1.msra.mxu0 %v167
    %227 = vmatprep.subr.mxu0 %v166
    %228 = vmatpush1.msra.mxu0 %v165
    %229 = vmatprep.subr.mxu0 0.0
    %230 = vmatpush2.msra.mxu0 0.0
    %231 = vmatprep.subr.mxu0 0.0
    %232 = vmatpush2.msra.mxu0 0.0
    %233 = vmatprep.subr.mxu0 0.0
    %234 = vmatpush2.msra.mxu0 0.0
    %235 = vmatprep.subr.mxu0 0.0
    %236 = vmatpush2.msra.mxu0 0.0
    %237 = vmatprep.subr.mxu0 0.0
    %238 = vmatpush2.msra.mxu0 0.0
    %239 = vmatprep.subr.mxu0 0.0
    %240 = vmatpush2.msra.mxu0 0.0
    %241 = vmatprep.subr.mxu0 0.0
    %242 = vmatpush2.msra.mxu0 0.0
    %243 = vmatprep.subr.mxu0 0.0
    %244 = vmatpush2.msra.mxu0 0.0
    %245 = vmatprep.subr.mxu0 0.0
    %246 = vmatpush2.msra.mxu0 0.0
    %247 = vmatprep.subr.mxu0 0.0
    %248 = vmatpush2.msra.mxu0 0.0
    %249 = vmatprep.subr.mxu0 0.0
    %250 = vmatpush2.msra.mxu0 0.0
    %251 = vmatprep.subr.mxu0 0.0
    %252 = vmatpush2.msra.mxu0 0.0
    %253 = vmatprep.subr.mxu0 0.0
    %254 = vmatpush2.msra.mxu0 0.0
    %255 = vmatprep.subr.mxu0 0.0
    %256 = vmatpush2.msra.mxu0 0.0
    %257 = vmatprep.subr.mxu0 0.0
    %258 = vmatpush2.msra.mxu0 0.0
    %259 = vmatprep.subr.mxu0 0.0
    %260 = vmatpush2.msra.mxu0 0.0
    %261 = vmatprep.mubr.f32.mxu0 0.0
    %262 = vmatmul.mubr.f32.gmra.mxu0 %v82
    %v263 = vpop.f32.mrf.mxu0
    %v264 = vadd.f32 0.0, %v263
    %v265 = vpop.f32.mrf.mxu0
    %v266 = vadd.f32 0.0, %v265
    %267 = vdwg.mxu0
    %vm268 = vcmask 15360
    %v270 = vsel %vm268, %v163, 0
    %vm272 = vcmask 1041408
    %v274 = vsel %vm272, %v264, 0
    %v277 = vsel %vm272, %v266, 0
    %279 = vmatprep.subr.mxu0 0.0
    %280 = vmatpush1.msra.mxu0 0.0
    %281 = vmatprep.subr.mxu0 0.0
    %282 = vmatpush1.msra.mxu0 0.0
    %283 = vmatprep.subr.mxu0 0.0
    %284 = vmatpush1.msra.mxu0 0.0
    %285 = vmatprep.subr.mxu0 0.0
    %286 = vmatpush1.msra.mxu0 0.0
    %287 = vmatprep.subr.mxu0 0.0
    %288 = vmatpush1.msra.mxu0 0.0
    %289 = vmatprep.subr.mxu0 0.0
    %290 = vmatpush1.msra.mxu0 0.0
    %291 = vmatprep.subr.mxu0 0.0
    %292 = vmatpush1.msra.mxu0 0.0
    %293 = vmatprep.subr.mxu0 0.0
    %294 = vmatpush1.msra.mxu0 0.0
    %295 = vmatprep.subr.mxu0 0.0
    %296 = vmatpush1.msra.mxu0 0.0
    %297 = vmatprep.subr.mxu0 0.0
    %298 = vmatpush1.msra.mxu0 0.0
    %299 = vmatprep.subr.mxu0 0.0
    %300 = vmatpush1.msra.mxu0 0.0
    %301 = vmatprep.subr.mxu0 0.0
    %302 = vmatpush1.msra.mxu0 0.0
    %303 = vmatprep.subr.mxu0 0.0
    %304 = vmatpush1.msra.mxu0 0.0
    %305 = vmatprep.subr.mxu0 0.0
    %306 = vmatpush1.msra.mxu0 0.0
    %307 = vmatprep.subr.mxu0 0.0
    %308 = vmatpush1.msra.mxu0 0.0
    %309 = vmatprep.subr.mxu0 %v277
    %310 = vmatpush1.msra.mxu0 %v274
    %311 = vmatprep.subr.mxu0 0.0
    %312 = vmatpush2.msra.mxu0 0.0
    %313 = vmatprep.subr.mxu0 0.0
    %314 = vmatpush2.msra.mxu0 0.0
    %315 = vmatprep.subr.mxu0 0.0
    %316 = vmatpush2.msra.mxu0 0.0
    %317 = vmatprep.subr.mxu0 0.0
    %318 = vmatpush2.msra.mxu0 0.0
    %319 = vmatprep.subr.mxu0 0.0
    %320 = vmatpush2.msra.mxu0 0.0
    %321 = vmatprep.subr.mxu0 0.0
    %322 = vmatpush2.msra.mxu0 0.0
    %323 = vmatprep.subr.mxu0 0.0
    %324 = vmatpush2.msra.mxu0 0.0
    %325 = vmatprep.subr.mxu0 0.0
    %326 = vmatpush2.msra.mxu0 0.0
    %327 = vmatprep.subr.mxu0 0.0
    %328 = vmatpush2.msra.mxu0 0.0
    %329 = vmatprep.subr.mxu0 0.0
    %330 = vmatpush2.msra.mxu0 0.0
    %331 = vmatprep.subr.mxu0 0.0
    %332 = vmatpush2.msra.mxu0 0.0
    %333 = vmatprep.subr.mxu0 0.0
    %334 = vmatpush2.msra.mxu0 0.0
    %335 = vmatprep.subr.mxu0 0.0
    %336 = vmatpush2.msra.mxu0 0.0
    %337 = vmatprep.subr.mxu0 0.0
    %338 = vmatpush2.msra.mxu0 0.0
    %339 = vmatprep.subr.mxu0 0.0
    %340 = vmatpush2.msra.mxu0 0.0
    %341 = vmatprep.subr.mxu0 0.0
    %342 = vmatpush2.msra.mxu0 0.0
    %343 = vmatprep.mubr.f32.mxu0 0.0
    %344 = vmatmul.mubr.f32.gmra.mxu0 %v270
    %v345 = vpop.f32.mrf.mxu0
    %v346 = vadd.f32 0.0, %v345
    %v347 = vpop.f32.mrf.mxu0
    %v348 = vadd.f32 0.0, %v347
    %349 = vdwg.mxu0
    %v351 = vsel %vm268, %v53, 0
    %v354 = vsel %vm272, %v158, 0
    %v357 = vsel %vm272, %v160, 0
    %359 = vmatprep.subr.mxu0 0.0
    %360 = vmatpush1.msra.mxu0 0.0
    %361 = vmatprep.subr.mxu0 0.0
    %362 = vmatpush1.msra.mxu0 0.0
    %363 = vmatprep.subr.mxu0 0.0
    %364 = vmatpush1.msra.mxu0 0.0
    %365 = vmatprep.subr.mxu0 0.0
    %366 = vmatpush1.msra.mxu0 0.0
    %367 = vmatprep.subr.mxu0 0.0
    %368 = vmatpush1.msra.mxu0 0.0
    %369 = vmatprep.subr.mxu0 0.0
    %370 = vmatpush1.msra.mxu0 0.0
    %371 = vmatprep.subr.mxu0 0.0
    %372 = vmatpush1.msra.mxu0 0.0
    %373 = vmatprep.subr.mxu0 0.0
    %374 = vmatpush1.msra.mxu0 0.0
    %375 = vmatprep.subr.mxu0 0.0
    %376 = vmatpush1.msra.mxu0 0.0
    %377 = vmatprep.subr.mxu0 0.0
    %378 = vmatpush1.msra.mxu0 0.0
    %379 = vmatprep.subr.mxu0 0.0
    %380 = vmatpush1.msra.mxu0 0.0
    %381 = vmatprep.subr.mxu0 0.0
    %382 = vmatpush1.msra.mxu0 0.0
    %383 = vmatprep.subr.mxu0 0.0
    %384 = vmatpush1.msra.mxu0 0.0
    %385 = vmatprep.subr.mxu0 0.0
    %386 = vmatpush1.msra.mxu0 0.0
    %387 = vmatprep.subr.mxu0 0.0
    %388 = vmatpush1.msra.mxu0 0.0
    %389 = vmatprep.subr.mxu0 %v357
    %390 = vmatpush1.msra.mxu0 %v354
    %391 = vmatprep.subr.mxu0 0.0
    %392 = vmatpush2.msra.mxu0 0.0
    %393 = vmatprep.subr.mxu0 0.0
    %394 = vmatpush2.msra.mxu0 0.0
    %395 = vmatprep.subr.mxu0 0.0
    %396 = vmatpush2.msra.mxu0 0.0
    %397 = vmatprep.subr.mxu0 0.0
    %398 = vmatpush2.msra.mxu0 0.0
    %399 = vmatprep.subr.mxu0 0.0
    %400 = vmatpush2.msra.mxu0 0.0
    %401 = vmatprep.subr.mxu0 0.0
    %402 = vmatpush2.msra.mxu0 0.0
    %403 = vmatprep.subr.mxu0 0.0
    %404 = vmatpush2.msra.mxu0 0.0
    %405 = vmatprep.subr.mxu0 0.0
    %406 = vmatpush2.msra.mxu0 0.0
    %407 = vmatprep.subr.mxu0 0.0
    %408 = vmatpush2.msra.mxu0 0.0
    %409 = vmatprep.subr.mxu0 0.0
    %410 = vmatpush2.msra.mxu0 0.0
    %411 = vmatprep.subr.mxu0 0.0
    %412 = vmatpush2.msra.mxu0 0.0
    %413 = vmatprep.subr.mxu0 0.0
    %414 = vmatpush2.msra.mxu0 0.0
    %415 = vmatprep.subr.mxu0 0.0
    %416 = vmatpush2.msra.mxu0 0.0
    %417 = vmatprep.subr.mxu0 0.0
    %418 = vmatpush2.msra.mxu0 0.0
    %419 = vmatprep.subr.mxu0 0.0
    %420 = vmatpush2.msra.mxu0 0.0
    %421 = vmatprep.subr.mxu0 0.0
    %422 = vmatpush2.msra.mxu0 0.0
    %423 = vmatprep.mubr.f32.mxu0 0.0
    %424 = vmatmul.mubr.f32.gmra.mxu0 %v351
    %v425 = vpop.f32.mrf.mxu0
    %v426 = vadd.f32 %v346, %v425
    %v427 = vpop.f32.mrf.mxu0
    %v428 = vadd.f32 %v348, %v427
    %429 = vdwg.mxu0
    %s430 = scalar_lea.vmem %s2, 16
    %v431 = vld [vmem:[%s430] sm:$0xff]
    %s432 = scalar_lea.vmem %s1, 416
    %v433 = vld [vmem:[%s432] sm:$0xff]
    %v434 = vld [vmem:[%s432 + $0x8] sm:$0xff]
    %v435 = vld [vmem:[%s432 + $0x10] sm:$0xff]
    %v436 = vld [vmem:[%s432 + $0x18] sm:$0xff]
    %v437 = vld [vmem:[%s432 + $0x20] sm:$0xff]
    %v438 = vld [vmem:[%s432 + $0x28] sm:$0xff]
    %v439 = vld [vmem:[%s432 + $0x30] sm:$0xff]
    %v440 = vld [vmem:[%s432 + $0x38] sm:$0xff]
    %v441 = vld [vmem:[%s432 + $0x40] sm:$0xff]
    %v442 = vld [vmem:[%s432 + $0x48] sm:$0xff]
    %v443 = vld [vmem:[%s432 + $0x50] sm:$0xff]
    %v444 = vld [vmem:[%s432 + $0x58] sm:$0xff]
    %v445 = vld [vmem:[%s432 + $0x60] sm:$0xff]
    %v446 = vld [vmem:[%s432 + $0x68] sm:$0xff]
    %v447 = vld [vmem:[%s432 + $0x70] sm:$0xff]
    %v448 = vld [vmem:[%s432 + $0x78] sm:$0xff]
    %v449 = vld [vmem:[%s432 + $0x80] sm:$0xff]
    %v450 = vld [vmem:[%s432 + $0x88] sm:$0xff]
    %v451 = vld [vmem:[%s432 + $0x90] sm:$0xff]
    %v452 = vld [vmem:[%s432 + $0x98] sm:$0xff]
    %v453 = vld [vmem:[%s432 + $0xa0] sm:$0xff]
    %v454 = vld [vmem:[%s432 + $0xa8] sm:$0xff]
    %v455 = vld [vmem:[%s432 + $0xb0] sm:$0xff]
    %v456 = vld [vmem:[%s432 + $0xb8] sm:$0xff]
    %v457 = vld [vmem:[%s432 + $0xc0] sm:$0xf]
    %v458 = vld [vmem:[%s432 + $0xc8] sm:$0xf]
    %v460 = vsel %vm84, %v457, 0
    %v463 = vsel %vm84, %v458, 0
    %465 = vmatprep.subr.mxu0 0.0
    %466 = vmatpush1.msra.mxu0 0.0
    %467 = vmatprep.subr.mxu0 0.0
    %468 = vmatpush1.msra.mxu0 0.0
    %469 = vmatprep.subr.mxu0 0.0
    %470 = vmatpush1.msra.mxu0 0.0
    %471 = vmatprep.subr.mxu0 %v463
    %472 = vmatpush1.msra.mxu0 %v460
    %473 = vmatprep.subr.mxu0 %v456
    %474 = vmatpush1.msra.mxu0 %v455
    %475 = vmatprep.subr.mxu0 %v454
    %476 = vmatpush1.msra.mxu0 %v453
    %477 = vmatprep.subr.mxu0 %v452
    %478 = vmatpush1.msra.mxu0 %v451
    %479 = vmatprep.subr.mxu0 %v450
    %480 = vmatpush1.msra.mxu0 %v449
    %481 = vmatprep.subr.mxu0 %v448
    %482 = vmatpush1.msra.mxu0 %v447
    %483 = vmatprep.subr.mxu0 %v446
    %484 = vmatpush1.msra.mxu0 %v445
    %485 = vmatprep.subr.mxu0 %v444
    %486 = vmatpush1.msra.mxu0 %v443
    %487 = vmatprep.subr.mxu0 %v442
    %488 = vmatpush1.msra.mxu0 %v441
    %489 = vmatprep.subr.mxu0 %v440
    %490 = vmatpush1.msra.mxu0 %v439
    %491 = vmatprep.subr.mxu0 %v438
    %492 = vmatpush1.msra.mxu0 %v437
    %493 = vmatprep.subr.mxu0 %v436
    %494 = vmatpush1.msra.mxu0 %v435
    %495 = vmatprep.subr.mxu0 %v434
    %496 = vmatpush1.msra.mxu0 %v433
    %497 = vmatprep.subr.mxu0 0.0
    %498 = vmatpush2.msra.mxu0 0.0
    %499 = vmatprep.subr.mxu0 0.0
    %500 = vmatpush2.msra.mxu0 0.0
    %501 = vmatprep.subr.mxu0 0.0
    %502 = vmatpush2.msra.mxu0 0.0
    %503 = vmatprep.subr.mxu0 0.0
    %504 = vmatpush2.msra.mxu0 0.0
    %505 = vmatprep.subr.mxu0 0.0
    %506 = vmatpush2.msra.mxu0 0.0
    %507 = vmatprep.subr.mxu0 0.0
    %508 = vmatpush2.msra.mxu0 0.0
    %509 = vmatprep.subr.mxu0 0.0
    %510 = vmatpush2.msra.mxu0 0.0
    %511 = vmatprep.subr.mxu0 0.0
    %512 = vmatpush2.msra.mxu0 0.0
    %513 = vmatprep.subr.mxu0 0.0
    %514 = vmatpush2.msra.mxu0 0.0
    %515 = vmatprep.subr.mxu0 0.0
    %516 = vmatpush2.msra.mxu0 0.0
    %517 = vmatprep.subr.mxu0 0.0
    %518 = vmatpush2.msra.mxu0 0.0
    %519 = vmatprep.subr.mxu0 0.0
    %520 = vmatpush2.msra.mxu0 0.0
    %521 = vmatprep.subr.mxu0 0.0
    %522 = vmatpush2.msra.mxu0 0.0
    %523 = vmatprep.subr.mxu0 0.0
    %524 = vmatpush2.msra.mxu0 0.0
    %525 = vmatprep.subr.mxu0 0.0
    %526 = vmatpush2.msra.mxu0 0.0
    %527 = vmatprep.subr.mxu0 0.0
    %528 = vmatpush2.msra.mxu0 0.0
    %529 = vmatprep.mubr.f32.mxu0 0.0
    %530 = vmatmul.mubr.f32.gmra.mxu0 %v82
    %v531 = vpop.f32.mrf.mxu0
    %v532 = vadd.f32 0.0, %v531
    %v533 = vpop.f32.mrf.mxu0
    %v534 = vadd.f32 0.0, %v533
    %535 = vdwg.mxu0
    %v537 = vsel %vm268, %v431, 0
    %v540 = vsel %vm272, %v532, 0
    %v543 = vsel %vm272, %v534, 0
    %545 = vmatprep.subr.mxu0 0.0
    %546 = vmatpush1.msra.mxu0 0.0
    %547 = vmatprep.subr.mxu0 0.0
    %548 = vmatpush1.msra.mxu0 0.0
    %549 = vmatprep.subr.mxu0 0.0
    %550 = vmatpush1.msra.mxu0 0.0
    %551 = vmatprep.subr.mxu0 0.0
    %552 = vmatpush1.msra.mxu0 0.0
    %553 = vmatprep.subr.mxu0 0.0
    %554 = vmatpush1.msra.mxu0 0.0
    %555 = vmatprep.subr.mxu0 0.0
    %556 = vmatpush1.msra.mxu0 0.0
    %557 = vmatprep.subr.mxu0 0.0
    %558 = vmatpush1.msra.mxu0 0.0
    %559 = vmatprep.subr.mxu0 0.0
    %560 = vmatpush1.msra.mxu0 0.0
    %561 = vmatprep.subr.mxu0 0.0
    %562 = vmatpush1.msra.mxu0 0.0
    %563 = vmatprep.subr.mxu0 0.0
    %564 = vmatpush1.msra.mxu0 0.0
    %565 = vmatprep.subr.mxu0 0.0
    %566 = vmatpush1.msra.mxu0 0.0
    %567 = vmatprep.subr.mxu0 0.0
    %568 = vmatpush1.msra.mxu0 0.0
    %569 = vmatprep.subr.mxu0 0.0
    %570 = vmatpush1.msra.mxu0 0.0
    %571 = vmatprep.subr.mxu0 0.0
    %572 = vmatpush1.msra.mxu0 0.0
    %573 = vmatprep.subr.mxu0 0.0
    %574 = vmatpush1.msra.mxu0 0.0
    %575 = vmatprep.subr.mxu0 %v543
    %576 = vmatpush1.msra.mxu0 %v540
    %577 = vmatprep.subr.mxu0 0.0
    %578 = vmatpush2.msra.mxu0 0.0
    %579 = vmatprep.subr.mxu0 0.0
    %580 = vmatpush2.msra.mxu0 0.0
    %581 = vmatprep.subr.mxu0 0.0
    %582 = vmatpush2.msra.mxu0 0.0
    %583 = vmatprep.subr.mxu0 0.0
    %584 = vmatpush2.msra.mxu0 0.0
    %585 = vmatprep.subr.mxu0 0.0
    %586 = vmatpush2.msra.mxu0 0.0
    %587 = vmatprep.subr.mxu0 0.0
    %588 = vmatpush2.msra.mxu0 0.0
    %589 = vmatprep.subr.mxu0 0.0
    %590 = vmatpush2.msra.mxu0 0.0
    %591 = vmatprep.subr.mxu0 0.0
    %592 = vmatpush2.msra.mxu0 0.0
    %593 = vmatprep.subr.mxu0 0.0
    %594 = vmatpush2.msra.mxu0 0.0
    %595 = vmatprep.subr.mxu0 0.0
    %596 = vmatpush2.msra.mxu0 0.0
    %597 = vmatprep.subr.mxu0 0.0
    %598 = vmatpush2.msra.mxu0 0.0
    %599 = vmatprep.subr.mxu0 0.0
    %600 = vmatpush2.msra.mxu0 0.0
    %601 = vmatprep.subr.mxu0 0.0
    %602 = vmatpush2.msra.mxu0 0.0
    %603 = vmatprep.subr.mxu0 0.0
    %604 = vmatpush2.msra.mxu0 0.0
    %605 = vmatprep.subr.mxu0 0.0
    %606 = vmatpush2.msra.mxu0 0.0
    %607 = vmatprep.subr.mxu0 0.0
    %608 = vmatpush2.msra.mxu0 0.0
    %609 = vmatprep.mubr.f32.mxu0 0.0
    %610 = vmatmul.mubr.f32.gmra.mxu0 %v537
    %v611 = vpop.f32.mrf.mxu0
    %v612 = vadd.f32 0.0, %v611
    %v613 = vpop.f32.mrf.mxu0
    %v614 = vadd.f32 0.0, %v613
    %615 = vdwg.mxu0
    %v616 = vadd.f32 %v426, %v612
    %v617 = vadd.f32 %v428, %v614
    %s618 = scalar_lea.vmem %s2, 24
    %v619 = vld [vmem:[%s618] sm:$0xff]
    %s620 = scalar_lea.vmem %s1, 624
    %v621 = vld [vmem:[%s620] sm:$0xff]
    %v622 = vld [vmem:[%s620 + $0x8] sm:$0xff]
    %v623 = vld [vmem:[%s620 + $0x10] sm:$0xff]
    %v624 = vld [vmem:[%s620 + $0x18] sm:$0xff]
    %v625 = vld [vmem:[%s620 + $0x20] sm:$0xff]
    %v626 = vld [vmem:[%s620 + $0x28] sm:$0xff]
    %v627 = vld [vmem:[%s620 + $0x30] sm:$0xff]
    %v628 = vld [vmem:[%s620 + $0x38] sm:$0xff]
    %v629 = vld [vmem:[%s620 + $0x40] sm:$0xff]
    %v630 = vld [vmem:[%s620 + $0x48] sm:$0xff]
    %v631 = vld [vmem:[%s620 + $0x50] sm:$0xff]
    %v632 = vld [vmem:[%s620 + $0x58] sm:$0xff]
    %v633 = vld [vmem:[%s620 + $0x60] sm:$0xff]
    %v634 = vld [vmem:[%s620 + $0x68] sm:$0xff]
    %v635 = vld [vmem:[%s620 + $0x70] sm:$0xff]
    %v636 = vld [vmem:[%s620 + $0x78] sm:$0xff]
    %v637 = vld [vmem:[%s620 + $0x80] sm:$0xff]
    %v638 = vld [vmem:[%s620 + $0x88] sm:$0xff]
    %v639 = vld [vmem:[%s620 + $0x90] sm:$0xff]
    %v640 = vld [vmem:[%s620 + $0x98] sm:$0xff]
    %v641 = vld [vmem:[%s620 + $0xa0] sm:$0xff]
    %v642 = vld [vmem:[%s620 + $0xa8] sm:$0xff]
    %v643 = vld [vmem:[%s620 + $0xb0] sm:$0xff]
    %v644 = vld [vmem:[%s620 + $0xb8] sm:$0xff]
    %v645 = vld [vmem:[%s620 + $0xc0] sm:$0xf]
    %v646 = vld [vmem:[%s620 + $0xc8] sm:$0xf]
    %v648 = vsel %vm84, %v645, 0
    %v651 = vsel %vm84, %v646, 0
    %653 = vmatprep.subr.mxu0 0.0
    %654 = vmatpush1.msra.mxu0 0.0
    %655 = vmatprep.subr.mxu0 0.0
    %656 = vmatpush1.msra.mxu0 0.0
    %657 = vmatprep.subr.mxu0 0.0
    %658 = vmatpush1.msra.mxu0 0.0
    %659 = vmatprep.subr.mxu0 %v651
    %660 = vmatpush1.msra.mxu0 %v648
    %661 = vmatprep.subr.mxu0 %v644
    %662 = vmatpush1.msra.mxu0 %v643
    %663 = vmatprep.subr.mxu0 %v642
    %664 = vmatpush1.msra.mxu0 %v641
    %665 = vmatprep.subr.mxu0 %v640
    %666 = vmatpush1.msra.mxu0 %v639
    %667 = vmatprep.subr.mxu0 %v638
    %668 = vmatpush1.msra.mxu0 %v637
    %669 = vmatprep.subr.mxu0 %v636
    %670 = vmatpush1.msra.mxu0 %v635
    %671 = vmatprep.subr.mxu0 %v634
    %672 = vmatpush1.msra.mxu0 %v633
    %673 = vmatprep.subr.mxu0 %v632
    %674 = vmatpush1.msra.mxu0 %v631
    %675 = vmatprep.subr.mxu0 %v630
    %676 = vmatpush1.msra.mxu0 %v629
    %677 = vmatprep.subr.mxu0 %v628
    %678 = vmatpush1.msra.mxu0 %v627
    %679 = vmatprep.subr.mxu0 %v626
    %680 = vmatpush1.msra.mxu0 %v625
    %681 = vmatprep.subr.mxu0 %v624
    %682 = vmatpush1.msra.mxu0 %v623
    %683 = vmatprep.subr.mxu0 %v622
    %684 = vmatpush1.msra.mxu0 %v621
    %685 = vmatprep.subr.mxu0 0.0
    %686 = vmatpush2.msra.mxu0 0.0
    %687 = vmatprep.subr.mxu0 0.0
    %688 = vmatpush2.msra.mxu0 0.0
    %689 = vmatprep.subr.mxu0 0.0
    %690 = vmatpush2.msra.mxu0 0.0
    %691 = vmatprep.subr.mxu0 0.0
    %692 = vmatpush2.msra.mxu0 0.0
    %693 = vmatprep.subr.mxu0 0.0
    %694 = vmatpush2.msra.mxu0 0.0
    %695 = vmatprep.subr.mxu0 0.0
    %696 = vmatpush2.msra.mxu0 0.0
    %697 = vmatprep.subr.mxu0 0.0
    %698 = vmatpush2.msra.mxu0 0.0
    %699 = vmatprep.subr.mxu0 0.0
    %700 = vmatpush2.msra.mxu0 0.0
    %701 = vmatprep.subr.mxu0 0.0
    %702 = vmatpush2.msra.mxu0 0.0
    %703 = vmatprep.subr.mxu0 0.0
    %704 = vmatpush2.msra.mxu0 0.0
    %705 = vmatprep.subr.mxu0 0.0
    %706 = vmatpush2.msra.mxu0 0.0
    %707 = vmatprep.subr.mxu0 0.0
    %708 = vmatpush2.msra.mxu0 0.0
    %709 = vmatprep.subr.mxu0 0.0
    %710 = vmatpush2.msra.mxu0 0.0
    %711 = vmatprep.subr.mxu0 0.0
    %712 = vmatpush2.msra.mxu0 0.0
    %713 = vmatprep.subr.mxu0 0.0
    %714 = vmatpush2.msra.mxu0 0.0
    %715 = vmatprep.subr.mxu0 0.0
    %716 = vmatpush2.msra.mxu0 0.0
    %717 = vmatprep.mubr.f32.mxu0 0.0
    %718 = vmatmul.mubr.f32.gmra.mxu0 %v82
    %v719 = vpop.f32.mrf.mxu0
    %v720 = vadd.f32 0.0, %v719
    %v721 = vpop.f32.mrf.mxu0
    %v722 = vadd.f32 0.0, %v721
    %723 = vdwg.mxu0
    %v725 = vsel %vm268, %v619, 0
    %v728 = vsel %vm272, %v720, 0
    %v731 = vsel %vm272, %v722, 0
    %733 = vmatprep.subr.mxu0 0.0
    %734 = vmatpush1.msra.mxu0 0.0
    %735 = vmatprep.subr.mxu0 0.0
    %736 = vmatpush1.msra.mxu0 0.0
    %737 = vmatprep.subr.mxu0 0.0
    %738 = vmatpush1.msra.mxu0 0.0
    %739 = vmatprep.subr.mxu0 0.0
    %740 = vmatpush1.msra.mxu0 0.0
    %741 = vmatprep.subr.mxu0 0.0
    %742 = vmatpush1.msra.mxu0 0.0
    %743 = vmatprep.subr.mxu0 0.0
    %744 = vmatpush1.msra.mxu0 0.0
    %745 = vmatprep.subr.mxu0 0.0
    %746 = vmatpush1.msra.mxu0 0.0
    %747 = vmatprep.subr.mxu0 0.0
    %748 = vmatpush1.msra.mxu0 0.0
    %749 = vmatprep.subr.mxu0 0.0
    %750 = vmatpush1.msra.mxu0 0.0
    %751 = vmatprep.subr.mxu0 0.0
    %752 = vmatpush1.msra.mxu0 0.0
    %753 = vmatprep.subr.mxu0 0.0
    %754 = vmatpush1.msra.mxu0 0.0
    %755 = vmatprep.subr.mxu0 0.0
    %756 = vmatpush1.msra.mxu0 0.0
    %757 = vmatprep.subr.mxu0 0.0
    %758 = vmatpush1.msra.mxu0 0.0
    %759 = vmatprep.subr.mxu0 0.0
    %760 = vmatpush1.msra.mxu0 0.0
    %761 = vmatprep.subr.mxu0 0.0
    %762 = vmatpush1.msra.mxu0 0.0
    %763 = vmatprep.subr.mxu0 %v731
    %764 = vmatpush1.msra.mxu0 %v728
    %765 = vmatprep.subr.mxu0 0.0
    %766 = vmatpush2.msra.mxu0 0.0
    %767 = vmatprep.subr.mxu0 0.0
    %768 = vmatpush2.msra.mxu0 0.0
    %769 = vmatprep.subr.mxu0 0.0
    %770 = vmatpush2.msra.mxu0 0.0
    %771 = vmatprep.subr.mxu0 0.0
    %772 = vmatpush2.msra.mxu0 0.0
    %773 = vmatprep.subr.mxu0 0.0
    %774 = vmatpush2.msra.mxu0 0.0
    %775 = vmatprep.subr.mxu0 0.0
    %776 = vmatpush2.msra.mxu0 0.0
    %777 = vmatprep.subr.mxu0 0.0
    %778 = vmatpush2.msra.mxu0 0.0
    %779 = vmatprep.subr.mxu0 0.0
    %780 = vmatpush2.msra.mxu0 0.0
    %781 = vmatprep.subr.mxu0 0.0
    %782 = vmatpush2.msra.mxu0 0.0
    %783 = vmatprep.subr.mxu0 0.0
    %784 = vmatpush2.msra.mxu0 0.0
    %785 = vmatprep.subr.mxu0 0.0
    %786 = vmatpush2.msra.mxu0 0.0
    %787 = vmatprep.subr.mxu0 0.0
    %788 = vmatpush2.msra.mxu0 0.0
    %789 = vmatprep.subr.mxu0 0.0
    %790 = vmatpush2.msra.mxu0 0.0
    %791 = vmatprep.subr.mxu0 0.0
    %792 = vmatpush2.msra.mxu0 0.0
    %793 = vmatprep.subr.mxu0 0.0
    %794 = vmatpush2.msra.mxu0 0.0
    %795 = vmatprep.subr.mxu0 0.0
    %796 = vmatpush2.msra.mxu0 0.0
    %797 = vmatprep.mubr.f32.mxu0 0.0
    %798 = vmatmul.mubr.f32.gmra.mxu0 %v725
    %v799 = vpop.f32.mrf.mxu0
    %v800 = vadd.f32 0.0, %v799
    %v801 = vpop.f32.mrf.mxu0
    %v802 = vadd.f32 0.0, %v801
    %803 = vdwg.mxu0
    %v804 = vadd.f32 %v616, %v800
    %v805 = vadd.f32 %v617, %v802
    %v806 = vld [vmem:[%s11] sm:$0xff]
    %v807 = vld [vmem:[%s11 + $0x8] sm:$0xff]
    %v808 = vld [vmem:[%s11 + $0x10] sm:$0xff]
    %v809 = vld [vmem:[%s11 + $0x18] sm:$0xff]
    %v810 = vld [vmem:[%s11 + $0x20] sm:$0xff]
    %v811 = vld [vmem:[%s11 + $0x28] sm:$0xff]
    %v812 = vld [vmem:[%s11 + $0x30] sm:$0xff]
    %v813 = vld [vmem:[%s11 + $0x38] sm:$0xff]
    %v814 = vld [vmem:[%s11 + $0x40] sm:$0xff]
    %v815 = vld [vmem:[%s11 + $0x48] sm:$0xff]
    %v816 = vld [vmem:[%s11 + $0x50] sm:$0xff]
    %v817 = vld [vmem:[%s11 + $0x58] sm:$0xff]
    %v818 = vld [vmem:[%s11 + $0x60] sm:$0xff]
    %v819 = vld [vmem:[%s11 + $0x68] sm:$0xff]
    %v820 = vld [vmem:[%s11 + $0x70] sm:$0xff]
    %v821 = vld [vmem:[%s11 + $0x78] sm:$0xff]
    %v822 = vld [vmem:[%s11 + $0x80] sm:$0xff]
    %v823 = vld [vmem:[%s11 + $0x88] sm:$0xff]
    %v824 = vld [vmem:[%s11 + $0x90] sm:$0xff]
    %v825 = vld [vmem:[%s11 + $0x98] sm:$0xff]
    %v826 = vld [vmem:[%s11 + $0xa0] sm:$0xff]
    %v827 = vld [vmem:[%s11 + $0xa8] sm:$0xff]
    %v828 = vld [vmem:[%s11 + $0xb0] sm:$0xff]
    %v829 = vld [vmem:[%s11 + $0xb8] sm:$0xff]
    %v830 = vld [vmem:[%s11 + $0xc0] sm:$0xff]
    %v831 = vld [vmem:[%s11 + $0xc8] sm:$0xff]
    %v832 = vld [vmem:[%s11 + $0xd0] sm:$0xff]
    %v833 = vld [vmem:[%s11 + $0xd8] sm:$0xff]
    %v834 = vld [vmem:[%s11 + $0xe0] sm:$0xff]
    %v835 = vld [vmem:[%s11 + $0xe8] sm:$0xff]
    %v836 = vld [vmem:[%s11 + $0xf0] sm:$0xff]
    %v837 = vld [vmem:[%s11 + $0xf8] sm:$0xff]
    %v838 = vld [vmem:[%s11 + $0x100] sm:$0xff]
    %v839 = vld [vmem:[%s11 + $0x108] sm:$0xff]
    %v840 = vld [vmem:[%s11 + $0x110] sm:$0xff]
    %v841 = vld [vmem:[%s11 + $0x118] sm:$0xff]
    %v842 = vld [vmem:[%s11 + $0x120] sm:$0xff]
    %v843 = vld [vmem:[%s11 + $0x128] sm:$0xff]
    %v844 = vld [vmem:[%s11 + $0x130] sm:$0xff]
    %v845 = vld [vmem:[%s11 + $0x138] sm:$0xff]
    %v846 = vld [vmem:[%s11 + $0x140] sm:$0xff]
    %v847 = vld [vmem:[%s11 + $0x148] sm:$0xff]
    %v848 = vld [vmem:[%s11 + $0x150] sm:$0xff]
    %v849 = vld [vmem:[%s11 + $0x158] sm:$0xff]
    %v850 = vld [vmem:[%s11 + $0x160] sm:$0xff]
    %v851 = vld [vmem:[%s11 + $0x168] sm:$0xff]
    %v852 = vld [vmem:[%s11 + $0x170] sm:$0xff]
    %v853 = vld [vmem:[%s11 + $0x178] sm:$0xff]
    %v854 = vld [vmem:[%s11 + $0x180] sm:$0xff]
    %v855 = vld [vmem:[%s11 + $0x188] sm:$0xff]
    %v856 = vld [vmem:[%s11 + $0x190] sm:$0xff]
    %v857 = vld [vmem:[%s11 + $0x198] sm:$0xff]
    %v858 = vld [vmem:[%s11 + $0x1a0] sm:$0xff]
    %v859 = vld [vmem:[%s11 + $0x1a8] sm:$0xff]
    %v860 = vld [vmem:[%s11 + $0x1b0] sm:$0xff]
    %v861 = vld [vmem:[%s11 + $0x1b8] sm:$0xff]
    %v862 = vld [vmem:[%s11 + $0x1c0] sm:$0xff]
    %v863 = vld [vmem:[%s11 + $0x1c8] sm:$0xff]
    %v864 = vld [vmem:[%s11 + $0x1d0] sm:$0xff]
    %v865 = vld [vmem:[%s11 + $0x1d8] sm:$0xff]
    %v866 = vld [vmem:[%s11 + $0x1e0] sm:$0xff]
    %v867 = vld [vmem:[%s11 + $0x1e8] sm:$0xff]
    %v868 = vld [vmem:[%s11 + $0x1f0] sm:$0xff]
    %v869 = vld [vmem:[%s11 + $0x1f8] sm:$0xff]
    %vm870 = vcmask 64512
    %v872 = vsel %vm870, 1.0, 0
    %874 = vmatprep.subr.mxu0 0.0
    %875 = vmatpush1.msra.mxu0 0.0
    %876 = vmatprep.subr.mxu0 0.0
    %877 = vmatpush1.msra.mxu0 0.0
    %878 = vmatprep.subr.mxu0 0.0
    %879 = vmatpush1.msra.mxu0 0.0
    %880 = vmatprep.subr.mxu0 0.0
    %881 = vmatpush1.msra.mxu0 0.0
    %882 = vmatprep.subr.mxu0 0.0
    %883 = vmatpush1.msra.mxu0 0.0
    %884 = vmatprep.subr.mxu0 0.0
    %885 = vmatpush1.msra.mxu0 0.0
    %886 = vmatprep.subr.mxu0 0.0
    %887 = vmatpush1.msra.mxu0 0.0
    %888 = vmatprep.subr.mxu0 0.0
    %889 = vmatpush1.msra.mxu0 0.0
    %890 = vmatprep.subr.mxu0 0.0
    %891 = vmatpush1.msra.mxu0 0.0
    %892 = vmatprep.subr.mxu0 0.0
    %893 = vmatpush1.msra.mxu0 0.0
    %894 = vmatprep.subr.mxu0 0.0
    %895 = vmatpush1.msra.mxu0 0.0
    %896 = vmatprep.subr.mxu0 0.0
    %897 = vmatpush1.msra.mxu0 0.0
    %898 = vmatprep.subr.mxu0 0.0
    %899 = vmatpush1.msra.mxu0 0.0
    %900 = vmatprep.subr.mxu0 0.0
    %901 = vmatpush1.msra.mxu0 0.0
    %902 = vmatprep.subr.mxu0 0.0
    %903 = vmatpush1.msra.mxu0 0.0
    %904 = vmatprep.subr.mxu0 %v805
    %905 = vmatpush1.msra.mxu0 %v804
    %906 = vmatprep.subr.mxu0 0.0
    %907 = vmatpush2.msra.mxu0 0.0
    %908 = vmatprep.subr.mxu0 0.0
    %909 = vmatpush2.msra.mxu0 0.0
    %910 = vmatprep.subr.mxu0 0.0
    %911 = vmatpush2.msra.mxu0 0.0
    %912 = vmatprep.subr.mxu0 0.0
    %913 = vmatpush2.msra.mxu0 0.0
    %914 = vmatprep.subr.mxu0 0.0
    %915 = vmatpush2.msra.mxu0 0.0
    %916 = vmatprep.subr.mxu0 0.0
    %917 = vmatpush2.msra.mxu0 0.0
    %918 = vmatprep.subr.mxu0 0.0
    %919 = vmatpush2.msra.mxu0 0.0
    %920 = vmatprep.subr.mxu0 0.0
    %921 = vmatpush2.msra.mxu0 0.0
    %922 = vmatprep.subr.mxu0 0.0
    %923 = vmatpush2.msra.mxu0 0.0
    %924 = vmatprep.subr.mxu0 0.0
    %925 = vmatpush2.msra.mxu0 0.0
    %926 = vmatprep.subr.mxu0 0.0
    %927 = vmatpush2.msra.mxu0 0.0
    %928 = vmatprep.subr.mxu0 0.0
    %929 = vmatpush2.msra.mxu0 0.0
    %930 = vmatprep.subr.mxu0 0.0
    %931 = vmatpush2.msra.mxu0 0.0
    %932 = vmatprep.subr.mxu0 0.0
    %933 = vmatpush2.msra.mxu0 0.0
    %934 = vmatprep.subr.mxu0 0.0
    %935 = vmatpush2.msra.mxu0 0.0
    %936 = vmatprep.subr.mxu0 0.0
    %937 = vmatpush2.msra.mxu0 0.0
    %938 = vmatprep.mubr.f32.mxu0 0.0
    %939 = vmatmul.mubr.f32.gmra.mxu0 %v872
    %v940 = vpop.f32.mrf.mxu0
    %v941 = vadd.f32 0.0, %v940
    %v942 = vpop.f32.mrf.mxu0
    %v943 = vadd.f32 0.0, %v942
    %944 = vdwg.mxu0
    %945 = vmatprep.subr.mxu0 %v837
    %946 = vmatpush1.msra.mxu0 %v836
    %947 = vmatprep.subr.mxu0 %v835
    %948 = vmatpush1.msra.mxu0 %v834
    %949 = vmatprep.subr.mxu0 %v833
    %950 = vmatpush1.msra.mxu0 %v832
    %951 = vmatprep.subr.mxu0 %v831
    %952 = vmatpush1.msra.mxu0 %v830
    %953 = vmatprep.subr.mxu0 %v829
    %954 = vmatpush1.msra.mxu0 %v828
    %955 = vmatprep.subr.mxu0 %v827
    %956 = vmatpush1.msra.mxu0 %v826
    %957 = vmatprep.subr.mxu0 %v825
    %958 = vmatpush1.msra.mxu0 %v824
    %959 = vmatprep.subr.mxu0 %v823
    %960 = vmatpush1.msra.mxu0 %v822
    %961 = vmatprep.subr.mxu0 %v821
    %962 = vmatpush1.msra.mxu0 %v820
    %963 = vmatprep.subr.mxu0 %v819
    %964 = vmatpush1.msra.mxu0 %v818
    %965 = vmatprep.subr.mxu0 %v817
    %966 = vmatpush1.msra.mxu0 %v816
    %967 = vmatprep.subr.mxu0 %v815
    %968 = vmatpush1.msra.mxu0 %v814
    %969 = vmatprep.subr.mxu0 %v813
    %970 = vmatpush1.msra.mxu0 %v812
    %971 = vmatprep.subr.mxu0 %v811
    %972 = vmatpush1.msra.mxu0 %v810
    %973 = vmatprep.subr.mxu0 %v809
    %974 = vmatpush1.msra.mxu0 %v808
    %975 = vmatprep.subr.mxu0 %v807
    %976 = vmatpush1.msra.mxu0 %v806
    %977 = vmatprep.subr.mxu0 %v869
    %978 = vmatpush2.msra.mxu0 %v868
    %979 = vmatprep.subr.mxu0 %v867
    %980 = vmatpush2.msra.mxu0 %v866
    %981 = vmatprep.subr.mxu0 %v865
    %982 = vmatpush2.msra.mxu0 %v864
    %983 = vmatprep.subr.mxu0 %v863
    %984 = vmatpush2.msra.mxu0 %v862
    %985 = vmatprep.subr.mxu0 %v861
    %986 = vmatpush2.msra.mxu0 %v860
    %987 = vmatprep.subr.mxu0 %v859
    %988 = vmatpush2.msra.mxu0 %v858
    %989 = vmatprep.subr.mxu0 %v857
    %990 = vmatpush2.msra.mxu0 %v856
    %991 = vmatprep.subr.mxu0 %v855
    %992 = vmatpush2.msra.mxu0 %v854
    %993 = vmatprep.subr.mxu0 %v853
    %994 = vmatpush2.msra.mxu0 %v852
    %995 = vmatprep.subr.mxu0 %v851
    %996 = vmatpush2.msra.mxu0 %v850
    %997 = vmatprep.subr.mxu0 %v849
    %998 = vmatpush2.msra.mxu0 %v848
    %999 = vmatprep.subr.mxu0 %v847
    %1000 = vmatpush2.msra.mxu0 %v846
    %1001 = vmatprep.subr.mxu0 %v845
    %1002 = vmatpush2.msra.mxu0 %v844
    %1003 = vmatprep.subr.mxu0 %v843
    %1004 = vmatpush2.msra.mxu0 %v842
    %1005 = vmatprep.subr.mxu0 %v841
    %1006 = vmatpush2.msra.mxu0 %v840
    %1007 = vmatprep.subr.mxu0 %v839
    %1008 = vmatpush2.msra.mxu0 %v838
    %1009 = vmatprep.mubr.f32.mxu0 %v943
    %1010 = vmatmul.mubr.f32.gmra.mxu0 %v941
    %v1011 = vpop.f32.mrf.mxu0
    %v1012 = vadd.f32 0.0, %v1011
    %v1013 = vpop.f32.mrf.mxu0
    %v1014 = vadd.f32 0.0, %v1013
    %1015 = vdwg.mxu0
    %v1016 = vmul.f32 %v1012, 0.03125
    %v1017 = vmul.f32 %v1014, 0.03125
    %v1018 = vlaneseq
    %v1019 = vshrl.u32 %v1018, 7
    %v1020 = vsub.s32 0, %v1019
    %v1021 = vrot.slane %v1016, %v1020
    %v1022 = vlaneseq
    %v1023 = vshrl.u32 %v1022, 7
    %v1024 = vsub.s32 0, %v1023
    %v1025 = vrot.slane %v1017, %v1024
    %v1026 = vsub.f32 %v804, %v1021
    %v1027 = vsub.f32 %v805, %v1025
    %v1028 = vmul.f32 %v1026, %v1026
    %v1029 = vmul.f32 %v1027, %v1027
    %1030 = vmatprep.subr.mxu0 0.0
    %1031 = vmatpush1.msra.mxu0 0.0
    %1032 = vmatprep.subr.mxu0 0.0
    %1033 = vmatpush1.msra.mxu0 0.0
    %1034 = vmatprep.subr.mxu0 0.0
    %1035 = vmatpush1.msra.mxu0 0.0
    %1036 = vmatprep.subr.mxu0 0.0
    %1037 = vmatpush1.msra.mxu0 0.0
    %1038 = vmatprep.subr.mxu0 0.0
    %1039 = vmatpush1.msra.mxu0 0.0
    %1040 = vmatprep.subr.mxu0 0.0
    %1041 = vmatpush1.msra.mxu0 0.0
    %1042 = vmatprep.subr.mxu0 0.0
    %1043 = vmatpush1.msra.mxu0 0.0
    %1044 = vmatprep.subr.mxu0 0.0
    %1045 = vmatpush1.msra.mxu0 0.0
    %1046 = vmatprep.subr.mxu0 0.0
    %1047 = vmatpush1.msra.mxu0 0.0
    %1048 = vmatprep.subr.mxu0 0.0
    %1049 = vmatpush1.msra.mxu0 0.0
    %1050 = vmatprep.subr.mxu0 0.0
    %1051 = vmatpush1.msra.mxu0 0.0
    %1052 = vmatprep.subr.mxu0 0.0
    %1053 = vmatpush1.msra.mxu0 0.0
    %1054 = vmatprep.subr.mxu0 0.0
    %1055 = vmatpush1.msra.mxu0 0.0
    %1056 = vmatprep.subr.mxu0 0.0
    %1057 = vmatpush1.msra.mxu0 0.0
    %1058 = vmatprep.subr.mxu0 0.0
    %1059 = vmatpush1.msra.mxu0 0.0
    %1060 = vmatprep.subr.mxu0 %v1029
    %1061 = vmatpush1.msra.mxu0 %v1028
    %1062 = vmatprep.subr.mxu0 0.0
    %1063 = vmatpush2.msra.mxu0 0.0
    %1064 = vmatprep.subr.mxu0 0.0
    %1065 = vmatpush2.msra.mxu0 0.0
    %1066 = vmatprep.subr.mxu0 0.0
    %1067 = vmatpush2.msra.mxu0 0.0
    %1068 = vmatprep.subr.mxu0 0.0
    %1069 = vmatpush2.msra.mxu0 0.0
    %1070 = vmatprep.subr.mxu0 0.0
    %1071 = vmatpush2.msra.mxu0 0.0
    %1072 = vmatprep.subr.mxu0 0.0
    %1073 = vmatpush2.msra.mxu0 0.0
    %1074 = vmatprep.subr.mxu0 0.0
    %1075 = vmatpush2.msra.mxu0 0.0
    %1076 = vmatprep.subr.mxu0 0.0
    %1077 = vmatpush2.msra.mxu0 0.0
    %1078 = vmatprep.subr.mxu0 0.0
    %1079 = vmatpush2.msra.mxu0 0.0
    %1080 = vmatprep.subr.mxu0 0.0
    %1081 = vmatpush2.msra.mxu0 0.0
    %1082 = vmatprep.subr.mxu0 0.0
    %1083 = vmatpush2.msra.mxu0 0.0
    %1084 = vmatprep.subr.mxu0 0.0
    %1085 = vmatpush2.msra.mxu0 0.0
    %1086 = vmatprep.subr.mxu0 0.0
    %1087 = vmatpush2.msra.mxu0 0.0
    %1088 = vmatprep.subr.mxu0 0.0
    %1089 = vmatpush2.msra.mxu0 0.0
    %1090 = vmatprep.subr.mxu0 0.0
    %1091 = vmatpush2.msra.mxu0 0.0
    %1092 = vmatprep.subr.mxu0 0.0
    %1093 = vmatpush2.msra.mxu0 0.0
    %1094 = vmatprep.mubr.f32.mxu0 0.0
    %1095 = vmatmul.mubr.f32.gmra.mxu0 %v872
    %v1096 = vpop.f32.mrf.mxu0
    %v1097 = vadd.f32 0.0, %v1096
    %v1098 = vpop.f32.mrf.mxu0
    %v1099 = vadd.f32 0.0, %v1098
    %1100 = vdwg.mxu0
    %1101 = vmatprep.subr.mxu0 %v837
    %1102 = vmatpush1.msra.mxu0 %v836
    %1103 = vmatprep.subr.mxu0 %v835
    %1104 = vmatpush1.msra.mxu0 %v834
    %1105 = vmatprep.subr.mxu0 %v833
    %1106 = vmatpush1.msra.mxu0 %v832
    %1107 = vmatprep.subr.mxu0 %v831
    %1108 = vmatpush1.msra.mxu0 %v830
    %1109 = vmatprep.subr.mxu0 %v829
    %1110 = vmatpush1.msra.mxu0 %v828
    %1111 = vmatprep.subr.mxu0 %v827
    %1112 = vmatpush1.msra.mxu0 %v826
    %1113 = vmatprep.subr.mxu0 %v825
    %1114 = vmatpush1.msra.mxu0 %v824
    %1115 = vmatprep.subr.mxu0 %v823
    %1116 = vmatpush1.msra.mxu0 %v822
    %1117 = vmatprep.subr.mxu0 %v821
    %1118 = vmatpush1.msra.mxu0 %v820
    %1119 = vmatprep.subr.mxu0 %v819
    %1120 = vmatpush1.msra.mxu0 %v818
    %1121 = vmatprep.subr.mxu0 %v817
    %1122 = vmatpush1.msra.mxu0 %v816
    %1123 = vmatprep.subr.mxu0 %v815
    %1124 = vmatpush1.msra.mxu0 %v814
    %1125 = vmatprep.subr.mxu0 %v813
    %1126 = vmatpush1.msra.mxu0 %v812
    %1127 = vmatprep.subr.mxu0 %v811
    %1128 = vmatpush1.msra.mxu0 %v810
    %1129 = vmatprep.subr.mxu0 %v809
    %1130 = vmatpush1.msra.mxu0 %v808
    %1131 = vmatprep.subr.mxu0 %v807
    %1132 = vmatpush1.msra.mxu0 %v806
    %1133 = vmatprep.subr.mxu0 %v869
    %1134 = vmatpush2.msra.mxu0 %v868
    %1135 = vmatprep.subr.mxu0 %v867
    %1136 = vmatpush2.msra.mxu0 %v866
    %1137 = vmatprep.subr.mxu0 %v865
    %1138 = vmatpush2.msra.mxu0 %v864
    %1139 = vmatprep.subr.mxu0 %v863
    %1140 = vmatpush2.msra.mxu0 %v862
    %1141 = vmatprep.subr.mxu0 %v861
    %1142 = vmatpush2.msra.mxu0 %v860
    %1143 = vmatprep.subr.mxu0 %v859
    %1144 = vmatpush2.msra.mxu0 %v858
    %1145 = vmatprep.subr.mxu0 %v857
    %1146 = vmatpush2.msra.mxu0 %v856
    %1147 = vmatprep.subr.mxu0 %v855
    %1148 = vmatpush2.msra.mxu0 %v854
    %1149 = vmatprep.subr.mxu0 %v853
    %1150 = vmatpush2.msra.mxu0 %v852
    %1151 = vmatprep.subr.mxu0 %v851
    %1152 = vmatpush2.msra.mxu0 %v850
    %1153 = vmatprep.subr.mxu0 %v849
    %1154 = vmatpush2.msra.mxu0 %v848
    %1155 = vmatprep.subr.mxu0 %v847
    %1156 = vmatpush2.msra.mxu0 %v846
    %1157 = vmatprep.subr.mxu0 %v845
    %1158 = vmatpush2.msra.mxu0 %v844
    %1159 = vmatprep.subr.mxu0 %v843
    %1160 = vmatpush2.msra.mxu0 %v842
    %1161 = vmatprep.subr.mxu0 %v841
    %1162 = vmatpush2.msra.mxu0 %v840
    %1163 = vmatprep.subr.mxu0 %v839
    %1164 = vmatpush2.msra.mxu0 %v838
    %1165 = vmatprep.mubr.f32.mxu0 %v1099
    %1166 = vmatmul.mubr.f32.gmra.mxu0 %v1097
    %v1167 = vpop.f32.mrf.mxu0
    %v1168 = vadd.f32 0.0, %v1167
    %v1169 = vpop.f32.mrf.mxu0
    %v1170 = vadd.f32 0.0, %v1169
    %1171 = vdwg.mxu0
    %v1172 = vmul.f32 %v1168, 0.03125
    %v1173 = vmul.f32 %v1170, 0.03125
    %v1174 = vadd.f32 %v1172, 1e-05
    %v1175 = vadd.f32 %v1173, 1e-05
    %v1176 = vrsqrt.pop %v1174
    %v1177 = vrsqrt.pop %v1175
    %v1178 = vmul.f32 %v50, %v1176
    %v1179 = vmul.f32 %v51, %v1177
    %v1180 = vlaneseq
    %v1181 = vshrl.u32 %v1180, 7
    %v1182 = vsub.s32 0, %v1181
    %v1183 = vrot.slane %v1178, %v1182
    %v1184 = vlaneseq
    %v1185 = vshrl.u32 %v1184, 7
    %v1186 = vsub.s32 0, %v1185
    %v1187 = vrot.slane %v1179, %v1186
    %v1188 = vmul.f32 %v1026, %v1183
    %v1189 = vmul.f32 %v1027, %v1187
    %v1190 = vlaneseq
    %v1191 = vshrl.u32 %v1190, 7
    %v1192 = vsub.s32 1, %v1191
    %v1193 = vrot.slane %v50, %v1192
    %v1194 = vlaneseq
    %v1195 = vshrl.u32 %v1194, 7
    %v1196 = vsub.s32 1, %v1195
    %v1197 = vrot.slane %v51, %v1196
    %v1198 = vadd.f32 %v1188, %v1193
    %v1199 = vadd.f32 %v1189, %v1197
    %v1200 = vmax.f32 %v1198, 0.0
    %v1201 = vmax.f32 %v1199, 0.0
    %v1202 = vld [vmem:[%s7] sm:$0xff]
    %v1203 = vld [vmem:[%s7 + $0x8] sm:$0xff]
    %v1204 = vld [vmem:[%s3] sm:$0xff]
    %v1205 = vld [vmem:[%s3 + $0x8] sm:$0xff]
    %v1206 = vld [vmem:[%s3 + $0x10] sm:$0xff]
    %v1207 = vld [vmem:[%s3 + $0x18] sm:$0xff]
    %v1208 = vld [vmem:[%s3 + $0x20] sm:$0xff]
    %v1209 = vld [vmem:[%s3 + $0x28] sm:$0xff]
    %v1210 = vld [vmem:[%s3 + $0x30] sm:$0xff]
    %v1211 = vld [vmem:[%s3 + $0x38] sm:$0xff]
    %v1212 = vld [vmem:[%s3 + $0x40] sm:$0xff]
    %v1213 = vld [vmem:[%s3 + $0x48] sm:$0xff]
    %v1214 = vld [vmem:[%s3 + $0x50] sm:$0xff]
    %v1215 = vld [vmem:[%s3 + $0x58] sm:$0xff]
    %v1216 = vld [vmem:[%s3 + $0x60] sm:$0xff]
    %v1217 = vld [vmem:[%s3 + $0x68] sm:$0xff]
    %v1218 = vld [vmem:[%s3 + $0x70] sm:$0xff]
    %v1219 = vld [vmem:[%s3 + $0x78] sm:$0xff]
    %v1220 = vld [vmem:[%s3 + $0x80] sm:$0xff]
    %v1221 = vld [vmem:[%s3 + $0x88] sm:$0xff]
    %v1222 = vld [vmem:[%s3 + $0x90] sm:$0xff]
    %v1223 = vld [vmem:[%s3 + $0x98] sm:$0xff]
    %v1224 = vld [vmem:[%s3 + $0xa0] sm:$0xff]
    %v1225 = vld [vmem:[%s3 + $0xa8] sm:$0xff]
    %v1226 = vld [vmem:[%s3 + $0xb0] sm:$0xff]
    %v1227 = vld [vmem:[%s3 + $0xb8] sm:$0xff]
    %v1228 = vld [vmem:[%s3 + $0xc0] sm:$0xff]
    %v1229 = vld [vmem:[%s3 + $0xc8] sm:$0xff]
    %v1230 = vld [vmem:[%s3 + $0xd0] sm:$0xff]
    %v1231 = vld [vmem:[%s3 + $0xd8] sm:$0xff]
    %v1232 = vld [vmem:[%s3 + $0xe0] sm:$0xff]
    %v1233 = vld [vmem:[%s3 + $0xe8] sm:$0xff]
    %v1234 = vld [vmem:[%s3 + $0xf0] sm:$0xff]
    %v1235 = vld [vmem:[%s3 + $0xf8] sm:$0xff]
    %v1236 = vld [vmem:[%s3 + $0x100] sm:$0xff]
    %v1237 = vld [vmem:[%s3 + $0x108] sm:$0xff]
    %v1238 = vld [vmem:[%s3 + $0x110] sm:$0xff]
    %v1239 = vld [vmem:[%s3 + $0x118] sm:$0xff]
    %v1240 = vld [vmem:[%s3 + $0x120] sm:$0xff]
    %v1241 = vld [vmem:[%s3 + $0x128] sm:$0xff]
    %v1242 = vld [vmem:[%s3 + $0x130] sm:$0xff]
    %v1243 = vld [vmem:[%s3 + $0x138] sm:$0xff]
    %v1244 = vld [vmem:[%s3 + $0x140] sm:$0xff]
    %v1245 = vld [vmem:[%s3 + $0x148] sm:$0xff]
    %v1246 = vld [vmem:[%s3 + $0x150] sm:$0xff]
    %v1247 = vld [vmem:[%s3 + $0x158] sm:$0xff]
    %v1248 = vld [vmem:[%s3 + $0x160] sm:$0xff]
    %v1249 = vld [vmem:[%s3 + $0x168] sm:$0xff]
    %v1250 = vld [vmem:[%s3 + $0x170] sm:$0xff]
    %v1251 = vld [vmem:[%s3 + $0x178] sm:$0xff]
    %v1252 = vld [vmem:[%s3 + $0x180] sm:$0xff]
    %v1253 = vld [vmem:[%s3 + $0x188] sm:$0xff]
    %v1254 = vld [vmem:[%s3 + $0x190] sm:$0xff]
    %v1255 = vld [vmem:[%s3 + $0x198] sm:$0xff]
    %v1256 = vld [vmem:[%s3 + $0x1a0] sm:$0xff]
    %v1257 = vld [vmem:[%s3 + $0x1a8] sm:$0xff]
    %v1258 = vld [vmem:[%s3 + $0x1b0] sm:$0xff]
    %v1259 = vld [vmem:[%s3 + $0x1b8] sm:$0xff]
    %v1260 = vld [vmem:[%s3 + $0x1c0] sm:$0xff]
    %v1261 = vld [vmem:[%s3 + $0x1c8] sm:$0xff]
    %v1262 = vld [vmem:[%s3 + $0x1d0] sm:$0xff]
    %v1263 = vld [vmem:[%s3 + $0x1d8] sm:$0xff]
    %v1264 = vld [vmem:[%s3 + $0x1e0] sm:$0xff]
    %v1265 = vld [vmem:[%s3 + $0x1e8] sm:$0xff]
    %v1266 = vld [vmem:[%s3 + $0x1f0] sm:$0xff]
    %v1267 = vld [vmem:[%s3 + $0x1f8] sm:$0xff]
    %1268 = vmatprep.subr.mxu0 %v1235
    %1269 = vmatpush1.msra.mxu0 %v1234
    %1270 = vmatprep.subr.mxu0 %v1233
    %1271 = vmatpush1.msra.mxu0 %v1232
    %1272 = vmatprep.subr.mxu0 %v1231
    %1273 = vmatpush1.msra.mxu0 %v1230
    %1274 = vmatprep.subr.mxu0 %v1229
    %1275 = vmatpush1.msra.mxu0 %v1228
    %1276 = vmatprep.subr.mxu0 %v1227
    %1277 = vmatpush1.msra.mxu0 %v1226
    %1278 = vmatprep.subr.mxu0 %v1225
    %1279 = vmatpush1.msra.mxu0 %v1224
    %1280 = vmatprep.subr.mxu0 %v1223
    %1281 = vmatpush1.msra.mxu0 %v1222
    %1282 = vmatprep.subr.mxu0 %v1221
    %1283 = vmatpush1.msra.mxu0 %v1220
    %1284 = vmatprep.subr.mxu0 %v1219
    %1285 = vmatpush1.msra.mxu0 %v1218
    %1286 = vmatprep.subr.mxu0 %v1217
    %1287 = vmatpush1.msra.mxu0 %v1216
    %1288 = vmatprep.subr.mxu0 %v1215
    %1289 = vmatpush1.msra.mxu0 %v1214
    %1290 = vmatprep.subr.mxu0 %v1213
    %1291 = vmatpush1.msra.mxu0 %v1212
    %1292 = vmatprep.subr.mxu0 %v1211
    %1293 = vmatpush1.msra.mxu0 %v1210
    %1294 = vmatprep.subr.mxu0 %v1209
    %1295 = vmatpush1.msra.mxu0 %v1208
    %1296 = vmatprep.subr.mxu0 %v1207
    %1297 = vmatpush1.msra.mxu0 %v1206
    %1298 = vmatprep.subr.mxu0 %v1205
    %1299 = vmatpush1.msra.mxu0 %v1204
    %1300 = vmatprep.subr.mxu0 %v1267
    %1301 = vmatpush2.msra.mxu0 %v1266
    %1302 = vmatprep.subr.mxu0 %v1265
    %1303 = vmatpush2.msra.mxu0 %v1264
    %1304 = vmatprep.subr.mxu0 %v1263
    %1305 = vmatpush2.msra.mxu0 %v1262
    %1306 = vmatprep.subr.mxu0 %v1261
    %1307 = vmatpush2.msra.mxu0 %v1260
    %1308 = vmatprep.subr.mxu0 %v1259
    %1309 = vmatpush2.msra.mxu0 %v1258
    %1310 = vmatprep.subr.mxu0 %v1257
    %1311 = vmatpush2.msra.mxu0 %v1256
    %1312 = vmatprep.subr.mxu0 %v1255
    %1313 = vmatpush2.msra.mxu0 %v1254
    %1314 = vmatprep.subr.mxu0 %v1253
    %1315 = vmatpush2.msra.mxu0 %v1252
    %1316 = vmatprep.subr.mxu0 %v1251
    %1317 = vmatpush2.msra.mxu0 %v1250
    %1318 = vmatprep.subr.mxu0 %v1249
    %1319 = vmatpush2.msra.mxu0 %v1248
    %1320 = vmatprep.subr.mxu0 %v1247
    %1321 = vmatpush2.msra.mxu0 %v1246
    %1322 = vmatprep.subr.mxu0 %v1245
    %1323 = vmatpush2.msra.mxu0 %v1244
    %1324 = vmatprep.subr.mxu0 %v1243
    %1325 = vmatpush2.msra.mxu0 %v1242
    %1326 = vmatprep.subr.mxu0 %v1241
    %1327 = vmatpush2.msra.mxu0 %v1240
    %1328 = vmatprep.subr.mxu0 %v1239
    %1329 = vmatpush2.msra.mxu0 %v1238
    %1330 = vmatprep.subr.mxu0 %v1237
    %1331 = vmatpush2.msra.mxu0 %v1236
    %1332 = vmatprep.mubr.f32.mxu0 %v1201
    %1333 = vmatmul.mubr.f32.gmra.mxu0 %v1200
    %v1334 = vpop.f32.mrf.mxu0
    %v1335 = vadd.f32 0.0, %v1334
    %v1336 = vpop.f32.mrf.mxu0
    %v1337 = vadd.f32 0.0, %v1336
    %1338 = vdwg.mxu0
    %s1339 = scalar_lea.vmem %s7, 16
    %v1340 = vld [vmem:[%s1339] sm:$0xff]
    %v1341 = vld [vmem:[%s1339 + $0x8] sm:$0xff]
    %s1342 = scalar_lea.vmem %s3, 512
    %v1343 = vld [vmem:[%s1342] sm:$0xff]
    %v1344 = vld [vmem:[%s1342 + $0x8] sm:$0xff]
    %v1345 = vld [vmem:[%s1342 + $0x10] sm:$0xff]
    %v1346 = vld [vmem:[%s1342 + $0x18] sm:$0xff]
    %v1347 = vld [vmem:[%s1342 + $0x20] sm:$0xff]
    %v1348 = vld [vmem:[%s1342 + $0x28] sm:$0xff]
    %v1349 = vld [vmem:[%s1342 + $0x30] sm:$0xff]
    %v1350 = vld [vmem:[%s1342 + $0x38] sm:$0xff]
    %v1351 = vld [vmem:[%s1342 + $0x40] sm:$0xff]
    %v1352 = vld [vmem:[%s1342 + $0x48] sm:$0xff]
    %v1353 = vld [vmem:[%s1342 + $0x50] sm:$0xff]
    %v1354 = vld [vmem:[%s1342 + $0x58] sm:$0xff]
    %v1355 = vld [vmem:[%s1342 + $0x60] sm:$0xff]
    %v1356 = vld [vmem:[%s1342 + $0x68] sm:$0xff]
    %v1357 = vld [vmem:[%s1342 + $0x70] sm:$0xff]
    %v1358 = vld [vmem:[%s1342 + $0x78] sm:$0xff]
    %v1359 = vld [vmem:[%s1342 + $0x80] sm:$0xff]
    %v1360 = vld [vmem:[%s1342 + $0x88] sm:$0xff]
    %v1361 = vld [vmem:[%s1342 + $0x90] sm:$0xff]
    %v1362 = vld [vmem:[%s1342 + $0x98] sm:$0xff]
    %v1363 = vld [vmem:[%s1342 + $0xa0] sm:$0xff]
    %v1364 = vld [vmem:[%s1342 + $0xa8] sm:$0xff]
    %v1365 = vld [vmem:[%s1342 + $0xb0] sm:$0xff]
    %v1366 = vld [vmem:[%s1342 + $0xb8] sm:$0xff]
    %v1367 = vld [vmem:[%s1342 + $0xc0] sm:$0xff]
    %v1368 = vld [vmem:[%s1342 + $0xc8] sm:$0xff]
    %v1369 = vld [vmem:[%s1342 + $0xd0] sm:$0xff]
    %v1370 = vld [vmem:[%s1342 + $0xd8] sm:$0xff]
    %v1371 = vld [vmem:[%s1342 + $0xe0] sm:$0xff]
    %v1372 = vld [vmem:[%s1342 + $0xe8] sm:$0xff]
    %v1373 = vld [vmem:[%s1342 + $0xf0] sm:$0xff]
    %v1374 = vld [vmem:[%s1342 + $0xf8] sm:$0xff]
    %v1375 = vld [vmem:[%s1342 + $0x100] sm:$0xff]
    %v1376 = vld [vmem:[%s1342 + $0x108] sm:$0xff]
    %v1377 = vld [vmem:[%s1342 + $0x110] sm:$0xff]
    %v1378 = vld [vmem:[%s1342 + $0x118] sm:$0xff]
    %v1379 = vld [vmem:[%s1342 + $0x120] sm:$0xff]
    %v1380 = vld [vmem:[%s1342 + $0x128] sm:$0xff]
    %v1381 = vld [vmem:[%s1342 + $0x130] sm:$0xff]
    %v1382 = vld [vmem:[%s1342 + $0x138] sm:$0xff]
    %v1383 = vld [vmem:[%s1342 + $0x140] sm:$0xff]
    %v1384 = vld [vmem:[%s1342 + $0x148] sm:$0xff]
    %v1385 = vld [vmem:[%s1342 + $0x150] sm:$0xff]
    %v1386 = vld [vmem:[%s1342 + $0x158] sm:$0xff]
    %v1387 = vld [vmem:[%s1342 + $0x160] sm:$0xff]
    %v1388 = vld [vmem:[%s1342 + $0x168] sm:$0xff]
    %v1389 = vld [vmem:[%s1342 + $0x170] sm:$0xff]
    %v1390 = vld [vmem:[%s1342 + $0x178] sm:$0xff]
    %v1391 = vld [vmem:[%s1342 + $0x180] sm:$0xff]
    %v1392 = vld [vmem:[%s1342 + $0x188] sm:$0xff]
    %v1393 = vld [vmem:[%s1342 + $0x190] sm:$0xff]
    %v1394 = vld [vmem:[%s1342 + $0x198] sm:$0xff]
    %v1395 = vld [vmem:[%s1342 + $0x1a0] sm:$0xff]
    %v1396 = vld [vmem:[%s1342 + $0x1a8] sm:$0xff]
    %v1397 = vld [vmem:[%s1342 + $0x1b0] sm:$0xff]
    %v1398 = vld [vmem:[%s1342 + $0x1b8] sm:$0xff]
    %v1399 = vld [vmem:[%s1342 + $0x1c0] sm:$0xff]
    %v1400 = vld [vmem:[%s1342 + $0x1c8] sm:$0xff]
    %v1401 = vld [vmem:[%s1342 + $0x1d0] sm:$0xff]
    %v1402 = vld [vmem:[%s1342 + $0x1d8] sm:$0xff]
    %v1403 = vld [vmem:[%s1342 + $0x1e0] sm:$0xff]
    %v1404 = vld [vmem:[%s1342 + $0x1e8] sm:$0xff]
    %v1405 = vld [vmem:[%s1342 + $0x1f0] sm:$0xff]
    %v1406 = vld [vmem:[%s1342 + $0x1f8] sm:$0xff]
    %1407 = vmatprep.subr.mxu0 %v1374
    %1408 = vmatpush1.msra.mxu0 %v1373
    %1409 = vmatprep.subr.mxu0 %v1372
    %1410 = vmatpush1.msra.mxu0 %v1371
    %1411 = vmatprep.subr.mxu0 %v1370
    %1412 = vmatpush1.msra.mxu0 %v1369
    %1413 = vmatprep.subr.mxu0 %v1368
    %1414 = vmatpush1.msra.mxu0 %v1367
    %1415 = vmatprep.subr.mxu0 %v1366
    %1416 = vmatpush1.msra.mxu0 %v1365
    %1417 = vmatprep.subr.mxu0 %v1364
    %1418 = vmatpush1.msra.mxu0 %v1363
    %1419 = vmatprep.subr.mxu0 %v1362
    %1420 = vmatpush1.msra.mxu0 %v1361
    %1421 = vmatprep.subr.mxu0 %v1360
    %1422 = vmatpush1.msra.mxu0 %v1359
    %1423 = vmatprep.subr.mxu0 %v1358
    %1424 = vmatpush1.msra.mxu0 %v1357
    %1425 = vmatprep.subr.mxu0 %v1356
    %1426 = vmatpush1.msra.mxu0 %v1355
    %1427 = vmatprep.subr.mxu0 %v1354
    %1428 = vmatpush1.msra.mxu0 %v1353
    %1429 = vmatprep.subr.mxu0 %v1352
    %1430 = vmatpush1.msra.mxu0 %v1351
    %1431 = vmatprep.subr.mxu0 %v1350
    %1432 = vmatpush1.msra.mxu0 %v1349
    %1433 = vmatprep.subr.mxu0 %v1348
    %1434 = vmatpush1.msra.mxu0 %v1347
    %1435 = vmatprep.subr.mxu0 %v1346
    %1436 = vmatpush1.msra.mxu0 %v1345
    %1437 = vmatprep.subr.mxu0 %v1344
    %1438 = vmatpush1.msra.mxu0 %v1343
    %1439 = vmatprep.subr.mxu0 %v1406
    %1440 = vmatpush2.msra.mxu0 %v1405
    %1441 = vmatprep.subr.mxu0 %v1404
    %1442 = vmatpush2.msra.mxu0 %v1403
    %1443 = vmatprep.subr.mxu0 %v1402
    %1444 = vmatpush2.msra.mxu0 %v1401
    %1445 = vmatprep.subr.mxu0 %v1400
    %1446 = vmatpush2.msra.mxu0 %v1399
    %1447 = vmatprep.subr.mxu0 %v1398
    %1448 = vmatpush2.msra.mxu0 %v1397
    %1449 = vmatprep.subr.mxu0 %v1396
    %1450 = vmatpush2.msra.mxu0 %v1395
    %1451 = vmatprep.subr.mxu0 %v1394
    %1452 = vmatpush2.msra.mxu0 %v1393
    %1453 = vmatprep.subr.mxu0 %v1392
    %1454 = vmatpush2.msra.mxu0 %v1391
    %1455 = vmatprep.subr.mxu0 %v1390
    %1456 = vmatpush2.msra.mxu0 %v1389
    %1457 = vmatprep.subr.mxu0 %v1388
    %1458 = vmatpush2.msra.mxu0 %v1387
    %1459 = vmatprep.subr.mxu0 %v1386
    %1460 = vmatpush2.msra.mxu0 %v1385
    %1461 = vmatprep.subr.mxu0 %v1384
    %1462 = vmatpush2.msra.mxu0 %v1383
    %1463 = vmatprep.subr.mxu0 %v1382
    %1464 = vmatpush2.msra.mxu0 %v1381
    %1465 = vmatprep.subr.mxu0 %v1380
    %1466 = vmatpush2.msra.mxu0 %v1379
    %1467 = vmatprep.subr.mxu0 %v1378
    %1468 = vmatpush2.msra.mxu0 %v1377
    %1469 = vmatprep.subr.mxu0 %v1376
    %1470 = vmatpush2.msra.mxu0 %v1375
    %1471 = vmatprep.mubr.f32.mxu0 %v1201
    %1472 = vmatmul.mubr.f32.gmra.mxu0 %v1200
    %v1473 = vpop.f32.mrf.mxu0
    %v1474 = vadd.f32 0.0, %v1473
    %v1475 = vpop.f32.mrf.mxu0
    %v1476 = vadd.f32 0.0, %v1475
    %1477 = vdwg.mxu0
    %v1479 = vsel %vm870, %v1340, 0
    %v1482 = vsel %vm870, %v1341, 0
    %1484 = vmatprep.subr.mxu0 0.0
    %1485 = vmatpush1.msra.mxu0 0.0
    %1486 = vmatprep.subr.mxu0 0.0
    %1487 = vmatpush1.msra.mxu0 0.0
    %1488 = vmatprep.subr.mxu0 0.0
    %1489 = vmatpush1.msra.mxu0 0.0
    %1490 = vmatprep.subr.mxu0 0.0
    %1491 = vmatpush1.msra.mxu0 0.0
    %1492 = vmatprep.subr.mxu0 0.0
    %1493 = vmatpush1.msra.mxu0 0.0
    %1494 = vmatprep.subr.mxu0 0.0
    %1495 = vmatpush1.msra.mxu0 0.0
    %1496 = vmatprep.subr.mxu0 0.0
    %1497 = vmatpush1.msra.mxu0 0.0
    %1498 = vmatprep.subr.mxu0 0.0
    %1499 = vmatpush1.msra.mxu0 0.0
    %1500 = vmatprep.subr.mxu0 0.0
    %1501 = vmatpush1.msra.mxu0 0.0
    %1502 = vmatprep.subr.mxu0 0.0
    %1503 = vmatpush1.msra.mxu0 0.0
    %1504 = vmatprep.subr.mxu0 0.0
    %1505 = vmatpush1.msra.mxu0 0.0
    %1506 = vmatprep.subr.mxu0 0.0
    %1507 = vmatpush1.msra.mxu0 0.0
    %1508 = vmatprep.subr.mxu0 0.0
    %1509 = vmatpush1.msra.mxu0 0.0
    %1510 = vmatprep.subr.mxu0 0.0
    %1511 = vmatpush1.msra.mxu0 0.0
    %1512 = vmatprep.subr.mxu0 0.0
    %1513 = vmatpush1.msra.mxu0 0.0
    %1514 = vmatprep.subr.mxu0 %v1476
    %1515 = vmatpush1.msra.mxu0 %v1474
    %1516 = vmatprep.subr.mxu0 0.0
    %1517 = vmatpush2.msra.mxu0 0.0
    %1518 = vmatprep.subr.mxu0 0.0
    %1519 = vmatpush2.msra.mxu0 0.0
    %1520 = vmatprep.subr.mxu0 0.0
    %1521 = vmatpush2.msra.mxu0 0.0
    %1522 = vmatprep.subr.mxu0 0.0
    %1523 = vmatpush2.msra.mxu0 0.0
    %1524 = vmatprep.subr.mxu0 0.0
    %1525 = vmatpush2.msra.mxu0 0.0
    %1526 = vmatprep.subr.mxu0 0.0
    %1527 = vmatpush2.msra.mxu0 0.0
    %1528 = vmatprep.subr.mxu0 0.0
    %1529 = vmatpush2.msra.mxu0 0.0
    %1530 = vmatprep.subr.mxu0 0.0
    %1531 = vmatpush2.msra.mxu0 0.0
    %1532 = vmatprep.subr.mxu0 0.0
    %1533 = vmatpush2.msra.mxu0 0.0
    %1534 = vmatprep.subr.mxu0 0.0
    %1535 = vmatpush2.msra.mxu0 0.0
    %1536 = vmatprep.subr.mxu0 0.0
    %1537 = vmatpush2.msra.mxu0 0.0
    %1538 = vmatprep.subr.mxu0 0.0
    %1539 = vmatpush2.msra.mxu0 0.0
    %1540 = vmatprep.subr.mxu0 0.0
    %1541 = vmatpush2.msra.mxu0 0.0
    %1542 = vmatprep.subr.mxu0 0.0
    %1543 = vmatpush2.msra.mxu0 0.0
    %1544 = vmatprep.subr.mxu0 0.0
    %1545 = vmatpush2.msra.mxu0 0.0
    %1546 = vmatprep.subr.mxu0 0.0
    %1547 = vmatpush2.msra.mxu0 0.0
    %1548 = vmatprep.mubr.f32.mxu0 0.0
    %1549 = vmatmul.mubr.f32.gmra.mxu0 %v1479
    %v1550 = vpop.f32.mrf.mxu0
    %v1551 = vadd.f32 0.0, %v1550
    %v1552 = vpop.f32.mrf.mxu0
    %v1553 = vadd.f32 0.0, %v1552
    %1554 = vmatprep.mubr.f32.mxu0 0.0
    %1555 = vmatmul.mubr.f32.gmra.mxu0 %v1482
    %v1556 = vpop.f32.mrf.mxu0
    %v1557 = vadd.f32 0.0, %v1556
    %v1558 = vpop.f32.mrf.mxu0
    %v1559 = vadd.f32 0.0, %v1558
    %1560 = vdwg.mxu0
    %v1562 = vsel %vm870, %v1202, 0
    %v1565 = vsel %vm870, %v1203, 0
    %1567 = vmatprep.subr.mxu0 0.0
    %1568 = vmatpush1.msra.mxu0 0.0
    %1569 = vmatprep.subr.mxu0 0.0
    %1570 = vmatpush1.msra.mxu0 0.0
    %1571 = vmatprep.subr.mxu0 0.0
    %1572 = vmatpush1.msra.mxu0 0.0
    %1573 = vmatprep.subr.mxu0 0.0
    %1574 = vmatpush1.msra.mxu0 0.0
    %1575 = vmatprep.subr.mxu0 0.0
    %1576 = vmatpush1.msra.mxu0 0.0
    %1577 = vmatprep.subr.mxu0 0.0
    %1578 = vmatpush1.msra.mxu0 0.0
    %1579 = vmatprep.subr.mxu0 0.0
    %1580 = vmatpush1.msra.mxu0 0.0
    %1581 = vmatprep.subr.mxu0 0.0
    %1582 = vmatpush1.msra.mxu0 0.0
    %1583 = vmatprep.subr.mxu0 0.0
    %1584 = vmatpush1.msra.mxu0 0.0
    %1585 = vmatprep.subr.mxu0 0.0
    %1586 = vmatpush1.msra.mxu0 0.0
    %1587 = vmatprep.subr.mxu0 0.0
    %1588 = vmatpush1.msra.mxu0 0.0
    %1589 = vmatprep.subr.mxu0 0.0
    %1590 = vmatpush1.msra.mxu0 0.0
    %1591 = vmatprep.subr.mxu0 0.0
    %1592 = vmatpush1.msra.mxu0 0.0
    %1593 = vmatprep.subr.mxu0 0.0
    %1594 = vmatpush1.msra.mxu0 0.0
    %1595 = vmatprep.subr.mxu0 0.0
    %1596 = vmatpush1.msra.mxu0 0.0
    %1597 = vmatprep.subr.mxu0 %v1337
    %1598 = vmatpush1.msra.mxu0 %v1335
    %1599 = vmatprep.subr.mxu0 0.0
    %1600 = vmatpush2.msra.mxu0 0.0
    %1601 = vmatprep.subr.mxu0 0.0
    %1602 = vmatpush2.msra.mxu0 0.0
    %1603 = vmatprep.subr.mxu0 0.0
    %1604 = vmatpush2.msra.mxu0 0.0
    %1605 = vmatprep.subr.mxu0 0.0
    %1606 = vmatpush2.msra.mxu0 0.0
    %1607 = vmatprep.subr.mxu0 0.0
    %1608 = vmatpush2.msra.mxu0 0.0
    %1609 = vmatprep.subr.mxu0 0.0
    %1610 = vmatpush2.msra.mxu0 0.0
    %1611 = vmatprep.subr.mxu0 0.0
    %1612 = vmatpush2.msra.mxu0 0.0
    %1613 = vmatprep.subr.mxu0 0.0
    %1614 = vmatpush2.msra.mxu0 0.0
    %1615 = vmatprep.subr.mxu0 0.0
    %1616 = vmatpush2.msra.mxu0 0.0
    %1617 = vmatprep.subr.mxu0 0.0
    %1618 = vmatpush2.msra.mxu0 0.0
    %1619 = vmatprep.subr.mxu0 0.0
    %1620 = vmatpush2.msra.mxu0 0.0
    %1621 = vmatprep.subr.mxu0 0.0
    %1622 = vmatpush2.msra.mxu0 0.0
    %1623 = vmatprep.subr.mxu0 0.0
    %1624 = vmatpush2.msra.mxu0 0.0
    %1625 = vmatprep.subr.mxu0 0.0
    %1626 = vmatpush2.msra.mxu0 0.0
    %1627 = vmatprep.subr.mxu0 0.0
    %1628 = vmatpush2.msra.mxu0 0.0
    %1629 = vmatprep.subr.mxu0 0.0
    %1630 = vmatpush2.msra.mxu0 0.0
    %1631 = vmatprep.mubr.f32.mxu0 0.0
    %1632 = vmatmul.mubr.f32.gmra.mxu0 %v1562
    %v1633 = vpop.f32.mrf.mxu0
    %v1634 = vadd.f32 %v1551, %v1633
    %v1635 = vpop.f32.mrf.mxu0
    %v1636 = vadd.f32 %v1553, %v1635
    %1637 = vmatprep.mubr.f32.mxu0 0.0
    %1638 = vmatmul.mubr.f32.gmra.mxu0 %v1565
    %v1639 = vpop.f32.mrf.mxu0
    %v1640 = vadd.f32 %v1557, %v1639
    %v1641 = vpop.f32.mrf.mxu0
    %v1642 = vadd.f32 %v1559, %v1641
    %1643 = vdwg.mxu0
    %s1644 = scalar_lea.vmem %s7, 32
    %v1645 = vld [vmem:[%s1644] sm:$0xff]
    %v1646 = vld [vmem:[%s1644 + $0x8] sm:$0xff]
    %s1647 = scalar_lea.vmem %s3, 1024
    %v1648 = vld [vmem:[%s1647] sm:$0xff]
    %v1649 = vld [vmem:[%s1647 + $0x8] sm:$0xff]
    %v1650 = vld [vmem:[%s1647 + $0x10] sm:$0xff]
    %v1651 = vld [vmem:[%s1647 + $0x18] sm:$0xff]
    %v1652 = vld [vmem:[%s1647 + $0x20] sm:$0xff]
    %v1653 = vld [vmem:[%s1647 + $0x28] sm:$0xff]
    %v1654 = vld [vmem:[%s1647 + $0x30] sm:$0xff]
    %v1655 = vld [vmem:[%s1647 + $0x38] sm:$0xff]
    %v1656 = vld [vmem:[%s1647 + $0x40] sm:$0xff]
    %v1657 = vld [vmem:[%s1647 + $0x48] sm:$0xff]
    %v1658 = vld [vmem:[%s1647 + $0x50] sm:$0xff]
    %v1659 = vld [vmem:[%s1647 + $0x58] sm:$0xff]
    %v1660 = vld [vmem:[%s1647 + $0x60] sm:$0xff]
    %v1661 = vld [vmem:[%s1647 + $0x68] sm:$0xff]
    %v1662 = vld [vmem:[%s1647 + $0x70] sm:$0xff]
    %v1663 = vld [vmem:[%s1647 + $0x78] sm:$0xff]
    %v1664 = vld [vmem:[%s1647 + $0x80] sm:$0xff]
    %v1665 = vld [vmem:[%s1647 + $0x88] sm:$0xff]
    %v1666 = vld [vmem:[%s1647 + $0x90] sm:$0xff]
    %v1667 = vld [vmem:[%s1647 + $0x98] sm:$0xff]
    %v1668 = vld [vmem:[%s1647 + $0xa0] sm:$0xff]
    %v1669 = vld [vmem:[%s1647 + $0xa8] sm:$0xff]
    %v1670 = vld [vmem:[%s1647 + $0xb0] sm:$0xff]
    %v1671 = vld [vmem:[%s1647 + $0xb8] sm:$0xff]
    %v1672 = vld [vmem:[%s1647 + $0xc0] sm:$0xff]
    %v1673 = vld [vmem:[%s1647 + $0xc8] sm:$0xff]
    %v1674 = vld [vmem:[%s1647 + $0xd0] sm:$0xff]
    %v1675 = vld [vmem:[%s1647 + $0xd8] sm:$0xff]
    %v1676 = vld [vmem:[%s1647 + $0xe0] sm:$0xff]
    %v1677 = vld [vmem:[%s1647 + $0xe8] sm:$0xff]
    %v1678 = vld [vmem:[%s1647 + $0xf0] sm:$0xff]
    %v1679 = vld [vmem:[%s1647 + $0xf8] sm:$0xff]
    %v1680 = vld [vmem:[%s1647 + $0x100] sm:$0xff]
    %v1681 = vld [vmem:[%s1647 + $0x108] sm:$0xff]
    %v1682 = vld [vmem:[%s1647 + $0x110] sm:$0xff]
    %v1683 = vld [vmem:[%s1647 + $0x118] sm:$0xff]
    %v1684 = vld [vmem:[%s1647 + $0x120] sm:$0xff]
    %v1685 = vld [vmem:[%s1647 + $0x128] sm:$0xff]
    %v1686 = vld [vmem:[%s1647 + $0x130] sm:$0xff]
    %v1687 = vld [vmem:[%s1647 + $0x138] sm:$0xff]
    %v1688 = vld [vmem:[%s1647 + $0x140] sm:$0xff]
    %v1689 = vld [vmem:[%s1647 + $0x148] sm:$0xff]
    %v1690 = vld [vmem:[%s1647 + $0x150] sm:$0xff]
    %v1691 = vld [vmem:[%s1647 + $0x158] sm:$0xff]
    %v1692 = vld [vmem:[%s1647 + $0x160] sm:$0xff]
    %v1693 = vld [vmem:[%s1647 + $0x168] sm:$0xff]
    %v1694 = vld [vmem:[%s1647 + $0x170] sm:$0xff]
    %v1695 = vld [vmem:[%s1647 + $0x178] sm:$0xff]
    %v1696 = vld [vmem:[%s1647 + $0x180] sm:$0xff]
    %v1697 = vld [vmem:[%s1647 + $0x188] sm:$0xff]
    %v1698 = vld [vmem:[%s1647 + $0x190] sm:$0xff]
    %v1699 = vld [vmem:[%s1647 + $0x198] sm:$0xff]
    %v1700 = vld [vmem:[%s1647 + $0x1a0] sm:$0xff]
    %v1701 = vld [vmem:[%s1647 + $0x1a8] sm:$0xff]
    %v1702 = vld [vmem:[%s1647 + $0x1b0] sm:$0xff]
    %v1703 = vld [vmem:[%s1647 + $0x1b8] sm:$0xff]
    %v1704 = vld [vmem:[%s1647 + $0x1c0] sm:$0xff]
    %v1705 = vld [vmem:[%s1647 + $0x1c8] sm:$0xff]
    %v1706 = vld [vmem:[%s1647 + $0x1d0] sm:$0xff]
    %v1707 = vld [vmem:[%s1647 + $0x1d8] sm:$0xff]
    %v1708 = vld [vmem:[%s1647 + $0x1e0] sm:$0xff]
    %v1709 = vld [vmem:[%s1647 + $0x1e8] sm:$0xff]
    %v1710 = vld [vmem:[%s1647 + $0x1f0] sm:$0xff]
    %v1711 = vld [vmem:[%s1647 + $0x1f8] sm:$0xff]
    %1712 = vmatprep.subr.mxu0 %v1679
    %1713 = vmatpush1.msra.mxu0 %v1678
    %1714 = vmatprep.subr.mxu0 %v1677
    %1715 = vmatpush1.msra.mxu0 %v1676
    %1716 = vmatprep.subr.mxu0 %v1675
    %1717 = vmatpush1.msra.mxu0 %v1674
    %1718 = vmatprep.subr.mxu0 %v1673
    %1719 = vmatpush1.msra.mxu0 %v1672
    %1720 = vmatprep.subr.mxu0 %v1671
    %1721 = vmatpush1.msra.mxu0 %v1670
    %1722 = vmatprep.subr.mxu0 %v1669
    %1723 = vmatpush1.msra.mxu0 %v1668
    %1724 = vmatprep.subr.mxu0 %v1667
    %1725 = vmatpush1.msra.mxu0 %v1666
    %1726 = vmatprep.subr.mxu0 %v1665
    %1727 = vmatpush1.msra.mxu0 %v1664
    %1728 = vmatprep.subr.mxu0 %v1663
    %1729 = vmatpush1.msra.mxu0 %v1662
    %1730 = vmatprep.subr.mxu0 %v1661
    %1731 = vmatpush1.msra.mxu0 %v1660
    %1732 = vmatprep.subr.mxu0 %v1659
    %1733 = vmatpush1.msra.mxu0 %v1658
    %1734 = vmatprep.subr.mxu0 %v1657
    %1735 = vmatpush1.msra.mxu0 %v1656
    %1736 = vmatprep.subr.mxu0 %v1655
    %1737 = vmatpush1.msra.mxu0 %v1654
    %1738 = vmatprep.subr.mxu0 %v1653
    %1739 = vmatpush1.msra.mxu0 %v1652
    %1740 = vmatprep.subr.mxu0 %v1651
    %1741 = vmatpush1.msra.mxu0 %v1650
    %1742 = vmatprep.subr.mxu0 %v1649
    %1743 = vmatpush1.msra.mxu0 %v1648
    %1744 = vmatprep.subr.mxu0 %v1711
    %1745 = vmatpush2.msra.mxu0 %v1710
    %1746 = vmatprep.subr.mxu0 %v1709
    %1747 = vmatpush2.msra.mxu0 %v1708
    %1748 = vmatprep.subr.mxu0 %v1707
    %1749 = vmatpush2.msra.mxu0 %v1706
    %1750 = vmatprep.subr.mxu0 %v1705
    %1751 = vmatpush2.msra.mxu0 %v1704
    %1752 = vmatprep.subr.mxu0 %v1703
    %1753 = vmatpush2.msra.mxu0 %v1702
    %1754 = vmatprep.subr.mxu0 %v1701
    %1755 = vmatpush2.msra.mxu0 %v1700
    %1756 = vmatprep.subr.mxu0 %v1699
    %1757 = vmatpush2.msra.mxu0 %v1698
    %1758 = vmatprep.subr.mxu0 %v1697
    %1759 = vmatpush2.msra.mxu0 %v1696
    %1760 = vmatprep.subr.mxu0 %v1695
    %1761 = vmatpush2.msra.mxu0 %v1694
    %1762 = vmatprep.subr.mxu0 %v1693
    %1763 = vmatpush2.msra.mxu0 %v1692
    %1764 = vmatprep.subr.mxu0 %v1691
    %1765 = vmatpush2.msra.mxu0 %v1690
    %1766 = vmatprep.subr.mxu0 %v1689
    %1767 = vmatpush2.msra.mxu0 %v1688
    %1768 = vmatprep.subr.mxu0 %v1687
    %1769 = vmatpush2.msra.mxu0 %v1686
    %1770 = vmatprep.subr.mxu0 %v1685
    %1771 = vmatpush2.msra.mxu0 %v1684
    %1772 = vmatprep.subr.mxu0 %v1683
    %1773 = vmatpush2.msra.mxu0 %v1682
    %1774 = vmatprep.subr.mxu0 %v1681
    %1775 = vmatpush2.msra.mxu0 %v1680
    %1776 = vmatprep.mubr.f32.mxu0 %v1201
    %1777 = vmatmul.mubr.f32.gmra.mxu0 %v1200
    %v1778 = vpop.f32.mrf.mxu0
    %v1779 = vadd.f32 0.0, %v1778
    %v1780 = vpop.f32.mrf.mxu0
    %v1781 = vadd.f32 0.0, %v1780
    %1782 = vdwg.mxu0
    %v1784 = vsel %vm870, %v1645, 0
    %v1787 = vsel %vm870, %v1646, 0
    %1789 = vmatprep.subr.mxu0 0.0
    %1790 = vmatpush1.msra.mxu0 0.0
    %1791 = vmatprep.subr.mxu0 0.0
    %1792 = vmatpush1.msra.mxu0 0.0
    %1793 = vmatprep.subr.mxu0 0.0
    %1794 = vmatpush1.msra.mxu0 0.0
    %1795 = vmatprep.subr.mxu0 0.0
    %1796 = vmatpush1.msra.mxu0 0.0
    %1797 = vmatprep.subr.mxu0 0.0
    %1798 = vmatpush1.msra.mxu0 0.0
    %1799 = vmatprep.subr.mxu0 0.0
    %1800 = vmatpush1.msra.mxu0 0.0
    %1801 = vmatprep.subr.mxu0 0.0
    %1802 = vmatpush1.msra.mxu0 0.0
    %1803 = vmatprep.subr.mxu0 0.0
    %1804 = vmatpush1.msra.mxu0 0.0
    %1805 = vmatprep.subr.mxu0 0.0
    %1806 = vmatpush1.msra.mxu0 0.0
    %1807 = vmatprep.subr.mxu0 0.0
    %1808 = vmatpush1.msra.mxu0 0.0
    %1809 = vmatprep.subr.mxu0 0.0
    %1810 = vmatpush1.msra.mxu0 0.0
    %1811 = vmatprep.subr.mxu0 0.0
    %1812 = vmatpush1.msra.mxu0 0.0
    %1813 = vmatprep.subr.mxu0 0.0
    %1814 = vmatpush1.msra.mxu0 0.0
    %1815 = vmatprep.subr.mxu0 0.0
    %1816 = vmatpush1.msra.mxu0 0.0
    %1817 = vmatprep.subr.mxu0 0.0
    %1818 = vmatpush1.msra.mxu0 0.0
    %1819 = vmatprep.subr.mxu0 %v1781
    %1820 = vmatpush1.msra.mxu0 %v1779
    %1821 = vmatprep.subr.mxu0 0.0
    %1822 = vmatpush2.msra.mxu0 0.0
    %1823 = vmatprep.subr.mxu0 0.0
    %1824 = vmatpush2.msra.mxu0 0.0
    %1825 = vmatprep.subr.mxu0 0.0
    %1826 = vmatpush2.msra.mxu0 0.0
    %1827 = vmatprep.subr.mxu0 0.0
    %1828 = vmatpush2.msra.mxu0 0.0
    %1829 = vmatprep.subr.mxu0 0.0
    %1830 = vmatpush2.msra.mxu0 0.0
    %1831 = vmatprep.subr.mxu0 0.0
    %1832 = vmatpush2.msra.mxu0 0.0
    %1833 = vmatprep.subr.mxu0 0.0
    %1834 = vmatpush2.msra.mxu0 0.0
    %1835 = vmatprep.subr.mxu0 0.0
    %1836 = vmatpush2.msra.mxu0 0.0
    %1837 = vmatprep.subr.mxu0 0.0
    %1838 = vmatpush2.msra.mxu0 0.0
    %1839 = vmatprep.subr.mxu0 0.0
    %1840 = vmatpush2.msra.mxu0 0.0
    %1841 = vmatprep.subr.mxu0 0.0
    %1842 = vmatpush2.msra.mxu0 0.0
    %1843 = vmatprep.subr.mxu0 0.0
    %1844 = vmatpush2.msra.mxu0 0.0
    %1845 = vmatprep.subr.mxu0 0.0
    %1846 = vmatpush2.msra.mxu0 0.0
    %1847 = vmatprep.subr.mxu0 0.0
    %1848 = vmatpush2.msra.mxu0 0.0
    %1849 = vmatprep.subr.mxu0 0.0
    %1850 = vmatpush2.msra.mxu0 0.0
    %1851 = vmatprep.subr.mxu0 0.0
    %1852 = vmatpush2.msra.mxu0 0.0
    %1853 = vmatprep.mubr.f32.mxu0 0.0
    %1854 = vmatmul.mubr.f32.gmra.mxu0 %v1784
    %v1855 = vpop.f32.mrf.mxu0
    %v1856 = vadd.f32 0.0, %v1855
    %v1857 = vpop.f32.mrf.mxu0
    %v1858 = vadd.f32 0.0, %v1857
    %1859 = vmatprep.mubr.f32.mxu0 0.0
    %1860 = vmatmul.mubr.f32.gmra.mxu0 %v1787
    %v1861 = vpop.f32.mrf.mxu0
    %v1862 = vadd.f32 0.0, %v1861
    %v1863 = vpop.f32.mrf.mxu0
    %v1864 = vadd.f32 0.0, %v1863
    %1865 = vdwg.mxu0
    %v1866 = vadd.f32 %v1634, %v1856
    %v1867 = vadd.f32 %v1636, %v1858
    %v1868 = vadd.f32 %v1640, %v1862
    %v1869 = vadd.f32 %v1642, %v1864
    %s1870 = scalar_lea.vmem %s7, 48
    %v1871 = vld [vmem:[%s1870] sm:$0xff]
    %v1872 = vld [vmem:[%s1870 + $0x8] sm:$0xff]
    %s1873 = scalar_lea.vmem %s3, 1536
    %v1874 = vld [vmem:[%s1873] sm:$0xff]
    %v1875 = vld [vmem:[%s1873 + $0x8] sm:$0xff]
    %v1876 = vld [vmem:[%s1873 + $0x10] sm:$0xff]
    %v1877 = vld [vmem:[%s1873 + $0x18] sm:$0xff]
    %v1878 = vld [vmem:[%s1873 + $0x20] sm:$0xff]
    %v1879 = vld [vmem:[%s1873 + $0x28] sm:$0xff]
    %v1880 = vld [vmem:[%s1873 + $0x30] sm:$0xff]
    %v1881 = vld [vmem:[%s1873 + $0x38] sm:$0xff]
    %v1882 = vld [vmem:[%s1873 + $0x40] sm:$0xff]
    %v1883 = vld [vmem:[%s1873 + $0x48] sm:$0xff]
    %v1884 = vld [vmem:[%s1873 + $0x50] sm:$0xff]
    %v1885 = vld [vmem:[%s1873 + $0x58] sm:$0xff]
    %v1886 = vld [vmem:[%s1873 + $0x60] sm:$0xff]
    %v1887 = vld [vmem:[%s1873 + $0x68] sm:$0xff]
    %v1888 = vld [vmem:[%s1873 + $0x70] sm:$0xff]
    %v1889 = vld [vmem:[%s1873 + $0x78] sm:$0xff]
    %v1890 = vld [vmem:[%s1873 + $0x80] sm:$0xff]
    %v1891 = vld [vmem:[%s1873 + $0x88] sm:$0xff]
    %v1892 = vld [vmem:[%s1873 + $0x90] sm:$0xff]
    %v1893 = vld [vmem:[%s1873 + $0x98] sm:$0xff]
    %v1894 = vld [vmem:[%s1873 + $0xa0] sm:$0xff]
    %v1895 = vld [vmem:[%s1873 + $0xa8] sm:$0xff]
    %v1896 = vld [vmem:[%s1873 + $0xb0] sm:$0xff]
    %v1897 = vld [vmem:[%s1873 + $0xb8] sm:$0xff]
    %v1898 = vld [vmem:[%s1873 + $0xc0] sm:$0xff]
    %v1899 = vld [vmem:[%s1873 + $0xc8] sm:$0xff]
    %v1900 = vld [vmem:[%s1873 + $0xd0] sm:$0xff]
    %v1901 = vld [vmem:[%s1873 + $0xd8] sm:$0xff]
    %v1902 = vld [vmem:[%s1873 + $0xe0] sm:$0xff]
    %v1903 = vld [vmem:[%s1873 + $0xe8] sm:$0xff]
    %v1904 = vld [vmem:[%s1873 + $0xf0] sm:$0xff]
    %v1905 = vld [vmem:[%s1873 + $0xf8] sm:$0xff]
    %v1906 = vld [vmem:[%s1873 + $0x100] sm:$0xff]
    %v1907 = vld [vmem:[%s1873 + $0x108] sm:$0xff]
    %v1908 = vld [vmem:[%s1873 + $0x110] sm:$0xff]
    %v1909 = vld [vmem:[%s1873 + $0x118] sm:$0xff]
    %v1910 = vld [vmem:[%s1873 + $0x120] sm:$0xff]
    %v1911 = vld [vmem:[%s1873 + $0x128] sm:$0xff]
    %v1912 = vld [vmem:[%s1873 + $0x130] sm:$0xff]
    %v1913 = vld [vmem:[%s1873 + $0x138] sm:$0xff]
    %v1914 = vld [vmem:[%s1873 + $0x140] sm:$0xff]
    %v1915 = vld [vmem:[%s1873 + $0x148] sm:$0xff]
    %v1916 = vld [vmem:[%s1873 + $0x150] sm:$0xff]
    %v1917 = vld [vmem:[%s1873 + $0x158] sm:$0xff]
    %v1918 = vld [vmem:[%s1873 + $0x160] sm:$0xff]
    %v1919 = vld [vmem:[%s1873 + $0x168] sm:$0xff]
    %v1920 = vld [vmem:[%s1873 + $0x170] sm:$0xff]
    %v1921 = vld [vmem:[%s1873 + $0x178] sm:$0xff]
    %v1922 = vld [vmem:[%s1873 + $0x180] sm:$0xff]
    %v1923 = vld [vmem:[%s1873 + $0x188] sm:$0xff]
    %v1924 = vld [vmem:[%s1873 + $0x190] sm:$0xff]
    %v1925 = vld [vmem:[%s1873 + $0x198] sm:$0xff]
    %v1926 = vld [vmem:[%s1873 + $0x1a0] sm:$0xff]
    %v1927 = vld [vmem:[%s1873 + $0x1a8] sm:$0xff]
    %v1928 = vld [vmem:[%s1873 + $0x1b0] sm:$0xff]
    %v1929 = vld [vmem:[%s1873 + $0x1b8] sm:$0xff]
    %v1930 = vld [vmem:[%s1873 + $0x1c0] sm:$0xff]
    %v1931 = vld [vmem:[%s1873 + $0x1c8] sm:$0xff]
    %v1932 = vld [vmem:[%s1873 + $0x1d0] sm:$0xff]
    %v1933 = vld [vmem:[%s1873 + $0x1d8] sm:$0xff]
    %v1934 = vld [vmem:[%s1873 + $0x1e0] sm:$0xff]
    %v1935 = vld [vmem:[%s1873 + $0x1e8] sm:$0xff]
    %v1936 = vld [vmem:[%s1873 + $0x1f0] sm:$0xff]
    %v1937 = vld [vmem:[%s1873 + $0x1f8] sm:$0xff]
    %1938 = vmatprep.subr.mxu0 %v1905
    %1939 = vmatpush1.msra.mxu0 %v1904
    %1940 = vmatprep.subr.mxu0 %v1903
    %1941 = vmatpush1.msra.mxu0 %v1902
    %1942 = vmatprep.subr.mxu0 %v1901
    %1943 = vmatpush1.msra.mxu0 %v1900
    %1944 = vmatprep.subr.mxu0 %v1899
    %1945 = vmatpush1.msra.mxu0 %v1898
    %1946 = vmatprep.subr.mxu0 %v1897
    %1947 = vmatpush1.msra.mxu0 %v1896
    %1948 = vmatprep.subr.mxu0 %v1895
    %1949 = vmatpush1.msra.mxu0 %v1894
    %1950 = vmatprep.subr.mxu0 %v1893
    %1951 = vmatpush1.msra.mxu0 %v1892
    %1952 = vmatprep.subr.mxu0 %v1891
    %1953 = vmatpush1.msra.mxu0 %v1890
    %1954 = vmatprep.subr.mxu0 %v1889
    %1955 = vmatpush1.msra.mxu0 %v1888
    %1956 = vmatprep.subr.mxu0 %v1887
    %1957 = vmatpush1.msra.mxu0 %v1886
    %1958 = vmatprep.subr.mxu0 %v1885
    %1959 = vmatpush1.msra.mxu0 %v1884
    %1960 = vmatprep.subr.mxu0 %v1883
    %1961 = vmatpush1.msra.mxu0 %v1882
    %1962 = vmatprep.subr.mxu0 %v1881
    %1963 = vmatpush1.msra.mxu0 %v1880
    %1964 = vmatprep.subr.mxu0 %v1879
    %1965 = vmatpush1.msra.mxu0 %v1878
    %1966 = vmatprep.subr.mxu0 %v1877
    %1967 = vmatpush1.msra.mxu0 %v1876
    %1968 = vmatprep.subr.mxu0 %v1875
    %1969 = vmatpush1.msra.mxu0 %v1874
    %1970 = vmatprep.subr.mxu0 %v1937
    %1971 = vmatpush2.msra.mxu0 %v1936
    %1972 = vmatprep.subr.mxu0 %v1935
    %1973 = vmatpush2.msra.mxu0 %v1934
    %1974 = vmatprep.subr.mxu0 %v1933
    %1975 = vmatpush2.msra.mxu0 %v1932
    %1976 = vmatprep.subr.mxu0 %v1931
    %1977 = vmatpush2.msra.mxu0 %v1930
    %1978 = vmatprep.subr.mxu0 %v1929
    %1979 = vmatpush2.msra.mxu0 %v1928
    %1980 = vmatprep.subr.mxu0 %v1927
    %1981 = vmatpush2.msra.mxu0 %v1926
    %1982 = vmatprep.subr.mxu0 %v1925
    %1983 = vmatpush2.msra.mxu0 %v1924
    %1984 = vmatprep.subr.mxu0 %v1923
    %1985 = vmatpush2.msra.mxu0 %v1922
    %1986 = vmatprep.subr.mxu0 %v1921
    %1987 = vmatpush2.msra.mxu0 %v1920
    %1988 = vmatprep.subr.mxu0 %v1919
    %1989 = vmatpush2.msra.mxu0 %v1918
    %1990 = vmatprep.subr.mxu0 %v1917
    %1991 = vmatpush2.msra.mxu0 %v1916
    %1992 = vmatprep.subr.mxu0 %v1915
    %1993 = vmatpush2.msra.mxu0 %v1914
    %1994 = vmatprep.subr.mxu0 %v1913
    %1995 = vmatpush2.msra.mxu0 %v1912
    %1996 = vmatprep.subr.mxu0 %v1911
    %1997 = vmatpush2.msra.mxu0 %v1910
    %1998 = vmatprep.subr.mxu0 %v1909
    %1999 = vmatpush2.msra.mxu0 %v1908
    %2000 = vmatprep.subr.mxu0 %v1907
    %2001 = vmatpush2.msra.mxu0 %v1906
    %2002 = vmatprep.mubr.f32.mxu0 %v1201
    %2003 = vmatmul.mubr.f32.gmra.mxu0 %v1200
    %v2004 = vpop.f32.mrf.mxu0
    %v2005 = vadd.f32 0.0, %v2004
    %v2006 = vpop.f32.mrf.mxu0
    %v2007 = vadd.f32 0.0, %v2006
    %2008 = vdwg.mxu0
    %v2010 = vsel %vm870, %v1871, 0
    %v2013 = vsel %vm870, %v1872, 0
    %2015 = vmatprep.subr.mxu0 0.0
    %2016 = vmatpush1.msra.mxu0 0.0
    %2017 = vmatprep.subr.mxu0 0.0
    %2018 = vmatpush1.msra.mxu0 0.0
    %2019 = vmatprep.subr.mxu0 0.0
    %2020 = vmatpush1.msra.mxu0 0.0
    %2021 = vmatprep.subr.mxu0 0.0
    %2022 = vmatpush1.msra.mxu0 0.0
    %2023 = vmatprep.subr.mxu0 0.0
    %2024 = vmatpush1.msra.mxu0 0.0
    %2025 = vmatprep.subr.mxu0 0.0
    %2026 = vmatpush1.msra.mxu0 0.0
    %2027 = vmatprep.subr.mxu0 0.0
    %2028 = vmatpush1.msra.mxu0 0.0
    %2029 = vmatprep.subr.mxu0 0.0
    %2030 = vmatpush1.msra.mxu0 0.0
    %2031 = vmatprep.subr.mxu0 0.0
    %2032 = vmatpush1.msra.mxu0 0.0
    %2033 = vmatprep.subr.mxu0 0.0
    %2034 = vmatpush1.msra.mxu0 0.0
    %2035 = vmatprep.subr.mxu0 0.0
    %2036 = vmatpush1.msra.mxu0 0.0
    %2037 = vmatprep.subr.mxu0 0.0
    %2038 = vmatpush1.msra.mxu0 0.0
    %2039 = vmatprep.subr.mxu0 0.0
    %2040 = vmatpush1.msra.mxu0 0.0
    %2041 = vmatprep.subr.mxu0 0.0
    %2042 = vmatpush1.msra.mxu0 0.0
    %2043 = vmatprep.subr.mxu0 0.0
    %2044 = vmatpush1.msra.mxu0 0.0
    %2045 = vmatprep.subr.mxu0 %v2007
    %2046 = vmatpush1.msra.mxu0 %v2005
    %2047 = vmatprep.subr.mxu0 0.0
    %2048 = vmatpush2.msra.mxu0 0.0
    %2049 = vmatprep.subr.mxu0 0.0
    %2050 = vmatpush2.msra.mxu0 0.0
    %2051 = vmatprep.subr.mxu0 0.0
    %2052 = vmatpush2.msra.mxu0 0.0
    %2053 = vmatprep.subr.mxu0 0.0
    %2054 = vmatpush2.msra.mxu0 0.0
    %2055 = vmatprep.subr.mxu0 0.0
    %2056 = vmatpush2.msra.mxu0 0.0
    %2057 = vmatprep.subr.mxu0 0.0
    %2058 = vmatpush2.msra.mxu0 0.0
    %2059 = vmatprep.subr.mxu0 0.0
    %2060 = vmatpush2.msra.mxu0 0.0
    %2061 = vmatprep.subr.mxu0 0.0
    %2062 = vmatpush2.msra.mxu0 0.0
    %2063 = vmatprep.subr.mxu0 0.0
    %2064 = vmatpush2.msra.mxu0 0.0
    %2065 = vmatprep.subr.mxu0 0.0
    %2066 = vmatpush2.msra.mxu0 0.0
    %2067 = vmatprep.subr.mxu0 0.0
    %2068 = vmatpush2.msra.mxu0 0.0
    %2069 = vmatprep.subr.mxu0 0.0
    %2070 = vmatpush2.msra.mxu0 0.0
    %2071 = vmatprep.subr.mxu0 0.0
    %2072 = vmatpush2.msra.mxu0 0.0
    %2073 = vmatprep.subr.mxu0 0.0
    %2074 = vmatpush2.msra.mxu0 0.0
    %2075 = vmatprep.subr.mxu0 0.0
    %2076 = vmatpush2.msra.mxu0 0.0
    %2077 = vmatprep.subr.mxu0 0.0
    %2078 = vmatpush2.msra.mxu0 0.0
    %2079 = vmatprep.mubr.f32.mxu0 0.0
    %2080 = vmatmul.mubr.f32.gmra.mxu0 %v2010
    %v2081 = vpop.f32.mrf.mxu0
    %v2082 = vadd.f32 0.0, %v2081
    %v2083 = vpop.f32.mrf.mxu0
    %v2084 = vadd.f32 0.0, %v2083
    %2085 = vmatprep.mubr.f32.mxu0 0.0
    %2086 = vmatmul.mubr.f32.gmra.mxu0 %v2013
    %v2087 = vpop.f32.mrf.mxu0
    %v2088 = vadd.f32 0.0, %v2087
    %v2089 = vpop.f32.mrf.mxu0
    %v2090 = vadd.f32 0.0, %v2089
    %2091 = vdwg.mxu0
    %v2092 = vadd.f32 %v1866, %v2082
    %v2093 = vadd.f32 %v1867, %v2084
    %v2094 = vadd.f32 %v1868, %v2088
    %v2095 = vadd.f32 %v1869, %v2090
    %s2096 = scalar_lea.vmem %s11, 512
    %v2097 = vld [vmem:[%s2096] sm:$0xff]
    %v2098 = vld [vmem:[%s2096 + $0x8] sm:$0xff]
    %v2099 = vld [vmem:[%s2096 + $0x10] sm:$0xff]
    %v2100 = vld [vmem:[%s2096 + $0x18] sm:$0xff]
    %v2101 = vld [vmem:[%s2096 + $0x20] sm:$0xff]
    %v2102 = vld [vmem:[%s2096 + $0x28] sm:$0xff]
    %v2103 = vld [vmem:[%s2096 + $0x30] sm:$0xff]
    %v2104 = vld [vmem:[%s2096 + $0x38] sm:$0xff]
    %v2105 = vld [vmem:[%s2096 + $0x40] sm:$0xff]
    %v2106 = vld [vmem:[%s2096 + $0x48] sm:$0xff]
    %v2107 = vld [vmem:[%s2096 + $0x50] sm:$0xff]
    %v2108 = vld [vmem:[%s2096 + $0x58] sm:$0xff]
    %v2109 = vld [vmem:[%s2096 + $0x60] sm:$0xff]
    %v2110 = vld [vmem:[%s2096 + $0x68] sm:$0xff]
    %v2111 = vld [vmem:[%s2096 + $0x70] sm:$0xff]
    %v2112 = vld [vmem:[%s2096 + $0x78] sm:$0xff]
    %v2113 = vld [vmem:[%s2096 + $0x80] sm:$0xff]
    %v2114 = vld [vmem:[%s2096 + $0x88] sm:$0xff]
    %v2115 = vld [vmem:[%s2096 + $0x90] sm:$0xff]
    %v2116 = vld [vmem:[%s2096 + $0x98] sm:$0xff]
    %v2117 = vld [vmem:[%s2096 + $0xa0] sm:$0xff]
    %v2118 = vld [vmem:[%s2096 + $0xa8] sm:$0xff]
    %v2119 = vld [vmem:[%s2096 + $0xb0] sm:$0xff]
    %v2120 = vld [vmem:[%s2096 + $0xb8] sm:$0xff]
    %v2121 = vld [vmem:[%s2096 + $0xc0] sm:$0xff]
    %v2122 = vld [vmem:[%s2096 + $0xc8] sm:$0xff]
    %v2123 = vld [vmem:[%s2096 + $0xd0] sm:$0xff]
    %v2124 = vld [vmem:[%s2096 + $0xd8] sm:$0xff]
    %v2125 = vld [vmem:[%s2096 + $0xe0] sm:$0xff]
    %v2126 = vld [vmem:[%s2096 + $0xe8] sm:$0xff]
    %v2127 = vld [vmem:[%s2096 + $0xf0] sm:$0xff]
    %v2128 = vld [vmem:[%s2096 + $0xf8] sm:$0xff]
    %v2129 = vld [vmem:[%s2096 + $0x100] sm:$0xff]
    %v2130 = vld [vmem:[%s2096 + $0x108] sm:$0xff]
    %v2131 = vld [vmem:[%s2096 + $0x110] sm:$0xff]
    %v2132 = vld [vmem:[%s2096 + $0x118] sm:$0xff]
    %v2133 = vld [vmem:[%s2096 + $0x120] sm:$0xff]
    %v2134 = vld [vmem:[%s2096 + $0x128] sm:$0xff]
    %v2135 = vld [vmem:[%s2096 + $0x130] sm:$0xff]
    %v2136 = vld [vmem:[%s2096 + $0x138] sm:$0xff]
    %v2137 = vld [vmem:[%s2096 + $0x140] sm:$0xff]
    %v2138 = vld [vmem:[%s2096 + $0x148] sm:$0xff]
    %v2139 = vld [vmem:[%s2096 + $0x150] sm:$0xff]
    %v2140 = vld [vmem:[%s2096 + $0x158] sm:$0xff]
    %v2141 = vld [vmem:[%s2096 + $0x160] sm:$0xff]
    %v2142 = vld [vmem:[%s2096 + $0x168] sm:$0xff]
    %v2143 = vld [vmem:[%s2096 + $0x170] sm:$0xff]
    %v2144 = vld [vmem:[%s2096 + $0x178] sm:$0xff]
    %v2145 = vld [vmem:[%s2096 + $0x180] sm:$0xff]
    %v2146 = vld [vmem:[%s2096 + $0x188] sm:$0xff]
    %v2147 = vld [vmem:[%s2096 + $0x190] sm:$0xff]
    %v2148 = vld [vmem:[%s2096 + $0x198] sm:$0xff]
    %v2149 = vld [vmem:[%s2096 + $0x1a0] sm:$0xff]
    %v2150 = vld [vmem:[%s2096 + $0x1a8] sm:$0xff]
    %v2151 = vld [vmem:[%s2096 + $0x1b0] sm:$0xff]
    %v2152 = vld [vmem:[%s2096 + $0x1b8] sm:$0xff]
    %v2153 = vld [vmem:[%s2096 + $0x1c0] sm:$0xff]
    %v2154 = vld [vmem:[%s2096 + $0x1c8] sm:$0xff]
    %v2155 = vld [vmem:[%s2096 + $0x1d0] sm:$0xff]
    %v2156 = vld [vmem:[%s2096 + $0x1d8] sm:$0xff]
    %v2157 = vld [vmem:[%s2096 + $0x1e0] sm:$0xff]
    %v2158 = vld [vmem:[%s2096 + $0x1e8] sm:$0xff]
    %v2159 = vld [vmem:[%s2096 + $0x1f0] sm:$0xff]
    %v2160 = vld [vmem:[%s2096 + $0x1f8] sm:$0xff]
    %vm2161 = vcmask 130048
    %v2162 = vsel %vm2161, 1.0, 0
    %2164 = vmatprep.subr.mxu0 0.0
    %2165 = vmatpush1.msra.mxu0 0.0
    %2166 = vmatprep.subr.mxu0 0.0
    %2167 = vmatpush1.msra.mxu0 0.0
    %2168 = vmatprep.subr.mxu0 0.0
    %2169 = vmatpush1.msra.mxu0 0.0
    %2170 = vmatprep.subr.mxu0 0.0
    %2171 = vmatpush1.msra.mxu0 0.0
    %2172 = vmatprep.subr.mxu0 0.0
    %2173 = vmatpush1.msra.mxu0 0.0
    %2174 = vmatprep.subr.mxu0 0.0
    %2175 = vmatpush1.msra.mxu0 0.0
    %2176 = vmatprep.subr.mxu0 0.0
    %2177 = vmatpush1.msra.mxu0 0.0
    %2178 = vmatprep.subr.mxu0 0.0
    %2179 = vmatpush1.msra.mxu0 0.0
    %2180 = vmatprep.subr.mxu0 0.0
    %2181 = vmatpush1.msra.mxu0 0.0
    %2182 = vmatprep.subr.mxu0 0.0
    %2183 = vmatpush1.msra.mxu0 0.0
    %2184 = vmatprep.subr.mxu0 0.0
    %2185 = vmatpush1.msra.mxu0 0.0
    %2186 = vmatprep.subr.mxu0 0.0
    %2187 = vmatpush1.msra.mxu0 0.0
    %2188 = vmatprep.subr.mxu0 0.0
    %2189 = vmatpush1.msra.mxu0 0.0
    %2190 = vmatprep.subr.mxu0 0.0
    %2191 = vmatpush1.msra.mxu0 0.0
    %2192 = vmatprep.subr.mxu0 %v2095
    %2193 = vmatpush1.msra.mxu0 %v2094
    %2194 = vmatprep.subr.mxu0 %v2093
    %2195 = vmatpush1.msra.mxu0 %v2092
    %2196 = vmatprep.subr.mxu0 0.0
    %2197 = vmatpush2.msra.mxu0 0.0
    %2198 = vmatprep.subr.mxu0 0.0
    %2199 = vmatpush2.msra.mxu0 0.0
    %2200 = vmatprep.subr.mxu0 0.0
    %2201 = vmatpush2.msra.mxu0 0.0
    %2202 = vmatprep.subr.mxu0 0.0
    %2203 = vmatpush2.msra.mxu0 0.0
    %2204 = vmatprep.subr.mxu0 0.0
    %2205 = vmatpush2.msra.mxu0 0.0
    %2206 = vmatprep.subr.mxu0 0.0
    %2207 = vmatpush2.msra.mxu0 0.0
    %2208 = vmatprep.subr.mxu0 0.0
    %2209 = vmatpush2.msra.mxu0 0.0
    %2210 = vmatprep.subr.mxu0 0.0
    %2211 = vmatpush2.msra.mxu0 0.0
    %2212 = vmatprep.subr.mxu0 0.0
    %2213 = vmatpush2.msra.mxu0 0.0
    %2214 = vmatprep.subr.mxu0 0.0
    %2215 = vmatpush2.msra.mxu0 0.0
    %2216 = vmatprep.subr.mxu0 0.0
    %2217 = vmatpush2.msra.mxu0 0.0
    %2218 = vmatprep.subr.mxu0 0.0
    %2219 = vmatpush2.msra.mxu0 0.0
    %2220 = vmatprep.subr.mxu0 0.0
    %2221 = vmatpush2.msra.mxu0 0.0
    %2222 = vmatprep.subr.mxu0 0.0
    %2223 = vmatpush2.msra.mxu0 0.0
    %2224 = vmatprep.subr.mxu0 0.0
    %2225 = vmatpush2.msra.mxu0 0.0
    %2226 = vmatprep.subr.mxu0 0.0
    %2227 = vmatpush2.msra.mxu0 0.0
    %2228 = vmatprep.mubr.f32.mxu0 0.0
    %2229 = vmatmul.mubr.f32.gmra.mxu0 %v2162
    %v2230 = vpop.f32.mrf.mxu0
    %v2231 = vadd.f32 0.0, %v2230
    %v2232 = vpop.f32.mrf.mxu0
    %v2233 = vadd.f32 0.0, %v2232
    %2234 = vdwg.mxu0
    %2235 = vmatprep.subr.mxu0 %v2128
    %2236 = vmatpush1.msra.mxu0 %v2127
    %2237 = vmatprep.subr.mxu0 %v2126
    %2238 = vmatpush1.msra.mxu0 %v2125
    %2239 = vmatprep.subr.mxu0 %v2124
    %2240 = vmatpush1.msra.mxu0 %v2123
    %2241 = vmatprep.subr.mxu0 %v2122
    %2242 = vmatpush1.msra.mxu0 %v2121
    %2243 = vmatprep.subr.mxu0 %v2120
    %2244 = vmatpush1.msra.mxu0 %v2119
    %2245 = vmatprep.subr.mxu0 %v2118
    %2246 = vmatpush1.msra.mxu0 %v2117
    %2247 = vmatprep.subr.mxu0 %v2116
    %2248 = vmatpush1.msra.mxu0 %v2115
    %2249 = vmatprep.subr.mxu0 %v2114
    %2250 = vmatpush1.msra.mxu0 %v2113
    %2251 = vmatprep.subr.mxu0 %v2112
    %2252 = vmatpush1.msra.mxu0 %v2111
    %2253 = vmatprep.subr.mxu0 %v2110
    %2254 = vmatpush1.msra.mxu0 %v2109
    %2255 = vmatprep.subr.mxu0 %v2108
    %2256 = vmatpush1.msra.mxu0 %v2107
    %2257 = vmatprep.subr.mxu0 %v2106
    %2258 = vmatpush1.msra.mxu0 %v2105
    %2259 = vmatprep.subr.mxu0 %v2104
    %2260 = vmatpush1.msra.mxu0 %v2103
    %2261 = vmatprep.subr.mxu0 %v2102
    %2262 = vmatpush1.msra.mxu0 %v2101
    %2263 = vmatprep.subr.mxu0 %v2100
    %2264 = vmatpush1.msra.mxu0 %v2099
    %2265 = vmatprep.subr.mxu0 %v2098
    %2266 = vmatpush1.msra.mxu0 %v2097
    %2267 = vmatprep.subr.mxu0 %v2160
    %2268 = vmatpush2.msra.mxu0 %v2159
    %2269 = vmatprep.subr.mxu0 %v2158
    %2270 = vmatpush2.msra.mxu0 %v2157
    %2271 = vmatprep.subr.mxu0 %v2156
    %2272 = vmatpush2.msra.mxu0 %v2155
    %2273 = vmatprep.subr.mxu0 %v2154
    %2274 = vmatpush2.msra.mxu0 %v2153
    %2275 = vmatprep.subr.mxu0 %v2152
    %2276 = vmatpush2.msra.mxu0 %v2151
    %2277 = vmatprep.subr.mxu0 %v2150
    %2278 = vmatpush2.msra.mxu0 %v2149
    %2279 = vmatprep.subr.mxu0 %v2148
    %2280 = vmatpush2.msra.mxu0 %v2147
    %2281 = vmatprep.subr.mxu0 %v2146
    %2282 = vmatpush2.msra.mxu0 %v2145
    %2283 = vmatprep.subr.mxu0 %v2144
    %2284 = vmatpush2.msra.mxu0 %v2143
    %2285 = vmatprep.subr.mxu0 %v2142
    %2286 = vmatpush2.msra.mxu0 %v2141
    %2287 = vmatprep.subr.mxu0 %v2140
    %2288 = vmatpush2.msra.mxu0 %v2139
    %2289 = vmatprep.subr.mxu0 %v2138
    %2290 = vmatpush2.msra.mxu0 %v2137
    %2291 = vmatprep.subr.mxu0 %v2136
    %2292 = vmatpush2.msra.mxu0 %v2135
    %2293 = vmatprep.subr.mxu0 %v2134
    %2294 = vmatpush2.msra.mxu0 %v2133
    %2295 = vmatprep.subr.mxu0 %v2132
    %2296 = vmatpush2.msra.mxu0 %v2131
    %2297 = vmatprep.subr.mxu0 %v2130
    %2298 = vmatpush2.msra.mxu0 %v2129
    %2299 = vmatprep.mubr.f32.mxu0 %v2233
    %2300 = vmatmul.mubr.f32.gmra.mxu0 %v2231
    %v2301 = vpop.f32.mrf.mxu0
    %v2302 = vadd.f32 0.0, %v2301
    %v2303 = vpop.f32.mrf.mxu0
    %v2304 = vadd.f32 0.0, %v2303
    %2305 = vdwg.mxu0
    %v2306 = vmul.f32 %v2302, 0.0078125
    %v2307 = vmul.f32 %v2304, 0.0078125
    %v2308 = vlaneseq
    %v2309 = vshrl.u32 %v2308, 7
    %v2310 = vsub.s32 0, %v2309
    %v2311 = vrot.slane %v2306, %v2310
    %v2312 = vlaneseq
    %v2313 = vshrl.u32 %v2312, 7
    %v2314 = vsub.s32 0, %v2313
    %v2315 = vrot.slane %v2307, %v2314
    %v2316 = vsub.f32 %v2092, %v2311
    %v2317 = vsub.f32 %v2093, %v2315
    %v2318 = vsub.f32 %v2094, %v2311
    %v2319 = vsub.f32 %v2095, %v2315
    %v2320 = vmul.f32 %v2316, %v2316
    %v2321 = vmul.f32 %v2317, %v2317
    %v2322 = vmul.f32 %v2318, %v2318
    %v2323 = vmul.f32 %v2319, %v2319
    %2324 = vmatprep.subr.mxu0 0.0
    %2325 = vmatpush1.msra.mxu0 0.0
    %2326 = vmatprep.subr.mxu0 0.0
    %2327 = vmatpush1.msra.mxu0 0.0
    %2328 = vmatprep.subr.mxu0 0.0
    %2329 = vmatpush1.msra.mxu0 0.0
    %2330 = vmatprep.subr.mxu0 0.0
    %2331 = vmatpush1.msra.mxu0 0.0
    %2332 = vmatprep.subr.mxu0 0.0
    %2333 = vmatpush1.msra.mxu0 0.0
    %2334 = vmatprep.subr.mxu0 0.0
    %2335 = vmatpush1.msra.mxu0 0.0
    %2336 = vmatprep.subr.mxu0 0.0
    %2337 = vmatpush1.msra.mxu0 0.0
    %2338 = vmatprep.subr.mxu0 0.0
    %2339 = vmatpush1.msra.mxu0 0.0
    %2340 = vmatprep.subr.mxu0 0.0
    %2341 = vmatpush1.msra.mxu0 0.0
    %2342 = vmatprep.subr.mxu0 0.0
    %2343 = vmatpush1.msra.mxu0 0.0
    %2344 = vmatprep.subr.mxu0 0.0
    %2345 = vmatpush1.msra.mxu0 0.0
    %2346 = vmatprep.subr.mxu0 0.0
    %2347 = vmatpush1.msra.mxu0 0.0
    %2348 = vmatprep.subr.mxu0 0.0
    %2349 = vmatpush1.msra.mxu0 0.0
    %2350 = vmatprep.subr.mxu0 0.0
    %2351 = vmatpush1.msra.mxu0 0.0
    %2352 = vmatprep.subr.mxu0 %v2323
    %2353 = vmatpush1.msra.mxu0 %v2322
    %2354 = vmatprep.subr.mxu0 %v2321
    %2355 = vmatpush1.msra.mxu0 %v2320
    %2356 = vmatprep.subr.mxu0 0.0
    %2357 = vmatpush2.msra.mxu0 0.0
    %2358 = vmatprep.subr.mxu0 0.0
    %2359 = vmatpush2.msra.mxu0 0.0
    %2360 = vmatprep.subr.mxu0 0.0
    %2361 = vmatpush2.msra.mxu0 0.0
    %2362 = vmatprep.subr.mxu0 0.0
    %2363 = vmatpush2.msra.mxu0 0.0
    %2364 = vmatprep.subr.mxu0 0.0
    %2365 = vmatpush2.msra.mxu0 0.0
    %2366 = vmatprep.subr.mxu0 0.0
    %2367 = vmatpush2.msra.mxu0 0.0
    %2368 = vmatprep.subr.mxu0 0.0
    %2369 = vmatpush2.msra.mxu0 0.0
    %2370 = vmatprep.subr.mxu0 0.0
    %2371 = vmatpush2.msra.mxu0 0.0
    %2372 = vmatprep.subr.mxu0 0.0
    %2373 = vmatpush2.msra.mxu0 0.0
    %2374 = vmatprep.subr.mxu0 0.0
    %2375 = vmatpush2.msra.mxu0 0.0
    %2376 = vmatprep.subr.mxu0 0.0
    %2377 = vmatpush2.msra.mxu0 0.0
    %2378 = vmatprep.subr.mxu0 0.0
    %2379 = vmatpush2.msra.mxu0 0.0
    %2380 = vmatprep.subr.mxu0 0.0
    %2381 = vmatpush2.msra.mxu0 0.0
    %2382 = vmatprep.subr.mxu0 0.0
    %2383 = vmatpush2.msra.mxu0 0.0
    %2384 = vmatprep.subr.mxu0 0.0
    %2385 = vmatpush2.msra.mxu0 0.0
    %2386 = vmatprep.subr.mxu0 0.0
    %2387 = vmatpush2.msra.mxu0 0.0
    %2388 = vmatprep.mubr.f32.mxu0 0.0
    %2389 = vmatmul.mubr.f32.gmra.mxu0 %v2162
    %v2390 = vpop.f32.mrf.mxu0
    %v2391 = vadd.f32 0.0, %v2390
    %v2392 = vpop.f32.mrf.mxu0
    %v2393 = vadd.f32 0.0, %v2392
    %2394 = vdwg.mxu0
    %2395 = vmatprep.subr.mxu0 %v2128
    %2396 = vmatpush1.msra.mxu0 %v2127
    %2397 = vmatprep.subr.mxu0 %v2126
    %2398 = vmatpush1.msra.mxu0 %v2125
    %2399 = vmatprep.subr.mxu0 %v2124
    %2400 = vmatpush1.msra.mxu0 %v2123
    %2401 = vmatprep.subr.mxu0 %v2122
    %2402 = vmatpush1.msra.mxu0 %v2121
    %2403 = vmatprep.subr.mxu0 %v2120
    %2404 = vmatpush1.msra.mxu0 %v2119
    %2405 = vmatprep.subr.mxu0 %v2118
    %2406 = vmatpush1.msra.mxu0 %v2117
    %2407 = vmatprep.subr.mxu0 %v2116
    %2408 = vmatpush1.msra.mxu0 %v2115
    %2409 = vmatprep.subr.mxu0 %v2114
    %2410 = vmatpush1.msra.mxu0 %v2113
    %2411 = vmatprep.subr.mxu0 %v2112
    %2412 = vmatpush1.msra.mxu0 %v2111
    %2413 = vmatprep.subr.mxu0 %v2110
    %2414 = vmatpush1.msra.mxu0 %v2109
    %2415 = vmatprep.subr.mxu0 %v2108
    %2416 = vmatpush1.msra.mxu0 %v2107
    %2417 = vmatprep.subr.mxu0 %v2106
    %2418 = vmatpush1.msra.mxu0 %v2105
    %2419 = vmatprep.subr.mxu0 %v2104
    %2420 = vmatpush1.msra.mxu0 %v2103
    %2421 = vmatprep.subr.mxu0 %v2102
    %2422 = vmatpush1.msra.mxu0 %v2101
    %2423 = vmatprep.subr.mxu0 %v2100
    %2424 = vmatpush1.msra.mxu0 %v2099
    %2425 = vmatprep.subr.mxu0 %v2098
    %2426 = vmatpush1.msra.mxu0 %v2097
    %2427 = vmatprep.subr.mxu0 %v2160
    %2428 = vmatpush2.msra.mxu0 %v2159
    %2429 = vmatprep.subr.mxu0 %v2158
    %2430 = vmatpush2.msra.mxu0 %v2157
    %2431 = vmatprep.subr.mxu0 %v2156
    %2432 = vmatpush2.msra.mxu0 %v2155
    %2433 = vmatprep.subr.mxu0 %v2154
    %2434 = vmatpush2.msra.mxu0 %v2153
    %2435 = vmatprep.subr.mxu0 %v2152
    %2436 = vmatpush2.msra.mxu0 %v2151
    %2437 = vmatprep.subr.mxu0 %v2150
    %2438 = vmatpush2.msra.mxu0 %v2149
    %2439 = vmatprep.subr.mxu0 %v2148
    %2440 = vmatpush2.msra.mxu0 %v2147
    %2441 = vmatprep.subr.mxu0 %v2146
    %2442 = vmatpush2.msra.mxu0 %v2145
    %2443 = vmatprep.subr.mxu0 %v2144
    %2444 = vmatpush2.msra.mxu0 %v2143
    %2445 = vmatprep.subr.mxu0 %v2142
    %2446 = vmatpush2.msra.mxu0 %v2141
    %2447 = vmatprep.subr.mxu0 %v2140
    %2448 = vmatpush2.msra.mxu0 %v2139
    %2449 = vmatprep.subr.mxu0 %v2138
    %2450 = vmatpush2.msra.mxu0 %v2137
    %2451 = vmatprep.subr.mxu0 %v2136
    %2452 = vmatpush2.msra.mxu0 %v2135
    %2453 = vmatprep.subr.mxu0 %v2134
    %2454 = vmatpush2.msra.mxu0 %v2133
    %2455 = vmatprep.subr.mxu0 %v2132
    %2456 = vmatpush2.msra.mxu0 %v2131
    %2457 = vmatprep.subr.mxu0 %v2130
    %2458 = vmatpush2.msra.mxu0 %v2129
    %2459 = vmatprep.mubr.f32.mxu0 %v2393
    %2460 = vmatmul.mubr.f32.gmra.mxu0 %v2391
    %v2461 = vpop.f32.mrf.mxu0
    %v2462 = vadd.f32 0.0, %v2461
    %v2463 = vpop.f32.mrf.mxu0
    %v2464 = vadd.f32 0.0, %v2463
    %2465 = vdwg.mxu0
    %v2466 = vmul.f32 %v2462, 0.0078125
    %v2467 = vmul.f32 %v2464, 0.0078125
    %v2468 = vadd.f32 %v2466, 1e-05
    %v2469 = vadd.f32 %v2467, 1e-05
    %v2470 = vrsqrt.pop %v2468
    %v2471 = vrsqrt.pop %v2469
    %v2474 = vrot.slane %v2470, 6
    %v2475 = vrot.slane %v2471, 6
    %v2478 = vmul.f32 %v50, %v2474
    %v2479 = vmul.f32 %v51, %v2475
    %v2480 = vlaneseq
    %v2481 = vshrl.u32 %v2480, 7
    %v2482 = vsub.s32 2, %v2481
    %v2483 = vrot.slane %v2478, %v2482
    %v2484 = vlaneseq
    %v2485 = vshrl.u32 %v2484, 7
    %v2486 = vsub.s32 2, %v2485
    %v2487 = vrot.slane %v2479, %v2486
    %v2488 = vmul.f32 %v2316, %v2483
    %v2489 = vmul.f32 %v2317, %v2487
    %v2490 = vmul.f32 %v2318, %v2483
    %v2491 = vmul.f32 %v2319, %v2487
    %v2492 = vlaneseq
    %v2493 = vshrl.u32 %v2492, 7
    %v2494 = vsub.s32 3, %v2493
    %v2495 = vrot.slane %v50, %v2494
    %v2496 = vlaneseq
    %v2497 = vshrl.u32 %v2496, 7
    %v2498 = vsub.s32 3, %v2497
    %v2499 = vrot.slane %v51, %v2498
    %v2500 = vadd.f32 %v2488, %v2495
    %v2501 = vadd.f32 %v2489, %v2499
    %v2502 = vadd.f32 %v2490, %v2495
    %v2503 = vadd.f32 %v2491, %v2499
    %v2504 = vmax.f32 %v2500, 0.0
    %v2505 = vmax.f32 %v2501, 0.0
    %v2506 = vmax.f32 %v2502, 0.0
    %v2507 = vmax.f32 %v2503, 0.0
    %v2508 = vld [vmem:[%s8] sm:$0xff]
    %v2509 = vld [vmem:[%s8 + $0x8] sm:$0xff]
    %v2510 = vld [vmem:[%s8 + $0x10] sm:$0xff]
    %v2511 = vld [vmem:[%s8 + $0x18] sm:$0xff]
    %v2512 = vld [vmem:[%s4] sm:$0xff]
    %v2513 = vld [vmem:[%s4 + $0x8] sm:$0xff]
    %v2514 = vld [vmem:[%s4 + $0x10] sm:$0xff]
    %v2515 = vld [vmem:[%s4 + $0x18] sm:$0xff]
    %v2516 = vld [vmem:[%s4 + $0x20] sm:$0xff]
    %v2517 = vld [vmem:[%s4 + $0x28] sm:$0xff]
    %v2518 = vld [vmem:[%s4 + $0x30] sm:$0xff]
    %v2519 = vld [vmem:[%s4 + $0x38] sm:$0xff]
    %v2520 = vld [vmem:[%s4 + $0x40] sm:$0xff]
    %v2521 = vld [vmem:[%s4 + $0x48] sm:$0xff]
    %v2522 = vld [vmem:[%s4 + $0x50] sm:$0xff]
    %v2523 = vld [vmem:[%s4 + $0x58] sm:$0xff]
    %v2524 = vld [vmem:[%s4 + $0x60] sm:$0xff]
    %v2525 = vld [vmem:[%s4 + $0x68] sm:$0xff]
    %v2526 = vld [vmem:[%s4 + $0x70] sm:$0xff]
    %v2527 = vld [vmem:[%s4 + $0x78] sm:$0xff]
    %v2528 = vld [vmem:[%s4 + $0x80] sm:$0xff]
    %v2529 = vld [vmem:[%s4 + $0x88] sm:$0xff]
    %v2530 = vld [vmem:[%s4 + $0x90] sm:$0xff]
    %v2531 = vld [vmem:[%s4 + $0x98] sm:$0xff]
    %v2532 = vld [vmem:[%s4 + $0xa0] sm:$0xff]
    %v2533 = vld [vmem:[%s4 + $0xa8] sm:$0xff]
    %v2534 = vld [vmem:[%s4 + $0xb0] sm:$0xff]
    %v2535 = vld [vmem:[%s4 + $0xb8] sm:$0xff]
    %v2536 = vld [vmem:[%s4 + $0xc0] sm:$0xff]
    %v2537 = vld [vmem:[%s4 + $0xc8] sm:$0xff]
    %v2538 = vld [vmem:[%s4 + $0xd0] sm:$0xff]
    %v2539 = vld [vmem:[%s4 + $0xd8] sm:$0xff]
    %v2540 = vld [vmem:[%s4 + $0xe0] sm:$0xff]
    %v2541 = vld [vmem:[%s4 + $0xe8] sm:$0xff]
    %v2542 = vld [vmem:[%s4 + $0xf0] sm:$0xff]
    %v2543 = vld [vmem:[%s4 + $0xf8] sm:$0xff]
    %v2544 = vld [vmem:[%s4 + $0x100] sm:$0xff]
    %v2545 = vld [vmem:[%s4 + $0x108] sm:$0xff]
    %v2546 = vld [vmem:[%s4 + $0x110] sm:$0xff]
    %v2547 = vld [vmem:[%s4 + $0x118] sm:$0xff]
    %v2548 = vld [vmem:[%s4 + $0x120] sm:$0xff]
    %v2549 = vld [vmem:[%s4 + $0x128] sm:$0xff]
    %v2550 = vld [vmem:[%s4 + $0x130] sm:$0xff]
    %v2551 = vld [vmem:[%s4 + $0x138] sm:$0xff]
    %v2552 = vld [vmem:[%s4 + $0x140] sm:$0xff]
    %v2553 = vld [vmem:[%s4 + $0x148] sm:$0xff]
    %v2554 = vld [vmem:[%s4 + $0x150] sm:$0xff]
    %v2555 = vld [vmem:[%s4 + $0x158] sm:$0xff]
    %v2556 = vld [vmem:[%s4 + $0x160] sm:$0xff]
    %v2557 = vld [vmem:[%s4 + $0x168] sm:$0xff]
    %v2558 = vld [vmem:[%s4 + $0x170] sm:$0xff]
    %v2559 = vld [vmem:[%s4 + $0x178] sm:$0xff]
    %v2560 = vld [vmem:[%s4 + $0x180] sm:$0xff]
    %v2561 = vld [vmem:[%s4 + $0x188] sm:$0xff]
    %v2562 = vld [vmem:[%s4 + $0x190] sm:$0xff]
    %v2563 = vld [vmem:[%s4 + $0x198] sm:$0xff]
    %v2564 = vld [vmem:[%s4 + $0x1a0] sm:$0xff]
    %v2565 = vld [vmem:[%s4 + $0x1a8] sm:$0xff]
    %v2566 = vld [vmem:[%s4 + $0x1b0] sm:$0xff]
    %v2567 = vld [vmem:[%s4 + $0x1b8] sm:$0xff]
    %v2568 = vld [vmem:[%s4 + $0x1c0] sm:$0xff]
    %v2569 = vld [vmem:[%s4 + $0x1c8] sm:$0xff]
    %v2570 = vld [vmem:[%s4 + $0x1d0] sm:$0xff]
    %v2571 = vld [vmem:[%s4 + $0x1d8] sm:$0xff]
    %v2572 = vld [vmem:[%s4 + $0x1e0] sm:$0xff]
    %v2573 = vld [vmem:[%s4 + $0x1e8] sm:$0xff]
    %v2574 = vld [vmem:[%s4 + $0x1f0] sm:$0xff]
    %v2575 = vld [vmem:[%s4 + $0x1f8] sm:$0xff]
    %2576 = vmatprep.subr.mxu0 %v2543
    %2577 = vmatpush1.msra.mxu0 %v2542
    %2578 = vmatprep.subr.mxu0 %v2541
    %2579 = vmatpush1.msra.mxu0 %v2540
    %2580 = vmatprep.subr.mxu0 %v2539
    %2581 = vmatpush1.msra.mxu0 %v2538
    %2582 = vmatprep.subr.mxu0 %v2537
    %2583 = vmatpush1.msra.mxu0 %v2536
    %2584 = vmatprep.subr.mxu0 %v2535
    %2585 = vmatpush1.msra.mxu0 %v2534
    %2586 = vmatprep.subr.mxu0 %v2533
    %2587 = vmatpush1.msra.mxu0 %v2532
    %2588 = vmatprep.subr.mxu0 %v2531
    %2589 = vmatpush1.msra.mxu0 %v2530
    %2590 = vmatprep.subr.mxu0 %v2529
    %2591 = vmatpush1.msra.mxu0 %v2528
    %2592 = vmatprep.subr.mxu0 %v2527
    %2593 = vmatpush1.msra.mxu0 %v2526
    %2594 = vmatprep.subr.mxu0 %v2525
    %2595 = vmatpush1.msra.mxu0 %v2524
    %2596 = vmatprep.subr.mxu0 %v2523
    %2597 = vmatpush1.msra.mxu0 %v2522
    %2598 = vmatprep.subr.mxu0 %v2521
    %2599 = vmatpush1.msra.mxu0 %v2520
    %2600 = vmatprep.subr.mxu0 %v2519
    %2601 = vmatpush1.msra.mxu0 %v2518
    %2602 = vmatprep.subr.mxu0 %v2517
    %2603 = vmatpush1.msra.mxu0 %v2516
    %2604 = vmatprep.subr.mxu0 %v2515
    %2605 = vmatpush1.msra.mxu0 %v2514
    %2606 = vmatprep.subr.mxu0 %v2513
    %2607 = vmatpush1.msra.mxu0 %v2512
    %2608 = vmatprep.subr.mxu0 %v2575
    %2609 = vmatpush2.msra.mxu0 %v2574
    %2610 = vmatprep.subr.mxu0 %v2573
    %2611 = vmatpush2.msra.mxu0 %v2572
    %2612 = vmatprep.subr.mxu0 %v2571
    %2613 = vmatpush2.msra.mxu0 %v2570
    %2614 = vmatprep.subr.mxu0 %v2569
    %2615 = vmatpush2.msra.mxu0 %v2568
    %2616 = vmatprep.subr.mxu0 %v2567
    %2617 = vmatpush2.msra.mxu0 %v2566
    %2618 = vmatprep.subr.mxu0 %v2565
    %2619 = vmatpush2.msra.mxu0 %v2564
    %2620 = vmatprep.subr.mxu0 %v2563
    %2621 = vmatpush2.msra.mxu0 %v2562
    %2622 = vmatprep.subr.mxu0 %v2561
    %2623 = vmatpush2.msra.mxu0 %v2560
    %2624 = vmatprep.subr.mxu0 %v2559
    %2625 = vmatpush2.msra.mxu0 %v2558
    %2626 = vmatprep.subr.mxu0 %v2557
    %2627 = vmatpush2.msra.mxu0 %v2556
    %2628 = vmatprep.subr.mxu0 %v2555
    %2629 = vmatpush2.msra.mxu0 %v2554
    %2630 = vmatprep.subr.mxu0 %v2553
    %2631 = vmatpush2.msra.mxu0 %v2552
    %2632 = vmatprep.subr.mxu0 %v2551
    %2633 = vmatpush2.msra.mxu0 %v2550
    %2634 = vmatprep.subr.mxu0 %v2549
    %2635 = vmatpush2.msra.mxu0 %v2548
    %2636 = vmatprep.subr.mxu0 %v2547
    %2637 = vmatpush2.msra.mxu0 %v2546
    %2638 = vmatprep.subr.mxu0 %v2545
    %2639 = vmatpush2.msra.mxu0 %v2544
    %2640 = vmatprep.mubr.f32.mxu0 %v2505
    %2641 = vmatmul.mubr.f32.gmra.mxu0 %v2504
    %v2642 = vpop.f32.mrf.mxu0
    %v2643 = vadd.f32 0.0, %v2642
    %v2644 = vpop.f32.mrf.mxu0
    %v2645 = vadd.f32 0.0, %v2644
    %2646 = vmatprep.mubr.f32.mxu0 %v2507
    %2647 = vmatmul.mubr.f32.gmra.mxu0 %v2506
    %v2648 = vpop.f32.mrf.mxu0
    %v2649 = vadd.f32 0.0, %v2648
    %v2650 = vpop.f32.mrf.mxu0
    %v2651 = vadd.f32 0.0, %v2650
    %2652 = vdwg.mxu0
    %s2653 = scalar_lea.vmem %s8, 32
    %v2654 = vld [vmem:[%s2653] sm:$0xff]
    %v2655 = vld [vmem:[%s2653 + $0x8] sm:$0xff]
    %v2656 = vld [vmem:[%s2653 + $0x10] sm:$0xff]
    %v2657 = vld [vmem:[%s2653 + $0x18] sm:$0xff]
    %s2658 = scalar_lea.vmem %s4, 512
    %v2659 = vld [vmem:[%s2658] sm:$0xff]
    %v2660 = vld [vmem:[%s2658 + $0x8] sm:$0xff]
    %v2661 = vld [vmem:[%s2658 + $0x10] sm:$0xff]
    %v2662 = vld [vmem:[%s2658 + $0x18] sm:$0xff]
    %v2663 = vld [vmem:[%s2658 + $0x20] sm:$0xff]
    %v2664 = vld [vmem:[%s2658 + $0x28] sm:$0xff]
    %v2665 = vld [vmem:[%s2658 + $0x30] sm:$0xff]
    %v2666 = vld [vmem:[%s2658 + $0x38] sm:$0xff]
    %v2667 = vld [vmem:[%s2658 + $0x40] sm:$0xff]
    %v2668 = vld [vmem:[%s2658 + $0x48] sm:$0xff]
    %v2669 = vld [vmem:[%s2658 + $0x50] sm:$0xff]
    %v2670 = vld [vmem:[%s2658 + $0x58] sm:$0xff]
    %v2671 = vld [vmem:[%s2658 + $0x60] sm:$0xff]
    %v2672 = vld [vmem:[%s2658 + $0x68] sm:$0xff]
    %v2673 = vld [vmem:[%s2658 + $0x70] sm:$0xff]
    %v2674 = vld [vmem:[%s2658 + $0x78] sm:$0xff]
    %v2675 = vld [vmem:[%s2658 + $0x80] sm:$0xff]
    %v2676 = vld [vmem:[%s2658 + $0x88] sm:$0xff]
    %v2677 = vld [vmem:[%s2658 + $0x90] sm:$0xff]
    %v2678 = vld [vmem:[%s2658 + $0x98] sm:$0xff]
    %v2679 = vld [vmem:[%s2658 + $0xa0] sm:$0xff]
    %v2680 = vld [vmem:[%s2658 + $0xa8] sm:$0xff]
    %v2681 = vld [vmem:[%s2658 + $0xb0] sm:$0xff]
    %v2682 = vld [vmem:[%s2658 + $0xb8] sm:$0xff]
    %v2683 = vld [vmem:[%s2658 + $0xc0] sm:$0xff]
    %v2684 = vld [vmem:[%s2658 + $0xc8] sm:$0xff]
    %v2685 = vld [vmem:[%s2658 + $0xd0] sm:$0xff]
    %v2686 = vld [vmem:[%s2658 + $0xd8] sm:$0xff]
    %v2687 = vld [vmem:[%s2658 + $0xe0] sm:$0xff]
    %v2688 = vld [vmem:[%s2658 + $0xe8] sm:$0xff]
    %v2689 = vld [vmem:[%s2658 + $0xf0] sm:$0xff]
    %v2690 = vld [vmem:[%s2658 + $0xf8] sm:$0xff]
    %v2691 = vld [vmem:[%s2658 + $0x100] sm:$0xff]
    %v2692 = vld [vmem:[%s2658 + $0x108] sm:$0xff]
    %v2693 = vld [vmem:[%s2658 + $0x110] sm:$0xff]
    %v2694 = vld [vmem:[%s2658 + $0x118] sm:$0xff]
    %v2695 = vld [vmem:[%s2658 + $0x120] sm:$0xff]
    %v2696 = vld [vmem:[%s2658 + $0x128] sm:$0xff]
    %v2697 = vld [vmem:[%s2658 + $0x130] sm:$0xff]
    %v2698 = vld [vmem:[%s2658 + $0x138] sm:$0xff]
    %v2699 = vld [vmem:[%s2658 + $0x140] sm:$0xff]
    %v2700 = vld [vmem:[%s2658 + $0x148] sm:$0xff]
    %v2701 = vld [vmem:[%s2658 + $0x150] sm:$0xff]
    %v2702 = vld [vmem:[%s2658 + $0x158] sm:$0xff]
    %v2703 = vld [vmem:[%s2658 + $0x160] sm:$0xff]
    %v2704 = vld [vmem:[%s2658 + $0x168] sm:$0xff]
    %v2705 = vld [vmem:[%s2658 + $0x170] sm:$0xff]
    %v2706 = vld [vmem:[%s2658 + $0x178] sm:$0xff]
    %v2707 = vld [vmem:[%s2658 + $0x180] sm:$0xff]
    %v2708 = vld [vmem:[%s2658 + $0x188] sm:$0xff]
    %v2709 = vld [vmem:[%s2658 + $0x190] sm:$0xff]
    %v2710 = vld [vmem:[%s2658 + $0x198] sm:$0xff]
    %v2711 = vld [vmem:[%s2658 + $0x1a0] sm:$0xff]
    %v2712 = vld [vmem:[%s2658 + $0x1a8] sm:$0xff]
    %v2713 = vld [vmem:[%s2658 + $0x1b0] sm:$0xff]
    %v2714 = vld [vmem:[%s2658 + $0x1b8] sm:$0xff]
    %v2715 = vld [vmem:[%s2658 + $0x1c0] sm:$0xff]
    %v2716 = vld [vmem:[%s2658 + $0x1c8] sm:$0xff]
    %v2717 = vld [vmem:[%s2658 + $0x1d0] sm:$0xff]
    %v2718 = vld [vmem:[%s2658 + $0x1d8] sm:$0xff]
    %v2719 = vld [vmem:[%s2658 + $0x1e0] sm:$0xff]
    %v2720 = vld [vmem:[%s2658 + $0x1e8] sm:$0xff]
    %v2721 = vld [vmem:[%s2658 + $0x1f0] sm:$0xff]
    %v2722 = vld [vmem:[%s2658 + $0x1f8] sm:$0xff]
    %2723 = vmatprep.subr.mxu0 %v2690
    %2724 = vmatpush1.msra.mxu0 %v2689
    %2725 = vmatprep.subr.mxu0 %v2688
    %2726 = vmatpush1.msra.mxu0 %v2687
    %2727 = vmatprep.subr.mxu0 %v2686
    %2728 = vmatpush1.msra.mxu0 %v2685
    %2729 = vmatprep.subr.mxu0 %v2684
    %2730 = vmatpush1.msra.mxu0 %v2683
    %2731 = vmatprep.subr.mxu0 %v2682
    %2732 = vmatpush1.msra.mxu0 %v2681
    %2733 = vmatprep.subr.mxu0 %v2680
    %2734 = vmatpush1.msra.mxu0 %v2679
    %2735 = vmatprep.subr.mxu0 %v2678
    %2736 = vmatpush1.msra.mxu0 %v2677
    %2737 = vmatprep.subr.mxu0 %v2676
    %2738 = vmatpush1.msra.mxu0 %v2675
    %2739 = vmatprep.subr.mxu0 %v2674
    %2740 = vmatpush1.msra.mxu0 %v2673
    %2741 = vmatprep.subr.mxu0 %v2672
    %2742 = vmatpush1.msra.mxu0 %v2671
    %2743 = vmatprep.subr.mxu0 %v2670
    %2744 = vmatpush1.msra.mxu0 %v2669
    %2745 = vmatprep.subr.mxu0 %v2668
    %2746 = vmatpush1.msra.mxu0 %v2667
    %2747 = vmatprep.subr.mxu0 %v2666
    %2748 = vmatpush1.msra.mxu0 %v2665
    %2749 = vmatprep.subr.mxu0 %v2664
    %2750 = vmatpush1.msra.mxu0 %v2663
    %2751 = vmatprep.subr.mxu0 %v2662
    %2752 = vmatpush1.msra.mxu0 %v2661
    %2753 = vmatprep.subr.mxu0 %v2660
    %2754 = vmatpush1.msra.mxu0 %v2659
    %2755 = vmatprep.subr.mxu0 %v2722
    %2756 = vmatpush2.msra.mxu0 %v2721
    %2757 = vmatprep.subr.mxu0 %v2720
    %2758 = vmatpush2.msra.mxu0 %v2719
    %2759 = vmatprep.subr.mxu0 %v2718
    %2760 = vmatpush2.msra.mxu0 %v2717
    %2761 = vmatprep.subr.mxu0 %v2716
    %2762 = vmatpush2.msra.mxu0 %v2715
    %2763 = vmatprep.subr.mxu0 %v2714
    %2764 = vmatpush2.msra.mxu0 %v2713
    %2765 = vmatprep.subr.mxu0 %v2712
    %2766 = vmatpush2.msra.mxu0 %v2711
    %2767 = vmatprep.subr.mxu0 %v2710
    %2768 = vmatpush2.msra.mxu0 %v2709
    %2769 = vmatprep.subr.mxu0 %v2708
    %2770 = vmatpush2.msra.mxu0 %v2707
    %2771 = vmatprep.subr.mxu0 %v2706
    %2772 = vmatpush2.msra.mxu0 %v2705
    %2773 = vmatprep.subr.mxu0 %v2704
    %2774 = vmatpush2.msra.mxu0 %v2703
    %2775 = vmatprep.subr.mxu0 %v2702
    %2776 = vmatpush2.msra.mxu0 %v2701
    %2777 = vmatprep.subr.mxu0 %v2700
    %2778 = vmatpush2.msra.mxu0 %v2699
    %2779 = vmatprep.subr.mxu0 %v2698
    %2780 = vmatpush2.msra.mxu0 %v2697
    %2781 = vmatprep.subr.mxu0 %v2696
    %2782 = vmatpush2.msra.mxu0 %v2695
    %2783 = vmatprep.subr.mxu0 %v2694
    %2784 = vmatpush2.msra.mxu0 %v2693
    %2785 = vmatprep.subr.mxu0 %v2692
    %2786 = vmatpush2.msra.mxu0 %v2691
    %2787 = vmatprep.mubr.f32.mxu0 %v2505
    %2788 = vmatmul.mubr.f32.gmra.mxu0 %v2504
    %v2789 = vpop.f32.mrf.mxu0
    %v2790 = vadd.f32 0.0, %v2789
    %v2791 = vpop.f32.mrf.mxu0
    %v2792 = vadd.f32 0.0, %v2791
    %2793 = vmatprep.mubr.f32.mxu0 %v2507
    %2794 = vmatmul.mubr.f32.gmra.mxu0 %v2506
    %v2795 = vpop.f32.mrf.mxu0
    %v2796 = vadd.f32 0.0, %v2795
    %v2797 = vpop.f32.mrf.mxu0
    %v2798 = vadd.f32 0.0, %v2797
    %2799 = vdwg.mxu0
    %v2801 = vsel %vm2161, %v2654, 0
    %v2804 = vsel %vm2161, %v2655, 0
    %v2807 = vsel %vm2161, %v2656, 0
    %v2810 = vsel %vm2161, %v2657, 0
    %2812 = vmatprep.subr.mxu0 0.0
    %2813 = vmatpush1.msra.mxu0 0.0
    %2814 = vmatprep.subr.mxu0 0.0
    %2815 = vmatpush1.msra.mxu0 0.0
    %2816 = vmatprep.subr.mxu0 0.0
    %2817 = vmatpush1.msra.mxu0 0.0
    %2818 = vmatprep.subr.mxu0 0.0
    %2819 = vmatpush1.msra.mxu0 0.0
    %2820 = vmatprep.subr.mxu0 0.0
    %2821 = vmatpush1.msra.mxu0 0.0
    %2822 = vmatprep.subr.mxu0 0.0
    %2823 = vmatpush1.msra.mxu0 0.0
    %2824 = vmatprep.subr.mxu0 0.0
    %2825 = vmatpush1.msra.mxu0 0.0
    %2826 = vmatprep.subr.mxu0 0.0
    %2827 = vmatpush1.msra.mxu0 0.0
    %2828 = vmatprep.subr.mxu0 0.0
    %2829 = vmatpush1.msra.mxu0 0.0
    %2830 = vmatprep.subr.mxu0 0.0
    %2831 = vmatpush1.msra.mxu0 0.0
    %2832 = vmatprep.subr.mxu0 0.0
    %2833 = vmatpush1.msra.mxu0 0.0
    %2834 = vmatprep.subr.mxu0 0.0
    %2835 = vmatpush1.msra.mxu0 0.0
    %2836 = vmatprep.subr.mxu0 0.0
    %2837 = vmatpush1.msra.mxu0 0.0
    %2838 = vmatprep.subr.mxu0 0.0
    %2839 = vmatpush1.msra.mxu0 0.0
    %2840 = vmatprep.subr.mxu0 %v2798
    %2841 = vmatpush1.msra.mxu0 %v2796
    %2842 = vmatprep.subr.mxu0 %v2792
    %2843 = vmatpush1.msra.mxu0 %v2790
    %2844 = vmatprep.subr.mxu0 0.0
    %2845 = vmatpush2.msra.mxu0 0.0
    %2846 = vmatprep.subr.mxu0 0.0
    %2847 = vmatpush2.msra.mxu0 0.0
    %2848 = vmatprep.subr.mxu0 0.0
    %2849 = vmatpush2.msra.mxu0 0.0
    %2850 = vmatprep.subr.mxu0 0.0
    %2851 = vmatpush2.msra.mxu0 0.0
    %2852 = vmatprep.subr.mxu0 0.0
    %2853 = vmatpush2.msra.mxu0 0.0
    %2854 = vmatprep.subr.mxu0 0.0
    %2855 = vmatpush2.msra.mxu0 0.0
    %2856 = vmatprep.subr.mxu0 0.0
    %2857 = vmatpush2.msra.mxu0 0.0
    %2858 = vmatprep.subr.mxu0 0.0
    %2859 = vmatpush2.msra.mxu0 0.0
    %2860 = vmatprep.subr.mxu0 0.0
    %2861 = vmatpush2.msra.mxu0 0.0
    %2862 = vmatprep.subr.mxu0 0.0
    %2863 = vmatpush2.msra.mxu0 0.0
    %2864 = vmatprep.subr.mxu0 0.0
    %2865 = vmatpush2.msra.mxu0 0.0
    %2866 = vmatprep.subr.mxu0 0.0
    %2867 = vmatpush2.msra.mxu0 0.0
    %2868 = vmatprep.subr.mxu0 0.0
    %2869 = vmatpush2.msra.mxu0 0.0
    %2870 = vmatprep.subr.mxu0 0.0
    %2871 = vmatpush2.msra.mxu0 0.0
    %2872 = vmatprep.subr.mxu0 0.0
    %2873 = vmatpush2.msra.mxu0 0.0
    %2874 = vmatprep.subr.mxu0 0.0
    %2875 = vmatpush2.msra.mxu0 0.0
    %2876 = vmatprep.mubr.f32.mxu0 0.0
    %2877 = vmatmul.mubr.f32.gmra.mxu0 %v2801
    %v2878 = vpop.f32.mrf.mxu0
    %v2879 = vadd.f32 0.0, %v2878
    %v2880 = vpop.f32.mrf.mxu0
    %v2881 = vadd.f32 0.0, %v2880
    %2882 = vmatprep.mubr.f32.mxu0 0.0
    %2883 = vmatmul.mubr.f32.gmra.mxu0 %v2804
    %v2884 = vpop.f32.mrf.mxu0
    %v2885 = vadd.f32 0.0, %v2884
    %v2886 = vpop.f32.mrf.mxu0
    %v2887 = vadd.f32 0.0, %v2886
    %2888 = vmatprep.mubr.f32.mxu0 0.0
    %2889 = vmatmul.mubr.f32.gmra.mxu0 %v2807
    %v2890 = vpop.f32.mrf.mxu0
    %v2891 = vadd.f32 0.0, %v2890
    %v2892 = vpop.f32.mrf.mxu0
    %v2893 = vadd.f32 0.0, %v2892
    %2894 = vmatprep.mubr.f32.mxu0 0.0
    %2895 = vmatmul.mubr.f32.gmra.mxu0 %v2810
    %v2896 = vpop.f32.mrf.mxu0
    %v2897 = vadd.f32 0.0, %v2896
    %v2898 = vpop.f32.mrf.mxu0
    %v2899 = vadd.f32 0.0, %v2898
    %2900 = vdwg.mxu0
    %v2902 = vsel %vm2161, %v2508, 0
    %v2905 = vsel %vm2161, %v2509, 0
    %v2908 = vsel %vm2161, %v2510, 0
    %v2911 = vsel %vm2161, %v2511, 0
    %2913 = vmatprep.subr.mxu0 0.0
    %2914 = vmatpush1.msra.mxu0 0.0
    %2915 = vmatprep.subr.mxu0 0.0
    %2916 = vmatpush1.msra.mxu0 0.0
    %2917 = vmatprep.subr.mxu0 0.0
    %2918 = vmatpush1.msra.mxu0 0.0
    %2919 = vmatprep.subr.mxu0 0.0
    %2920 = vmatpush1.msra.mxu0 0.0
    %2921 = vmatprep.subr.mxu0 0.0
    %2922 = vmatpush1.msra.mxu0 0.0
    %2923 = vmatprep.subr.mxu0 0.0
    %2924 = vmatpush1.msra.mxu0 0.0
    %2925 = vmatprep.subr.mxu0 0.0
    %2926 = vmatpush1.msra.mxu0 0.0
    %2927 = vmatprep.subr.mxu0 0.0
    %2928 = vmatpush1.msra.mxu0 0.0
    %2929 = vmatprep.subr.mxu0 0.0
    %2930 = vmatpush1.msra.mxu0 0.0
    %2931 = vmatprep.subr.mxu0 0.0
    %2932 = vmatpush1.msra.mxu0 0.0
    %2933 = vmatprep.subr.mxu0 0.0
    %2934 = vmatpush1.msra.mxu0 0.0
    %2935 = vmatprep.subr.mxu0 0.0
    %2936 = vmatpush1.msra.mxu0 0.0
    %2937 = vmatprep.subr.mxu0 0.0
    %2938 = vmatpush1.msra.mxu0 0.0
    %2939 = vmatprep.subr.mxu0 0.0
    %2940 = vmatpush1.msra.mxu0 0.0
    %2941 = vmatprep.subr.mxu0 %v2651
    %2942 = vmatpush1.msra.mxu0 %v2649
    %2943 = vmatprep.subr.mxu0 %v2645
    %2944 = vmatpush1.msra.mxu0 %v2643
    %2945 = vmatprep.subr.mxu0 0.0
    %2946 = vmatpush2.msra.mxu0 0.0
    %2947 = vmatprep.subr.mxu0 0.0
    %2948 = vmatpush2.msra.mxu0 0.0
    %2949 = vmatprep.subr.mxu0 0.0
    %2950 = vmatpush2.msra.mxu0 0.0
    %2951 = vmatprep.subr.mxu0 0.0
    %2952 = vmatpush2.msra.mxu0 0.0
    %2953 = vmatprep.subr.mxu0 0.0
    %2954 = vmatpush2.msra.mxu0 0.0
    %2955 = vmatprep.subr.mxu0 0.0
    %2956 = vmatpush2.msra.mxu0 0.0
    %2957 = vmatprep.subr.mxu0 0.0
    %2958 = vmatpush2.msra.mxu0 0.0
    %2959 = vmatprep.subr.mxu0 0.0
    %2960 = vmatpush2.msra.mxu0 0.0
    %2961 = vmatprep.subr.mxu0 0.0
    %2962 = vmatpush2.msra.mxu0 0.0
    %2963 = vmatprep.subr.mxu0 0.0
    %2964 = vmatpush2.msra.mxu0 0.0
    %2965 = vmatprep.subr.mxu0 0.0
    %2966 = vmatpush2.msra.mxu0 0.0
    %2967 = vmatprep.subr.mxu0 0.0
    %2968 = vmatpush2.msra.mxu0 0.0
    %2969 = vmatprep.subr.mxu0 0.0
    %2970 = vmatpush2.msra.mxu0 0.0
    %2971 = vmatprep.subr.mxu0 0.0
    %2972 = vmatpush2.msra.mxu0 0.0
    %2973 = vmatprep.subr.mxu0 0.0
    %2974 = vmatpush2.msra.mxu0 0.0
    %2975 = vmatprep.subr.mxu0 0.0
    %2976 = vmatpush2.msra.mxu0 0.0
    %2977 = vmatprep.mubr.f32.mxu0 0.0
    %2978 = vmatmul.mubr.f32.gmra.mxu0 %v2902
    %v2979 = vpop.f32.mrf.mxu0
    %v2980 = vadd.f32 %v2879, %v2979
    %v2981 = vpop.f32.mrf.mxu0
    %v2982 = vadd.f32 %v2881, %v2981
    %2983 = vmatprep.mubr.f32.mxu0 0.0
    %2984 = vmatmul.mubr.f32.gmra.mxu0 %v2905
    %v2985 = vpop.f32.mrf.mxu0
    %v2986 = vadd.f32 %v2885, %v2985
    %v2987 = vpop.f32.mrf.mxu0
    %v2988 = vadd.f32 %v2887, %v2987
    %2989 = vmatprep.mubr.f32.mxu0 0.0
    %2990 = vmatmul.mubr.f32.gmra.mxu0 %v2908
    %v2991 = vpop.f32.mrf.mxu0
    %v2992 = vadd.f32 %v2891, %v2991
    %v2993 = vpop.f32.mrf.mxu0
    %v2994 = vadd.f32 %v2893, %v2993
    %2995 = vmatprep.mubr.f32.mxu0 0.0
    %2996 = vmatmul.mubr.f32.gmra.mxu0 %v2911
    %v2997 = vpop.f32.mrf.mxu0
    %v2998 = vadd.f32 %v2897, %v2997
    %v2999 = vpop.f32.mrf.mxu0
    %v3000 = vadd.f32 %v2899, %v2999
    %3001 = vdwg.mxu0
    %s3002 = scalar_lea.vmem %s8, 64
    %v3003 = vld [vmem:[%s3002] sm:$0xff]
    %v3004 = vld [vmem:[%s3002 + $0x8] sm:$0xff]
    %v3005 = vld [vmem:[%s3002 + $0x10] sm:$0xff]
    %v3006 = vld [vmem:[%s3002 + $0x18] sm:$0xff]
    %s3007 = scalar_lea.vmem %s4, 1024
    %v3008 = vld [vmem:[%s3007] sm:$0xff]
    %v3009 = vld [vmem:[%s3007 + $0x8] sm:$0xff]
    %v3010 = vld [vmem:[%s3007 + $0x10] sm:$0xff]
    %v3011 = vld [vmem:[%s3007 + $0x18] sm:$0xff]
    %v3012 = vld [vmem:[%s3007 + $0x20] sm:$0xff]
    %v3013 = vld [vmem:[%s3007 + $0x28] sm:$0xff]
    %v3014 = vld [vmem:[%s3007 + $0x30] sm:$0xff]
    %v3015 = vld [vmem:[%s3007 + $0x38] sm:$0xff]
    %v3016 = vld [vmem:[%s3007 + $0x40] sm:$0xff]
    %v3017 = vld [vmem:[%s3007 + $0x48] sm:$0xff]
    %v3018 = vld [vmem:[%s3007 + $0x50] sm:$0xff]
    %v3019 = vld [vmem:[%s3007 + $0x58] sm:$0xff]
    %v3020 = vld [vmem:[%s3007 + $0x60] sm:$0xff]
    %v3021 = vld [vmem:[%s3007 + $0x68] sm:$0xff]
    %v3022 = vld [vmem:[%s3007 + $0x70] sm:$0xff]
    %v3023 = vld [vmem:[%s3007 + $0x78] sm:$0xff]
    %v3024 = vld [vmem:[%s3007 + $0x80] sm:$0xff]
    %v3025 = vld [vmem:[%s3007 + $0x88] sm:$0xff]
    %v3026 = vld [vmem:[%s3007 + $0x90] sm:$0xff]
    %v3027 = vld [vmem:[%s3007 + $0x98] sm:$0xff]
    %v3028 = vld [vmem:[%s3007 + $0xa0] sm:$0xff]
    %v3029 = vld [vmem:[%s3007 + $0xa8] sm:$0xff]
    %v3030 = vld [vmem:[%s3007 + $0xb0] sm:$0xff]
    %v3031 = vld [vmem:[%s3007 + $0xb8] sm:$0xff]
    %v3032 = vld [vmem:[%s3007 + $0xc0] sm:$0xff]
    %v3033 = vld [vmem:[%s3007 + $0xc8] sm:$0xff]
    %v3034 = vld [vmem:[%s3007 + $0xd0] sm:$0xff]
    %v3035 = vld [vmem:[%s3007 + $0xd8] sm:$0xff]
    %v3036 = vld [vmem:[%s3007 + $0xe0] sm:$0xff]
    %v3037 = vld [vmem:[%s3007 + $0xe8] sm:$0xff]
    %v3038 = vld [vmem:[%s3007 + $0xf0] sm:$0xff]
    %v3039 = vld [vmem:[%s3007 + $0xf8] sm:$0xff]
    %v3040 = vld [vmem:[%s3007 + $0x100] sm:$0xff]
    %v3041 = vld [vmem:[%s3007 + $0x108] sm:$0xff]
    %v3042 = vld [vmem:[%s3007 + $0x110] sm:$0xff]
    %v3043 = vld [vmem:[%s3007 + $0x118] sm:$0xff]
    %v3044 = vld [vmem:[%s3007 + $0x120] sm:$0xff]
    %v3045 = vld [vmem:[%s3007 + $0x128] sm:$0xff]
    %v3046 = vld [vmem:[%s3007 + $0x130] sm:$0xff]
    %v3047 = vld [vmem:[%s3007 + $0x138] sm:$0xff]
    %v3048 = vld [vmem:[%s3007 + $0x140] sm:$0xff]
    %v3049 = vld [vmem:[%s3007 + $0x148] sm:$0xff]
    %v3050 = vld [vmem:[%s3007 + $0x150] sm:$0xff]
    %v3051 = vld [vmem:[%s3007 + $0x158] sm:$0xff]
    %v3052 = vld [vmem:[%s3007 + $0x160] sm:$0xff]
    %v3053 = vld [vmem:[%s3007 + $0x168] sm:$0xff]
    %v3054 = vld [vmem:[%s3007 + $0x170] sm:$0xff]
    %v3055 = vld [vmem:[%s3007 + $0x178] sm:$0xff]
    %v3056 = vld [vmem:[%s3007 + $0x180] sm:$0xff]
    %v3057 = vld [vmem:[%s3007 + $0x188] sm:$0xff]
    %v3058 = vld [vmem:[%s3007 + $0x190] sm:$0xff]
    %v3059 = vld [vmem:[%s3007 + $0x198] sm:$0xff]
    %v3060 = vld [vmem:[%s3007 + $0x1a0] sm:$0xff]
    %v3061 = vld [vmem:[%s3007 + $0x1a8] sm:$0xff]
    %v3062 = vld [vmem:[%s3007 + $0x1b0] sm:$0xff]
    %v3063 = vld [vmem:[%s3007 + $0x1b8] sm:$0xff]
    %v3064 = vld [vmem:[%s3007 + $0x1c0] sm:$0xff]
    %v3065 = vld [vmem:[%s3007 + $0x1c8] sm:$0xff]
    %v3066 = vld [vmem:[%s3007 + $0x1d0] sm:$0xff]
    %v3067 = vld [vmem:[%s3007 + $0x1d8] sm:$0xff]
    %v3068 = vld [vmem:[%s3007 + $0x1e0] sm:$0xff]
    %v3069 = vld [vmem:[%s3007 + $0x1e8] sm:$0xff]
    %v3070 = vld [vmem:[%s3007 + $0x1f0] sm:$0xff]
    %v3071 = vld [vmem:[%s3007 + $0x1f8] sm:$0xff]
    %3072 = vmatprep.subr.mxu0 %v3039
    %3073 = vmatpush1.msra.mxu0 %v3038
    %3074 = vmatprep.subr.mxu0 %v3037
    %3075 = vmatpush1.msra.mxu0 %v3036
    %3076 = vmatprep.subr.mxu0 %v3035
    %3077 = vmatpush1.msra.mxu0 %v3034
    %3078 = vmatprep.subr.mxu0 %v3033
    %3079 = vmatpush1.msra.mxu0 %v3032
    %3080 = vmatprep.subr.mxu0 %v3031
    %3081 = vmatpush1.msra.mxu0 %v3030
    %3082 = vmatprep.subr.mxu0 %v3029
    %3083 = vmatpush1.msra.mxu0 %v3028
    %3084 = vmatprep.subr.mxu0 %v3027
    %3085 = vmatpush1.msra.mxu0 %v3026
    %3086 = vmatprep.subr.mxu0 %v3025
    %3087 = vmatpush1.msra.mxu0 %v3024
    %3088 = vmatprep.subr.mxu0 %v3023
    %3089 = vmatpush1.msra.mxu0 %v3022
    %3090 = vmatprep.subr.mxu0 %v3021
    %3091 = vmatpush1.msra.mxu0 %v3020
    %3092 = vmatprep.subr.mxu0 %v3019
    %3093 = vmatpush1.msra.mxu0 %v3018
    %3094 = vmatprep.subr.mxu0 %v3017
    %3095 = vmatpush1.msra.mxu0 %v3016
    %3096 = vmatprep.subr.mxu0 %v3015
    %3097 = vmatpush1.msra.mxu0 %v3014
    %3098 = vmatprep.subr.mxu0 %v3013
    %3099 = vmatpush1.msra.mxu0 %v3012
    %3100 = vmatprep.subr.mxu0 %v3011
    %3101 = vmatpush1.msra.mxu0 %v3010
    %3102 = vmatprep.subr.mxu0 %v3009
    %3103 = vmatpush1.msra.mxu0 %v3008
    %3104 = vmatprep.subr.mxu0 %v3071
    %3105 = vmatpush2.msra.mxu0 %v3070
    %3106 = vmatprep.subr.mxu0 %v3069
    %3107 = vmatpush2.msra.mxu0 %v3068
    %3108 = vmatprep.subr.mxu0 %v3067
    %3109 = vmatpush2.msra.mxu0 %v3066
    %3110 = vmatprep.subr.mxu0 %v3065
    %3111 = vmatpush2.msra.mxu0 %v3064
    %3112 = vmatprep.subr.mxu0 %v3063
    %3113 = vmatpush2.msra.mxu0 %v3062
    %3114 = vmatprep.subr.mxu0 %v3061
    %3115 = vmatpush2.msra.mxu0 %v3060
    %3116 = vmatprep.subr.mxu0 %v3059
    %3117 = vmatpush2.msra.mxu0 %v3058
    %3118 = vmatprep.subr.mxu0 %v3057
    %3119 = vmatpush2.msra.mxu0 %v3056
    %3120 = vmatprep.subr.mxu0 %v3055
    %3121 = vmatpush2.msra.mxu0 %v3054
    %3122 = vmatprep.subr.mxu0 %v3053
    %3123 = vmatpush2.msra.mxu0 %v3052
    %3124 = vmatprep.subr.mxu0 %v3051
    %3125 = vmatpush2.msra.mxu0 %v3050
    %3126 = vmatprep.subr.mxu0 %v3049
    %3127 = vmatpush2.msra.mxu0 %v3048
    %3128 = vmatprep.subr.mxu0 %v3047
    %3129 = vmatpush2.msra.mxu0 %v3046
    %3130 = vmatprep.subr.mxu0 %v3045
    %3131 = vmatpush2.msra.mxu0 %v3044
    %3132 = vmatprep.subr.mxu0 %v3043
    %3133 = vmatpush2.msra.mxu0 %v3042
    %3134 = vmatprep.subr.mxu0 %v3041
    %3135 = vmatpush2.msra.mxu0 %v3040
    %3136 = vmatprep.mubr.f32.mxu0 %v2505
    %3137 = vmatmul.mubr.f32.gmra.mxu0 %v2504
    %v3138 = vpop.f32.mrf.mxu0
    %v3139 = vadd.f32 0.0, %v3138
    %v3140 = vpop.f32.mrf.mxu0
    %v3141 = vadd.f32 0.0, %v3140
    %3142 = vmatprep.mubr.f32.mxu0 %v2507
    %3143 = vmatmul.mubr.f32.gmra.mxu0 %v2506
    %v3144 = vpop.f32.mrf.mxu0
    %v3145 = vadd.f32 0.0, %v3144
    %v3146 = vpop.f32.mrf.mxu0
    %v3147 = vadd.f32 0.0, %v3146
    %3148 = vdwg.mxu0
    %v3150 = vsel %vm2161, %v3003, 0
    %v3153 = vsel %vm2161, %v3004, 0
    %v3156 = vsel %vm2161, %v3005, 0
    %v3159 = vsel %vm2161, %v3006, 0
    %3161 = vmatprep.subr.mxu0 0.0
    %3162 = vmatpush1.msra.mxu0 0.0
    %3163 = vmatprep.subr.mxu0 0.0
    %3164 = vmatpush1.msra.mxu0 0.0
    %3165 = vmatprep.subr.mxu0 0.0
    %3166 = vmatpush1.msra.mxu0 0.0
    %3167 = vmatprep.subr.mxu0 0.0
    %3168 = vmatpush1.msra.mxu0 0.0
    %3169 = vmatprep.subr.mxu0 0.0
    %3170 = vmatpush1.msra.mxu0 0.0
    %3171 = vmatprep.subr.mxu0 0.0
    %3172 = vmatpush1.msra.mxu0 0.0
    %3173 = vmatprep.subr.mxu0 0.0
    %3174 = vmatpush1.msra.mxu0 0.0
    %3175 = vmatprep.subr.mxu0 0.0
    %3176 = vmatpush1.msra.mxu0 0.0
    %3177 = vmatprep.subr.mxu0 0.0
    %3178 = vmatpush1.msra.mxu0 0.0
    %3179 = vmatprep.subr.mxu0 0.0
    %3180 = vmatpush1.msra.mxu0 0.0
    %3181 = vmatprep.subr.mxu0 0.0
    %3182 = vmatpush1.msra.mxu0 0.0
    %3183 = vmatprep.subr.mxu0 0.0
    %3184 = vmatpush1.msra.mxu0 0.0
    %3185 = vmatprep.subr.mxu0 0.0
    %3186 = vmatpush1.msra.mxu0 0.0
    %3187 = vmatprep.subr.mxu0 0.0
    %3188 = vmatpush1.msra.mxu0 0.0
    %3189 = vmatprep.subr.mxu0 %v3147
    %3190 = vmatpush1.msra.mxu0 %v3145
    %3191 = vmatprep.subr.mxu0 %v3141
    %3192 = vmatpush1.msra.mxu0 %v3139
    %3193 = vmatprep.subr.mxu0 0.0
    %3194 = vmatpush2.msra.mxu0 0.0
    %3195 = vmatprep.subr.mxu0 0.0
    %3196 = vmatpush2.msra.mxu0 0.0
    %3197 = vmatprep.subr.mxu0 0.0
    %3198 = vmatpush2.msra.mxu0 0.0
    %3199 = vmatprep.subr.mxu0 0.0
    %3200 = vmatpush2.msra.mxu0 0.0
    %3201 = vmatprep.subr.mxu0 0.0
    %3202 = vmatpush2.msra.mxu0 0.0
    %3203 = vmatprep.subr.mxu0 0.0
    %3204 = vmatpush2.msra.mxu0 0.0
    %3205 = vmatprep.subr.mxu0 0.0
    %3206 = vmatpush2.msra.mxu0 0.0
    %3207 = vmatprep.subr.mxu0 0.0
    %3208 = vmatpush2.msra.mxu0 0.0
    %3209 = vmatprep.subr.mxu0 0.0
    %3210 = vmatpush2.msra.mxu0 0.0
    %3211 = vmatprep.subr.mxu0 0.0
    %3212 = vmatpush2.msra.mxu0 0.0
    %3213 = vmatprep.subr.mxu0 0.0
    %3214 = vmatpush2.msra.mxu0 0.0
    %3215 = vmatprep.subr.mxu0 0.0
    %3216 = vmatpush2.msra.mxu0 0.0
    %3217 = vmatprep.subr.mxu0 0.0
    %3218 = vmatpush2.msra.mxu0 0.0
    %3219 = vmatprep.subr.mxu0 0.0
    %3220 = vmatpush2.msra.mxu0 0.0
    %3221 = vmatprep.subr.mxu0 0.0
    %3222 = vmatpush2.msra.mxu0 0.0
    %3223 = vmatprep.subr.mxu0 0.0
    %3224 = vmatpush2.msra.mxu0 0.0
    %3225 = vmatprep.mubr.f32.mxu0 0.0
    %3226 = vmatmul.mubr.f32.gmra.mxu0 %v3150
    %v3227 = vpop.f32.mrf.mxu0
    %v3228 = vadd.f32 0.0, %v3227
    %v3229 = vpop.f32.mrf.mxu0
    %v3230 = vadd.f32 0.0, %v3229
    %3231 = vmatprep.mubr.f32.mxu0 0.0
    %3232 = vmatmul.mubr.f32.gmra.mxu0 %v3153
    %v3233 = vpop.f32.mrf.mxu0
    %v3234 = vadd.f32 0.0, %v3233
    %v3235 = vpop.f32.mrf.mxu0
    %v3236 = vadd.f32 0.0, %v3235
    %3237 = vmatprep.mubr.f32.mxu0 0.0
    %3238 = vmatmul.mubr.f32.gmra.mxu0 %v3156
    %v3239 = vpop.f32.mrf.mxu0
    %v3240 = vadd.f32 0.0, %v3239
    %v3241 = vpop.f32.mrf.mxu0
    %v3242 = vadd.f32 0.0, %v3241
    %3243 = vmatprep.mubr.f32.mxu0 0.0
    %3244 = vmatmul.mubr.f32.gmra.mxu0 %v3159
    %v3245 = vpop.f32.mrf.mxu0
    %v3246 = vadd.f32 0.0, %v3245
    %v3247 = vpop.f32.mrf.mxu0
    %v3248 = vadd.f32 0.0, %v3247
    %3249 = vdwg.mxu0
    %v3250 = vadd.f32 %v2980, %v3228
    %v3251 = vadd.f32 %v2982, %v3230
    %v3252 = vadd.f32 %v2986, %v3234
    %v3253 = vadd.f32 %v2988, %v3236
    %v3254 = vadd.f32 %v2992, %v3240
    %v3255 = vadd.f32 %v2994, %v3242
    %v3256 = vadd.f32 %v2998, %v3246
    %v3257 = vadd.f32 %v3000, %v3248
    %s3258 = scalar_lea.vmem %s8, 96
    %v3259 = vld [vmem:[%s3258] sm:$0xff]
    %v3260 = vld [vmem:[%s3258 + $0x8] sm:$0xff]
    %v3261 = vld [vmem:[%s3258 + $0x10] sm:$0xff]
    %v3262 = vld [vmem:[%s3258 + $0x18] sm:$0xff]
    %s3263 = scalar_lea.vmem %s4, 1536
    %v3264 = vld [vmem:[%s3263] sm:$0xff]
    %v3265 = vld [vmem:[%s3263 + $0x8] sm:$0xff]
    %v3266 = vld [vmem:[%s3263 + $0x10] sm:$0xff]
    %v3267 = vld [vmem:[%s3263 + $0x18] sm:$0xff]
    %v3268 = vld [vmem:[%s3263 + $0x20] sm:$0xff]
    %v3269 = vld [vmem:[%s3263 + $0x28] sm:$0xff]
    %v3270 = vld [vmem:[%s3263 + $0x30] sm:$0xff]
    %v3271 = vld [vmem:[%s3263 + $0x38] sm:$0xff]
    %v3272 = vld [vmem:[%s3263 + $0x40] sm:$0xff]
    %v3273 = vld [vmem:[%s3263 + $0x48] sm:$0xff]
    %v3274 = vld [vmem:[%s3263 + $0x50] sm:$0xff]
    %v3275 = vld [vmem:[%s3263 + $0x58] sm:$0xff]
    %v3276 = vld [vmem:[%s3263 + $0x60] sm:$0xff]
    %v3277 = vld [vmem:[%s3263 + $0x68] sm:$0xff]
    %v3278 = vld [vmem:[%s3263 + $0x70] sm:$0xff]
    %v3279 = vld [vmem:[%s3263 + $0x78] sm:$0xff]
    %v3280 = vld [vmem:[%s3263 + $0x80] sm:$0xff]
    %v3281 = vld [vmem:[%s3263 + $0x88] sm:$0xff]
    %v3282 = vld [vmem:[%s3263 + $0x90] sm:$0xff]
    %v3283 = vld [vmem:[%s3263 + $0x98] sm:$0xff]
    %v3284 = vld [vmem:[%s3263 + $0xa0] sm:$0xff]
    %v3285 = vld [vmem:[%s3263 + $0xa8] sm:$0xff]
    %v3286 = vld [vmem:[%s3263 + $0xb0] sm:$0xff]
    %v3287 = vld [vmem:[%s3263 + $0xb8] sm:$0xff]
    %v3288 = vld [vmem:[%s3263 + $0xc0] sm:$0xff]
    %v3289 = vld [vmem:[%s3263 + $0xc8] sm:$0xff]
    %v3290 = vld [vmem:[%s3263 + $0xd0] sm:$0xff]
    %v3291 = vld [vmem:[%s3263 + $0xd8] sm:$0xff]
    %v3292 = vld [vmem:[%s3263 + $0xe0] sm:$0xff]
    %v3293 = vld [vmem:[%s3263 + $0xe8] sm:$0xff]
    %v3294 = vld [vmem:[%s3263 + $0xf0] sm:$0xff]
    %v3295 = vld [vmem:[%s3263 + $0xf8] sm:$0xff]
    %v3296 = vld [vmem:[%s3263 + $0x100] sm:$0xff]
    %v3297 = vld [vmem:[%s3263 + $0x108] sm:$0xff]
    %v3298 = vld [vmem:[%s3263 + $0x110] sm:$0xff]
    %v3299 = vld [vmem:[%s3263 + $0x118] sm:$0xff]
    %v3300 = vld [vmem:[%s3263 + $0x120] sm:$0xff]
    %v3301 = vld [vmem:[%s3263 + $0x128] sm:$0xff]
    %v3302 = vld [vmem:[%s3263 + $0x130] sm:$0xff]
    %v3303 = vld [vmem:[%s3263 + $0x138] sm:$0xff]
    %v3304 = vld [vmem:[%s3263 + $0x140] sm:$0xff]
    %v3305 = vld [vmem:[%s3263 + $0x148] sm:$0xff]
    %v3306 = vld [vmem:[%s3263 + $0x150] sm:$0xff]
    %v3307 = vld [vmem:[%s3263 + $0x158] sm:$0xff]
    %v3308 = vld [vmem:[%s3263 + $0x160] sm:$0xff]
    %v3309 = vld [vmem:[%s3263 + $0x168] sm:$0xff]
    %v3310 = vld [vmem:[%s3263 + $0x170] sm:$0xff]
    %v3311 = vld [vmem:[%s3263 + $0x178] sm:$0xff]
    %v3312 = vld [vmem:[%s3263 + $0x180] sm:$0xff]
    %v3313 = vld [vmem:[%s3263 + $0x188] sm:$0xff]
    %v3314 = vld [vmem:[%s3263 + $0x190] sm:$0xff]
    %v3315 = vld [vmem:[%s3263 + $0x198] sm:$0xff]
    %v3316 = vld [vmem:[%s3263 + $0x1a0] sm:$0xff]
    %v3317 = vld [vmem:[%s3263 + $0x1a8] sm:$0xff]
    %v3318 = vld [vmem:[%s3263 + $0x1b0] sm:$0xff]
    %v3319 = vld [vmem:[%s3263 + $0x1b8] sm:$0xff]
    %v3320 = vld [vmem:[%s3263 + $0x1c0] sm:$0xff]
    %v3321 = vld [vmem:[%s3263 + $0x1c8] sm:$0xff]
    %v3322 = vld [vmem:[%s3263 + $0x1d0] sm:$0xff]
    %v3323 = vld [vmem:[%s3263 + $0x1d8] sm:$0xff]
    %v3324 = vld [vmem:[%s3263 + $0x1e0] sm:$0xff]
    %v3325 = vld [vmem:[%s3263 + $0x1e8] sm:$0xff]
    %v3326 = vld [vmem:[%s3263 + $0x1f0] sm:$0xff]
    %v3327 = vld [vmem:[%s3263 + $0x1f8] sm:$0xff]
    %3328 = vmatprep.subr.mxu0 %v3295
    %3329 = vmatpush1.msra.mxu0 %v3294
    %3330 = vmatprep.subr.mxu0 %v3293
    %3331 = vmatpush1.msra.mxu0 %v3292
    %3332 = vmatprep.subr.mxu0 %v3291
    %3333 = vmatpush1.msra.mxu0 %v3290
    %3334 = vmatprep.subr.mxu0 %v3289
    %3335 = vmatpush1.msra.mxu0 %v3288
    %3336 = vmatprep.subr.mxu0 %v3287
    %3337 = vmatpush1.msra.mxu0 %v3286
    %3338 = vmatprep.subr.mxu0 %v3285
    %3339 = vmatpush1.msra.mxu0 %v3284
    %3340 = vmatprep.subr.mxu0 %v3283
    %3341 = vmatpush1.msra.mxu0 %v3282
    %3342 = vmatprep.subr.mxu0 %v3281
    %3343 = vmatpush1.msra.mxu0 %v3280
    %3344 = vmatprep.subr.mxu0 %v3279
    %3345 = vmatpush1.msra.mxu0 %v3278
    %3346 = vmatprep.subr.mxu0 %v3277
    %3347 = vmatpush1.msra.mxu0 %v3276
    %3348 = vmatprep.subr.mxu0 %v3275
    %3349 = vmatpush1.msra.mxu0 %v3274
    %3350 = vmatprep.subr.mxu0 %v3273
    %3351 = vmatpush1.msra.mxu0 %v3272
    %3352 = vmatprep.subr.mxu0 %v3271
    %3353 = vmatpush1.msra.mxu0 %v3270
    %3354 = vmatprep.subr.mxu0 %v3269
    %3355 = vmatpush1.msra.mxu0 %v3268
    %3356 = vmatprep.subr.mxu0 %v3267
    %3357 = vmatpush1.msra.mxu0 %v3266
    %3358 = vmatprep.subr.mxu0 %v3265
    %3359 = vmatpush1.msra.mxu0 %v3264
    %3360 = vmatprep.subr.mxu0 %v3327
    %3361 = vmatpush2.msra.mxu0 %v3326
    %3362 = vmatprep.subr.mxu0 %v3325
    %3363 = vmatpush2.msra.mxu0 %v3324
    %3364 = vmatprep.subr.mxu0 %v3323
    %3365 = vmatpush2.msra.mxu0 %v3322
    %3366 = vmatprep.subr.mxu0 %v3321
    %3367 = vmatpush2.msra.mxu0 %v3320
    %3368 = vmatprep.subr.mxu0 %v3319
    %3369 = vmatpush2.msra.mxu0 %v3318
    %3370 = vmatprep.subr.mxu0 %v3317
    %3371 = vmatpush2.msra.mxu0 %v3316
    %3372 = vmatprep.subr.mxu0 %v3315
    %3373 = vmatpush2.msra.mxu0 %v3314
    %3374 = vmatprep.subr.mxu0 %v3313
    %3375 = vmatpush2.msra.mxu0 %v3312
    %3376 = vmatprep.subr.mxu0 %v3311
    %3377 = vmatpush2.msra.mxu0 %v3310
    %3378 = vmatprep.subr.mxu0 %v3309
    %3379 = vmatpush2.msra.mxu0 %v3308
    %3380 = vmatprep.subr.mxu0 %v3307
    %3381 = vmatpush2.msra.mxu0 %v3306
    %3382 = vmatprep.subr.mxu0 %v3305
    %3383 = vmatpush2.msra.mxu0 %v3304
    %3384 = vmatprep.subr.mxu0 %v3303
    %3385 = vmatpush2.msra.mxu0 %v3302
    %3386 = vmatprep.subr.mxu0 %v3301
    %3387 = vmatpush2.msra.mxu0 %v3300
    %3388 = vmatprep.subr.mxu0 %v3299
    %3389 = vmatpush2.msra.mxu0 %v3298
    %3390 = vmatprep.subr.mxu0 %v3297
    %3391 = vmatpush2.msra.mxu0 %v3296
    %3392 = vmatprep.mubr.f32.mxu0 %v2505
    %3393 = vmatmul.mubr.f32.gmra.mxu0 %v2504
    %v3394 = vpop.f32.mrf.mxu0
    %v3395 = vadd.f32 0.0, %v3394
    %v3396 = vpop.f32.mrf.mxu0
    %v3397 = vadd.f32 0.0, %v3396
    %3398 = vmatprep.mubr.f32.mxu0 %v2507
    %3399 = vmatmul.mubr.f32.gmra.mxu0 %v2506
    %v3400 = vpop.f32.mrf.mxu0
    %v3401 = vadd.f32 0.0, %v3400
    %v3402 = vpop.f32.mrf.mxu0
    %v3403 = vadd.f32 0.0, %v3402
    %3404 = vdwg.mxu0
    %v3406 = vsel %vm2161, %v3259, 0
    %v3409 = vsel %vm2161, %v3260, 0
    %v3412 = vsel %vm2161, %v3261, 0
    %v3415 = vsel %vm2161, %v3262, 0
    %3417 = vmatprep.subr.mxu0 0.0
    %3418 = vmatpush1.msra.mxu0 0.0
    %3419 = vmatprep.subr.mxu0 0.0
    %3420 = vmatpush1.msra.mxu0 0.0
    %3421 = vmatprep.subr.mxu0 0.0
    %3422 = vmatpush1.msra.mxu0 0.0
    %3423 = vmatprep.subr.mxu0 0.0
    %3424 = vmatpush1.msra.mxu0 0.0
    %3425 = vmatprep.subr.mxu0 0.0
    %3426 = vmatpush1.msra.mxu0 0.0
    %3427 = vmatprep.subr.mxu0 0.0
    %3428 = vmatpush1.msra.mxu0 0.0
    %3429 = vmatprep.subr.mxu0 0.0
    %3430 = vmatpush1.msra.mxu0 0.0
    %3431 = vmatprep.subr.mxu0 0.0
    %3432 = vmatpush1.msra.mxu0 0.0
    %3433 = vmatprep.subr.mxu0 0.0
    %3434 = vmatpush1.msra.mxu0 0.0
    %3435 = vmatprep.subr.mxu0 0.0
    %3436 = vmatpush1.msra.mxu0 0.0
    %3437 = vmatprep.subr.mxu0 0.0
    %3438 = vmatpush1.msra.mxu0 0.0
    %3439 = vmatprep.subr.mxu0 0.0
    %3440 = vmatpush1.msra.mxu0 0.0
    %3441 = vmatprep.subr.mxu0 0.0
    %3442 = vmatpush1.msra.mxu0 0.0
    %3443 = vmatprep.subr.mxu0 0.0
    %3444 = vmatpush1.msra.mxu0 0.0
    %3445 = vmatprep.subr.mxu0 %v3403
    %3446 = vmatpush1.msra.mxu0 %v3401
    %3447 = vmatprep.subr.mxu0 %v3397
    %3448 = vmatpush1.msra.mxu0 %v3395
    %3449 = vmatprep.subr.mxu0 0.0
    %3450 = vmatpush2.msra.mxu0 0.0
    %3451 = vmatprep.subr.mxu0 0.0
    %3452 = vmatpush2.msra.mxu0 0.0
    %3453 = vmatprep.subr.mxu0 0.0
    %3454 = vmatpush2.msra.mxu0 0.0
    %3455 = vmatprep.subr.mxu0 0.0
    %3456 = vmatpush2.msra.mxu0 0.0
    %3457 = vmatprep.subr.mxu0 0.0
    %3458 = vmatpush2.msra.mxu0 0.0
    %3459 = vmatprep.subr.mxu0 0.0
    %3460 = vmatpush2.msra.mxu0 0.0
    %3461 = vmatprep.subr.mxu0 0.0
    %3462 = vmatpush2.msra.mxu0 0.0
    %3463 = vmatprep.subr.mxu0 0.0
    %3464 = vmatpush2.msra.mxu0 0.0
    %3465 = vmatprep.subr.mxu0 0.0
    %3466 = vmatpush2.msra.mxu0 0.0
    %3467 = vmatprep.subr.mxu0 0.0
    %3468 = vmatpush2.msra.mxu0 0.0
    %3469 = vmatprep.subr.mxu0 0.0
    %3470 = vmatpush2.msra.mxu0 0.0
    %3471 = vmatprep.subr.mxu0 0.0
    %3472 = vmatpush2.msra.mxu0 0.0
    %3473 = vmatprep.subr.mxu0 0.0
    %3474 = vmatpush2.msra.mxu0 0.0
    %3475 = vmatprep.subr.mxu0 0.0
    %3476 = vmatpush2.msra.mxu0 0.0
    %3477 = vmatprep.subr.mxu0 0.0
    %3478 = vmatpush2.msra.mxu0 0.0
    %3479 = vmatprep.subr.mxu0 0.0
    %3480 = vmatpush2.msra.mxu0 0.0
    %3481 = vmatprep.mubr.f32.mxu0 0.0
    %3482 = vmatmul.mubr.f32.gmra.mxu0 %v3406
    %v3483 = vpop.f32.mrf.mxu0
    %v3484 = vadd.f32 0.0, %v3483
    %v3485 = vpop.f32.mrf.mxu0
    %v3486 = vadd.f32 0.0, %v3485
    %3487 = vmatprep.mubr.f32.mxu0 0.0
    %3488 = vmatmul.mubr.f32.gmra.mxu0 %v3409
    %v3489 = vpop.f32.mrf.mxu0
    %v3490 = vadd.f32 0.0, %v3489
    %v3491 = vpop.f32.mrf.mxu0
    %v3492 = vadd.f32 0.0, %v3491
    %3493 = vmatprep.mubr.f32.mxu0 0.0
    %3494 = vmatmul.mubr.f32.gmra.mxu0 %v3412
    %v3495 = vpop.f32.mrf.mxu0
    %v3496 = vadd.f32 0.0, %v3495
    %v3497 = vpop.f32.mrf.mxu0
    %v3498 = vadd.f32 0.0, %v3497
    %3499 = vmatprep.mubr.f32.mxu0 0.0
    %3500 = vmatmul.mubr.f32.gmra.mxu0 %v3415
    %v3501 = vpop.f32.mrf.mxu0
    %v3502 = vadd.f32 0.0, %v3501
    %v3503 = vpop.f32.mrf.mxu0
    %v3504 = vadd.f32 0.0, %v3503
    %3505 = vdwg.mxu0
    %v3506 = vadd.f32 %v3250, %v3484
    %v3507 = vadd.f32 %v3251, %v3486
    %v3508 = vadd.f32 %v3252, %v3490
    %v3509 = vadd.f32 %v3253, %v3492
    %v3510 = vadd.f32 %v3254, %v3496
    %v3511 = vadd.f32 %v3255, %v3498
    %v3512 = vadd.f32 %v3256, %v3502
    %v3513 = vadd.f32 %v3257, %v3504
    %s3514 = scalar_lea.vmem %s11, 1024
    %v3515 = vld [vmem:[%s3514] sm:$0xff]
    %v3516 = vld [vmem:[%s3514 + $0x8] sm:$0xff]
    %v3517 = vld [vmem:[%s3514 + $0x10] sm:$0xff]
    %v3518 = vld [vmem:[%s3514 + $0x18] sm:$0xff]
    %v3519 = vld [vmem:[%s3514 + $0x20] sm:$0xff]
    %v3520 = vld [vmem:[%s3514 + $0x28] sm:$0xff]
    %v3521 = vld [vmem:[%s3514 + $0x30] sm:$0xff]
    %v3522 = vld [vmem:[%s3514 + $0x38] sm:$0xff]
    %v3523 = vld [vmem:[%s3514 + $0x40] sm:$0xff]
    %v3524 = vld [vmem:[%s3514 + $0x48] sm:$0xff]
    %v3525 = vld [vmem:[%s3514 + $0x50] sm:$0xff]
    %v3526 = vld [vmem:[%s3514 + $0x58] sm:$0xff]
    %v3527 = vld [vmem:[%s3514 + $0x60] sm:$0xff]
    %v3528 = vld [vmem:[%s3514 + $0x68] sm:$0xff]
    %v3529 = vld [vmem:[%s3514 + $0x70] sm:$0xff]
    %v3530 = vld [vmem:[%s3514 + $0x78] sm:$0xff]
    %v3531 = vld [vmem:[%s3514 + $0x80] sm:$0xff]
    %v3532 = vld [vmem:[%s3514 + $0x88] sm:$0xff]
    %v3533 = vld [vmem:[%s3514 + $0x90] sm:$0xff]
    %v3534 = vld [vmem:[%s3514 + $0x98] sm:$0xff]
    %v3535 = vld [vmem:[%s3514 + $0xa0] sm:$0xff]
    %v3536 = vld [vmem:[%s3514 + $0xa8] sm:$0xff]
    %v3537 = vld [vmem:[%s3514 + $0xb0] sm:$0xff]
    %v3538 = vld [vmem:[%s3514 + $0xb8] sm:$0xff]
    %v3539 = vld [vmem:[%s3514 + $0xc0] sm:$0xff]
    %v3540 = vld [vmem:[%s3514 + $0xc8] sm:$0xff]
    %v3541 = vld [vmem:[%s3514 + $0xd0] sm:$0xff]
    %v3542 = vld [vmem:[%s3514 + $0xd8] sm:$0xff]
    %v3543 = vld [vmem:[%s3514 + $0xe0] sm:$0xff]
    %v3544 = vld [vmem:[%s3514 + $0xe8] sm:$0xff]
    %v3545 = vld [vmem:[%s3514 + $0xf0] sm:$0xff]
    %v3546 = vld [vmem:[%s3514 + $0xf8] sm:$0xff]
    %v3547 = vld [vmem:[%s3514 + $0x100] sm:$0xff]
    %v3548 = vld [vmem:[%s3514 + $0x108] sm:$0xff]
    %v3549 = vld [vmem:[%s3514 + $0x110] sm:$0xff]
    %v3550 = vld [vmem:[%s3514 + $0x118] sm:$0xff]
    %v3551 = vld [vmem:[%s3514 + $0x120] sm:$0xff]
    %v3552 = vld [vmem:[%s3514 + $0x128] sm:$0xff]
    %v3553 = vld [vmem:[%s3514 + $0x130] sm:$0xff]
    %v3554 = vld [vmem:[%s3514 + $0x138] sm:$0xff]
    %v3555 = vld [vmem:[%s3514 + $0x140] sm:$0xff]
    %v3556 = vld [vmem:[%s3514 + $0x148] sm:$0xff]
    %v3557 = vld [vmem:[%s3514 + $0x150] sm:$0xff]
    %v3558 = vld [vmem:[%s3514 + $0x158] sm:$0xff]
    %v3559 = vld [vmem:[%s3514 + $0x160] sm:$0xff]
    %v3560 = vld [vmem:[%s3514 + $0x168] sm:$0xff]
    %v3561 = vld [vmem:[%s3514 + $0x170] sm:$0xff]
    %v3562 = vld [vmem:[%s3514 + $0x178] sm:$0xff]
    %v3563 = vld [vmem:[%s3514 + $0x180] sm:$0xff]
    %v3564 = vld [vmem:[%s3514 + $0x188] sm:$0xff]
    %v3565 = vld [vmem:[%s3514 + $0x190] sm:$0xff]
    %v3566 = vld [vmem:[%s3514 + $0x198] sm:$0xff]
    %v3567 = vld [vmem:[%s3514 + $0x1a0] sm:$0xff]
    %v3568 = vld [vmem:[%s3514 + $0x1a8] sm:$0xff]
    %v3569 = vld [vmem:[%s3514 + $0x1b0] sm:$0xff]
    %v3570 = vld [vmem:[%s3514 + $0x1b8] sm:$0xff]
    %v3571 = vld [vmem:[%s3514 + $0x1c0] sm:$0xff]
    %v3572 = vld [vmem:[%s3514 + $0x1c8] sm:$0xff]
    %v3573 = vld [vmem:[%s3514 + $0x1d0] sm:$0xff]
    %v3574 = vld [vmem:[%s3514 + $0x1d8] sm:$0xff]
    %v3575 = vld [vmem:[%s3514 + $0x1e0] sm:$0xff]
    %v3576 = vld [vmem:[%s3514 + $0x1e8] sm:$0xff]
    %v3577 = vld [vmem:[%s3514 + $0x1f0] sm:$0xff]
    %v3578 = vld [vmem:[%s3514 + $0x1f8] sm:$0xff]
    %vm3579 = vcmask 261120
    %v3580 = vsel %vm3579, 1.0, 0
    %3582 = vmatprep.subr.mxu0 0.0
    %3583 = vmatpush1.msra.mxu0 0.0
    %3584 = vmatprep.subr.mxu0 0.0
    %3585 = vmatpush1.msra.mxu0 0.0
    %3586 = vmatprep.subr.mxu0 0.0
    %3587 = vmatpush1.msra.mxu0 0.0
    %3588 = vmatprep.subr.mxu0 0.0
    %3589 = vmatpush1.msra.mxu0 0.0
    %3590 = vmatprep.subr.mxu0 0.0
    %3591 = vmatpush1.msra.mxu0 0.0
    %3592 = vmatprep.subr.mxu0 0.0
    %3593 = vmatpush1.msra.mxu0 0.0
    %3594 = vmatprep.subr.mxu0 0.0
    %3595 = vmatpush1.msra.mxu0 0.0
    %3596 = vmatprep.subr.mxu0 0.0
    %3597 = vmatpush1.msra.mxu0 0.0
    %3598 = vmatprep.subr.mxu0 0.0
    %3599 = vmatpush1.msra.mxu0 0.0
    %3600 = vmatprep.subr.mxu0 0.0
    %3601 = vmatpush1.msra.mxu0 0.0
    %3602 = vmatprep.subr.mxu0 0.0
    %3603 = vmatpush1.msra.mxu0 0.0
    %3604 = vmatprep.subr.mxu0 0.0
    %3605 = vmatpush1.msra.mxu0 0.0
    %3606 = vmatprep.subr.mxu0 %v3513
    %3607 = vmatpush1.msra.mxu0 %v3512
    %3608 = vmatprep.subr.mxu0 %v3511
    %3609 = vmatpush1.msra.mxu0 %v3510
    %3610 = vmatprep.subr.mxu0 %v3509
    %3611 = vmatpush1.msra.mxu0 %v3508
    %3612 = vmatprep.subr.mxu0 %v3507
    %3613 = vmatpush1.msra.mxu0 %v3506
    %3614 = vmatprep.subr.mxu0 0.0
    %3615 = vmatpush2.msra.mxu0 0.0
    %3616 = vmatprep.subr.mxu0 0.0
    %3617 = vmatpush2.msra.mxu0 0.0
    %3618 = vmatprep.subr.mxu0 0.0
    %3619 = vmatpush2.msra.mxu0 0.0
    %3620 = vmatprep.subr.mxu0 0.0
    %3621 = vmatpush2.msra.mxu0 0.0
    %3622 = vmatprep.subr.mxu0 0.0
    %3623 = vmatpush2.msra.mxu0 0.0
    %3624 = vmatprep.subr.mxu0 0.0
    %3625 = vmatpush2.msra.mxu0 0.0
    %3626 = vmatprep.subr.mxu0 0.0
    %3627 = vmatpush2.msra.mxu0 0.0
    %3628 = vmatprep.subr.mxu0 0.0
    %3629 = vmatpush2.msra.mxu0 0.0
    %3630 = vmatprep.subr.mxu0 0.0
    %3631 = vmatpush2.msra.mxu0 0.0
    %3632 = vmatprep.subr.mxu0 0.0
    %3633 = vmatpush2.msra.mxu0 0.0
    %3634 = vmatprep.subr.mxu0 0.0
    %3635 = vmatpush2.msra.mxu0 0.0
    %3636 = vmatprep.subr.mxu0 0.0
    %3637 = vmatpush2.msra.mxu0 0.0
    %3638 = vmatprep.subr.mxu0 0.0
    %3639 = vmatpush2.msra.mxu0 0.0
    %3640 = vmatprep.subr.mxu0 0.0
    %3641 = vmatpush2.msra.mxu0 0.0
    %3642 = vmatprep.subr.mxu0 0.0
    %3643 = vmatpush2.msra.mxu0 0.0
    %3644 = vmatprep.subr.mxu0 0.0
    %3645 = vmatpush2.msra.mxu0 0.0
    %3646 = vmatprep.mubr.f32.mxu0 0.0
    %3647 = vmatmul.mubr.f32.gmra.mxu0 %v3580
    %v3648 = vpop.f32.mrf.mxu0
    %v3649 = vadd.f32 0.0, %v3648
    %v3650 = vpop.f32.mrf.mxu0
    %v3651 = vadd.f32 0.0, %v3650
    %3652 = vdwg.mxu0
    %3653 = vmatprep.subr.mxu0 %v3546
    %3654 = vmatpush1.msra.mxu0 %v3545
    %3655 = vmatprep.subr.mxu0 %v3544
    %3656 = vmatpush1.msra.mxu0 %v3543
    %3657 = vmatprep.subr.mxu0 %v3542
    %3658 = vmatpush1.msra.mxu0 %v3541
    %3659 = vmatprep.subr.mxu0 %v3540
    %3660 = vmatpush1.msra.mxu0 %v3539
    %3661 = vmatprep.subr.mxu0 %v3538
    %3662 = vmatpush1.msra.mxu0 %v3537
    %3663 = vmatprep.subr.mxu0 %v3536
    %3664 = vmatpush1.msra.mxu0 %v3535
    %3665 = vmatprep.subr.mxu0 %v3534
    %3666 = vmatpush1.msra.mxu0 %v3533
    %3667 = vmatprep.subr.mxu0 %v3532
    %3668 = vmatpush1.msra.mxu0 %v3531
    %3669 = vmatprep.subr.mxu0 %v3530
    %3670 = vmatpush1.msra.mxu0 %v3529
    %3671 = vmatprep.subr.mxu0 %v3528
    %3672 = vmatpush1.msra.mxu0 %v3527
    %3673 = vmatprep.subr.mxu0 %v3526
    %3674 = vmatpush1.msra.mxu0 %v3525
    %3675 = vmatprep.subr.mxu0 %v3524
    %3676 = vmatpush1.msra.mxu0 %v3523
    %3677 = vmatprep.subr.mxu0 %v3522
    %3678 = vmatpush1.msra.mxu0 %v3521
    %3679 = vmatprep.subr.mxu0 %v3520
    %3680 = vmatpush1.msra.mxu0 %v3519
    %3681 = vmatprep.subr.mxu0 %v3518
    %3682 = vmatpush1.msra.mxu0 %v3517
    %3683 = vmatprep.subr.mxu0 %v3516
    %3684 = vmatpush1.msra.mxu0 %v3515
    %3685 = vmatprep.subr.mxu0 %v3578
    %3686 = vmatpush2.msra.mxu0 %v3577
    %3687 = vmatprep.subr.mxu0 %v3576
    %3688 = vmatpush2.msra.mxu0 %v3575
    %3689 = vmatprep.subr.mxu0 %v3574
    %3690 = vmatpush2.msra.mxu0 %v3573
    %3691 = vmatprep.subr.mxu0 %v3572
    %3692 = vmatpush2.msra.mxu0 %v3571
    %3693 = vmatprep.subr.mxu0 %v3570
    %3694 = vmatpush2.msra.mxu0 %v3569
    %3695 = vmatprep.subr.mxu0 %v3568
    %3696 = vmatpush2.msra.mxu0 %v3567
    %3697 = vmatprep.subr.mxu0 %v3566
    %3698 = vmatpush2.msra.mxu0 %v3565
    %3699 = vmatprep.subr.mxu0 %v3564
    %3700 = vmatpush2.msra.mxu0 %v3563
    %3701 = vmatprep.subr.mxu0 %v3562
    %3702 = vmatpush2.msra.mxu0 %v3561
    %3703 = vmatprep.subr.mxu0 %v3560
    %3704 = vmatpush2.msra.mxu0 %v3559
    %3705 = vmatprep.subr.mxu0 %v3558
    %3706 = vmatpush2.msra.mxu0 %v3557
    %3707 = vmatprep.subr.mxu0 %v3556
    %3708 = vmatpush2.msra.mxu0 %v3555
    %3709 = vmatprep.subr.mxu0 %v3554
    %3710 = vmatpush2.msra.mxu0 %v3553
    %3711 = vmatprep.subr.mxu0 %v3552
    %3712 = vmatpush2.msra.mxu0 %v3551
    %3713 = vmatprep.subr.mxu0 %v3550
    %3714 = vmatpush2.msra.mxu0 %v3549
    %3715 = vmatprep.subr.mxu0 %v3548
    %3716 = vmatpush2.msra.mxu0 %v3547
    %3717 = vmatprep.mubr.f32.mxu0 %v3651
    %3718 = vmatmul.mubr.f32.gmra.mxu0 %v3649
    %v3719 = vpop.f32.mrf.mxu0
    %v3720 = vadd.f32 0.0, %v3719
    %v3721 = vpop.f32.mrf.mxu0
    %v3722 = vadd.f32 0.0, %v3721
    %3723 = vdwg.mxu0
    %v3724 = vmul.f32 %v3720, 0.001953125
    %v3725 = vmul.f32 %v3722, 0.001953125
    %v3726 = vlaneseq
    %v3727 = vshrl.u32 %v3726, 7
    %v3728 = vsub.s32 0, %v3727
    %v3729 = vrot.slane %v3724, %v3728
    %v3730 = vlaneseq
    %v3731 = vshrl.u32 %v3730, 7
    %v3732 = vsub.s32 0, %v3731
    %v3733 = vrot.slane %v3725, %v3732
    %v3734 = vsub.f32 %v3506, %v3729
    %v3735 = vsub.f32 %v3507, %v3733
    %v3736 = vsub.f32 %v3508, %v3729
    %v3737 = vsub.f32 %v3509, %v3733
    %v3738 = vsub.f32 %v3510, %v3729
    %v3739 = vsub.f32 %v3511, %v3733
    %v3740 = vsub.f32 %v3512, %v3729
    %v3741 = vsub.f32 %v3513, %v3733
    %v3742 = vmul.f32 %v3734, %v3734
    %v3743 = vmul.f32 %v3735, %v3735
    %v3744 = vmul.f32 %v3736, %v3736
    %v3745 = vmul.f32 %v3737, %v3737
    %v3746 = vmul.f32 %v3738, %v3738
    %v3747 = vmul.f32 %v3739, %v3739
    %v3748 = vmul.f32 %v3740, %v3740
    %v3749 = vmul.f32 %v3741, %v3741
    %3750 = vmatprep.subr.mxu0 0.0
    %3751 = vmatpush1.msra.mxu0 0.0
    %3752 = vmatprep.subr.mxu0 0.0
    %3753 = vmatpush1.msra.mxu0 0.0
    %3754 = vmatprep.subr.mxu0 0.0
    %3755 = vmatpush1.msra.mxu0 0.0
    %3756 = vmatprep.subr.mxu0 0.0
    %3757 = vmatpush1.msra.mxu0 0.0
    %3758 = vmatprep.subr.mxu0 0.0
    %3759 = vmatpush1.msra.mxu0 0.0
    %3760 = vmatprep.subr.mxu0 0.0
    %3761 = vmatpush1.msra.mxu0 0.0
    %3762 = vmatprep.subr.mxu0 0.0
    %3763 = vmatpush1.msra.mxu0 0.0
    %3764 = vmatprep.subr.mxu0 0.0
    %3765 = vmatpush1.msra.mxu0 0.0
    %3766 = vmatprep.subr.mxu0 0.0
    %3767 = vmatpush1.msra.mxu0 0.0
    %3768 = vmatprep.subr.mxu0 0.0
    %3769 = vmatpush1.msra.mxu0 0.0
    %3770 = vmatprep.subr.mxu0 0.0
    %3771 = vmatpush1.msra.mxu0 0.0
    %3772 = vmatprep.subr.mxu0 0.0
    %3773 = vmatpush1.msra.mxu0 0.0
    %3774 = vmatprep.subr.mxu0 %v3749
    %3775 = vmatpush1.msra.mxu0 %v3748
    %3776 = vmatprep.subr.mxu0 %v3747
    %3777 = vmatpush1.msra.mxu0 %v3746
    %3778 = vmatprep.subr.mxu0 %v3745
    %3779 = vmatpush1.msra.mxu0 %v3744
    %3780 = vmatprep.subr.mxu0 %v3743
    %3781 = vmatpush1.msra.mxu0 %v3742
    %3782 = vmatprep.subr.mxu0 0.0
    %3783 = vmatpush2.msra.mxu0 0.0
    %3784 = vmatprep.subr.mxu0 0.0
    %3785 = vmatpush2.msra.mxu0 0.0
    %3786 = vmatprep.subr.mxu0 0.0
    %3787 = vmatpush2.msra.mxu0 0.0
    %3788 = vmatprep.subr.mxu0 0.0
    %3789 = vmatpush2.msra.mxu0 0.0
    %3790 = vmatprep.subr.mxu0 0.0
    %3791 = vmatpush2.msra.mxu0 0.0
    %3792 = vmatprep.subr.mxu0 0.0
    %3793 = vmatpush2.msra.mxu0 0.0
    %3794 = vmatprep.subr.mxu0 0.0
    %3795 = vmatpush2.msra.mxu0 0.0
    %3796 = vmatprep.subr.mxu0 0.0
    %3797 = vmatpush2.msra.mxu0 0.0
    %3798 = vmatprep.subr.mxu0 0.0
    %3799 = vmatpush2.msra.mxu0 0.0
    %3800 = vmatprep.subr.mxu0 0.0
    %3801 = vmatpush2.msra.mxu0 0.0
    %3802 = vmatprep.subr.mxu0 0.0
    %3803 = vmatpush2.msra.mxu0 0.0
    %3804 = vmatprep.subr.mxu0 0.0
    %3805 = vmatpush2.msra.mxu0 0.0
    %3806 = vmatprep.subr.mxu0 0.0
    %3807 = vmatpush2.msra.mxu0 0.0
    %3808 = vmatprep.subr.mxu0 0.0
    %3809 = vmatpush2.msra.mxu0 0.0
    %3810 = vmatprep.subr.mxu0 0.0
    %3811 = vmatpush2.msra.mxu0 0.0
    %3812 = vmatprep.subr.mxu0 0.0
    %3813 = vmatpush2.msra.mxu0 0.0
    %3814 = vmatprep.mubr.f32.mxu0 0.0
    %3815 = vmatmul.mubr.f32.gmra.mxu0 %v3580
    %v3816 = vpop.f32.mrf.mxu0
    %v3817 = vadd.f32 0.0, %v3816
    %v3818 = vpop.f32.mrf.mxu0
    %v3819 = vadd.f32 0.0, %v3818
    %3820 = vdwg.mxu0
    %3821 = vmatprep.subr.mxu0 %v3546
    %3822 = vmatpush1.msra.mxu0 %v3545
    %3823 = vmatprep.subr.mxu0 %v3544
    %3824 = vmatpush1.msra.mxu0 %v3543
    %3825 = vmatprep.subr.mxu0 %v3542
    %3826 = vmatpush1.msra.mxu0 %v3541
    %3827 = vmatprep.subr.mxu0 %v3540
    %3828 = vmatpush1.msra.mxu0 %v3539
    %3829 = vmatprep.subr.mxu0 %v3538
    %3830 = vmatpush1.msra.mxu0 %v3537
    %3831 = vmatprep.subr.mxu0 %v3536
    %3832 = vmatpush1.msra.mxu0 %v3535
    %3833 = vmatprep.subr.mxu0 %v3534
    %3834 = vmatpush1.msra.mxu0 %v3533
    %3835 = vmatprep.subr.mxu0 %v3532
    %3836 = vmatpush1.msra.mxu0 %v3531
    %3837 = vmatprep.subr.mxu0 %v3530
    %3838 = vmatpush1.msra.mxu0 %v3529
    %3839 = vmatprep.subr.mxu0 %v3528
    %3840 = vmatpush1.msra.mxu0 %v3527
    %3841 = vmatprep.subr.mxu0 %v3526
    %3842 = vmatpush1.msra.mxu0 %v3525
    %3843 = vmatprep.subr.mxu0 %v3524
    %3844 = vmatpush1.msra.mxu0 %v3523
    %3845 = vmatprep.subr.mxu0 %v3522
    %3846 = vmatpush1.msra.mxu0 %v3521
    %3847 = vmatprep.subr.mxu0 %v3520
    %3848 = vmatpush1.msra.mxu0 %v3519
    %3849 = vmatprep.subr.mxu0 %v3518
    %3850 = vmatpush1.msra.mxu0 %v3517
    %3851 = vmatprep.subr.mxu0 %v3516
    %3852 = vmatpush1.msra.mxu0 %v3515
    %3853 = vmatprep.subr.mxu0 %v3578
    %3854 = vmatpush2.msra.mxu0 %v3577
    %3855 = vmatprep.subr.mxu0 %v3576
    %3856 = vmatpush2.msra.mxu0 %v3575
    %3857 = vmatprep.subr.mxu0 %v3574
    %3858 = vmatpush2.msra.mxu0 %v3573
    %3859 = vmatprep.subr.mxu0 %v3572
    %3860 = vmatpush2.msra.mxu0 %v3571
    %3861 = vmatprep.subr.mxu0 %v3570
    %3862 = vmatpush2.msra.mxu0 %v3569
    %3863 = vmatprep.subr.mxu0 %v3568
    %3864 = vmatpush2.msra.mxu0 %v3567
    %3865 = vmatprep.subr.mxu0 %v3566
    %3866 = vmatpush2.msra.mxu0 %v3565
    %3867 = vmatprep.subr.mxu0 %v3564
    %3868 = vmatpush2.msra.mxu0 %v3563
    %3869 = vmatprep.subr.mxu0 %v3562
    %3870 = vmatpush2.msra.mxu0 %v3561
    %3871 = vmatprep.subr.mxu0 %v3560
    %3872 = vmatpush2.msra.mxu0 %v3559
    %3873 = vmatprep.subr.mxu0 %v3558
    %3874 = vmatpush2.msra.mxu0 %v3557
    %3875 = vmatprep.subr.mxu0 %v3556
    %3876 = vmatpush2.msra.mxu0 %v3555
    %3877 = vmatprep.subr.mxu0 %v3554
    %3878 = vmatpush2.msra.mxu0 %v3553
    %3879 = vmatprep.subr.mxu0 %v3552
    %3880 = vmatpush2.msra.mxu0 %v3551
    %3881 = vmatprep.subr.mxu0 %v3550
    %3882 = vmatpush2.msra.mxu0 %v3549
    %3883 = vmatprep.subr.mxu0 %v3548
    %3884 = vmatpush2.msra.mxu0 %v3547
    %3885 = vmatprep.mubr.f32.mxu0 %v3819
    %3886 = vmatmul.mubr.f32.gmra.mxu0 %v3817
    %v3887 = vpop.f32.mrf.mxu0
    %v3888 = vadd.f32 0.0, %v3887
    %v3889 = vpop.f32.mrf.mxu0
    %v3890 = vadd.f32 0.0, %v3889
    %3891 = vdwg.mxu0
    %v3892 = vmul.f32 %v3888, 0.001953125
    %v3893 = vmul.f32 %v3890, 0.001953125
    %v3894 = vadd.f32 %v3892, 1e-05
    %v3895 = vadd.f32 %v3893, 1e-05
    %v3896 = vrsqrt.pop %v3894
    %v3897 = vrsqrt.pop %v3895
    %v3900 = vrot.slane %v3896, 4
    %v3901 = vrot.slane %v3897, 4
    %v3904 = vmul.f32 %v50, %v3900
    %v3905 = vmul.f32 %v51, %v3901
    %v3906 = vlaneseq
    %v3907 = vshrl.u32 %v3906, 7
    %v3908 = vsub.s32 4, %v3907
    %v3909 = vrot.slane %v3904, %v3908
    %v3910 = vlaneseq
    %v3911 = vshrl.u32 %v3910, 7
    %v3912 = vsub.s32 4, %v3911
    %v3913 = vrot.slane %v3905, %v3912
    %v3914 = vmul.f32 %v3734, %v3909
    %v3915 = vmul.f32 %v3735, %v3913
    %v3916 = vmul.f32 %v3736, %v3909
    %v3917 = vmul.f32 %v3737, %v3913
    %v3918 = vmul.f32 %v3738, %v3909
    %v3919 = vmul.f32 %v3739, %v3913
    %v3920 = vmul.f32 %v3740, %v3909
    %v3921 = vmul.f32 %v3741, %v3913
    %v3922 = vlaneseq
    %v3923 = vshrl.u32 %v3922, 7
    %v3924 = vsub.s32 5, %v3923
    %v3925 = vrot.slane %v50, %v3924
    %v3926 = vlaneseq
    %v3927 = vshrl.u32 %v3926, 7
    %v3928 = vsub.s32 5, %v3927
    %v3929 = vrot.slane %v51, %v3928
    %v3930 = vadd.f32 %v3914, %v3925
    %v3931 = vadd.f32 %v3915, %v3929
    %v3932 = vadd.f32 %v3916, %v3925
    %v3933 = vadd.f32 %v3917, %v3929
    %v3934 = vadd.f32 %v3918, %v3925
    %v3935 = vadd.f32 %v3919, %v3929
    %v3936 = vadd.f32 %v3920, %v3925
    %v3937 = vadd.f32 %v3921, %v3929
    %v3938 = vmax.f32 %v3930, 0.0
    %v3939 = vmax.f32 %v3931, 0.0
    %v3940 = vmax.f32 %v3932, 0.0
    %v3941 = vmax.f32 %v3933, 0.0
    %v3942 = vmax.f32 %v3934, 0.0
    %v3943 = vmax.f32 %v3935, 0.0
    %v3944 = vmax.f32 %v3936, 0.0
    %v3945 = vmax.f32 %v3937, 0.0
    %v3946 = vld [vmem:[%s9] sm:$0xff]
    %v3947 = vld [vmem:[%s9 + $0x8] sm:$0xff]
    %v3948 = vld [vmem:[%s9 + $0x10] sm:$0xff]
    %v3949 = vld [vmem:[%s9 + $0x18] sm:$0xff]
    %v3950 = vld [vmem:[%s9 + $0x20] sm:$0xff]
    %v3951 = vld [vmem:[%s9 + $0x28] sm:$0xff]
    %v3952 = vld [vmem:[%s9 + $0x30] sm:$0xff]
    %v3953 = vld [vmem:[%s9 + $0x38] sm:$0xff]
    %v3954 = vld [vmem:[%s5] sm:$0xff]
    %v3955 = vld [vmem:[%s5 + $0x8] sm:$0xff]
    %v3956 = vld [vmem:[%s5 + $0x10] sm:$0xff]
    %v3957 = vld [vmem:[%s5 + $0x18] sm:$0xff]
    %v3958 = vld [vmem:[%s5 + $0x20] sm:$0xff]
    %v3959 = vld [vmem:[%s5 + $0x28] sm:$0xff]
    %v3960 = vld [vmem:[%s5 + $0x30] sm:$0xff]
    %v3961 = vld [vmem:[%s5 + $0x38] sm:$0xff]
    %v3962 = vld [vmem:[%s5 + $0x40] sm:$0xff]
    %v3963 = vld [vmem:[%s5 + $0x48] sm:$0xff]
    %v3964 = vld [vmem:[%s5 + $0x50] sm:$0xff]
    %v3965 = vld [vmem:[%s5 + $0x58] sm:$0xff]
    %v3966 = vld [vmem:[%s5 + $0x60] sm:$0xff]
    %v3967 = vld [vmem:[%s5 + $0x68] sm:$0xff]
    %v3968 = vld [vmem:[%s5 + $0x70] sm:$0xff]
    %v3969 = vld [vmem:[%s5 + $0x78] sm:$0xff]
    %v3970 = vld [vmem:[%s5 + $0x80] sm:$0xff]
    %v3971 = vld [vmem:[%s5 + $0x88] sm:$0xff]
    %v3972 = vld [vmem:[%s5 + $0x90] sm:$0xff]
    %v3973 = vld [vmem:[%s5 + $0x98] sm:$0xff]
    %v3974 = vld [vmem:[%s5 + $0xa0] sm:$0xff]
    %v3975 = vld [vmem:[%s5 + $0xa8] sm:$0xff]
    %v3976 = vld [vmem:[%s5 + $0xb0] sm:$0xff]
    %v3977 = vld [vmem:[%s5 + $0xb8] sm:$0xff]
    %v3978 = vld [vmem:[%s5 + $0xc0] sm:$0xff]
    %v3979 = vld [vmem:[%s5 + $0xc8] sm:$0xff]
    %v3980 = vld [vmem:[%s5 + $0xd0] sm:$0xff]
    %v3981 = vld [vmem:[%s5 + $0xd8] sm:$0xff]
    %v3982 = vld [vmem:[%s5 + $0xe0] sm:$0xff]
    %v3983 = vld [vmem:[%s5 + $0xe8] sm:$0xff]
    %v3984 = vld [vmem:[%s5 + $0xf0] sm:$0xff]
    %v3985 = vld [vmem:[%s5 + $0xf8] sm:$0xff]
    %v3986 = vld [vmem:[%s5 + $0x100] sm:$0xff]
    %v3987 = vld [vmem:[%s5 + $0x108] sm:$0xff]
    %v3988 = vld [vmem:[%s5 + $0x110] sm:$0xff]
    %v3989 = vld [vmem:[%s5 + $0x118] sm:$0xff]
    %v3990 = vld [vmem:[%s5 + $0x120] sm:$0xff]
    %v3991 = vld [vmem:[%s5 + $0x128] sm:$0xff]
    %v3992 = vld [vmem:[%s5 + $0x130] sm:$0xff]
    %v3993 = vld [vmem:[%s5 + $0x138] sm:$0xff]
    %v3994 = vld [vmem:[%s5 + $0x140] sm:$0xff]
    %v3995 = vld [vmem:[%s5 + $0x148] sm:$0xff]
    %v3996 = vld [vmem:[%s5 + $0x150] sm:$0xff]
    %v3997 = vld [vmem:[%s5 + $0x158] sm:$0xff]
    %v3998 = vld [vmem:[%s5 + $0x160] sm:$0xff]
    %v3999 = vld [vmem:[%s5 + $0x168] sm:$0xff]
    %v4000 = vld [vmem:[%s5 + $0x170] sm:$0xff]
    %v4001 = vld [vmem:[%s5 + $0x178] sm:$0xff]
    %v4002 = vld [vmem:[%s5 + $0x180] sm:$0xff]
    %v4003 = vld [vmem:[%s5 + $0x188] sm:$0xff]
    %v4004 = vld [vmem:[%s5 + $0x190] sm:$0xff]
    %v4005 = vld [vmem:[%s5 + $0x198] sm:$0xff]
    %v4006 = vld [vmem:[%s5 + $0x1a0] sm:$0xff]
    %v4007 = vld [vmem:[%s5 + $0x1a8] sm:$0xff]
    %v4008 = vld [vmem:[%s5 + $0x1b0] sm:$0xff]
    %v4009 = vld [vmem:[%s5 + $0x1b8] sm:$0xff]
    %v4010 = vld [vmem:[%s5 + $0x1c0] sm:$0xff]
    %v4011 = vld [vmem:[%s5 + $0x1c8] sm:$0xff]
    %v4012 = vld [vmem:[%s5 + $0x1d0] sm:$0xff]
    %v4013 = vld [vmem:[%s5 + $0x1d8] sm:$0xff]
    %v4014 = vld [vmem:[%s5 + $0x1e0] sm:$0xff]
    %v4015 = vld [vmem:[%s5 + $0x1e8] sm:$0xff]
    %v4016 = vld [vmem:[%s5 + $0x1f0] sm:$0xff]
    %v4017 = vld [vmem:[%s5 + $0x1f8] sm:$0xff]
    %4018 = vmatprep.subr.mxu0 %v3985
    %4019 = vmatpush1.msra.mxu0 %v3984
    %4020 = vmatprep.subr.mxu0 %v3983
    %4021 = vmatpush1.msra.mxu0 %v3982
    %4022 = vmatprep.subr.mxu0 %v3981
    %4023 = vmatpush1.msra.mxu0 %v3980
    %4024 = vmatprep.subr.mxu0 %v3979
    %4025 = vmatpush1.msra.mxu0 %v3978
    %4026 = vmatprep.subr.mxu0 %v3977
    %4027 = vmatpush1.msra.mxu0 %v3976
    %4028 = vmatprep.subr.mxu0 %v3975
    %4029 = vmatpush1.msra.mxu0 %v3974
    %4030 = vmatprep.subr.mxu0 %v3973
    %4031 = vmatpush1.msra.mxu0 %v3972
    %4032 = vmatprep.subr.mxu0 %v3971
    %4033 = vmatpush1.msra.mxu0 %v3970
    %4034 = vmatprep.subr.mxu0 %v3969
    %4035 = vmatpush1.msra.mxu0 %v3968
    %4036 = vmatprep.subr.mxu0 %v3967
    %4037 = vmatpush1.msra.mxu0 %v3966
    %4038 = vmatprep.subr.mxu0 %v3965
    %4039 = vmatpush1.msra.mxu0 %v3964
    %4040 = vmatprep.subr.mxu0 %v3963
    %4041 = vmatpush1.msra.mxu0 %v3962
    %4042 = vmatprep.subr.mxu0 %v3961
    %4043 = vmatpush1.msra.mxu0 %v3960
    %4044 = vmatprep.subr.mxu0 %v3959
    %4045 = vmatpush1.msra.mxu0 %v3958
    %4046 = vmatprep.subr.mxu0 %v3957
    %4047 = vmatpush1.msra.mxu0 %v3956
    %4048 = vmatprep.subr.mxu0 %v3955
    %4049 = vmatpush1.msra.mxu0 %v3954
    %4050 = vmatprep.subr.mxu0 %v4017
    %4051 = vmatpush2.msra.mxu0 %v4016
    %4052 = vmatprep.subr.mxu0 %v4015
    %4053 = vmatpush2.msra.mxu0 %v4014
    %4054 = vmatprep.subr.mxu0 %v4013
    %4055 = vmatpush2.msra.mxu0 %v4012
    %4056 = vmatprep.subr.mxu0 %v4011
    %4057 = vmatpush2.msra.mxu0 %v4010
    %4058 = vmatprep.subr.mxu0 %v4009
    %4059 = vmatpush2.msra.mxu0 %v4008
    %4060 = vmatprep.subr.mxu0 %v4007
    %4061 = vmatpush2.msra.mxu0 %v4006
    %4062 = vmatprep.subr.mxu0 %v4005
    %4063 = vmatpush2.msra.mxu0 %v4004
    %4064 = vmatprep.subr.mxu0 %v4003
    %4065 = vmatpush2.msra.mxu0 %v4002
    %4066 = vmatprep.subr.mxu0 %v4001
    %4067 = vmatpush2.msra.mxu0 %v4000
    %4068 = vmatprep.subr.mxu0 %v3999
    %4069 = vmatpush2.msra.mxu0 %v3998
    %4070 = vmatprep.subr.mxu0 %v3997
    %4071 = vmatpush2.msra.mxu0 %v3996
    %4072 = vmatprep.subr.mxu0 %v3995
    %4073 = vmatpush2.msra.mxu0 %v3994
    %4074 = vmatprep.subr.mxu0 %v3993
    %4075 = vmatpush2.msra.mxu0 %v3992
    %4076 = vmatprep.subr.mxu0 %v3991
    %4077 = vmatpush2.msra.mxu0 %v3990
    %4078 = vmatprep.subr.mxu0 %v3989
    %4079 = vmatpush2.msra.mxu0 %v3988
    %4080 = vmatprep.subr.mxu0 %v3987
    %4081 = vmatpush2.msra.mxu0 %v3986
    %4082 = vmatprep.mubr.f32.mxu0 %v3939
    %4083 = vmatmul.mubr.f32.gmra.mxu0 %v3938
    %v4084 = vpop.f32.mrf.mxu0
    %v4085 = vadd.f32 0.0, %v4084
    %v4086 = vpop.f32.mrf.mxu0
    %v4087 = vadd.f32 0.0, %v4086
    %4088 = vmatprep.mubr.f32.mxu0 %v3941
    %4089 = vmatmul.mubr.f32.gmra.mxu0 %v3940
    %v4090 = vpop.f32.mrf.mxu0
    %v4091 = vadd.f32 0.0, %v4090
    %v4092 = vpop.f32.mrf.mxu0
    %v4093 = vadd.f32 0.0, %v4092
    %4094 = vmatprep.mubr.f32.mxu0 %v3943
    %4095 = vmatmul.mubr.f32.gmra.mxu0 %v3942
    %v4096 = vpop.f32.mrf.mxu0
    %v4097 = vadd.f32 0.0, %v4096
    %v4098 = vpop.f32.mrf.mxu0
    %v4099 = vadd.f32 0.0, %v4098
    %4100 = vmatprep.mubr.f32.mxu0 %v3945
    %4101 = vmatmul.mubr.f32.gmra.mxu0 %v3944
    %v4102 = vpop.f32.mrf.mxu0
    %v4103 = vadd.f32 0.0, %v4102
    %v4104 = vpop.f32.mrf.mxu0
    %v4105 = vadd.f32 0.0, %v4104
    %4106 = vdwg.mxu0
    %s4107 = scalar_lea.vmem %s9, 64
    %v4108 = vld [vmem:[%s4107] sm:$0xff]
    %v4109 = vld [vmem:[%s4107 + $0x8] sm:$0xff]
    %v4110 = vld [vmem:[%s4107 + $0x10] sm:$0xff]
    %v4111 = vld [vmem:[%s4107 + $0x18] sm:$0xff]
    %v4112 = vld [vmem:[%s4107 + $0x20] sm:$0xff]
    %v4113 = vld [vmem:[%s4107 + $0x28] sm:$0xff]
    %v4114 = vld [vmem:[%s4107 + $0x30] sm:$0xff]
    %v4115 = vld [vmem:[%s4107 + $0x38] sm:$0xff]
    %s4116 = scalar_lea.vmem %s5, 512
    %v4117 = vld [vmem:[%s4116] sm:$0xff]
    %v4118 = vld [vmem:[%s4116 + $0x8] sm:$0xff]
    %v4119 = vld [vmem:[%s4116 + $0x10] sm:$0xff]
    %v4120 = vld [vmem:[%s4116 + $0x18] sm:$0xff]
    %v4121 = vld [vmem:[%s4116 + $0x20] sm:$0xff]
    %v4122 = vld [vmem:[%s4116 + $0x28] sm:$0xff]
    %v4123 = vld [vmem:[%s4116 + $0x30] sm:$0xff]
    %v4124 = vld [vmem:[%s4116 + $0x38] sm:$0xff]
    %v4125 = vld [vmem:[%s4116 + $0x40] sm:$0xff]
    %v4126 = vld [vmem:[%s4116 + $0x48] sm:$0xff]
    %v4127 = vld [vmem:[%s4116 + $0x50] sm:$0xff]
    %v4128 = vld [vmem:[%s4116 + $0x58] sm:$0xff]
    %v4129 = vld [vmem:[%s4116 + $0x60] sm:$0xff]
    %v4130 = vld [vmem:[%s4116 + $0x68] sm:$0xff]
    %v4131 = vld [vmem:[%s4116 + $0x70] sm:$0xff]
    %v4132 = vld [vmem:[%s4116 + $0x78] sm:$0xff]
    %v4133 = vld [vmem:[%s4116 + $0x80] sm:$0xff]
    %v4134 = vld [vmem:[%s4116 + $0x88] sm:$0xff]
    %v4135 = vld [vmem:[%s4116 + $0x90] sm:$0xff]
    %v4136 = vld [vmem:[%s4116 + $0x98] sm:$0xff]
    %v4137 = vld [vmem:[%s4116 + $0xa0] sm:$0xff]
    %v4138 = vld [vmem:[%s4116 + $0xa8] sm:$0xff]
    %v4139 = vld [vmem:[%s4116 + $0xb0] sm:$0xff]
    %v4140 = vld [vmem:[%s4116 + $0xb8] sm:$0xff]
    %v4141 = vld [vmem:[%s4116 + $0xc0] sm:$0xff]
    %v4142 = vld [vmem:[%s4116 + $0xc8] sm:$0xff]
    %v4143 = vld [vmem:[%s4116 + $0xd0] sm:$0xff]
    %v4144 = vld [vmem:[%s4116 + $0xd8] sm:$0xff]
    %v4145 = vld [vmem:[%s4116 + $0xe0] sm:$0xff]
    %v4146 = vld [vmem:[%s4116 + $0xe8] sm:$0xff]
    %v4147 = vld [vmem:[%s4116 + $0xf0] sm:$0xff]
    %v4148 = vld [vmem:[%s4116 + $0xf8] sm:$0xff]
    %v4149 = vld [vmem:[%s4116 + $0x100] sm:$0xff]
    %v4150 = vld [vmem:[%s4116 + $0x108] sm:$0xff]
    %v4151 = vld [vmem:[%s4116 + $0x110] sm:$0xff]
    %v4152 = vld [vmem:[%s4116 + $0x118] sm:$0xff]
    %v4153 = vld [vmem:[%s4116 + $0x120] sm:$0xff]
    %v4154 = vld [vmem:[%s4116 + $0x128] sm:$0xff]
    %v4155 = vld [vmem:[%s4116 + $0x130] sm:$0xff]
    %v4156 = vld [vmem:[%s4116 + $0x138] sm:$0xff]
    %v4157 = vld [vmem:[%s4116 + $0x140] sm:$0xff]
    %v4158 = vld [vmem:[%s4116 + $0x148] sm:$0xff]
    %v4159 = vld [vmem:[%s4116 + $0x150] sm:$0xff]
    %v4160 = vld [vmem:[%s4116 + $0x158] sm:$0xff]
    %v4161 = vld [vmem:[%s4116 + $0x160] sm:$0xff]
    %v4162 = vld [vmem:[%s4116 + $0x168] sm:$0xff]
    %v4163 = vld [vmem:[%s4116 + $0x170] sm:$0xff]
    %v4164 = vld [vmem:[%s4116 + $0x178] sm:$0xff]
    %v4165 = vld [vmem:[%s4116 + $0x180] sm:$0xff]
    %v4166 = vld [vmem:[%s4116 + $0x188] sm:$0xff]
    %v4167 = vld [vmem:[%s4116 + $0x190] sm:$0xff]
    %v4168 = vld [vmem:[%s4116 + $0x198] sm:$0xff]
    %v4169 = vld [vmem:[%s4116 + $0x1a0] sm:$0xff]
    %v4170 = vld [vmem:[%s4116 + $0x1a8] sm:$0xff]
    %v4171 = vld [vmem:[%s4116 + $0x1b0] sm:$0xff]
    %v4172 = vld [vmem:[%s4116 + $0x1b8] sm:$0xff]
    %v4173 = vld [vmem:[%s4116 + $0x1c0] sm:$0xff]
    %v4174 = vld [vmem:[%s4116 + $0x1c8] sm:$0xff]
    %v4175 = vld [vmem:[%s4116 + $0x1d0] sm:$0xff]
    %v4176 = vld [vmem:[%s4116 + $0x1d8] sm:$0xff]
    %v4177 = vld [vmem:[%s4116 + $0x1e0] sm:$0xff]
    %v4178 = vld [vmem:[%s4116 + $0x1e8] sm:$0xff]
    %v4179 = vld [vmem:[%s4116 + $0x1f0] sm:$0xff]
    %v4180 = vld [vmem:[%s4116 + $0x1f8] sm:$0xff]
    %4181 = vmatprep.subr.mxu0 %v4148
    %4182 = vmatpush1.msra.mxu0 %v4147
    %4183 = vmatprep.subr.mxu0 %v4146
    %4184 = vmatpush1.msra.mxu0 %v4145
    %4185 = vmatprep.subr.mxu0 %v4144
    %4186 = vmatpush1.msra.mxu0 %v4143
    %4187 = vmatprep.subr.mxu0 %v4142
    %4188 = vmatpush1.msra.mxu0 %v4141
    %4189 = vmatprep.subr.mxu0 %v4140
    %4190 = vmatpush1.msra.mxu0 %v4139
    %4191 = vmatprep.subr.mxu0 %v4138
    %4192 = vmatpush1.msra.mxu0 %v4137
    %4193 = vmatprep.subr.mxu0 %v4136
    %4194 = vmatpush1.msra.mxu0 %v4135
    %4195 = vmatprep.subr.mxu0 %v4134
    %4196 = vmatpush1.msra.mxu0 %v4133
    %4197 = vmatprep.subr.mxu0 %v4132
    %4198 = vmatpush1.msra.mxu0 %v4131
    %4199 = vmatprep.subr.mxu0 %v4130
    %4200 = vmatpush1.msra.mxu0 %v4129
    %4201 = vmatprep.subr.mxu0 %v4128
    %4202 = vmatpush1.msra.mxu0 %v4127
    %4203 = vmatprep.subr.mxu0 %v4126
    %4204 = vmatpush1.msra.mxu0 %v4125
    %4205 = vmatprep.subr.mxu0 %v4124
    %4206 = vmatpush1.msra.mxu0 %v4123
    %4207 = vmatprep.subr.mxu0 %v4122
    %4208 = vmatpush1.msra.mxu0 %v4121
    %4209 = vmatprep.subr.mxu0 %v4120
    %4210 = vmatpush1.msra.mxu0 %v4119
    %4211 = vmatprep.subr.mxu0 %v4118
    %4212 = vmatpush1.msra.mxu0 %v4117
    %4213 = vmatprep.subr.mxu0 %v4180
    %4214 = vmatpush2.msra.mxu0 %v4179
    %4215 = vmatprep.subr.mxu0 %v4178
    %4216 = vmatpush2.msra.mxu0 %v4177
    %4217 = vmatprep.subr.mxu0 %v4176
    %4218 = vmatpush2.msra.mxu0 %v4175
    %4219 = vmatprep.subr.mxu0 %v4174
    %4220 = vmatpush2.msra.mxu0 %v4173
    %4221 = vmatprep.subr.mxu0 %v4172
    %4222 = vmatpush2.msra.mxu0 %v4171
    %4223 = vmatprep.subr.mxu0 %v4170
    %4224 = vmatpush2.msra.mxu0 %v4169
    %4225 = vmatprep.subr.mxu0 %v4168
    %4226 = vmatpush2.msra.mxu0 %v4167
    %4227 = vmatprep.subr.mxu0 %v4166
    %4228 = vmatpush2.msra.mxu0 %v4165
    %4229 = vmatprep.subr.mxu0 %v4164
    %4230 = vmatpush2.msra.mxu0 %v4163
    %4231 = vmatprep.subr.mxu0 %v4162
    %4232 = vmatpush2.msra.mxu0 %v4161
    %4233 = vmatprep.subr.mxu0 %v4160
    %4234 = vmatpush2.msra.mxu0 %v4159
    %4235 = vmatprep.subr.mxu0 %v4158
    %4236 = vmatpush2.msra.mxu0 %v4157
    %4237 = vmatprep.subr.mxu0 %v4156
    %4238 = vmatpush2.msra.mxu0 %v4155
    %4239 = vmatprep.subr.mxu0 %v4154
    %4240 = vmatpush2.msra.mxu0 %v4153
    %4241 = vmatprep.subr.mxu0 %v4152
    %4242 = vmatpush2.msra.mxu0 %v4151
    %4243 = vmatprep.subr.mxu0 %v4150
    %4244 = vmatpush2.msra.mxu0 %v4149
    %4245 = vmatprep.mubr.f32.mxu0 %v3939
    %4246 = vmatmul.mubr.f32.gmra.mxu0 %v3938
    %v4247 = vpop.f32.mrf.mxu0
    %v4248 = vadd.f32 0.0, %v4247
    %v4249 = vpop.f32.mrf.mxu0
    %v4250 = vadd.f32 0.0, %v4249
    %4251 = vmatprep.mubr.f32.mxu0 %v3941
    %4252 = vmatmul.mubr.f32.gmra.mxu0 %v3940
    %v4253 = vpop.f32.mrf.mxu0
    %v4254 = vadd.f32 0.0, %v4253
    %v4255 = vpop.f32.mrf.mxu0
    %v4256 = vadd.f32 0.0, %v4255
    %4257 = vmatprep.mubr.f32.mxu0 %v3943
    %4258 = vmatmul.mubr.f32.gmra.mxu0 %v3942
    %v4259 = vpop.f32.mrf.mxu0
    %v4260 = vadd.f32 0.0, %v4259
    %v4261 = vpop.f32.mrf.mxu0
    %v4262 = vadd.f32 0.0, %v4261
    %4263 = vmatprep.mubr.f32.mxu0 %v3945
    %4264 = vmatmul.mubr.f32.gmra.mxu0 %v3944
    %v4265 = vpop.f32.mrf.mxu0
    %v4266 = vadd.f32 0.0, %v4265
    %v4267 = vpop.f32.mrf.mxu0
    %v4268 = vadd.f32 0.0, %v4267
    %4269 = vdwg.mxu0
    %v4271 = vsel %vm3579, %v4108, 0
    %v4274 = vsel %vm3579, %v4109, 0
    %v4277 = vsel %vm3579, %v4110, 0
    %v4280 = vsel %vm3579, %v4111, 0
    %v4283 = vsel %vm3579, %v4112, 0
    %v4286 = vsel %vm3579, %v4113, 0
    %v4289 = vsel %vm3579, %v4114, 0
    %v4292 = vsel %vm3579, %v4115, 0
    %4294 = vmatprep.subr.mxu0 0.0
    %4295 = vmatpush1.msra.mxu0 0.0
    %4296 = vmatprep.subr.mxu0 0.0
    %4297 = vmatpush1.msra.mxu0 0.0
    %4298 = vmatprep.subr.mxu0 0.0
    %4299 = vmatpush1.msra.mxu0 0.0
    %4300 = vmatprep.subr.mxu0 0.0
    %4301 = vmatpush1.msra.mxu0 0.0
    %4302 = vmatprep.subr.mxu0 0.0
    %4303 = vmatpush1.msra.mxu0 0.0
    %4304 = vmatprep.subr.mxu0 0.0
    %4305 = vmatpush1.msra.mxu0 0.0
    %4306 = vmatprep.subr.mxu0 0.0
    %4307 = vmatpush1.msra.mxu0 0.0
    %4308 = vmatprep.subr.mxu0 0.0
    %4309 = vmatpush1.msra.mxu0 0.0
    %4310 = vmatprep.subr.mxu0 0.0
    %4311 = vmatpush1.msra.mxu0 0.0
    %4312 = vmatprep.subr.mxu0 0.0
    %4313 = vmatpush1.msra.mxu0 0.0
    %4314 = vmatprep.subr.mxu0 0.0
    %4315 = vmatpush1.msra.mxu0 0.0
    %4316 = vmatprep.subr.mxu0 0.0
    %4317 = vmatpush1.msra.mxu0 0.0
    %4318 = vmatprep.subr.mxu0 %v4268
    %4319 = vmatpush1.msra.mxu0 %v4266
    %4320 = vmatprep.subr.mxu0 %v4262
    %4321 = vmatpush1.msra.mxu0 %v4260
    %4322 = vmatprep.subr.mxu0 %v4256
    %4323 = vmatpush1.msra.mxu0 %v4254
    %4324 = vmatprep.subr.mxu0 %v4250
    %4325 = vmatpush1.msra.mxu0 %v4248
    %4326 = vmatprep.subr.mxu0 0.0
    %4327 = vmatpush2.msra.mxu0 0.0
    %4328 = vmatprep.subr.mxu0 0.0
    %4329 = vmatpush2.msra.mxu0 0.0
    %4330 = vmatprep.subr.mxu0 0.0
    %4331 = vmatpush2.msra.mxu0 0.0
    %4332 = vmatprep.subr.mxu0 0.0
    %4333 = vmatpush2.msra.mxu0 0.0
    %4334 = vmatprep.subr.mxu0 0.0
    %4335 = vmatpush2.msra.mxu0 0.0
    %4336 = vmatprep.subr.mxu0 0.0
    %4337 = vmatpush2.msra.mxu0 0.0
    %4338 = vmatprep.subr.mxu0 0.0
    %4339 = vmatpush2.msra.mxu0 0.0
    %4340 = vmatprep.subr.mxu0 0.0
    %4341 = vmatpush2.msra.mxu0 0.0
    %4342 = vmatprep.subr.mxu0 0.0
    %4343 = vmatpush2.msra.mxu0 0.0
    %4344 = vmatprep.subr.mxu0 0.0
    %4345 = vmatpush2.msra.mxu0 0.0
    %4346 = vmatprep.subr.mxu0 0.0
    %4347 = vmatpush2.msra.mxu0 0.0
    %4348 = vmatprep.subr.mxu0 0.0
    %4349 = vmatpush2.msra.mxu0 0.0
    %4350 = vmatprep.subr.mxu0 0.0
    %4351 = vmatpush2.msra.mxu0 0.0
    %4352 = vmatprep.subr.mxu0 0.0
    %4353 = vmatpush2.msra.mxu0 0.0
    %4354 = vmatprep.subr.mxu0 0.0
    %4355 = vmatpush2.msra.mxu0 0.0
    %4356 = vmatprep.subr.mxu0 0.0
    %4357 = vmatpush2.msra.mxu0 0.0
    %4358 = vmatprep.mubr.f32.mxu0 0.0
    %4359 = vmatmul.mubr.f32.gmra.mxu0 %v4271
    %v4360 = vpop.f32.mrf.mxu0
    %v4361 = vadd.f32 0.0, %v4360
    %v4362 = vpop.f32.mrf.mxu0
    %v4363 = vadd.f32 0.0, %v4362
    %4364 = vmatprep.mubr.f32.mxu0 0.0
    %4365 = vmatmul.mubr.f32.gmra.mxu0 %v4274
    %v4366 = vpop.f32.mrf.mxu0
    %v4367 = vadd.f32 0.0, %v4366
    %v4368 = vpop.f32.mrf.mxu0
    %v4369 = vadd.f32 0.0, %v4368
    %4370 = vmatprep.mubr.f32.mxu0 0.0
    %4371 = vmatmul.mubr.f32.gmra.mxu0 %v4277
    %v4372 = vpop.f32.mrf.mxu0
    %v4373 = vadd.f32 0.0, %v4372
    %v4374 = vpop.f32.mrf.mxu0
    %v4375 = vadd.f32 0.0, %v4374
    %4376 = vmatprep.mubr.f32.mxu0 0.0
    %4377 = vmatmul.mubr.f32.gmra.mxu0 %v4280
    %v4378 = vpop.f32.mrf.mxu0
    %v4379 = vadd.f32 0.0, %v4378
    %v4380 = vpop.f32.mrf.mxu0
    %v4381 = vadd.f32 0.0, %v4380
    %4382 = vmatprep.mubr.f32.mxu0 0.0
    %4383 = vmatmul.mubr.f32.gmra.mxu0 %v4283
    %v4384 = vpop.f32.mrf.mxu0
    %v4385 = vadd.f32 0.0, %v4384
    %v4386 = vpop.f32.mrf.mxu0
    %v4387 = vadd.f32 0.0, %v4386
    %4388 = vmatprep.mubr.f32.mxu0 0.0
    %4389 = vmatmul.mubr.f32.gmra.mxu0 %v4286
    %v4390 = vpop.f32.mrf.mxu0
    %v4391 = vadd.f32 0.0, %v4390
    %v4392 = vpop.f32.mrf.mxu0
    %v4393 = vadd.f32 0.0, %v4392
    %4394 = vmatprep.mubr.f32.mxu0 0.0
    %4395 = vmatmul.mubr.f32.gmra.mxu0 %v4289
    %v4396 = vpop.f32.mrf.mxu0
    %v4397 = vadd.f32 0.0, %v4396
    %v4398 = vpop.f32.mrf.mxu0
    %v4399 = vadd.f32 0.0, %v4398
    %4400 = vmatprep.mubr.f32.mxu0 0.0
    %4401 = vmatmul.mubr.f32.gmra.mxu0 %v4292
    %v4402 = vpop.f32.mrf.mxu0
    %v4403 = vadd.f32 0.0, %v4402
    %v4404 = vpop.f32.mrf.mxu0
    %v4405 = vadd.f32 0.0, %v4404
    %4406 = vdwg.mxu0
    %v4408 = vsel %vm3579, %v3946, 0
    %v4411 = vsel %vm3579, %v3947, 0
    %v4414 = vsel %vm3579, %v3948, 0
    %v4417 = vsel %vm3579, %v3949, 0
    %v4420 = vsel %vm3579, %v3950, 0
    %v4423 = vsel %vm3579, %v3951, 0
    %v4426 = vsel %vm3579, %v3952, 0
    %v4429 = vsel %vm3579, %v3953, 0
    %4431 = vmatprep.subr.mxu0 0.0
    %4432 = vmatpush1.msra.mxu0 0.0
    %4433 = vmatprep.subr.mxu0 0.0
    %4434 = vmatpush1.msra.mxu0 0.0
    %4435 = vmatprep.subr.mxu0 0.0
    %4436 = vmatpush1.msra.mxu0 0.0
    %4437 = vmatprep.subr.mxu0 0.0
    %4438 = vmatpush1.msra.mxu0 0.0
    %4439 = vmatprep.subr.mxu0 0.0
    %4440 = vmatpush1.msra.mxu0 0.0
    %4441 = vmatprep.subr.mxu0 0.0
    %4442 = vmatpush1.msra.mxu0 0.0
    %4443 = vmatprep.subr.mxu0 0.0
    %4444 = vmatpush1.msra.mxu0 0.0
    %4445 = vmatprep.subr.mxu0 0.0
    %4446 = vmatpush1.msra.mxu0 0.0
    %4447 = vmatprep.subr.mxu0 0.0
    %4448 = vmatpush1.msra.mxu0 0.0
    %4449 = vmatprep.subr.mxu0 0.0
    %4450 = vmatpush1.msra.mxu0 0.0
    %4451 = vmatprep.subr.mxu0 0.0
    %4452 = vmatpush1.msra.mxu0 0.0
    %4453 = vmatprep.subr.mxu0 0.0
    %4454 = vmatpush1.msra.mxu0 0.0
    %4455 = vmatprep.subr.mxu0 %v4105
    %4456 = vmatpush1.msra.mxu0 %v4103
    %4457 = vmatprep.subr.mxu0 %v4099
    %4458 = vmatpush1.msra.mxu0 %v4097
    %4459 = vmatprep.subr.mxu0 %v4093
    %4460 = vmatpush1.msra.mxu0 %v4091
    %4461 = vmatprep.subr.mxu0 %v4087
    %4462 = vmatpush1.msra.mxu0 %v4085
    %4463 = vmatprep.subr.mxu0 0.0
    %4464 = vmatpush2.msra.mxu0 0.0
    %4465 = vmatprep.subr.mxu0 0.0
    %4466 = vmatpush2.msra.mxu0 0.0
    %4467 = vmatprep.subr.mxu0 0.0
    %4468 = vmatpush2.msra.mxu0 0.0
    %4469 = vmatprep.subr.mxu0 0.0
    %4470 = vmatpush2.msra.mxu0 0.0
    %4471 = vmatprep.subr.mxu0 0.0
    %4472 = vmatpush2.msra.mxu0 0.0
    %4473 = vmatprep.subr.mxu0 0.0
    %4474 = vmatpush2.msra.mxu0 0.0
    %4475 = vmatprep.subr.mxu0 0.0
    %4476 = vmatpush2.msra.mxu0 0.0
    %4477 = vmatprep.subr.mxu0 0.0
    %4478 = vmatpush2.msra.mxu0 0.0
    %4479 = vmatprep.subr.mxu0 0.0
    %4480 = vmatpush2.msra.mxu0 0.0
    %4481 = vmatprep.subr.mxu0 0.0
    %4482 = vmatpush2.msra.mxu0 0.0
    %4483 = vmatprep.subr.mxu0 0.0
    %4484 = vmatpush2.msra.mxu0 0.0
    %4485 = vmatprep.subr.mxu0 0.0
    %4486 = vmatpush2.msra.mxu0 0.0
    %4487 = vmatprep.subr.mxu0 0.0
    %4488 = vmatpush2.msra.mxu0 0.0
    %4489 = vmatprep.subr.mxu0 0.0
    %4490 = vmatpush2.msra.mxu0 0.0
    %4491 = vmatprep.subr.mxu0 0.0
    %4492 = vmatpush2.msra.mxu0 0.0
    %4493 = vmatprep.subr.mxu0 0.0
    %4494 = vmatpush2.msra.mxu0 0.0
    %4495 = vmatprep.mubr.f32.mxu0 0.0
    %4496 = vmatmul.mubr.f32.gmra.mxu0 %v4408
    %v4497 = vpop.f32.mrf.mxu0
    %v4498 = vadd.f32 %v4361, %v4497
    %v4499 = vpop.f32.mrf.mxu0
    %v4500 = vadd.f32 %v4363, %v4499
    %4501 = vmatprep.mubr.f32.mxu0 0.0
    %4502 = vmatmul.mubr.f32.gmra.mxu0 %v4411
    %v4503 = vpop.f32.mrf.mxu0
    %v4504 = vadd.f32 %v4367, %v4503
    %v4505 = vpop.f32.mrf.mxu0
    %v4506 = vadd.f32 %v4369, %v4505
    %4507 = vmatprep.mubr.f32.mxu0 0.0
    %4508 = vmatmul.mubr.f32.gmra.mxu0 %v4414
    %v4509 = vpop.f32.mrf.mxu0
    %v4510 = vadd.f32 %v4373, %v4509
    %v4511 = vpop.f32.mrf.mxu0
    %v4512 = vadd.f32 %v4375, %v4511
    %4513 = vmatprep.mubr.f32.mxu0 0.0
    %4514 = vmatmul.mubr.f32.gmra.mxu0 %v4417
    %v4515 = vpop.f32.mrf.mxu0
    %v4516 = vadd.f32 %v4379, %v4515
    %v4517 = vpop.f32.mrf.mxu0
    %v4518 = vadd.f32 %v4381, %v4517
    %4519 = vmatprep.mubr.f32.mxu0 0.0
    %4520 = vmatmul.mubr.f32.gmra.mxu0 %v4420
    %v4521 = vpop.f32.mrf.mxu0
    %v4522 = vadd.f32 %v4385, %v4521
    %v4523 = vpop.f32.mrf.mxu0
    %v4524 = vadd.f32 %v4387, %v4523
    %4525 = vmatprep.mubr.f32.mxu0 0.0
    %4526 = vmatmul.mubr.f32.gmra.mxu0 %v4423
    %v4527 = vpop.f32.mrf.mxu0
    %v4528 = vadd.f32 %v4391, %v4527
    %v4529 = vpop.f32.mrf.mxu0
    %v4530 = vadd.f32 %v4393, %v4529
    %4531 = vmatprep.mubr.f32.mxu0 0.0
    %4532 = vmatmul.mubr.f32.gmra.mxu0 %v4426
    %v4533 = vpop.f32.mrf.mxu0
    %v4534 = vadd.f32 %v4397, %v4533
    %v4535 = vpop.f32.mrf.mxu0
    %v4536 = vadd.f32 %v4399, %v4535
    %4537 = vmatprep.mubr.f32.mxu0 0.0
    %4538 = vmatmul.mubr.f32.gmra.mxu0 %v4429
    %v4539 = vpop.f32.mrf.mxu0
    %v4540 = vadd.f32 %v4403, %v4539
    %v4541 = vpop.f32.mrf.mxu0
    %v4542 = vadd.f32 %v4405, %v4541
    %4543 = vdwg.mxu0
    %s4544 = scalar_lea.vmem %s9, 128
    %v4545 = vld [vmem:[%s4544] sm:$0xff]
    %v4546 = vld [vmem:[%s4544 + $0x8] sm:$0xff]
    %v4547 = vld [vmem:[%s4544 + $0x10] sm:$0xff]
    %v4548 = vld [vmem:[%s4544 + $0x18] sm:$0xff]
    %v4549 = vld [vmem:[%s4544 + $0x20] sm:$0xff]
    %v4550 = vld [vmem:[%s4544 + $0x28] sm:$0xff]
    %v4551 = vld [vmem:[%s4544 + $0x30] sm:$0xff]
    %v4552 = vld [vmem:[%s4544 + $0x38] sm:$0xff]
    %s4553 = scalar_lea.vmem %s5, 1024
    %v4554 = vld [vmem:[%s4553] sm:$0xff]
    %v4555 = vld [vmem:[%s4553 + $0x8] sm:$0xff]
    %v4556 = vld [vmem:[%s4553 + $0x10] sm:$0xff]
    %v4557 = vld [vmem:[%s4553 + $0x18] sm:$0xff]
    %v4558 = vld [vmem:[%s4553 + $0x20] sm:$0xff]
    %v4559 = vld [vmem:[%s4553 + $0x28] sm:$0xff]
    %v4560 = vld [vmem:[%s4553 + $0x30] sm:$0xff]
    %v4561 = vld [vmem:[%s4553 + $0x38] sm:$0xff]
    %v4562 = vld [vmem:[%s4553 + $0x40] sm:$0xff]
    %v4563 = vld [vmem:[%s4553 + $0x48] sm:$0xff]
    %v4564 = vld [vmem:[%s4553 + $0x50] sm:$0xff]
    %v4565 = vld [vmem:[%s4553 + $0x58] sm:$0xff]
    %v4566 = vld [vmem:[%s4553 + $0x60] sm:$0xff]
    %v4567 = vld [vmem:[%s4553 + $0x68] sm:$0xff]
    %v4568 = vld [vmem:[%s4553 + $0x70] sm:$0xff]
    %v4569 = vld [vmem:[%s4553 + $0x78] sm:$0xff]
    %v4570 = vld [vmem:[%s4553 + $0x80] sm:$0xff]
    %v4571 = vld [vmem:[%s4553 + $0x88] sm:$0xff]
    %v4572 = vld [vmem:[%s4553 + $0x90] sm:$0xff]
    %v4573 = vld [vmem:[%s4553 + $0x98] sm:$0xff]
    %v4574 = vld [vmem:[%s4553 + $0xa0] sm:$0xff]
    %v4575 = vld [vmem:[%s4553 + $0xa8] sm:$0xff]
    %v4576 = vld [vmem:[%s4553 + $0xb0] sm:$0xff]
    %v4577 = vld [vmem:[%s4553 + $0xb8] sm:$0xff]
    %v4578 = vld [vmem:[%s4553 + $0xc0] sm:$0xff]
    %v4579 = vld [vmem:[%s4553 + $0xc8] sm:$0xff]
    %v4580 = vld [vmem:[%s4553 + $0xd0] sm:$0xff]
    %v4581 = vld [vmem:[%s4553 + $0xd8] sm:$0xff]
    %v4582 = vld [vmem:[%s4553 + $0xe0] sm:$0xff]
    %v4583 = vld [vmem:[%s4553 + $0xe8] sm:$0xff]
    %v4584 = vld [vmem:[%s4553 + $0xf0] sm:$0xff]
    %v4585 = vld [vmem:[%s4553 + $0xf8] sm:$0xff]
    %v4586 = vld [vmem:[%s4553 + $0x100] sm:$0xff]
    %v4587 = vld [vmem:[%s4553 + $0x108] sm:$0xff]
    %v4588 = vld [vmem:[%s4553 + $0x110] sm:$0xff]
    %v4589 = vld [vmem:[%s4553 + $0x118] sm:$0xff]
    %v4590 = vld [vmem:[%s4553 + $0x120] sm:$0xff]
    %v4591 = vld [vmem:[%s4553 + $0x128] sm:$0xff]
    %v4592 = vld [vmem:[%s4553 + $0x130] sm:$0xff]
    %v4593 = vld [vmem:[%s4553 + $0x138] sm:$0xff]
    %v4594 = vld [vmem:[%s4553 + $0x140] sm:$0xff]
    %v4595 = vld [vmem:[%s4553 + $0x148] sm:$0xff]
    %v4596 = vld [vmem:[%s4553 + $0x150] sm:$0xff]
    %v4597 = vld [vmem:[%s4553 + $0x158] sm:$0xff]
    %v4598 = vld [vmem:[%s4553 + $0x160] sm:$0xff]
    %v4599 = vld [vmem:[%s4553 + $0x168] sm:$0xff]
    %v4600 = vld [vmem:[%s4553 + $0x170] sm:$0xff]
    %v4601 = vld [vmem:[%s4553 + $0x178] sm:$0xff]
    %v4602 = vld [vmem:[%s4553 + $0x180] sm:$0xff]
    %v4603 = vld [vmem:[%s4553 + $0x188] sm:$0xff]
    %v4604 = vld [vmem:[%s4553 + $0x190] sm:$0xff]
    %v4605 = vld [vmem:[%s4553 + $0x198] sm:$0xff]
    %v4606 = vld [vmem:[%s4553 + $0x1a0] sm:$0xff]
    %v4607 = vld [vmem:[%s4553 + $0x1a8] sm:$0xff]
    %v4608 = vld [vmem:[%s4553 + $0x1b0] sm:$0xff]
    %v4609 = vld [vmem:[%s4553 + $0x1b8] sm:$0xff]
    %v4610 = vld [vmem:[%s4553 + $0x1c0] sm:$0xff]
    %v4611 = vld [vmem:[%s4553 + $0x1c8] sm:$0xff]
    %v4612 = vld [vmem:[%s4553 + $0x1d0] sm:$0xff]
    %v4613 = vld [vmem:[%s4553 + $0x1d8] sm:$0xff]
    %v4614 = vld [vmem:[%s4553 + $0x1e0] sm:$0xff]
    %v4615 = vld [vmem:[%s4553 + $0x1e8] sm:$0xff]
    %v4616 = vld [vmem:[%s4553 + $0x1f0] sm:$0xff]
    %v4617 = vld [vmem:[%s4553 + $0x1f8] sm:$0xff]
    %4618 = vmatprep.subr.mxu0 %v4585
    %4619 = vmatpush1.msra.mxu0 %v4584
    %4620 = vmatprep.subr.mxu0 %v4583
    %4621 = vmatpush1.msra.mxu0 %v4582
    %4622 = vmatprep.subr.mxu0 %v4581
    %4623 = vmatpush1.msra.mxu0 %v4580
    %4624 = vmatprep.subr.mxu0 %v4579
    %4625 = vmatpush1.msra.mxu0 %v4578
    %4626 = vmatprep.subr.mxu0 %v4577
    %4627 = vmatpush1.msra.mxu0 %v4576
    %4628 = vmatprep.subr.mxu0 %v4575
    %4629 = vmatpush1.msra.mxu0 %v4574
    %4630 = vmatprep.subr.mxu0 %v4573
    %4631 = vmatpush1.msra.mxu0 %v4572
    %4632 = vmatprep.subr.mxu0 %v4571
    %4633 = vmatpush1.msra.mxu0 %v4570
    %4634 = vmatprep.subr.mxu0 %v4569
    %4635 = vmatpush1.msra.mxu0 %v4568
    %4636 = vmatprep.subr.mxu0 %v4567
    %4637 = vmatpush1.msra.mxu0 %v4566
    %4638 = vmatprep.subr.mxu0 %v4565
    %4639 = vmatpush1.msra.mxu0 %v4564
    %4640 = vmatprep.subr.mxu0 %v4563
    %4641 = vmatpush1.msra.mxu0 %v4562
    %4642 = vmatprep.subr.mxu0 %v4561
    %4643 = vmatpush1.msra.mxu0 %v4560
    %4644 = vmatprep.subr.mxu0 %v4559
    %4645 = vmatpush1.msra.mxu0 %v4558
    %4646 = vmatprep.subr.mxu0 %v4557
    %4647 = vmatpush1.msra.mxu0 %v4556
    %4648 = vmatprep.subr.mxu0 %v4555
    %4649 = vmatpush1.msra.mxu0 %v4554
    %4650 = vmatprep.subr.mxu0 %v4617
    %4651 = vmatpush2.msra.mxu0 %v4616
    %4652 = vmatprep.subr.mxu0 %v4615
    %4653 = vmatpush2.msra.mxu0 %v4614
    %4654 = vmatprep.subr.mxu0 %v4613
    %4655 = vmatpush2.msra.mxu0 %v4612
    %4656 = vmatprep.subr.mxu0 %v4611
    %4657 = vmatpush2.msra.mxu0 %v4610
    %4658 = vmatprep.subr.mxu0 %v4609
    %4659 = vmatpush2.msra.mxu0 %v4608
    %4660 = vmatprep.subr.mxu0 %v4607
    %4661 = vmatpush2.msra.mxu0 %v4606
    %4662 = vmatprep.subr.mxu0 %v4605
    %4663 = vmatpush2.msra.mxu0 %v4604
    %4664 = vmatprep.subr.mxu0 %v4603
    %4665 = vmatpush2.msra.mxu0 %v4602
    %4666 = vmatprep.subr.mxu0 %v4601
    %4667 = vmatpush2.msra.mxu0 %v4600
    %4668 = vmatprep.subr.mxu0 %v4599
    %4669 = vmatpush2.msra.mxu0 %v4598
    %4670 = vmatprep.subr.mxu0 %v4597
    %4671 = vmatpush2.msra.mxu0 %v4596
    %4672 = vmatprep.subr.mxu0 %v4595
    %4673 = vmatpush2.msra.mxu0 %v4594
    %4674 = vmatprep.subr.mxu0 %v4593
    %4675 = vmatpush2.msra.mxu0 %v4592
    %4676 = vmatprep.subr.mxu0 %v4591
    %4677 = vmatpush2.msra.mxu0 %v4590
    %4678 = vmatprep.subr.mxu0 %v4589
    %4679 = vmatpush2.msra.mxu0 %v4588
    %4680 = vmatprep.subr.mxu0 %v4587
    %4681 = vmatpush2.msra.mxu0 %v4586
    %4682 = vmatprep.mubr.f32.mxu0 %v3939
    %4683 = vmatmul.mubr.f32.gmra.mxu0 %v3938
    %v4684 = vpop.f32.mrf.mxu0
    %v4685 = vadd.f32 0.0, %v4684
    %v4686 = vpop.f32.mrf.mxu0
    %v4687 = vadd.f32 0.0, %v4686
    %4688 = vmatprep.mubr.f32.mxu0 %v3941
    %4689 = vmatmul.mubr.f32.gmra.mxu0 %v3940
    %v4690 = vpop.f32.mrf.mxu0
    %v4691 = vadd.f32 0.0, %v4690
    %v4692 = vpop.f32.mrf.mxu0
    %v4693 = vadd.f32 0.0, %v4692
    %4694 = vmatprep.mubr.f32.mxu0 %v3943
    %4695 = vmatmul.mubr.f32.gmra.mxu0 %v3942
    %v4696 = vpop.f32.mrf.mxu0
    %v4697 = vadd.f32 0.0, %v4696
    %v4698 = vpop.f32.mrf.mxu0
    %v4699 = vadd.f32 0.0, %v4698
    %4700 = vmatprep.mubr.f32.mxu0 %v3945
    %4701 = vmatmul.mubr.f32.gmra.mxu0 %v3944
    %v4702 = vpop.f32.mrf.mxu0
    %v4703 = vadd.f32 0.0, %v4702
    %v4704 = vpop.f32.mrf.mxu0
    %v4705 = vadd.f32 0.0, %v4704
    %4706 = vdwg.mxu0
    %v4708 = vsel %vm3579, %v4545, 0
    %v4711 = vsel %vm3579, %v4546, 0
    %v4714 = vsel %vm3579, %v4547, 0
    %v4717 = vsel %vm3579, %v4548, 0
    %v4720 = vsel %vm3579, %v4549, 0
    %v4723 = vsel %vm3579, %v4550, 0
    %v4726 = vsel %vm3579, %v4551, 0
    %v4729 = vsel %vm3579, %v4552, 0
    %4731 = vmatprep.subr.mxu0 0.0
    %4732 = vmatpush1.msra.mxu0 0.0
    %4733 = vmatprep.subr.mxu0 0.0
    %4734 = vmatpush1.msra.mxu0 0.0
    %4735 = vmatprep.subr.mxu0 0.0
    %4736 = vmatpush1.msra.mxu0 0.0
    %4737 = vmatprep.subr.mxu0 0.0
    %4738 = vmatpush1.msra.mxu0 0.0
    %4739 = vmatprep.subr.mxu0 0.0
    %4740 = vmatpush1.msra.mxu0 0.0
    %4741 = vmatprep.subr.mxu0 0.0
    %4742 = vmatpush1.msra.mxu0 0.0
    %4743 = vmatprep.subr.mxu0 0.0
    %4744 = vmatpush1.msra.mxu0 0.0
    %4745 = vmatprep.subr.mxu0 0.0
    %4746 = vmatpush1.msra.mxu0 0.0
    %4747 = vmatprep.subr.mxu0 0.0
    %4748 = vmatpush1.msra.mxu0 0.0
    %4749 = vmatprep.subr.mxu0 0.0
    %4750 = vmatpush1.msra.mxu0 0.0
    %4751 = vmatprep.subr.mxu0 0.0
    %4752 = vmatpush1.msra.mxu0 0.0
    %4753 = vmatprep.subr.mxu0 0.0
    %4754 = vmatpush1.msra.mxu0 0.0
    %4755 = vmatprep.subr.mxu0 %v4705
    %4756 = vmatpush1.msra.mxu0 %v4703
    %4757 = vmatprep.subr.mxu0 %v4699
    %4758 = vmatpush1.msra.mxu0 %v4697
    %4759 = vmatprep.subr.mxu0 %v4693
    %4760 = vmatpush1.msra.mxu0 %v4691
    %4761 = vmatprep.subr.mxu0 %v4687
    %4762 = vmatpush1.msra.mxu0 %v4685
    %4763 = vmatprep.subr.mxu0 0.0
    %4764 = vmatpush2.msra.mxu0 0.0
    %4765 = vmatprep.subr.mxu0 0.0
    %4766 = vmatpush2.msra.mxu0 0.0
    %4767 = vmatprep.subr.mxu0 0.0
    %4768 = vmatpush2.msra.mxu0 0.0
    %4769 = vmatprep.subr.mxu0 0.0
    %4770 = vmatpush2.msra.mxu0 0.0
    %4771 = vmatprep.subr.mxu0 0.0
    %4772 = vmatpush2.msra.mxu0 0.0
    %4773 = vmatprep.subr.mxu0 0.0
    %4774 = vmatpush2.msra.mxu0 0.0
    %4775 = vmatprep.subr.mxu0 0.0
    %4776 = vmatpush2.msra.mxu0 0.0
    %4777 = vmatprep.subr.mxu0 0.0
    %4778 = vmatpush2.msra.mxu0 0.0
    %4779 = vmatprep.subr.mxu0 0.0
    %4780 = vmatpush2.msra.mxu0 0.0
    %4781 = vmatprep.subr.mxu0 0.0
    %4782 = vmatpush2.msra.mxu0 0.0
    %4783 = vmatprep.subr.mxu0 0.0
    %4784 = vmatpush2.msra.mxu0 0.0
    %4785 = vmatprep.subr.mxu0 0.0
    %4786 = vmatpush2.msra.mxu0 0.0
    %4787 = vmatprep.subr.mxu0 0.0
    %4788 = vmatpush2.msra.mxu0 0.0
    %4789 = vmatprep.subr.mxu0 0.0
    %4790 = vmatpush2.msra.mxu0 0.0
    %4791 = vmatprep.subr.mxu0 0.0
    %4792 = vmatpush2.msra.mxu0 0.0
    %4793 = vmatprep.subr.mxu0 0.0
    %4794 = vmatpush2.msra.mxu0 0.0
    %4795 = vmatprep.mubr.f32.mxu0 0.0
    %4796 = vmatmul.mubr.f32.gmra.mxu0 %v4708
    %v4797 = vpop.f32.mrf.mxu0
    %v4798 = vadd.f32 0.0, %v4797
    %v4799 = vpop.f32.mrf.mxu0
    %v4800 = vadd.f32 0.0, %v4799
    %4801 = vmatprep.mubr.f32.mxu0 0.0
    %4802 = vmatmul.mubr.f32.gmra.mxu0 %v4711
    %v4803 = vpop.f32.mrf.mxu0
    %v4804 = vadd.f32 0.0, %v4803
    %v4805 = vpop.f32.mrf.mxu0
    %v4806 = vadd.f32 0.0, %v4805
    %4807 = vmatprep.mubr.f32.mxu0 0.0
    %4808 = vmatmul.mubr.f32.gmra.mxu0 %v4714
    %v4809 = vpop.f32.mrf.mxu0
    %v4810 = vadd.f32 0.0, %v4809
    %v4811 = vpop.f32.mrf.mxu0
    %v4812 = vadd.f32 0.0, %v4811
    %4813 = vmatprep.mubr.f32.mxu0 0.0
    %4814 = vmatmul.mubr.f32.gmra.mxu0 %v4717
    %v4815 = vpop.f32.mrf.mxu0
    %v4816 = vadd.f32 0.0, %v4815
    %v4817 = vpop.f32.mrf.mxu0
    %v4818 = vadd.f32 0.0, %v4817
    %4819 = vmatprep.mubr.f32.mxu0 0.0
    %4820 = vmatmul.mubr.f32.gmra.mxu0 %v4720
    %v4821 = vpop.f32.mrf.mxu0
    %v4822 = vadd.f32 0.0, %v4821
    %v4823 = vpop.f32.mrf.mxu0
    %v4824 = vadd.f32 0.0, %v4823
    %4825 = vmatprep.mubr.f32.mxu0 0.0
    %4826 = vmatmul.mubr.f32.gmra.mxu0 %v4723
    %v4827 = vpop.f32.mrf.mxu0
    %v4828 = vadd.f32 0.0, %v4827
    %v4829 = vpop.f32.mrf.mxu0
    %v4830 = vadd.f32 0.0, %v4829
    %4831 = vmatprep.mubr.f32.mxu0 0.0
    %4832 = vmatmul.mubr.f32.gmra.mxu0 %v4726
    %v4833 = vpop.f32.mrf.mxu0
    %v4834 = vadd.f32 0.0, %v4833
    %v4835 = vpop.f32.mrf.mxu0
    %v4836 = vadd.f32 0.0, %v4835
    %4837 = vmatprep.mubr.f32.mxu0 0.0
    %4838 = vmatmul.mubr.f32.gmra.mxu0 %v4729
    %v4839 = vpop.f32.mrf.mxu0
    %v4840 = vadd.f32 0.0, %v4839
    %v4841 = vpop.f32.mrf.mxu0
    %v4842 = vadd.f32 0.0, %v4841
    %4843 = vdwg.mxu0
    %v4844 = vadd.f32 %v4498, %v4798
    %v4845 = vadd.f32 %v4500, %v4800
    %v4846 = vadd.f32 %v4504, %v4804
    %v4847 = vadd.f32 %v4506, %v4806
    %v4848 = vadd.f32 %v4510, %v4810
    %v4849 = vadd.f32 %v4512, %v4812
    %v4850 = vadd.f32 %v4516, %v4816
    %v4851 = vadd.f32 %v4518, %v4818
    %v4852 = vadd.f32 %v4522, %v4822
    %v4853 = vadd.f32 %v4524, %v4824
    %v4854 = vadd.f32 %v4528, %v4828
    %v4855 = vadd.f32 %v4530, %v4830
    %v4856 = vadd.f32 %v4534, %v4834
    %v4857 = vadd.f32 %v4536, %v4836
    %v4858 = vadd.f32 %v4540, %v4840
    %v4859 = vadd.f32 %v4542, %v4842
    %s4860 = scalar_lea.vmem %s9, 192
    %v4861 = vld [vmem:[%s4860] sm:$0xff]
    %v4862 = vld [vmem:[%s4860 + $0x8] sm:$0xff]
    %v4863 = vld [vmem:[%s4860 + $0x10] sm:$0xff]
    %v4864 = vld [vmem:[%s4860 + $0x18] sm:$0xff]
    %v4865 = vld [vmem:[%s4860 + $0x20] sm:$0xff]
    %v4866 = vld [vmem:[%s4860 + $0x28] sm:$0xff]
    %v4867 = vld [vmem:[%s4860 + $0x30] sm:$0xff]
    %v4868 = vld [vmem:[%s4860 + $0x38] sm:$0xff]
    %s4869 = scalar_lea.vmem %s5, 1536
    %v4870 = vld [vmem:[%s4869] sm:$0xff]
    %v4871 = vld [vmem:[%s4869 + $0x8] sm:$0xff]
    %v4872 = vld [vmem:[%s4869 + $0x10] sm:$0xff]
    %v4873 = vld [vmem:[%s4869 + $0x18] sm:$0xff]
    %v4874 = vld [vmem:[%s4869 + $0x20] sm:$0xff]
    %v4875 = vld [vmem:[%s4869 + $0x28] sm:$0xff]
    %v4876 = vld [vmem:[%s4869 + $0x30] sm:$0xff]
    %v4877 = vld [vmem:[%s4869 + $0x38] sm:$0xff]
    %v4878 = vld [vmem:[%s4869 + $0x40] sm:$0xff]
    %v4879 = vld [vmem:[%s4869 + $0x48] sm:$0xff]
    %v4880 = vld [vmem:[%s4869 + $0x50] sm:$0xff]
    %v4881 = vld [vmem:[%s4869 + $0x58] sm:$0xff]
    %v4882 = vld [vmem:[%s4869 + $0x60] sm:$0xff]
    %v4883 = vld [vmem:[%s4869 + $0x68] sm:$0xff]
    %v4884 = vld [vmem:[%s4869 + $0x70] sm:$0xff]
    %v4885 = vld [vmem:[%s4869 + $0x78] sm:$0xff]
    %v4886 = vld [vmem:[%s4869 + $0x80] sm:$0xff]
    %v4887 = vld [vmem:[%s4869 + $0x88] sm:$0xff]
    %v4888 = vld [vmem:[%s4869 + $0x90] sm:$0xff]
    %v4889 = vld [vmem:[%s4869 + $0x98] sm:$0xff]
    %v4890 = vld [vmem:[%s4869 + $0xa0] sm:$0xff]
    %v4891 = vld [vmem:[%s4869 + $0xa8] sm:$0xff]
    %v4892 = vld [vmem:[%s4869 + $0xb0] sm:$0xff]
    %v4893 = vld [vmem:[%s4869 + $0xb8] sm:$0xff]
    %v4894 = vld [vmem:[%s4869 + $0xc0] sm:$0xff]
    %v4895 = vld [vmem:[%s4869 + $0xc8] sm:$0xff]
    %v4896 = vld [vmem:[%s4869 + $0xd0] sm:$0xff]
    %v4897 = vld [vmem:[%s4869 + $0xd8] sm:$0xff]
    %v4898 = vld [vmem:[%s4869 + $0xe0] sm:$0xff]
    %v4899 = vld [vmem:[%s4869 + $0xe8] sm:$0xff]
    %v4900 = vld [vmem:[%s4869 + $0xf0] sm:$0xff]
    %v4901 = vld [vmem:[%s4869 + $0xf8] sm:$0xff]
    %v4902 = vld [vmem:[%s4869 + $0x100] sm:$0xff]
    %v4903 = vld [vmem:[%s4869 + $0x108] sm:$0xff]
    %v4904 = vld [vmem:[%s4869 + $0x110] sm:$0xff]
    %v4905 = vld [vmem:[%s4869 + $0x118] sm:$0xff]
    %v4906 = vld [vmem:[%s4869 + $0x120] sm:$0xff]
    %v4907 = vld [vmem:[%s4869 + $0x128] sm:$0xff]
    %v4908 = vld [vmem:[%s4869 + $0x130] sm:$0xff]
    %v4909 = vld [vmem:[%s4869 + $0x138] sm:$0xff]
    %v4910 = vld [vmem:[%s4869 + $0x140] sm:$0xff]
    %v4911 = vld [vmem:[%s4869 + $0x148] sm:$0xff]
    %v4912 = vld [vmem:[%s4869 + $0x150] sm:$0xff]
    %v4913 = vld [vmem:[%s4869 + $0x158] sm:$0xff]
    %v4914 = vld [vmem:[%s4869 + $0x160] sm:$0xff]
    %v4915 = vld [vmem:[%s4869 + $0x168] sm:$0xff]
    %v4916 = vld [vmem:[%s4869 + $0x170] sm:$0xff]
    %v4917 = vld [vmem:[%s4869 + $0x178] sm:$0xff]
    %v4918 = vld [vmem:[%s4869 + $0x180] sm:$0xff]
    %v4919 = vld [vmem:[%s4869 + $0x188] sm:$0xff]
    %v4920 = vld [vmem:[%s4869 + $0x190] sm:$0xff]
    %v4921 = vld [vmem:[%s4869 + $0x198] sm:$0xff]
    %v4922 = vld [vmem:[%s4869 + $0x1a0] sm:$0xff]
    %v4923 = vld [vmem:[%s4869 + $0x1a8] sm:$0xff]
    %v4924 = vld [vmem:[%s4869 + $0x1b0] sm:$0xff]
    %v4925 = vld [vmem:[%s4869 + $0x1b8] sm:$0xff]
    %v4926 = vld [vmem:[%s4869 + $0x1c0] sm:$0xff]
    %v4927 = vld [vmem:[%s4869 + $0x1c8] sm:$0xff]
    %v4928 = vld [vmem:[%s4869 + $0x1d0] sm:$0xff]
    %v4929 = vld [vmem:[%s4869 + $0x1d8] sm:$0xff]
    %v4930 = vld [vmem:[%s4869 + $0x1e0] sm:$0xff]
    %v4931 = vld [vmem:[%s4869 + $0x1e8] sm:$0xff]
    %v4932 = vld [vmem:[%s4869 + $0x1f0] sm:$0xff]
    %v4933 = vld [vmem:[%s4869 + $0x1f8] sm:$0xff]
    %4934 = vmatprep.subr.mxu0 %v4901
    %4935 = vmatpush1.msra.mxu0 %v4900
    %4936 = vmatprep.subr.mxu0 %v4899
    %4937 = vmatpush1.msra.mxu0 %v4898
    %4938 = vmatprep.subr.mxu0 %v4897
    %4939 = vmatpush1.msra.mxu0 %v4896
    %4940 = vmatprep.subr.mxu0 %v4895
    %4941 = vmatpush1.msra.mxu0 %v4894
    %4942 = vmatprep.subr.mxu0 %v4893
    %4943 = vmatpush1.msra.mxu0 %v4892
    %4944 = vmatprep.subr.mxu0 %v4891
    %4945 = vmatpush1.msra.mxu0 %v4890
    %4946 = vmatprep.subr.mxu0 %v4889
    %4947 = vmatpush1.msra.mxu0 %v4888
    %4948 = vmatprep.subr.mxu0 %v4887
    %4949 = vmatpush1.msra.mxu0 %v4886
    %4950 = vmatprep.subr.mxu0 %v4885
    %4951 = vmatpush1.msra.mxu0 %v4884
    %4952 = vmatprep.subr.mxu0 %v4883
    %4953 = vmatpush1.msra.mxu0 %v4882
    %4954 = vmatprep.subr.mxu0 %v4881
    %4955 = vmatpush1.msra.mxu0 %v4880
    %4956 = vmatprep.subr.mxu0 %v4879
    %4957 = vmatpush1.msra.mxu0 %v4878
    %4958 = vmatprep.subr.mxu0 %v4877
    %4959 = vmatpush1.msra.mxu0 %v4876
    %4960 = vmatprep.subr.mxu0 %v4875
    %4961 = vmatpush1.msra.mxu0 %v4874
    %4962 = vmatprep.subr.mxu0 %v4873
    %4963 = vmatpush1.msra.mxu0 %v4872
    %4964 = vmatprep.subr.mxu0 %v4871
    %4965 = vmatpush1.msra.mxu0 %v4870
    %4966 = vmatprep.subr.mxu0 %v4933
    %4967 = vmatpush2.msra.mxu0 %v4932
    %4968 = vmatprep.subr.mxu0 %v4931
    %4969 = vmatpush2.msra.mxu0 %v4930
    %4970 = vmatprep.subr.mxu0 %v4929
    %4971 = vmatpush2.msra.mxu0 %v4928
    %4972 = vmatprep.subr.mxu0 %v4927
    %4973 = vmatpush2.msra.mxu0 %v4926
    %4974 = vmatprep.subr.mxu0 %v4925
    %4975 = vmatpush2.msra.mxu0 %v4924
    %4976 = vmatprep.subr.mxu0 %v4923
    %4977 = vmatpush2.msra.mxu0 %v4922
    %4978 = vmatprep.subr.mxu0 %v4921
    %4979 = vmatpush2.msra.mxu0 %v4920
    %4980 = vmatprep.subr.mxu0 %v4919
    %4981 = vmatpush2.msra.mxu0 %v4918
    %4982 = vmatprep.subr.mxu0 %v4917
    %4983 = vmatpush2.msra.mxu0 %v4916
    %4984 = vmatprep.subr.mxu0 %v4915
    %4985 = vmatpush2.msra.mxu0 %v4914
    %4986 = vmatprep.subr.mxu0 %v4913
    %4987 = vmatpush2.msra.mxu0 %v4912
    %4988 = vmatprep.subr.mxu0 %v4911
    %4989 = vmatpush2.msra.mxu0 %v4910
    %4990 = vmatprep.subr.mxu0 %v4909
    %4991 = vmatpush2.msra.mxu0 %v4908
    %4992 = vmatprep.subr.mxu0 %v4907
    %4993 = vmatpush2.msra.mxu0 %v4906
    %4994 = vmatprep.subr.mxu0 %v4905
    %4995 = vmatpush2.msra.mxu0 %v4904
    %4996 = vmatprep.subr.mxu0 %v4903
    %4997 = vmatpush2.msra.mxu0 %v4902
    %4998 = vmatprep.mubr.f32.mxu0 %v3939
    %4999 = vmatmul.mubr.f32.gmra.mxu0 %v3938
    %v5000 = vpop.f32.mrf.mxu0
    %v5001 = vadd.f32 0.0, %v5000
    %v5002 = vpop.f32.mrf.mxu0
    %v5003 = vadd.f32 0.0, %v5002
    %5004 = vmatprep.mubr.f32.mxu0 %v3941
    %5005 = vmatmul.mubr.f32.gmra.mxu0 %v3940
    %v5006 = vpop.f32.mrf.mxu0
    %v5007 = vadd.f32 0.0, %v5006
    %v5008 = vpop.f32.mrf.mxu0
    %v5009 = vadd.f32 0.0, %v5008
    %5010 = vmatprep.mubr.f32.mxu0 %v3943
    %5011 = vmatmul.mubr.f32.gmra.mxu0 %v3942
    %v5012 = vpop.f32.mrf.mxu0
    %v5013 = vadd.f32 0.0, %v5012
    %v5014 = vpop.f32.mrf.mxu0
    %v5015 = vadd.f32 0.0, %v5014
    %5016 = vmatprep.mubr.f32.mxu0 %v3945
    %5017 = vmatmul.mubr.f32.gmra.mxu0 %v3944
    %v5018 = vpop.f32.mrf.mxu0
    %v5019 = vadd.f32 0.0, %v5018
    %v5020 = vpop.f32.mrf.mxu0
    %v5021 = vadd.f32 0.0, %v5020
    %5022 = vdwg.mxu0
    %v5024 = vsel %vm3579, %v4861, 0
    %v5027 = vsel %vm3579, %v4862, 0
    %v5030 = vsel %vm3579, %v4863, 0
    %v5033 = vsel %vm3579, %v4864, 0
    %v5036 = vsel %vm3579, %v4865, 0
    %v5039 = vsel %vm3579, %v4866, 0
    %v5042 = vsel %vm3579, %v4867, 0
    %v5045 = vsel %vm3579, %v4868, 0
    %5047 = vmatprep.subr.mxu0 0.0
    %5048 = vmatpush1.msra.mxu0 0.0
    %5049 = vmatprep.subr.mxu0 0.0
    %5050 = vmatpush1.msra.mxu0 0.0
    %5051 = vmatprep.subr.mxu0 0.0
    %5052 = vmatpush1.msra.mxu0 0.0
    %5053 = vmatprep.subr.mxu0 0.0
    %5054 = vmatpush1.msra.mxu0 0.0
    %5055 = vmatprep.subr.mxu0 0.0
    %5056 = vmatpush1.msra.mxu0 0.0
    %5057 = vmatprep.subr.mxu0 0.0
    %5058 = vmatpush1.msra.mxu0 0.0
    %5059 = vmatprep.subr.mxu0 0.0
    %5060 = vmatpush1.msra.mxu0 0.0
    %5061 = vmatprep.subr.mxu0 0.0
    %5062 = vmatpush1.msra.mxu0 0.0
    %5063 = vmatprep.subr.mxu0 0.0
    %5064 = vmatpush1.msra.mxu0 0.0
    %5065 = vmatprep.subr.mxu0 0.0
    %5066 = vmatpush1.msra.mxu0 0.0
    %5067 = vmatprep.subr.mxu0 0.0
    %5068 = vmatpush1.msra.mxu0 0.0
    %5069 = vmatprep.subr.mxu0 0.0
    %5070 = vmatpush1.msra.mxu0 0.0
    %5071 = vmatprep.subr.mxu0 %v5021
    %5072 = vmatpush1.msra.mxu0 %v5019
    %5073 = vmatprep.subr.mxu0 %v5015
    %5074 = vmatpush1.msra.mxu0 %v5013
    %5075 = vmatprep.subr.mxu0 %v5009
    %5076 = vmatpush1.msra.mxu0 %v5007
    %5077 = vmatprep.subr.mxu0 %v5003
    %5078 = vmatpush1.msra.mxu0 %v5001
    %5079 = vmatprep.subr.mxu0 0.0
    %5080 = vmatpush2.msra.mxu0 0.0
    %5081 = vmatprep.subr.mxu0 0.0
    %5082 = vmatpush2.msra.mxu0 0.0
    %5083 = vmatprep.subr.mxu0 0.0
    %5084 = vmatpush2.msra.mxu0 0.0
    %5085 = vmatprep.subr.mxu0 0.0
    %5086 = vmatpush2.msra.mxu0 0.0
    %5087 = vmatprep.subr.mxu0 0.0
    %5088 = vmatpush2.msra.mxu0 0.0
    %5089 = vmatprep.subr.mxu0 0.0
    %5090 = vmatpush2.msra.mxu0 0.0
    %5091 = vmatprep.subr.mxu0 0.0
    %5092 = vmatpush2.msra.mxu0 0.0
    %5093 = vmatprep.subr.mxu0 0.0
    %5094 = vmatpush2.msra.mxu0 0.0
    %5095 = vmatprep.subr.mxu0 0.0
    %5096 = vmatpush2.msra.mxu0 0.0
    %5097 = vmatprep.subr.mxu0 0.0
    %5098 = vmatpush2.msra.mxu0 0.0
    %5099 = vmatprep.subr.mxu0 0.0
    %5100 = vmatpush2.msra.mxu0 0.0
    %5101 = vmatprep.subr.mxu0 0.0
    %5102 = vmatpush2.msra.mxu0 0.0
    %5103 = vmatprep.subr.mxu0 0.0
    %5104 = vmatpush2.msra.mxu0 0.0
    %5105 = vmatprep.subr.mxu0 0.0
    %5106 = vmatpush2.msra.mxu0 0.0
    %5107 = vmatprep.subr.mxu0 0.0
    %5108 = vmatpush2.msra.mxu0 0.0
    %5109 = vmatprep.subr.mxu0 0.0
    %5110 = vmatpush2.msra.mxu0 0.0
    %5111 = vmatprep.mubr.f32.mxu0 0.0
    %5112 = vmatmul.mubr.f32.gmra.mxu0 %v5024
    %v5113 = vpop.f32.mrf.mxu0
    %v5114 = vadd.f32 0.0, %v5113
    %v5115 = vpop.f32.mrf.mxu0
    %v5116 = vadd.f32 0.0, %v5115
    %5117 = vmatprep.mubr.f32.mxu0 0.0
    %5118 = vmatmul.mubr.f32.gmra.mxu0 %v5027
    %v5119 = vpop.f32.mrf.mxu0
    %v5120 = vadd.f32 0.0, %v5119
    %v5121 = vpop.f32.mrf.mxu0
    %v5122 = vadd.f32 0.0, %v5121
    %5123 = vmatprep.mubr.f32.mxu0 0.0
    %5124 = vmatmul.mubr.f32.gmra.mxu0 %v5030
    %v5125 = vpop.f32.mrf.mxu0
    %v5126 = vadd.f32 0.0, %v5125
    %v5127 = vpop.f32.mrf.mxu0
    %v5128 = vadd.f32 0.0, %v5127
    %5129 = vmatprep.mubr.f32.mxu0 0.0
    %5130 = vmatmul.mubr.f32.gmra.mxu0 %v5033
    %v5131 = vpop.f32.mrf.mxu0
    %v5132 = vadd.f32 0.0, %v5131
    %v5133 = vpop.f32.mrf.mxu0
    %v5134 = vadd.f32 0.0, %v5133
    %5135 = vmatprep.mubr.f32.mxu0 0.0
    %5136 = vmatmul.mubr.f32.gmra.mxu0 %v5036
    %v5137 = vpop.f32.mrf.mxu0
    %v5138 = vadd.f32 0.0, %v5137
    %v5139 = vpop.f32.mrf.mxu0
    %v5140 = vadd.f32 0.0, %v5139
    %5141 = vmatprep.mubr.f32.mxu0 0.0
    %5142 = vmatmul.mubr.f32.gmra.mxu0 %v5039
    %v5143 = vpop.f32.mrf.mxu0
    %v5144 = vadd.f32 0.0, %v5143
    %v5145 = vpop.f32.mrf.mxu0
    %v5146 = vadd.f32 0.0, %v5145
    %5147 = vmatprep.mubr.f32.mxu0 0.0
    %5148 = vmatmul.mubr.f32.gmra.mxu0 %v5042
    %v5149 = vpop.f32.mrf.mxu0
    %v5150 = vadd.f32 0.0, %v5149
    %v5151 = vpop.f32.mrf.mxu0
    %v5152 = vadd.f32 0.0, %v5151
    %5153 = vmatprep.mubr.f32.mxu0 0.0
    %5154 = vmatmul.mubr.f32.gmra.mxu0 %v5045
    %v5155 = vpop.f32.mrf.mxu0
    %v5156 = vadd.f32 0.0, %v5155
    %v5157 = vpop.f32.mrf.mxu0
    %v5158 = vadd.f32 0.0, %v5157
    %5159 = vdwg.mxu0
    %v5160 = vadd.f32 %v4844, %v5114
    %v5161 = vadd.f32 %v4845, %v5116
    %v5162 = vadd.f32 %v4846, %v5120
    %v5163 = vadd.f32 %v4847, %v5122
    %v5164 = vadd.f32 %v4848, %v5126
    %v5165 = vadd.f32 %v4849, %v5128
    %v5166 = vadd.f32 %v4850, %v5132
    %v5167 = vadd.f32 %v4851, %v5134
    %v5168 = vadd.f32 %v4852, %v5138
    %v5169 = vadd.f32 %v4853, %v5140
    %v5170 = vadd.f32 %v4854, %v5144
    %v5171 = vadd.f32 %v4855, %v5146
    %v5172 = vadd.f32 %v4856, %v5150
    %v5173 = vadd.f32 %v4857, %v5152
    %v5174 = vadd.f32 %v4858, %v5156
    %v5175 = vadd.f32 %v4859, %v5158
    %s5176 = scalar_lea.vmem %s11, 1536
    %v5177 = vld [vmem:[%s5176] sm:$0xff]
    %v5178 = vld [vmem:[%s5176 + $0x8] sm:$0xff]
    %v5179 = vld [vmem:[%s5176 + $0x10] sm:$0xff]
    %v5180 = vld [vmem:[%s5176 + $0x18] sm:$0xff]
    %v5181 = vld [vmem:[%s5176 + $0x20] sm:$0xff]
    %v5182 = vld [vmem:[%s5176 + $0x28] sm:$0xff]
    %v5183 = vld [vmem:[%s5176 + $0x30] sm:$0xff]
    %v5184 = vld [vmem:[%s5176 + $0x38] sm:$0xff]
    %v5185 = vld [vmem:[%s5176 + $0x40] sm:$0xff]
    %v5186 = vld [vmem:[%s5176 + $0x48] sm:$0xff]
    %v5187 = vld [vmem:[%s5176 + $0x50] sm:$0xff]
    %v5188 = vld [vmem:[%s5176 + $0x58] sm:$0xff]
    %v5189 = vld [vmem:[%s5176 + $0x60] sm:$0xff]
    %v5190 = vld [vmem:[%s5176 + $0x68] sm:$0xff]
    %v5191 = vld [vmem:[%s5176 + $0x70] sm:$0xff]
    %v5192 = vld [vmem:[%s5176 + $0x78] sm:$0xff]
    %v5193 = vld [vmem:[%s5176 + $0x80] sm:$0xff]
    %v5194 = vld [vmem:[%s5176 + $0x88] sm:$0xff]
    %v5195 = vld [vmem:[%s5176 + $0x90] sm:$0xff]
    %v5196 = vld [vmem:[%s5176 + $0x98] sm:$0xff]
    %v5197 = vld [vmem:[%s5176 + $0xa0] sm:$0xff]
    %v5198 = vld [vmem:[%s5176 + $0xa8] sm:$0xff]
    %v5199 = vld [vmem:[%s5176 + $0xb0] sm:$0xff]
    %v5200 = vld [vmem:[%s5176 + $0xb8] sm:$0xff]
    %v5201 = vld [vmem:[%s5176 + $0xc0] sm:$0xff]
    %v5202 = vld [vmem:[%s5176 + $0xc8] sm:$0xff]
    %v5203 = vld [vmem:[%s5176 + $0xd0] sm:$0xff]
    %v5204 = vld [vmem:[%s5176 + $0xd8] sm:$0xff]
    %v5205 = vld [vmem:[%s5176 + $0xe0] sm:$0xff]
    %v5206 = vld [vmem:[%s5176 + $0xe8] sm:$0xff]
    %v5207 = vld [vmem:[%s5176 + $0xf0] sm:$0xff]
    %v5208 = vld [vmem:[%s5176 + $0xf8] sm:$0xff]
    %v5209 = vld [vmem:[%s5176 + $0x100] sm:$0xff]
    %v5210 = vld [vmem:[%s5176 + $0x108] sm:$0xff]
    %v5211 = vld [vmem:[%s5176 + $0x110] sm:$0xff]
    %v5212 = vld [vmem:[%s5176 + $0x118] sm:$0xff]
    %v5213 = vld [vmem:[%s5176 + $0x120] sm:$0xff]
    %v5214 = vld [vmem:[%s5176 + $0x128] sm:$0xff]
    %v5215 = vld [vmem:[%s5176 + $0x130] sm:$0xff]
    %v5216 = vld [vmem:[%s5176 + $0x138] sm:$0xff]
    %v5217 = vld [vmem:[%s5176 + $0x140] sm:$0xff]
    %v5218 = vld [vmem:[%s5176 + $0x148] sm:$0xff]
    %v5219 = vld [vmem:[%s5176 + $0x150] sm:$0xff]
    %v5220 = vld [vmem:[%s5176 + $0x158] sm:$0xff]
    %v5221 = vld [vmem:[%s5176 + $0x160] sm:$0xff]
    %v5222 = vld [vmem:[%s5176 + $0x168] sm:$0xff]
    %v5223 = vld [vmem:[%s5176 + $0x170] sm:$0xff]
    %v5224 = vld [vmem:[%s5176 + $0x178] sm:$0xff]
    %v5225 = vld [vmem:[%s5176 + $0x180] sm:$0xff]
    %v5226 = vld [vmem:[%s5176 + $0x188] sm:$0xff]
    %v5227 = vld [vmem:[%s5176 + $0x190] sm:$0xff]
    %v5228 = vld [vmem:[%s5176 + $0x198] sm:$0xff]
    %v5229 = vld [vmem:[%s5176 + $0x1a0] sm:$0xff]
    %v5230 = vld [vmem:[%s5176 + $0x1a8] sm:$0xff]
    %v5231 = vld [vmem:[%s5176 + $0x1b0] sm:$0xff]
    %v5232 = vld [vmem:[%s5176 + $0x1b8] sm:$0xff]
    %v5233 = vld [vmem:[%s5176 + $0x1c0] sm:$0xff]
    %v5234 = vld [vmem:[%s5176 + $0x1c8] sm:$0xff]
    %v5235 = vld [vmem:[%s5176 + $0x1d0] sm:$0xff]
    %v5236 = vld [vmem:[%s5176 + $0x1d8] sm:$0xff]
    %v5237 = vld [vmem:[%s5176 + $0x1e0] sm:$0xff]
    %v5238 = vld [vmem:[%s5176 + $0x1e8] sm:$0xff]
    %v5239 = vld [vmem:[%s5176 + $0x1f0] sm:$0xff]
    %v5240 = vld [vmem:[%s5176 + $0x1f8] sm:$0xff]
    %vm5241 = vcmask 523264
    %v5242 = vsel %vm5241, 1.0, 0
    %5244 = vmatprep.subr.mxu0 0.0
    %5245 = vmatpush1.msra.mxu0 0.0
    %5246 = vmatprep.subr.mxu0 0.0
    %5247 = vmatpush1.msra.mxu0 0.0
    %5248 = vmatprep.subr.mxu0 0.0
    %5249 = vmatpush1.msra.mxu0 0.0
    %5250 = vmatprep.subr.mxu0 0.0
    %5251 = vmatpush1.msra.mxu0 0.0
    %5252 = vmatprep.subr.mxu0 0.0
    %5253 = vmatpush1.msra.mxu0 0.0
    %5254 = vmatprep.subr.mxu0 0.0
    %5255 = vmatpush1.msra.mxu0 0.0
    %5256 = vmatprep.subr.mxu0 0.0
    %5257 = vmatpush1.msra.mxu0 0.0
    %5258 = vmatprep.subr.mxu0 0.0
    %5259 = vmatpush1.msra.mxu0 0.0
    %5260 = vmatprep.subr.mxu0 %v5175
    %5261 = vmatpush1.msra.mxu0 %v5174
    %5262 = vmatprep.subr.mxu0 %v5173
    %5263 = vmatpush1.msra.mxu0 %v5172
    %5264 = vmatprep.subr.mxu0 %v5171
    %5265 = vmatpush1.msra.mxu0 %v5170
    %5266 = vmatprep.subr.mxu0 %v5169
    %5267 = vmatpush1.msra.mxu0 %v5168
    %5268 = vmatprep.subr.mxu0 %v5167
    %5269 = vmatpush1.msra.mxu0 %v5166
    %5270 = vmatprep.subr.mxu0 %v5165
    %5271 = vmatpush1.msra.mxu0 %v5164
    %5272 = vmatprep.subr.mxu0 %v5163
    %5273 = vmatpush1.msra.mxu0 %v5162
    %5274 = vmatprep.subr.mxu0 %v5161
    %5275 = vmatpush1.msra.mxu0 %v5160
    %5276 = vmatprep.subr.mxu0 0.0
    %5277 = vmatpush2.msra.mxu0 0.0
    %5278 = vmatprep.subr.mxu0 0.0
    %5279 = vmatpush2.msra.mxu0 0.0
    %5280 = vmatprep.subr.mxu0 0.0
    %5281 = vmatpush2.msra.mxu0 0.0
    %5282 = vmatprep.subr.mxu0 0.0
    %5283 = vmatpush2.msra.mxu0 0.0
    %5284 = vmatprep.subr.mxu0 0.0
    %5285 = vmatpush2.msra.mxu0 0.0
    %5286 = vmatprep.subr.mxu0 0.0
    %5287 = vmatpush2.msra.mxu0 0.0
    %5288 = vmatprep.subr.mxu0 0.0
    %5289 = vmatpush2.msra.mxu0 0.0
    %5290 = vmatprep.subr.mxu0 0.0
    %5291 = vmatpush2.msra.mxu0 0.0
    %5292 = vmatprep.subr.mxu0 0.0
    %5293 = vmatpush2.msra.mxu0 0.0
    %5294 = vmatprep.subr.mxu0 0.0
    %5295 = vmatpush2.msra.mxu0 0.0
    %5296 = vmatprep.subr.mxu0 0.0
    %5297 = vmatpush2.msra.mxu0 0.0
    %5298 = vmatprep.subr.mxu0 0.0
    %5299 = vmatpush2.msra.mxu0 0.0
    %5300 = vmatprep.subr.mxu0 0.0
    %5301 = vmatpush2.msra.mxu0 0.0
    %5302 = vmatprep.subr.mxu0 0.0
    %5303 = vmatpush2.msra.mxu0 0.0
    %5304 = vmatprep.subr.mxu0 0.0
    %5305 = vmatpush2.msra.mxu0 0.0
    %5306 = vmatprep.subr.mxu0 0.0
    %5307 = vmatpush2.msra.mxu0 0.0
    %5308 = vmatprep.mubr.f32.mxu0 0.0
    %5309 = vmatmul.mubr.f32.gmra.mxu0 %v5242
    %v5310 = vpop.f32.mrf.mxu0
    %v5311 = vadd.f32 0.0, %v5310
    %v5312 = vpop.f32.mrf.mxu0
    %v5313 = vadd.f32 0.0, %v5312
    %5314 = vdwg.mxu0
    %5315 = vmatprep.subr.mxu0 %v5208
    %5316 = vmatpush1.msra.mxu0 %v5207
    %5317 = vmatprep.subr.mxu0 %v5206
    %5318 = vmatpush1.msra.mxu0 %v5205
    %5319 = vmatprep.subr.mxu0 %v5204
    %5320 = vmatpush1.msra.mxu0 %v5203
    %5321 = vmatprep.subr.mxu0 %v5202
    %5322 = vmatpush1.msra.mxu0 %v5201
    %5323 = vmatprep.subr.mxu0 %v5200
    %5324 = vmatpush1.msra.mxu0 %v5199
    %5325 = vmatprep.subr.mxu0 %v5198
    %5326 = vmatpush1.msra.mxu0 %v5197
    %5327 = vmatprep.subr.mxu0 %v5196
    %5328 = vmatpush1.msra.mxu0 %v5195
    %5329 = vmatprep.subr.mxu0 %v5194
    %5330 = vmatpush1.msra.mxu0 %v5193
    %5331 = vmatprep.subr.mxu0 %v5192
    %5332 = vmatpush1.msra.mxu0 %v5191
    %5333 = vmatprep.subr.mxu0 %v5190
    %5334 = vmatpush1.msra.mxu0 %v5189
    %5335 = vmatprep.subr.mxu0 %v5188
    %5336 = vmatpush1.msra.mxu0 %v5187
    %5337 = vmatprep.subr.mxu0 %v5186
    %5338 = vmatpush1.msra.mxu0 %v5185
    %5339 = vmatprep.subr.mxu0 %v5184
    %5340 = vmatpush1.msra.mxu0 %v5183
    %5341 = vmatprep.subr.mxu0 %v5182
    %5342 = vmatpush1.msra.mxu0 %v5181
    %5343 = vmatprep.subr.mxu0 %v5180
    %5344 = vmatpush1.msra.mxu0 %v5179
    %5345 = vmatprep.subr.mxu0 %v5178
    %5346 = vmatpush1.msra.mxu0 %v5177
    %5347 = vmatprep.subr.mxu0 %v5240
    %5348 = vmatpush2.msra.mxu0 %v5239
    %5349 = vmatprep.subr.mxu0 %v5238
    %5350 = vmatpush2.msra.mxu0 %v5237
    %5351 = vmatprep.subr.mxu0 %v5236
    %5352 = vmatpush2.msra.mxu0 %v5235
    %5353 = vmatprep.subr.mxu0 %v5234
    %5354 = vmatpush2.msra.mxu0 %v5233
    %5355 = vmatprep.subr.mxu0 %v5232
    %5356 = vmatpush2.msra.mxu0 %v5231
    %5357 = vmatprep.subr.mxu0 %v5230
    %5358 = vmatpush2.msra.mxu0 %v5229
    %5359 = vmatprep.subr.mxu0 %v5228
    %5360 = vmatpush2.msra.mxu0 %v5227
    %5361 = vmatprep.subr.mxu0 %v5226
    %5362 = vmatpush2.msra.mxu0 %v5225
    %5363 = vmatprep.subr.mxu0 %v5224
    %5364 = vmatpush2.msra.mxu0 %v5223
    %5365 = vmatprep.subr.mxu0 %v5222
    %5366 = vmatpush2.msra.mxu0 %v5221
    %5367 = vmatprep.subr.mxu0 %v5220
    %5368 = vmatpush2.msra.mxu0 %v5219
    %5369 = vmatprep.subr.mxu0 %v5218
    %5370 = vmatpush2.msra.mxu0 %v5217
    %5371 = vmatprep.subr.mxu0 %v5216
    %5372 = vmatpush2.msra.mxu0 %v5215
    %5373 = vmatprep.subr.mxu0 %v5214
    %5374 = vmatpush2.msra.mxu0 %v5213
    %5375 = vmatprep.subr.mxu0 %v5212
    %5376 = vmatpush2.msra.mxu0 %v5211
    %5377 = vmatprep.subr.mxu0 %v5210
    %5378 = vmatpush2.msra.mxu0 %v5209
    %5379 = vmatprep.mubr.f32.mxu0 %v5313
    %5380 = vmatmul.mubr.f32.gmra.mxu0 %v5311
    %v5381 = vpop.f32.mrf.mxu0
    %v5382 = vadd.f32 0.0, %v5381
    %v5383 = vpop.f32.mrf.mxu0
    %v5384 = vadd.f32 0.0, %v5383
    %5385 = vdwg.mxu0
    %v5386 = vmul.f32 %v5382, 0.00048828125
    %v5387 = vmul.f32 %v5384, 0.00048828125
    %v5388 = vlaneseq
    %v5389 = vshrl.u32 %v5388, 7
    %v5390 = vsub.s32 0, %v5389
    %v5391 = vrot.slane %v5386, %v5390
    %v5392 = vlaneseq
    %v5393 = vshrl.u32 %v5392, 7
    %v5394 = vsub.s32 0, %v5393
    %v5395 = vrot.slane %v5387, %v5394
    %v5396 = vsub.f32 %v5160, %v5391
    %v5397 = vsub.f32 %v5161, %v5395
    %v5398 = vsub.f32 %v5162, %v5391
    %v5399 = vsub.f32 %v5163, %v5395
    %v5400 = vsub.f32 %v5164, %v5391
    %v5401 = vsub.f32 %v5165, %v5395
    %v5402 = vsub.f32 %v5166, %v5391
    %v5403 = vsub.f32 %v5167, %v5395
    %v5404 = vsub.f32 %v5168, %v5391
    %v5405 = vsub.f32 %v5169, %v5395
    %v5406 = vsub.f32 %v5170, %v5391
    %v5407 = vsub.f32 %v5171, %v5395
    %v5408 = vsub.f32 %v5172, %v5391
    %v5409 = vsub.f32 %v5173, %v5395
    %v5410 = vsub.f32 %v5174, %v5391
    %v5411 = vsub.f32 %v5175, %v5395
    %v5412 = vmul.f32 %v5396, %v5396
    %v5413 = vmul.f32 %v5397, %v5397
    %v5414 = vmul.f32 %v5398, %v5398
    %v5415 = vmul.f32 %v5399, %v5399
    %v5416 = vmul.f32 %v5400, %v5400
    %v5417 = vmul.f32 %v5401, %v5401
    %v5418 = vmul.f32 %v5402, %v5402
    %v5419 = vmul.f32 %v5403, %v5403
    %v5420 = vmul.f32 %v5404, %v5404
    %v5421 = vmul.f32 %v5405, %v5405
    %v5422 = vmul.f32 %v5406, %v5406
    %v5423 = vmul.f32 %v5407, %v5407
    %v5424 = vmul.f32 %v5408, %v5408
    %v5425 = vmul.f32 %v5409, %v5409
    %v5426 = vmul.f32 %v5410, %v5410
    %v5427 = vmul.f32 %v5411, %v5411
    %5428 = vmatprep.subr.mxu0 0.0
    %5429 = vmatpush1.msra.mxu0 0.0
    %5430 = vmatprep.subr.mxu0 0.0
    %5431 = vmatpush1.msra.mxu0 0.0
    %5432 = vmatprep.subr.mxu0 0.0
    %5433 = vmatpush1.msra.mxu0 0.0
    %5434 = vmatprep.subr.mxu0 0.0
    %5435 = vmatpush1.msra.mxu0 0.0
    %5436 = vmatprep.subr.mxu0 0.0
    %5437 = vmatpush1.msra.mxu0 0.0
    %5438 = vmatprep.subr.mxu0 0.0
    %5439 = vmatpush1.msra.mxu0 0.0
    %5440 = vmatprep.subr.mxu0 0.0
    %5441 = vmatpush1.msra.mxu0 0.0
    %5442 = vmatprep.subr.mxu0 0.0
    %5443 = vmatpush1.msra.mxu0 0.0
    %5444 = vmatprep.subr.mxu0 %v5427
    %5445 = vmatpush1.msra.mxu0 %v5426
    %5446 = vmatprep.subr.mxu0 %v5425
    %5447 = vmatpush1.msra.mxu0 %v5424
    %5448 = vmatprep.subr.mxu0 %v5423
    %5449 = vmatpush1.msra.mxu0 %v5422
    %5450 = vmatprep.subr.mxu0 %v5421
    %5451 = vmatpush1.msra.mxu0 %v5420
    %5452 = vmatprep.subr.mxu0 %v5419
    %5453 = vmatpush1.msra.mxu0 %v5418
    %5454 = vmatprep.subr.mxu0 %v5417
    %5455 = vmatpush1.msra.mxu0 %v5416
    %5456 = vmatprep.subr.mxu0 %v5415
    %5457 = vmatpush1.msra.mxu0 %v5414
    %5458 = vmatprep.subr.mxu0 %v5413
    %5459 = vmatpush1.msra.mxu0 %v5412
    %5460 = vmatprep.subr.mxu0 0.0
    %5461 = vmatpush2.msra.mxu0 0.0
    %5462 = vmatprep.subr.mxu0 0.0
    %5463 = vmatpush2.msra.mxu0 0.0
    %5464 = vmatprep.subr.mxu0 0.0
    %5465 = vmatpush2.msra.mxu0 0.0
    %5466 = vmatprep.subr.mxu0 0.0
    %5467 = vmatpush2.msra.mxu0 0.0
    %5468 = vmatprep.subr.mxu0 0.0
    %5469 = vmatpush2.msra.mxu0 0.0
    %5470 = vmatprep.subr.mxu0 0.0
    %5471 = vmatpush2.msra.mxu0 0.0
    %5472 = vmatprep.subr.mxu0 0.0
    %5473 = vmatpush2.msra.mxu0 0.0
    %5474 = vmatprep.subr.mxu0 0.0
    %5475 = vmatpush2.msra.mxu0 0.0
    %5476 = vmatprep.subr.mxu0 0.0
    %5477 = vmatpush2.msra.mxu0 0.0
    %5478 = vmatprep.subr.mxu0 0.0
    %5479 = vmatpush2.msra.mxu0 0.0
    %5480 = vmatprep.subr.mxu0 0.0
    %5481 = vmatpush2.msra.mxu0 0.0
    %5482 = vmatprep.subr.mxu0 0.0
    %5483 = vmatpush2.msra.mxu0 0.0
    %5484 = vmatprep.subr.mxu0 0.0
    %5485 = vmatpush2.msra.mxu0 0.0
    %5486 = vmatprep.subr.mxu0 0.0
    %5487 = vmatpush2.msra.mxu0 0.0
    %5488 = vmatprep.subr.mxu0 0.0
    %5489 = vmatpush2.msra.mxu0 0.0
    %5490 = vmatprep.subr.mxu0 0.0
    %5491 = vmatpush2.msra.mxu0 0.0
    %5492 = vmatprep.mubr.f32.mxu0 0.0
    %5493 = vmatmul.mubr.f32.gmra.mxu0 %v5242
    %v5494 = vpop.f32.mrf.mxu0
    %v5495 = vadd.f32 0.0, %v5494
    %v5496 = vpop.f32.mrf.mxu0
    %v5497 = vadd.f32 0.0, %v5496
    %5498 = vdwg.mxu0
    %5499 = vmatprep.subr.mxu0 %v5208
    %5500 = vmatpush1.msra.mxu0 %v5207
    %5501 = vmatprep.subr.mxu0 %v5206
    %5502 = vmatpush1.msra.mxu0 %v5205
    %5503 = vmatprep.subr.mxu0 %v5204
    %5504 = vmatpush1.msra.mxu0 %v5203
    %5505 = vmatprep.subr.mxu0 %v5202
    %5506 = vmatpush1.msra.mxu0 %v5201
    %5507 = vmatprep.subr.mxu0 %v5200
    %5508 = vmatpush1.msra.mxu0 %v5199
    %5509 = vmatprep.subr.mxu0 %v5198
    %5510 = vmatpush1.msra.mxu0 %v5197
    %5511 = vmatprep.subr.mxu0 %v5196
    %5512 = vmatpush1.msra.mxu0 %v5195
    %5513 = vmatprep.subr.mxu0 %v5194
    %5514 = vmatpush1.msra.mxu0 %v5193
    %5515 = vmatprep.subr.mxu0 %v5192
    %5516 = vmatpush1.msra.mxu0 %v5191
    %5517 = vmatprep.subr.mxu0 %v5190
    %5518 = vmatpush1.msra.mxu0 %v5189
    %5519 = vmatprep.subr.mxu0 %v5188
    %5520 = vmatpush1.msra.mxu0 %v5187
    %5521 = vmatprep.subr.mxu0 %v5186
    %5522 = vmatpush1.msra.mxu0 %v5185
    %5523 = vmatprep.subr.mxu0 %v5184
    %5524 = vmatpush1.msra.mxu0 %v5183
    %5525 = vmatprep.subr.mxu0 %v5182
    %5526 = vmatpush1.msra.mxu0 %v5181
    %5527 = vmatprep.subr.mxu0 %v5180
    %5528 = vmatpush1.msra.mxu0 %v5179
    %5529 = vmatprep.subr.mxu0 %v5178
    %5530 = vmatpush1.msra.mxu0 %v5177
    %5531 = vmatprep.subr.mxu0 %v5240
    %5532 = vmatpush2.msra.mxu0 %v5239
    %5533 = vmatprep.subr.mxu0 %v5238
    %5534 = vmatpush2.msra.mxu0 %v5237
    %5535 = vmatprep.subr.mxu0 %v5236
    %5536 = vmatpush2.msra.mxu0 %v5235
    %5537 = vmatprep.subr.mxu0 %v5234
    %5538 = vmatpush2.msra.mxu0 %v5233
    %5539 = vmatprep.subr.mxu0 %v5232
    %5540 = vmatpush2.msra.mxu0 %v5231
    %5541 = vmatprep.subr.mxu0 %v5230
    %5542 = vmatpush2.msra.mxu0 %v5229
    %5543 = vmatprep.subr.mxu0 %v5228
    %5544 = vmatpush2.msra.mxu0 %v5227
    %5545 = vmatprep.subr.mxu0 %v5226
    %5546 = vmatpush2.msra.mxu0 %v5225
    %5547 = vmatprep.subr.mxu0 %v5224
    %5548 = vmatpush2.msra.mxu0 %v5223
    %5549 = vmatprep.subr.mxu0 %v5222
    %5550 = vmatpush2.msra.mxu0 %v5221
    %5551 = vmatprep.subr.mxu0 %v5220
    %5552 = vmatpush2.msra.mxu0 %v5219
    %5553 = vmatprep.subr.mxu0 %v5218
    %5554 = vmatpush2.msra.mxu0 %v5217
    %5555 = vmatprep.subr.mxu0 %v5216
    %5556 = vmatpush2.msra.mxu0 %v5215
    %5557 = vmatprep.subr.mxu0 %v5214
    %5558 = vmatpush2.msra.mxu0 %v5213
    %5559 = vmatprep.subr.mxu0 %v5212
    %5560 = vmatpush2.msra.mxu0 %v5211
    %5561 = vmatprep.subr.mxu0 %v5210
    %5562 = vmatpush2.msra.mxu0 %v5209
    %5563 = vmatprep.mubr.f32.mxu0 %v5497
    %5564 = vmatmul.mubr.f32.gmra.mxu0 %v5495
    %v5565 = vpop.f32.mrf.mxu0
    %v5566 = vadd.f32 0.0, %v5565
    %v5567 = vpop.f32.mrf.mxu0
    %v5568 = vadd.f32 0.0, %v5567
    %5569 = vdwg.mxu0
    %v5570 = vmul.f32 %v5566, 0.00048828125
    %v5571 = vmul.f32 %v5568, 0.00048828125
    %v5572 = vadd.f32 %v5570, 1e-05
    %v5573 = vadd.f32 %v5571, 1e-05
    %v5574 = vrsqrt.pop %v5572
    %v5575 = vrsqrt.pop %v5573
    %v5578 = vrot.slane %v5574, 2
    %v5579 = vrot.slane %v5575, 2
    %v5582 = vmul.f32 %v50, %v5578
    %v5583 = vmul.f32 %v51, %v5579
    %v5584 = vlaneseq
    %v5585 = vshrl.u32 %v5584, 7
    %v5586 = vsub.s32 6, %v5585
    %v5587 = vrot.slane %v5582, %v5586
    %v5588 = vlaneseq
    %v5589 = vshrl.u32 %v5588, 7
    %v5590 = vsub.s32 6, %v5589
    %v5591 = vrot.slane %v5583, %v5590
    %v5592 = vmul.f32 %v5396, %v5587
    %v5593 = vmul.f32 %v5397, %v5591
    %v5594 = vmul.f32 %v5398, %v5587
    %v5595 = vmul.f32 %v5399, %v5591
    %v5596 = vmul.f32 %v5400, %v5587
    %v5597 = vmul.f32 %v5401, %v5591
    %v5598 = vmul.f32 %v5402, %v5587
    %v5599 = vmul.f32 %v5403, %v5591
    %v5600 = vmul.f32 %v5404, %v5587
    %v5601 = vmul.f32 %v5405, %v5591
    %v5602 = vmul.f32 %v5406, %v5587
    %v5603 = vmul.f32 %v5407, %v5591
    %v5604 = vmul.f32 %v5408, %v5587
    %v5605 = vmul.f32 %v5409, %v5591
    %v5606 = vmul.f32 %v5410, %v5587
    %v5607 = vmul.f32 %v5411, %v5591
    %v5608 = vlaneseq
    %v5609 = vshrl.u32 %v5608, 7
    %v5610 = vsub.s32 7, %v5609
    %v5611 = vrot.slane %v50, %v5610
    %v5612 = vlaneseq
    %v5613 = vshrl.u32 %v5612, 7
    %v5614 = vsub.s32 7, %v5613
    %v5615 = vrot.slane %v51, %v5614
    %v5616 = vadd.f32 %v5592, %v5611
    %v5617 = vadd.f32 %v5593, %v5615
    %v5618 = vadd.f32 %v5594, %v5611
    %v5619 = vadd.f32 %v5595, %v5615
    %v5620 = vadd.f32 %v5596, %v5611
    %v5621 = vadd.f32 %v5597, %v5615
    %v5622 = vadd.f32 %v5598, %v5611
    %v5623 = vadd.f32 %v5599, %v5615
    %v5624 = vadd.f32 %v5600, %v5611
    %v5625 = vadd.f32 %v5601, %v5615
    %v5626 = vadd.f32 %v5602, %v5611
    %v5627 = vadd.f32 %v5603, %v5615
    %v5628 = vadd.f32 %v5604, %v5611
    %v5629 = vadd.f32 %v5605, %v5615
    %v5630 = vadd.f32 %v5606, %v5611
    %v5631 = vadd.f32 %v5607, %v5615
    %v5632 = vmax.f32 %v5616, 0.0
    %v5633 = vmax.f32 %v5617, 0.0
    %v5634 = vmax.f32 %v5618, 0.0
    %v5635 = vmax.f32 %v5619, 0.0
    %v5636 = vmax.f32 %v5620, 0.0
    %v5637 = vmax.f32 %v5621, 0.0
    %v5638 = vmax.f32 %v5622, 0.0
    %v5639 = vmax.f32 %v5623, 0.0
    %v5640 = vmax.f32 %v5624, 0.0
    %v5641 = vmax.f32 %v5625, 0.0
    %v5642 = vmax.f32 %v5626, 0.0
    %v5643 = vmax.f32 %v5627, 0.0
    %v5644 = vmax.f32 %v5628, 0.0
    %v5645 = vmax.f32 %v5629, 0.0
    %v5646 = vmax.f32 %v5630, 0.0
    %v5647 = vmax.f32 %v5631, 0.0
    %v5648 = vld [vmem:[%s10] sm:$0xff]
    %v5649 = vld [vmem:[%s10 + $0x8] sm:$0xff]
    %v5650 = vld [vmem:[%s10 + $0x10] sm:$0xff]
    %v5651 = vld [vmem:[%s10 + $0x18] sm:$0xff]
    %v5652 = vld [vmem:[%s10 + $0x20] sm:$0xff]
    %v5653 = vld [vmem:[%s10 + $0x28] sm:$0xff]
    %v5654 = vld [vmem:[%s10 + $0x30] sm:$0xff]
    %v5655 = vld [vmem:[%s10 + $0x38] sm:$0xff]
    %v5656 = vld [vmem:[%s10 + $0x40] sm:$0xff]
    %v5657 = vld [vmem:[%s10 + $0x48] sm:$0xff]
    %v5658 = vld [vmem:[%s10 + $0x50] sm:$0xff]
    %v5659 = vld [vmem:[%s10 + $0x58] sm:$0xff]
    %v5660 = vld [vmem:[%s10 + $0x60] sm:$0xff]
    %v5661 = vld [vmem:[%s10 + $0x68] sm:$0xff]
    %v5662 = vld [vmem:[%s10 + $0x70] sm:$0xff]
    %v5663 = vld [vmem:[%s10 + $0x78] sm:$0xff]
    %v5664 = vld [vmem:[%s6] sm:$0xff]
    %v5665 = vld [vmem:[%s6 + $0x8] sm:$0xff]
    %v5666 = vld [vmem:[%s6 + $0x10] sm:$0xff]
    %v5667 = vld [vmem:[%s6 + $0x18] sm:$0xff]
    %v5668 = vld [vmem:[%s6 + $0x20] sm:$0xff]
    %v5669 = vld [vmem:[%s6 + $0x28] sm:$0xff]
    %v5670 = vld [vmem:[%s6 + $0x30] sm:$0xff]
    %v5671 = vld [vmem:[%s6 + $0x38] sm:$0xff]
    %v5672 = vld [vmem:[%s6 + $0x40] sm:$0xff]
    %v5673 = vld [vmem:[%s6 + $0x48] sm:$0xff]
    %v5674 = vld [vmem:[%s6 + $0x50] sm:$0xff]
    %v5675 = vld [vmem:[%s6 + $0x58] sm:$0xff]
    %v5676 = vld [vmem:[%s6 + $0x60] sm:$0xff]
    %v5677 = vld [vmem:[%s6 + $0x68] sm:$0xff]
    %v5678 = vld [vmem:[%s6 + $0x70] sm:$0xff]
    %v5679 = vld [vmem:[%s6 + $0x78] sm:$0xff]
    %v5680 = vld [vmem:[%s6 + $0x80] sm:$0xff]
    %v5681 = vld [vmem:[%s6 + $0x88] sm:$0xff]
    %v5682 = vld [vmem:[%s6 + $0x90] sm:$0xff]
    %v5683 = vld [vmem:[%s6 + $0x98] sm:$0xff]
    %v5684 = vld [vmem:[%s6 + $0xa0] sm:$0xff]
    %v5685 = vld [vmem:[%s6 + $0xa8] sm:$0xff]
    %v5686 = vld [vmem:[%s6 + $0xb0] sm:$0xff]
    %v5687 = vld [vmem:[%s6 + $0xb8] sm:$0xff]
    %v5688 = vld [vmem:[%s6 + $0xc0] sm:$0xff]
    %v5689 = vld [vmem:[%s6 + $0xc8] sm:$0xff]
    %v5690 = vld [vmem:[%s6 + $0xd0] sm:$0xff]
    %v5691 = vld [vmem:[%s6 + $0xd8] sm:$0xff]
    %v5692 = vld [vmem:[%s6 + $0xe0] sm:$0xff]
    %v5693 = vld [vmem:[%s6 + $0xe8] sm:$0xff]
    %v5694 = vld [vmem:[%s6 + $0xf0] sm:$0xff]
    %v5695 = vld [vmem:[%s6 + $0xf8] sm:$0xff]
    %5696 = vmatprep.subr.mxu0 0.0
    %5697 = vmatpush1.msra.mxu0 %v5679
    %5698 = vmatprep.subr.mxu0 0.0
    %5699 = vmatpush1.msra.mxu0 %v5678
    %5700 = vmatprep.subr.mxu0 0.0
    %5701 = vmatpush1.msra.mxu0 %v5677
    %5702 = vmatprep.subr.mxu0 0.0
    %5703 = vmatpush1.msra.mxu0 %v5676
    %5704 = vmatprep.subr.mxu0 0.0
    %5705 = vmatpush1.msra.mxu0 %v5675
    %5706 = vmatprep.subr.mxu0 0.0
    %5707 = vmatpush1.msra.mxu0 %v5674
    %5708 = vmatprep.subr.mxu0 0.0
    %5709 = vmatpush1.msra.mxu0 %v5673
    %5710 = vmatprep.subr.mxu0 0.0
    %5711 = vmatpush1.msra.mxu0 %v5672
    %5712 = vmatprep.subr.mxu0 0.0
    %5713 = vmatpush1.msra.mxu0 %v5671
    %5714 = vmatprep.subr.mxu0 0.0
    %5715 = vmatpush1.msra.mxu0 %v5670
    %5716 = vmatprep.subr.mxu0 0.0
    %5717 = vmatpush1.msra.mxu0 %v5669
    %5718 = vmatprep.subr.mxu0 0.0
    %5719 = vmatpush1.msra.mxu0 %v5668
    %5720 = vmatprep.subr.mxu0 0.0
    %5721 = vmatpush1.msra.mxu0 %v5667
    %5722 = vmatprep.subr.mxu0 0.0
    %5723 = vmatpush1.msra.mxu0 %v5666
    %5724 = vmatprep.subr.mxu0 0.0
    %5725 = vmatpush1.msra.mxu0 %v5665
    %5726 = vmatprep.subr.mxu0 0.0
    %5727 = vmatpush1.msra.mxu0 %v5664
    %5728 = vmatprep.subr.mxu0 0.0
    %5729 = vmatpush2.msra.mxu0 %v5695
    %5730 = vmatprep.subr.mxu0 0.0
    %5731 = vmatpush2.msra.mxu0 %v5694
    %5732 = vmatprep.subr.mxu0 0.0
    %5733 = vmatpush2.msra.mxu0 %v5693
    %5734 = vmatprep.subr.mxu0 0.0
    %5735 = vmatpush2.msra.mxu0 %v5692
    %5736 = vmatprep.subr.mxu0 0.0
    %5737 = vmatpush2.msra.mxu0 %v5691
    %5738 = vmatprep.subr.mxu0 0.0
    %5739 = vmatpush2.msra.mxu0 %v5690
    %5740 = vmatprep.subr.mxu0 0.0
    %5741 = vmatpush2.msra.mxu0 %v5689
    %5742 = vmatprep.subr.mxu0 0.0
    %5743 = vmatpush2.msra.mxu0 %v5688
    %5744 = vmatprep.subr.mxu0 0.0
    %5745 = vmatpush2.msra.mxu0 %v5687
    %5746 = vmatprep.subr.mxu0 0.0
    %5747 = vmatpush2.msra.mxu0 %v5686
    %5748 = vmatprep.subr.mxu0 0.0
    %5749 = vmatpush2.msra.mxu0 %v5685
    %5750 = vmatprep.subr.mxu0 0.0
    %5751 = vmatpush2.msra.mxu0 %v5684
    %5752 = vmatprep.subr.mxu0 0.0
    %5753 = vmatpush2.msra.mxu0 %v5683
    %5754 = vmatprep.subr.mxu0 0.0
    %5755 = vmatpush2.msra.mxu0 %v5682
    %5756 = vmatprep.subr.mxu0 0.0
    %5757 = vmatpush2.msra.mxu0 %v5681
    %5758 = vmatprep.subr.mxu0 0.0
    %5759 = vmatpush2.msra.mxu0 %v5680
    %5760 = vmatprep.mubr.f32.mxu0 %v5633
    %5761 = vmatmul.mubr.f32.gmra.mxu0 %v5632
    %v5762 = vpop.f32.mrf.mxu0
    %v5763 = vadd.f32 0.0, %v5762
    %v5764 = vpop.f32.mrf.mxu0
    %5765 = vmatprep.mubr.f32.mxu0 %v5635
    %5766 = vmatmul.mubr.f32.gmra.mxu0 %v5634
    %v5767 = vpop.f32.mrf.mxu0
    %v5768 = vadd.f32 0.0, %v5767
    %v5769 = vpop.f32.mrf.mxu0
    %5770 = vmatprep.mubr.f32.mxu0 %v5637
    %5771 = vmatmul.mubr.f32.gmra.mxu0 %v5636
    %v5772 = vpop.f32.mrf.mxu0
    %v5773 = vadd.f32 0.0, %v5772
    %v5774 = vpop.f32.mrf.mxu0
    %5775 = vmatprep.mubr.f32.mxu0 %v5639
    %5776 = vmatmul.mubr.f32.gmra.mxu0 %v5638
    %v5777 = vpop.f32.mrf.mxu0
    %v5778 = vadd.f32 0.0, %v5777
    %v5779 = vpop.f32.mrf.mxu0
    %5780 = vmatprep.mubr.f32.mxu0 %v5641
    %5781 = vmatmul.mubr.f32.gmra.mxu0 %v5640
    %v5782 = vpop.f32.mrf.mxu0
    %v5783 = vadd.f32 0.0, %v5782
    %v5784 = vpop.f32.mrf.mxu0
    %5785 = vmatprep.mubr.f32.mxu0 %v5643
    %5786 = vmatmul.mubr.f32.gmra.mxu0 %v5642
    %v5787 = vpop.f32.mrf.mxu0
    %v5788 = vadd.f32 0.0, %v5787
    %v5789 = vpop.f32.mrf.mxu0
    %5790 = vmatprep.mubr.f32.mxu0 %v5645
    %5791 = vmatmul.mubr.f32.gmra.mxu0 %v5644
    %v5792 = vpop.f32.mrf.mxu0
    %v5793 = vadd.f32 0.0, %v5792
    %v5794 = vpop.f32.mrf.mxu0
    %5795 = vmatprep.mubr.f32.mxu0 %v5647
    %5796 = vmatmul.mubr.f32.gmra.mxu0 %v5646
    %v5797 = vpop.f32.mrf.mxu0
    %v5798 = vadd.f32 0.0, %v5797
    %v5799 = vpop.f32.mrf.mxu0
    %5800 = vdwg.mxu0
    %s5801 = scalar_lea.vmem %s10, 128
    %v5802 = vld [vmem:[%s5801] sm:$0xff]
    %v5803 = vld [vmem:[%s5801 + $0x8] sm:$0xff]
    %v5804 = vld [vmem:[%s5801 + $0x10] sm:$0xff]
    %v5805 = vld [vmem:[%s5801 + $0x18] sm:$0xff]
    %v5806 = vld [vmem:[%s5801 + $0x20] sm:$0xff]
    %v5807 = vld [vmem:[%s5801 + $0x28] sm:$0xff]
    %v5808 = vld [vmem:[%s5801 + $0x30] sm:$0xff]
    %v5809 = vld [vmem:[%s5801 + $0x38] sm:$0xff]
    %v5810 = vld [vmem:[%s5801 + $0x40] sm:$0xff]
    %v5811 = vld [vmem:[%s5801 + $0x48] sm:$0xff]
    %v5812 = vld [vmem:[%s5801 + $0x50] sm:$0xff]
    %v5813 = vld [vmem:[%s5801 + $0x58] sm:$0xff]
    %v5814 = vld [vmem:[%s5801 + $0x60] sm:$0xff]
    %v5815 = vld [vmem:[%s5801 + $0x68] sm:$0xff]
    %v5816 = vld [vmem:[%s5801 + $0x70] sm:$0xff]
    %v5817 = vld [vmem:[%s5801 + $0x78] sm:$0xff]
    %s5818 = scalar_lea.vmem %s6, 256
    %v5819 = vld [vmem:[%s5818] sm:$0xff]
    %v5820 = vld [vmem:[%s5818 + $0x8] sm:$0xff]
    %v5821 = vld [vmem:[%s5818 + $0x10] sm:$0xff]
    %v5822 = vld [vmem:[%s5818 + $0x18] sm:$0xff]
    %v5823 = vld [vmem:[%s5818 + $0x20] sm:$0xff]
    %v5824 = vld [vmem:[%s5818 + $0x28] sm:$0xff]
    %v5825 = vld [vmem:[%s5818 + $0x30] sm:$0xff]
    %v5826 = vld [vmem:[%s5818 + $0x38] sm:$0xff]
    %v5827 = vld [vmem:[%s5818 + $0x40] sm:$0xff]
    %v5828 = vld [vmem:[%s5818 + $0x48] sm:$0xff]
    %v5829 = vld [vmem:[%s5818 + $0x50] sm:$0xff]
    %v5830 = vld [vmem:[%s5818 + $0x58] sm:$0xff]
    %v5831 = vld [vmem:[%s5818 + $0x60] sm:$0xff]
    %v5832 = vld [vmem:[%s5818 + $0x68] sm:$0xff]
    %v5833 = vld [vmem:[%s5818 + $0x70] sm:$0xff]
    %v5834 = vld [vmem:[%s5818 + $0x78] sm:$0xff]
    %v5835 = vld [vmem:[%s5818 + $0x80] sm:$0xff]
    %v5836 = vld [vmem:[%s5818 + $0x88] sm:$0xff]
    %v5837 = vld [vmem:[%s5818 + $0x90] sm:$0xff]
    %v5838 = vld [vmem:[%s5818 + $0x98] sm:$0xff]
    %v5839 = vld [vmem:[%s5818 + $0xa0] sm:$0xff]
    %v5840 = vld [vmem:[%s5818 + $0xa8] sm:$0xff]
    %v5841 = vld [vmem:[%s5818 + $0xb0] sm:$0xff]
    %v5842 = vld [vmem:[%s5818 + $0xb8] sm:$0xff]
    %v5843 = vld [vmem:[%s5818 + $0xc0] sm:$0xff]
    %v5844 = vld [vmem:[%s5818 + $0xc8] sm:$0xff]
    %v5845 = vld [vmem:[%s5818 + $0xd0] sm:$0xff]
    %v5846 = vld [vmem:[%s5818 + $0xd8] sm:$0xff]
    %v5847 = vld [vmem:[%s5818 + $0xe0] sm:$0xff]
    %v5848 = vld [vmem:[%s5818 + $0xe8] sm:$0xff]
    %v5849 = vld [vmem:[%s5818 + $0xf0] sm:$0xff]
    %v5850 = vld [vmem:[%s5818 + $0xf8] sm:$0xff]
    %5851 = vmatprep.subr.mxu0 0.0
    %5852 = vmatpush1.msra.mxu0 %v5834
    %5853 = vmatprep.subr.mxu0 0.0
    %5854 = vmatpush1.msra.mxu0 %v5833
    %5855 = vmatprep.subr.mxu0 0.0
    %5856 = vmatpush1.msra.mxu0 %v5832
    %5857 = vmatprep.subr.mxu0 0.0
    %5858 = vmatpush1.msra.mxu0 %v5831
    %5859 = vmatprep.subr.mxu0 0.0
    %5860 = vmatpush1.msra.mxu0 %v5830
    %5861 = vmatprep.subr.mxu0 0.0
    %5862 = vmatpush1.msra.mxu0 %v5829
    %5863 = vmatprep.subr.mxu0 0.0
    %5864 = vmatpush1.msra.mxu0 %v5828
    %5865 = vmatprep.subr.mxu0 0.0
    %5866 = vmatpush1.msra.mxu0 %v5827
    %5867 = vmatprep.subr.mxu0 0.0
    %5868 = vmatpush1.msra.mxu0 %v5826
    %5869 = vmatprep.subr.mxu0 0.0
    %5870 = vmatpush1.msra.mxu0 %v5825
    %5871 = vmatprep.subr.mxu0 0.0
    %5872 = vmatpush1.msra.mxu0 %v5824
    %5873 = vmatprep.subr.mxu0 0.0
    %5874 = vmatpush1.msra.mxu0 %v5823
    %5875 = vmatprep.subr.mxu0 0.0
    %5876 = vmatpush1.msra.mxu0 %v5822
    %5877 = vmatprep.subr.mxu0 0.0
    %5878 = vmatpush1.msra.mxu0 %v5821
    %5879 = vmatprep.subr.mxu0 0.0
    %5880 = vmatpush1.msra.mxu0 %v5820
    %5881 = vmatprep.subr.mxu0 0.0
    %5882 = vmatpush1.msra.mxu0 %v5819
    %5883 = vmatprep.subr.mxu0 0.0
    %5884 = vmatpush2.msra.mxu0 %v5850
    %5885 = vmatprep.subr.mxu0 0.0
    %5886 = vmatpush2.msra.mxu0 %v5849
    %5887 = vmatprep.subr.mxu0 0.0
    %5888 = vmatpush2.msra.mxu0 %v5848
    %5889 = vmatprep.subr.mxu0 0.0
    %5890 = vmatpush2.msra.mxu0 %v5847
    %5891 = vmatprep.subr.mxu0 0.0
    %5892 = vmatpush2.msra.mxu0 %v5846
    %5893 = vmatprep.subr.mxu0 0.0
    %5894 = vmatpush2.msra.mxu0 %v5845
    %5895 = vmatprep.subr.mxu0 0.0
    %5896 = vmatpush2.msra.mxu0 %v5844
    %5897 = vmatprep.subr.mxu0 0.0
    %5898 = vmatpush2.msra.mxu0 %v5843
    %5899 = vmatprep.subr.mxu0 0.0
    %5900 = vmatpush2.msra.mxu0 %v5842
    %5901 = vmatprep.subr.mxu0 0.0
    %5902 = vmatpush2.msra.mxu0 %v5841
    %5903 = vmatprep.subr.mxu0 0.0
    %5904 = vmatpush2.msra.mxu0 %v5840
    %5905 = vmatprep.subr.mxu0 0.0
    %5906 = vmatpush2.msra.mxu0 %v5839
    %5907 = vmatprep.subr.mxu0 0.0
    %5908 = vmatpush2.msra.mxu0 %v5838
    %5909 = vmatprep.subr.mxu0 0.0
    %5910 = vmatpush2.msra.mxu0 %v5837
    %5911 = vmatprep.subr.mxu0 0.0
    %5912 = vmatpush2.msra.mxu0 %v5836
    %5913 = vmatprep.subr.mxu0 0.0
    %5914 = vmatpush2.msra.mxu0 %v5835
    %5915 = vmatprep.mubr.f32.mxu0 %v5633
    %5916 = vmatmul.mubr.f32.gmra.mxu0 %v5632
    %v5917 = vpop.f32.mrf.mxu0
    %v5918 = vadd.f32 0.0, %v5917
    %v5919 = vpop.f32.mrf.mxu0
    %5920 = vmatprep.mubr.f32.mxu0 %v5635
    %5921 = vmatmul.mubr.f32.gmra.mxu0 %v5634
    %v5922 = vpop.f32.mrf.mxu0
    %v5923 = vadd.f32 0.0, %v5922
    %v5924 = vpop.f32.mrf.mxu0
    %5925 = vmatprep.mubr.f32.mxu0 %v5637
    %5926 = vmatmul.mubr.f32.gmra.mxu0 %v5636
    %v5927 = vpop.f32.mrf.mxu0
    %v5928 = vadd.f32 0.0, %v5927
    %v5929 = vpop.f32.mrf.mxu0
    %5930 = vmatprep.mubr.f32.mxu0 %v5639
    %5931 = vmatmul.mubr.f32.gmra.mxu0 %v5638
    %v5932 = vpop.f32.mrf.mxu0
    %v5933 = vadd.f32 0.0, %v5932
    %v5934 = vpop.f32.mrf.mxu0
    %5935 = vmatprep.mubr.f32.mxu0 %v5641
    %5936 = vmatmul.mubr.f32.gmra.mxu0 %v5640
    %v5937 = vpop.f32.mrf.mxu0
    %v5938 = vadd.f32 0.0, %v5937
    %v5939 = vpop.f32.mrf.mxu0
    %5940 = vmatprep.mubr.f32.mxu0 %v5643
    %5941 = vmatmul.mubr.f32.gmra.mxu0 %v5642
    %v5942 = vpop.f32.mrf.mxu0
    %v5943 = vadd.f32 0.0, %v5942
    %v5944 = vpop.f32.mrf.mxu0
    %5945 = vmatprep.mubr.f32.mxu0 %v5645
    %5946 = vmatmul.mubr.f32.gmra.mxu0 %v5644
    %v5947 = vpop.f32.mrf.mxu0
    %v5948 = vadd.f32 0.0, %v5947
    %v5949 = vpop.f32.mrf.mxu0
    %5950 = vmatprep.mubr.f32.mxu0 %v5647
    %5951 = vmatmul.mubr.f32.gmra.mxu0 %v5646
    %v5952 = vpop.f32.mrf.mxu0
    %v5953 = vadd.f32 0.0, %v5952
    %v5954 = vpop.f32.mrf.mxu0
    %5955 = vdwg.mxu0
    %v5957 = vsel %vm5241, %v5802, 0
    %v5960 = vsel %vm5241, %v5803, 0
    %v5963 = vsel %vm5241, %v5804, 0
    %v5966 = vsel %vm5241, %v5805, 0
    %v5969 = vsel %vm5241, %v5806, 0
    %v5972 = vsel %vm5241, %v5807, 0
    %v5975 = vsel %vm5241, %v5808, 0
    %v5978 = vsel %vm5241, %v5809, 0
    %v5981 = vsel %vm5241, %v5810, 0
    %v5984 = vsel %vm5241, %v5811, 0
    %v5987 = vsel %vm5241, %v5812, 0
    %v5990 = vsel %vm5241, %v5813, 0
    %v5993 = vsel %vm5241, %v5814, 0
    %v5996 = vsel %vm5241, %v5815, 0
    %v5999 = vsel %vm5241, %v5816, 0
    %v6002 = vsel %vm5241, %v5817, 0
    %6004 = vmatprep.subr.mxu0 0.0
    %6005 = vmatpush1.msra.mxu0 0.0
    %6006 = vmatprep.subr.mxu0 0.0
    %6007 = vmatpush1.msra.mxu0 0.0
    %6008 = vmatprep.subr.mxu0 0.0
    %6009 = vmatpush1.msra.mxu0 0.0
    %6010 = vmatprep.subr.mxu0 0.0
    %6011 = vmatpush1.msra.mxu0 0.0
    %6012 = vmatprep.subr.mxu0 0.0
    %6013 = vmatpush1.msra.mxu0 0.0
    %6014 = vmatprep.subr.mxu0 0.0
    %6015 = vmatpush1.msra.mxu0 0.0
    %6016 = vmatprep.subr.mxu0 0.0
    %6017 = vmatpush1.msra.mxu0 0.0
    %6018 = vmatprep.subr.mxu0 0.0
    %6019 = vmatpush1.msra.mxu0 0.0
    %6020 = vmatprep.subr.mxu0 0.0
    %6021 = vmatpush1.msra.mxu0 %v5953
    %6022 = vmatprep.subr.mxu0 0.0
    %6023 = vmatpush1.msra.mxu0 %v5948
    %6024 = vmatprep.subr.mxu0 0.0
    %6025 = vmatpush1.msra.mxu0 %v5943
    %6026 = vmatprep.subr.mxu0 0.0
    %6027 = vmatpush1.msra.mxu0 %v5938
    %6028 = vmatprep.subr.mxu0 0.0
    %6029 = vmatpush1.msra.mxu0 %v5933
    %6030 = vmatprep.subr.mxu0 0.0
    %6031 = vmatpush1.msra.mxu0 %v5928
    %6032 = vmatprep.subr.mxu0 0.0
    %6033 = vmatpush1.msra.mxu0 %v5923
    %6034 = vmatprep.subr.mxu0 0.0
    %6035 = vmatpush1.msra.mxu0 %v5918
    %6036 = vmatprep.subr.mxu0 0.0
    %6037 = vmatpush2.msra.mxu0 0.0
    %6038 = vmatprep.subr.mxu0 0.0
    %6039 = vmatpush2.msra.mxu0 0.0
    %6040 = vmatprep.subr.mxu0 0.0
    %6041 = vmatpush2.msra.mxu0 0.0
    %6042 = vmatprep.subr.mxu0 0.0
    %6043 = vmatpush2.msra.mxu0 0.0
    %6044 = vmatprep.subr.mxu0 0.0
    %6045 = vmatpush2.msra.mxu0 0.0
    %6046 = vmatprep.subr.mxu0 0.0
    %6047 = vmatpush2.msra.mxu0 0.0
    %6048 = vmatprep.subr.mxu0 0.0
    %6049 = vmatpush2.msra.mxu0 0.0
    %6050 = vmatprep.subr.mxu0 0.0
    %6051 = vmatpush2.msra.mxu0 0.0
    %6052 = vmatprep.subr.mxu0 0.0
    %6053 = vmatpush2.msra.mxu0 0.0
    %6054 = vmatprep.subr.mxu0 0.0
    %6055 = vmatpush2.msra.mxu0 0.0
    %6056 = vmatprep.subr.mxu0 0.0
    %6057 = vmatpush2.msra.mxu0 0.0
    %6058 = vmatprep.subr.mxu0 0.0
    %6059 = vmatpush2.msra.mxu0 0.0
    %6060 = vmatprep.subr.mxu0 0.0
    %6061 = vmatpush2.msra.mxu0 0.0
    %6062 = vmatprep.subr.mxu0 0.0
    %6063 = vmatpush2.msra.mxu0 0.0
    %6064 = vmatprep.subr.mxu0 0.0
    %6065 = vmatpush2.msra.mxu0 0.0
    %6066 = vmatprep.subr.mxu0 0.0
    %6067 = vmatpush2.msra.mxu0 0.0
    %6068 = vmatprep.mubr.f32.mxu0 0.0
    %6069 = vmatmul.mubr.f32.gmra.mxu0 %v5957
    %v6070 = vpop.f32.mrf.mxu0
    %v6071 = vadd.f32 0.0, %v6070
    %v6072 = vpop.f32.mrf.mxu0
    %6073 = vmatprep.mubr.f32.mxu0 0.0
    %6074 = vmatmul.mubr.f32.gmra.mxu0 %v5960
    %v6075 = vpop.f32.mrf.mxu0
    %v6076 = vadd.f32 0.0, %v6075
    %v6077 = vpop.f32.mrf.mxu0
    %6078 = vmatprep.mubr.f32.mxu0 0.0
    %6079 = vmatmul.mubr.f32.gmra.mxu0 %v5963
    %v6080 = vpop.f32.mrf.mxu0
    %v6081 = vadd.f32 0.0, %v6080
    %v6082 = vpop.f32.mrf.mxu0
    %6083 = vmatprep.mubr.f32.mxu0 0.0
    %6084 = vmatmul.mubr.f32.gmra.mxu0 %v5966
    %v6085 = vpop.f32.mrf.mxu0
    %v6086 = vadd.f32 0.0, %v6085
    %v6087 = vpop.f32.mrf.mxu0
    %6088 = vmatprep.mubr.f32.mxu0 0.0
    %6089 = vmatmul.mubr.f32.gmra.mxu0 %v5969
    %v6090 = vpop.f32.mrf.mxu0
    %v6091 = vadd.f32 0.0, %v6090
    %v6092 = vpop.f32.mrf.mxu0
    %6093 = vmatprep.mubr.f32.mxu0 0.0
    %6094 = vmatmul.mubr.f32.gmra.mxu0 %v5972
    %v6095 = vpop.f32.mrf.mxu0
    %v6096 = vadd.f32 0.0, %v6095
    %v6097 = vpop.f32.mrf.mxu0
    %6098 = vmatprep.mubr.f32.mxu0 0.0
    %6099 = vmatmul.mubr.f32.gmra.mxu0 %v5975
    %v6100 = vpop.f32.mrf.mxu0
    %v6101 = vadd.f32 0.0, %v6100
    %v6102 = vpop.f32.mrf.mxu0
    %6103 = vmatprep.mubr.f32.mxu0 0.0
    %6104 = vmatmul.mubr.f32.gmra.mxu0 %v5978
    %v6105 = vpop.f32.mrf.mxu0
    %v6106 = vadd.f32 0.0, %v6105
    %v6107 = vpop.f32.mrf.mxu0
    %6108 = vmatprep.mubr.f32.mxu0 0.0
    %6109 = vmatmul.mubr.f32.gmra.mxu0 %v5981
    %v6110 = vpop.f32.mrf.mxu0
    %v6111 = vadd.f32 0.0, %v6110
    %v6112 = vpop.f32.mrf.mxu0
    %6113 = vmatprep.mubr.f32.mxu0 0.0
    %6114 = vmatmul.mubr.f32.gmra.mxu0 %v5984
    %v6115 = vpop.f32.mrf.mxu0
    %v6116 = vadd.f32 0.0, %v6115
    %v6117 = vpop.f32.mrf.mxu0
    %6118 = vmatprep.mubr.f32.mxu0 0.0
    %6119 = vmatmul.mubr.f32.gmra.mxu0 %v5987
    %v6120 = vpop.f32.mrf.mxu0
    %v6121 = vadd.f32 0.0, %v6120
    %v6122 = vpop.f32.mrf.mxu0
    %6123 = vmatprep.mubr.f32.mxu0 0.0
    %6124 = vmatmul.mubr.f32.gmra.mxu0 %v5990
    %v6125 = vpop.f32.mrf.mxu0
    %v6126 = vadd.f32 0.0, %v6125
    %v6127 = vpop.f32.mrf.mxu0
    %6128 = vmatprep.mubr.f32.mxu0 0.0
    %6129 = vmatmul.mubr.f32.gmra.mxu0 %v5993
    %v6130 = vpop.f32.mrf.mxu0
    %v6131 = vadd.f32 0.0, %v6130
    %v6132 = vpop.f32.mrf.mxu0
    %6133 = vmatprep.mubr.f32.mxu0 0.0
    %6134 = vmatmul.mubr.f32.gmra.mxu0 %v5996
    %v6135 = vpop.f32.mrf.mxu0
    %v6136 = vadd.f32 0.0, %v6135
    %v6137 = vpop.f32.mrf.mxu0
    %6138 = vmatprep.mubr.f32.mxu0 0.0
    %6139 = vmatmul.mubr.f32.gmra.mxu0 %v5999
    %v6140 = vpop.f32.mrf.mxu0
    %v6141 = vadd.f32 0.0, %v6140
    %v6142 = vpop.f32.mrf.mxu0
    %6143 = vmatprep.mubr.f32.mxu0 0.0
    %6144 = vmatmul.mubr.f32.gmra.mxu0 %v6002
    %v6145 = vpop.f32.mrf.mxu0
    %v6146 = vadd.f32 0.0, %v6145
    %v6147 = vpop.f32.mrf.mxu0
    %6148 = vdwg.mxu0
    %v6150 = vsel %vm5241, %v5648, 0
    %v6153 = vsel %vm5241, %v5649, 0
    %v6156 = vsel %vm5241, %v5650, 0
    %v6159 = vsel %vm5241, %v5651, 0
    %v6162 = vsel %vm5241, %v5652, 0
    %v6165 = vsel %vm5241, %v5653, 0
    %v6168 = vsel %vm5241, %v5654, 0
    %v6171 = vsel %vm5241, %v5655, 0
    %v6174 = vsel %vm5241, %v5656, 0
    %v6177 = vsel %vm5241, %v5657, 0
    %v6180 = vsel %vm5241, %v5658, 0
    %v6183 = vsel %vm5241, %v5659, 0
    %v6186 = vsel %vm5241, %v5660, 0
    %v6189 = vsel %vm5241, %v5661, 0
    %v6192 = vsel %vm5241, %v5662, 0
    %v6195 = vsel %vm5241, %v5663, 0
    %6197 = vmatprep.subr.mxu0 0.0
    %6198 = vmatpush1.msra.mxu0 0.0
    %6199 = vmatprep.subr.mxu0 0.0
    %6200 = vmatpush1.msra.mxu0 0.0
    %6201 = vmatprep.subr.mxu0 0.0
    %6202 = vmatpush1.msra.mxu0 0.0
    %6203 = vmatprep.subr.mxu0 0.0
    %6204 = vmatpush1.msra.mxu0 0.0
    %6205 = vmatprep.subr.mxu0 0.0
    %6206 = vmatpush1.msra.mxu0 0.0
    %6207 = vmatprep.subr.mxu0 0.0
    %6208 = vmatpush1.msra.mxu0 0.0
    %6209 = vmatprep.subr.mxu0 0.0
    %6210 = vmatpush1.msra.mxu0 0.0
    %6211 = vmatprep.subr.mxu0 0.0
    %6212 = vmatpush1.msra.mxu0 0.0
    %6213 = vmatprep.subr.mxu0 0.0
    %6214 = vmatpush1.msra.mxu0 %v5798
    %6215 = vmatprep.subr.mxu0 0.0
    %6216 = vmatpush1.msra.mxu0 %v5793
    %6217 = vmatprep.subr.mxu0 0.0
    %6218 = vmatpush1.msra.mxu0 %v5788
    %6219 = vmatprep.subr.mxu0 0.0
    %6220 = vmatpush1.msra.mxu0 %v5783
    %6221 = vmatprep.subr.mxu0 0.0
    %6222 = vmatpush1.msra.mxu0 %v5778
    %6223 = vmatprep.subr.mxu0 0.0
    %6224 = vmatpush1.msra.mxu0 %v5773
    %6225 = vmatprep.subr.mxu0 0.0
    %6226 = vmatpush1.msra.mxu0 %v5768
    %6227 = vmatprep.subr.mxu0 0.0
    %6228 = vmatpush1.msra.mxu0 %v5763
    %6229 = vmatprep.subr.mxu0 0.0
    %6230 = vmatpush2.msra.mxu0 0.0
    %6231 = vmatprep.subr.mxu0 0.0
    %6232 = vmatpush2.msra.mxu0 0.0
    %6233 = vmatprep.subr.mxu0 0.0
    %6234 = vmatpush2.msra.mxu0 0.0
    %6235 = vmatprep.subr.mxu0 0.0
    %6236 = vmatpush2.msra.mxu0 0.0
    %6237 = vmatprep.subr.mxu0 0.0
    %6238 = vmatpush2.msra.mxu0 0.0
    %6239 = vmatprep.subr.mxu0 0.0
    %6240 = vmatpush2.msra.mxu0 0.0
    %6241 = vmatprep.subr.mxu0 0.0
    %6242 = vmatpush2.msra.mxu0 0.0
    %6243 = vmatprep.subr.mxu0 0.0
    %6244 = vmatpush2.msra.mxu0 0.0
    %6245 = vmatprep.subr.mxu0 0.0
    %6246 = vmatpush2.msra.mxu0 0.0
    %6247 = vmatprep.subr.mxu0 0.0
    %6248 = vmatpush2.msra.mxu0 0.0
    %6249 = vmatprep.subr.mxu0 0.0
    %6250 = vmatpush2.msra.mxu0 0.0
    %6251 = vmatprep.subr.mxu0 0.0
    %6252 = vmatpush2.msra.mxu0 0.0
    %6253 = vmatprep.subr.mxu0 0.0
    %6254 = vmatpush2.msra.mxu0 0.0
    %6255 = vmatprep.subr.mxu0 0.0
    %6256 = vmatpush2.msra.mxu0 0.0
    %6257 = vmatprep.subr.mxu0 0.0
    %6258 = vmatpush2.msra.mxu0 0.0
    %6259 = vmatprep.subr.mxu0 0.0
    %6260 = vmatpush2.msra.mxu0 0.0
    %6261 = vmatprep.mubr.f32.mxu0 0.0
    %6262 = vmatmul.mubr.f32.gmra.mxu0 %v6150
    %v6263 = vpop.f32.mrf.mxu0
    %v6264 = vadd.f32 %v6071, %v6263
    %v6265 = vpop.f32.mrf.mxu0
    %6266 = vmatprep.mubr.f32.mxu0 0.0
    %6267 = vmatmul.mubr.f32.gmra.mxu0 %v6153
    %v6268 = vpop.f32.mrf.mxu0
    %v6269 = vadd.f32 %v6076, %v6268
    %v6270 = vpop.f32.mrf.mxu0
    %6271 = vmatprep.mubr.f32.mxu0 0.0
    %6272 = vmatmul.mubr.f32.gmra.mxu0 %v6156
    %v6273 = vpop.f32.mrf.mxu0
    %v6274 = vadd.f32 %v6081, %v6273
    %v6275 = vpop.f32.mrf.mxu0
    %6276 = vmatprep.mubr.f32.mxu0 0.0
    %6277 = vmatmul.mubr.f32.gmra.mxu0 %v6159
    %v6278 = vpop.f32.mrf.mxu0
    %v6279 = vadd.f32 %v6086, %v6278
    %v6280 = vpop.f32.mrf.mxu0
    %6281 = vmatprep.mubr.f32.mxu0 0.0
    %6282 = vmatmul.mubr.f32.gmra.mxu0 %v6162
    %v6283 = vpop.f32.mrf.mxu0
    %v6284 = vadd.f32 %v6091, %v6283
    %v6285 = vpop.f32.mrf.mxu0
    %6286 = vmatprep.mubr.f32.mxu0 0.0
    %6287 = vmatmul.mubr.f32.gmra.mxu0 %v6165
    %v6288 = vpop.f32.mrf.mxu0
    %v6289 = vadd.f32 %v6096, %v6288
    %v6290 = vpop.f32.mrf.mxu0
    %6291 = vmatprep.mubr.f32.mxu0 0.0
    %6292 = vmatmul.mubr.f32.gmra.mxu0 %v6168
    %v6293 = vpop.f32.mrf.mxu0
    %v6294 = vadd.f32 %v6101, %v6293
    %v6295 = vpop.f32.mrf.mxu0
    %6296 = vmatprep.mubr.f32.mxu0 0.0
    %6297 = vmatmul.mubr.f32.gmra.mxu0 %v6171
    %v6298 = vpop.f32.mrf.mxu0
    %v6299 = vadd.f32 %v6106, %v6298
    %v6300 = vpop.f32.mrf.mxu0
    %6301 = vmatprep.mubr.f32.mxu0 0.0
    %6302 = vmatmul.mubr.f32.gmra.mxu0 %v6174
    %v6303 = vpop.f32.mrf.mxu0
    %v6304 = vadd.f32 %v6111, %v6303
    %v6305 = vpop.f32.mrf.mxu0
    %6306 = vmatprep.mubr.f32.mxu0 0.0
    %6307 = vmatmul.mubr.f32.gmra.mxu0 %v6177
    %v6308 = vpop.f32.mrf.mxu0
    %v6309 = vadd.f32 %v6116, %v6308
    %v6310 = vpop.f32.mrf.mxu0
    %6311 = vmatprep.mubr.f32.mxu0 0.0
    %6312 = vmatmul.mubr.f32.gmra.mxu0 %v6180
    %v6313 = vpop.f32.mrf.mxu0
    %v6314 = vadd.f32 %v6121, %v6313
    %v6315 = vpop.f32.mrf.mxu0
    %6316 = vmatprep.mubr.f32.mxu0 0.0
    %6317 = vmatmul.mubr.f32.gmra.mxu0 %v6183
    %v6318 = vpop.f32.mrf.mxu0
    %v6319 = vadd.f32 %v6126, %v6318
    %v6320 = vpop.f32.mrf.mxu0
    %6321 = vmatprep.mubr.f32.mxu0 0.0
    %6322 = vmatmul.mubr.f32.gmra.mxu0 %v6186
    %v6323 = vpop.f32.mrf.mxu0
    %v6324 = vadd.f32 %v6131, %v6323
    %v6325 = vpop.f32.mrf.mxu0
    %6326 = vmatprep.mubr.f32.mxu0 0.0
    %6327 = vmatmul.mubr.f32.gmra.mxu0 %v6189
    %v6328 = vpop.f32.mrf.mxu0
    %v6329 = vadd.f32 %v6136, %v6328
    %v6330 = vpop.f32.mrf.mxu0
    %6331 = vmatprep.mubr.f32.mxu0 0.0
    %6332 = vmatmul.mubr.f32.gmra.mxu0 %v6192
    %v6333 = vpop.f32.mrf.mxu0
    %v6334 = vadd.f32 %v6141, %v6333
    %v6335 = vpop.f32.mrf.mxu0
    %6336 = vmatprep.mubr.f32.mxu0 0.0
    %6337 = vmatmul.mubr.f32.gmra.mxu0 %v6195
    %v6338 = vpop.f32.mrf.mxu0
    %v6339 = vadd.f32 %v6146, %v6338
    %v6340 = vpop.f32.mrf.mxu0
    %6341 = vdwg.mxu0
    %s6342 = scalar_lea.vmem %s10, 256
    %v6343 = vld [vmem:[%s6342] sm:$0xff]
    %v6344 = vld [vmem:[%s6342 + $0x8] sm:$0xff]
    %v6345 = vld [vmem:[%s6342 + $0x10] sm:$0xff]
    %v6346 = vld [vmem:[%s6342 + $0x18] sm:$0xff]
    %v6347 = vld [vmem:[%s6342 + $0x20] sm:$0xff]
    %v6348 = vld [vmem:[%s6342 + $0x28] sm:$0xff]
    %v6349 = vld [vmem:[%s6342 + $0x30] sm:$0xff]
    %v6350 = vld [vmem:[%s6342 + $0x38] sm:$0xff]
    %v6351 = vld [vmem:[%s6342 + $0x40] sm:$0xff]
    %v6352 = vld [vmem:[%s6342 + $0x48] sm:$0xff]
    %v6353 = vld [vmem:[%s6342 + $0x50] sm:$0xff]
    %v6354 = vld [vmem:[%s6342 + $0x58] sm:$0xff]
    %v6355 = vld [vmem:[%s6342 + $0x60] sm:$0xff]
    %v6356 = vld [vmem:[%s6342 + $0x68] sm:$0xff]
    %v6357 = vld [vmem:[%s6342 + $0x70] sm:$0xff]
    %v6358 = vld [vmem:[%s6342 + $0x78] sm:$0xff]
    %s6359 = scalar_lea.vmem %s6, 512
    %v6360 = vld [vmem:[%s6359] sm:$0xff]
    %v6361 = vld [vmem:[%s6359 + $0x8] sm:$0xff]
    %v6362 = vld [vmem:[%s6359 + $0x10] sm:$0xff]
    %v6363 = vld [vmem:[%s6359 + $0x18] sm:$0xff]
    %v6364 = vld [vmem:[%s6359 + $0x20] sm:$0xff]
    %v6365 = vld [vmem:[%s6359 + $0x28] sm:$0xff]
    %v6366 = vld [vmem:[%s6359 + $0x30] sm:$0xff]
    %v6367 = vld [vmem:[%s6359 + $0x38] sm:$0xff]
    %v6368 = vld [vmem:[%s6359 + $0x40] sm:$0xff]
    %v6369 = vld [vmem:[%s6359 + $0x48] sm:$0xff]
    %v6370 = vld [vmem:[%s6359 + $0x50] sm:$0xff]
    %v6371 = vld [vmem:[%s6359 + $0x58] sm:$0xff]
    %v6372 = vld [vmem:[%s6359 + $0x60] sm:$0xff]
    %v6373 = vld [vmem:[%s6359 + $0x68] sm:$0xff]
    %v6374 = vld [vmem:[%s6359 + $0x70] sm:$0xff]
    %v6375 = vld [vmem:[%s6359 + $0x78] sm:$0xff]
    %v6376 = vld [vmem:[%s6359 + $0x80] sm:$0xff]
    %v6377 = vld [vmem:[%s6359 + $0x88] sm:$0xff]
    %v6378 = vld [vmem:[%s6359 + $0x90] sm:$0xff]
    %v6379 = vld [vmem:[%s6359 + $0x98] sm:$0xff]
    %v6380 = vld [vmem:[%s6359 + $0xa0] sm:$0xff]
    %v6381 = vld [vmem:[%s6359 + $0xa8] sm:$0xff]
    %v6382 = vld [vmem:[%s6359 + $0xb0] sm:$0xff]
    %v6383 = vld [vmem:[%s6359 + $0xb8] sm:$0xff]
    %v6384 = vld [vmem:[%s6359 + $0xc0] sm:$0xff]
    %v6385 = vld [vmem:[%s6359 + $0xc8] sm:$0xff]
    %v6386 = vld [vmem:[%s6359 + $0xd0] sm:$0xff]
    %v6387 = vld [vmem:[%s6359 + $0xd8] sm:$0xff]
    %v6388 = vld [vmem:[%s6359 + $0xe0] sm:$0xff]
    %v6389 = vld [vmem:[%s6359 + $0xe8] sm:$0xff]
    %v6390 = vld [vmem:[%s6359 + $0xf0] sm:$0xff]
    %v6391 = vld [vmem:[%s6359 + $0xf8] sm:$0xff]
    %6392 = vmatprep.subr.mxu0 0.0
    %6393 = vmatpush1.msra.mxu0 %v6375
    %6394 = vmatprep.subr.mxu0 0.0
    %6395 = vmatpush1.msra.mxu0 %v6374
    %6396 = vmatprep.subr.mxu0 0.0
    %6397 = vmatpush1.msra.mxu0 %v6373
    %6398 = vmatprep.subr.mxu0 0.0
    %6399 = vmatpush1.msra.mxu0 %v6372
    %6400 = vmatprep.subr.mxu0 0.0
    %6401 = vmatpush1.msra.mxu0 %v6371
    %6402 = vmatprep.subr.mxu0 0.0
    %6403 = vmatpush1.msra.mxu0 %v6370
    %6404 = vmatprep.subr.mxu0 0.0
    %6405 = vmatpush1.msra.mxu0 %v6369
    %6406 = vmatprep.subr.mxu0 0.0
    %6407 = vmatpush1.msra.mxu0 %v6368
    %6408 = vmatprep.subr.mxu0 0.0
    %6409 = vmatpush1.msra.mxu0 %v6367
    %6410 = vmatprep.subr.mxu0 0.0
    %6411 = vmatpush1.msra.mxu0 %v6366
    %6412 = vmatprep.subr.mxu0 0.0
    %6413 = vmatpush1.msra.mxu0 %v6365
    %6414 = vmatprep.subr.mxu0 0.0
    %6415 = vmatpush1.msra.mxu0 %v6364
    %6416 = vmatprep.subr.mxu0 0.0
    %6417 = vmatpush1.msra.mxu0 %v6363
    %6418 = vmatprep.subr.mxu0 0.0
    %6419 = vmatpush1.msra.mxu0 %v6362
    %6420 = vmatprep.subr.mxu0 0.0
    %6421 = vmatpush1.msra.mxu0 %v6361
    %6422 = vmatprep.subr.mxu0 0.0
    %6423 = vmatpush1.msra.mxu0 %v6360
    %6424 = vmatprep.subr.mxu0 0.0
    %6425 = vmatpush2.msra.mxu0 %v6391
    %6426 = vmatprep.subr.mxu0 0.0
    %6427 = vmatpush2.msra.mxu0 %v6390
    %6428 = vmatprep.subr.mxu0 0.0
    %6429 = vmatpush2.msra.mxu0 %v6389
    %6430 = vmatprep.subr.mxu0 0.0
    %6431 = vmatpush2.msra.mxu0 %v6388
    %6432 = vmatprep.subr.mxu0 0.0
    %6433 = vmatpush2.msra.mxu0 %v6387
    %6434 = vmatprep.subr.mxu0 0.0
    %6435 = vmatpush2.msra.mxu0 %v6386
    %6436 = vmatprep.subr.mxu0 0.0
    %6437 = vmatpush2.msra.mxu0 %v6385
    %6438 = vmatprep.subr.mxu0 0.0
    %6439 = vmatpush2.msra.mxu0 %v6384
    %6440 = vmatprep.subr.mxu0 0.0
    %6441 = vmatpush2.msra.mxu0 %v6383
    %6442 = vmatprep.subr.mxu0 0.0
    %6443 = vmatpush2.msra.mxu0 %v6382
    %6444 = vmatprep.subr.mxu0 0.0
    %6445 = vmatpush2.msra.mxu0 %v6381
    %6446 = vmatprep.subr.mxu0 0.0
    %6447 = vmatpush2.msra.mxu0 %v6380
    %6448 = vmatprep.subr.mxu0 0.0
    %6449 = vmatpush2.msra.mxu0 %v6379
    %6450 = vmatprep.subr.mxu0 0.0
    %6451 = vmatpush2.msra.mxu0 %v6378
    %6452 = vmatprep.subr.mxu0 0.0
    %6453 = vmatpush2.msra.mxu0 %v6377
    %6454 = vmatprep.subr.mxu0 0.0
    %6455 = vmatpush2.msra.mxu0 %v6376
    %6456 = vmatprep.mubr.f32.mxu0 %v5633
    %6457 = vmatmul.mubr.f32.gmra.mxu0 %v5632
    %v6458 = vpop.f32.mrf.mxu0
    %v6459 = vadd.f32 0.0, %v6458
    %v6460 = vpop.f32.mrf.mxu0
    %6461 = vmatprep.mubr.f32.mxu0 %v5635
    %6462 = vmatmul.mubr.f32.gmra.mxu0 %v5634
    %v6463 = vpop.f32.mrf.mxu0
    %v6464 = vadd.f32 0.0, %v6463
    %v6465 = vpop.f32.mrf.mxu0
    %6466 = vmatprep.mubr.f32.mxu0 %v5637
    %6467 = vmatmul.mubr.f32.gmra.mxu0 %v5636
    %v6468 = vpop.f32.mrf.mxu0
    %v6469 = vadd.f32 0.0, %v6468
    %v6470 = vpop.f32.mrf.mxu0
    %6471 = vmatprep.mubr.f32.mxu0 %v5639
    %6472 = vmatmul.mubr.f32.gmra.mxu0 %v5638
    %v6473 = vpop.f32.mrf.mxu0
    %v6474 = vadd.f32 0.0, %v6473
    %v6475 = vpop.f32.mrf.mxu0
    %6476 = vmatprep.mubr.f32.mxu0 %v5641
    %6477 = vmatmul.mubr.f32.gmra.mxu0 %v5640
    %v6478 = vpop.f32.mrf.mxu0
    %v6479 = vadd.f32 0.0, %v6478
    %v6480 = vpop.f32.mrf.mxu0
    %6481 = vmatprep.mubr.f32.mxu0 %v5643
    %6482 = vmatmul.mubr.f32.gmra.mxu0 %v5642
    %v6483 = vpop.f32.mrf.mxu0
    %v6484 = vadd.f32 0.0, %v6483
    %v6485 = vpop.f32.mrf.mxu0
    %6486 = vmatprep.mubr.f32.mxu0 %v5645
    %6487 = vmatmul.mubr.f32.gmra.mxu0 %v5644
    %v6488 = vpop.f32.mrf.mxu0
    %v6489 = vadd.f32 0.0, %v6488
    %v6490 = vpop.f32.mrf.mxu0
    %6491 = vmatprep.mubr.f32.mxu0 %v5647
    %6492 = vmatmul.mubr.f32.gmra.mxu0 %v5646
    %v6493 = vpop.f32.mrf.mxu0
    %v6494 = vadd.f32 0.0, %v6493
    %v6495 = vpop.f32.mrf.mxu0
    %6496 = vdwg.mxu0
    %v6498 = vsel %vm5241, %v6343, 0
    %v6501 = vsel %vm5241, %v6344, 0
    %v6504 = vsel %vm5241, %v6345, 0
    %v6507 = vsel %vm5241, %v6346, 0
    %v6510 = vsel %vm5241, %v6347, 0
    %v6513 = vsel %vm5241, %v6348, 0
    %v6516 = vsel %vm5241, %v6349, 0
    %v6519 = vsel %vm5241, %v6350, 0
    %v6522 = vsel %vm5241, %v6351, 0
    %v6525 = vsel %vm5241, %v6352, 0
    %v6528 = vsel %vm5241, %v6353, 0
    %v6531 = vsel %vm5241, %v6354, 0
    %v6534 = vsel %vm5241, %v6355, 0
    %v6537 = vsel %vm5241, %v6356, 0
    %v6540 = vsel %vm5241, %v6357, 0
    %v6543 = vsel %vm5241, %v6358, 0
    %6545 = vmatprep.subr.mxu0 0.0
    %6546 = vmatpush1.msra.mxu0 0.0
    %6547 = vmatprep.subr.mxu0 0.0
    %6548 = vmatpush1.msra.mxu0 0.0
    %6549 = vmatprep.subr.mxu0 0.0
    %6550 = vmatpush1.msra.mxu0 0.0
    %6551 = vmatprep.subr.mxu0 0.0
    %6552 = vmatpush1.msra.mxu0 0.0
    %6553 = vmatprep.subr.mxu0 0.0
    %6554 = vmatpush1.msra.mxu0 0.0
    %6555 = vmatprep.subr.mxu0 0.0
    %6556 = vmatpush1.msra.mxu0 0.0
    %6557 = vmatprep.subr.mxu0 0.0
    %6558 = vmatpush1.msra.mxu0 0.0
    %6559 = vmatprep.subr.mxu0 0.0
    %6560 = vmatpush1.msra.mxu0 0.0
    %6561 = vmatprep.subr.mxu0 0.0
    %6562 = vmatpush1.msra.mxu0 %v6494
    %6563 = vmatprep.subr.mxu0 0.0
    %6564 = vmatpush1.msra.mxu0 %v6489
    %6565 = vmatprep.subr.mxu0 0.0
    %6566 = vmatpush1.msra.mxu0 %v6484
    %6567 = vmatprep.subr.mxu0 0.0
    %6568 = vmatpush1.msra.mxu0 %v6479
    %6569 = vmatprep.subr.mxu0 0.0
    %6570 = vmatpush1.msra.mxu0 %v6474
    %6571 = vmatprep.subr.mxu0 0.0
    %6572 = vmatpush1.msra.mxu0 %v6469
    %6573 = vmatprep.subr.mxu0 0.0
    %6574 = vmatpush1.msra.mxu0 %v6464
    %6575 = vmatprep.subr.mxu0 0.0
    %6576 = vmatpush1.msra.mxu0 %v6459
    %6577 = vmatprep.subr.mxu0 0.0
    %6578 = vmatpush2.msra.mxu0 0.0
    %6579 = vmatprep.subr.mxu0 0.0
    %6580 = vmatpush2.msra.mxu0 0.0
    %6581 = vmatprep.subr.mxu0 0.0
    %6582 = vmatpush2.msra.mxu0 0.0
    %6583 = vmatprep.subr.mxu0 0.0
    %6584 = vmatpush2.msra.mxu0 0.0
    %6585 = vmatprep.subr.mxu0 0.0
    %6586 = vmatpush2.msra.mxu0 0.0
    %6587 = vmatprep.subr.mxu0 0.0
    %6588 = vmatpush2.msra.mxu0 0.0
    %6589 = vmatprep.subr.mxu0 0.0
    %6590 = vmatpush2.msra.mxu0 0.0
    %6591 = vmatprep.subr.mxu0 0.0
    %6592 = vmatpush2.msra.mxu0 0.0
    %6593 = vmatprep.subr.mxu0 0.0
    %6594 = vmatpush2.msra.mxu0 0.0
    %6595 = vmatprep.subr.mxu0 0.0
    %6596 = vmatpush2.msra.mxu0 0.0
    %6597 = vmatprep.subr.mxu0 0.0
    %6598 = vmatpush2.msra.mxu0 0.0
    %6599 = vmatprep.subr.mxu0 0.0
    %6600 = vmatpush2.msra.mxu0 0.0
    %6601 = vmatprep.subr.mxu0 0.0
    %6602 = vmatpush2.msra.mxu0 0.0
    %6603 = vmatprep.subr.mxu0 0.0
    %6604 = vmatpush2.msra.mxu0 0.0
    %6605 = vmatprep.subr.mxu0 0.0
    %6606 = vmatpush2.msra.mxu0 0.0
    %6607 = vmatprep.subr.mxu0 0.0
    %6608 = vmatpush2.msra.mxu0 0.0
    %6609 = vmatprep.mubr.f32.mxu0 0.0
    %6610 = vmatmul.mubr.f32.gmra.mxu0 %v6498
    %v6611 = vpop.f32.mrf.mxu0
    %v6612 = vadd.f32 0.0, %v6611
    %v6613 = vpop.f32.mrf.mxu0
    %6614 = vmatprep.mubr.f32.mxu0 0.0
    %6615 = vmatmul.mubr.f32.gmra.mxu0 %v6501
    %v6616 = vpop.f32.mrf.mxu0
    %v6617 = vadd.f32 0.0, %v6616
    %v6618 = vpop.f32.mrf.mxu0
    %6619 = vmatprep.mubr.f32.mxu0 0.0
    %6620 = vmatmul.mubr.f32.gmra.mxu0 %v6504
    %v6621 = vpop.f32.mrf.mxu0
    %v6622 = vadd.f32 0.0, %v6621
    %v6623 = vpop.f32.mrf.mxu0
    %6624 = vmatprep.mubr.f32.mxu0 0.0
    %6625 = vmatmul.mubr.f32.gmra.mxu0 %v6507
    %v6626 = vpop.f32.mrf.mxu0
    %v6627 = vadd.f32 0.0, %v6626
    %v6628 = vpop.f32.mrf.mxu0
    %6629 = vmatprep.mubr.f32.mxu0 0.0
    %6630 = vmatmul.mubr.f32.gmra.mxu0 %v6510
    %v6631 = vpop.f32.mrf.mxu0
    %v6632 = vadd.f32 0.0, %v6631
    %v6633 = vpop.f32.mrf.mxu0
    %6634 = vmatprep.mubr.f32.mxu0 0.0
    %6635 = vmatmul.mubr.f32.gmra.mxu0 %v6513
    %v6636 = vpop.f32.mrf.mxu0
    %v6637 = vadd.f32 0.0, %v6636
    %v6638 = vpop.f32.mrf.mxu0
    %6639 = vmatprep.mubr.f32.mxu0 0.0
    %6640 = vmatmul.mubr.f32.gmra.mxu0 %v6516
    %v6641 = vpop.f32.mrf.mxu0
    %v6642 = vadd.f32 0.0, %v6641
    %v6643 = vpop.f32.mrf.mxu0
    %6644 = vmatprep.mubr.f32.mxu0 0.0
    %6645 = vmatmul.mubr.f32.gmra.mxu0 %v6519
    %v6646 = vpop.f32.mrf.mxu0
    %v6647 = vadd.f32 0.0, %v6646
    %v6648 = vpop.f32.mrf.mxu0
    %6649 = vmatprep.mubr.f32.mxu0 0.0
    %6650 = vmatmul.mubr.f32.gmra.mxu0 %v6522
    %v6651 = vpop.f32.mrf.mxu0
    %v6652 = vadd.f32 0.0, %v6651
    %v6653 = vpop.f32.mrf.mxu0
    %6654 = vmatprep.mubr.f32.mxu0 0.0
    %6655 = vmatmul.mubr.f32.gmra.mxu0 %v6525
    %v6656 = vpop.f32.mrf.mxu0
    %v6657 = vadd.f32 0.0, %v6656
    %v6658 = vpop.f32.mrf.mxu0
    %6659 = vmatprep.mubr.f32.mxu0 0.0
    %6660 = vmatmul.mubr.f32.gmra.mxu0 %v6528
    %v6661 = vpop.f32.mrf.mxu0
    %v6662 = vadd.f32 0.0, %v6661
    %v6663 = vpop.f32.mrf.mxu0
    %6664 = vmatprep.mubr.f32.mxu0 0.0
    %6665 = vmatmul.mubr.f32.gmra.mxu0 %v6531
    %v6666 = vpop.f32.mrf.mxu0
    %v6667 = vadd.f32 0.0, %v6666
    %v6668 = vpop.f32.mrf.mxu0
    %6669 = vmatprep.mubr.f32.mxu0 0.0
    %6670 = vmatmul.mubr.f32.gmra.mxu0 %v6534
    %v6671 = vpop.f32.mrf.mxu0
    %v6672 = vadd.f32 0.0, %v6671
    %v6673 = vpop.f32.mrf.mxu0
    %6674 = vmatprep.mubr.f32.mxu0 0.0
    %6675 = vmatmul.mubr.f32.gmra.mxu0 %v6537
    %v6676 = vpop.f32.mrf.mxu0
    %v6677 = vadd.f32 0.0, %v6676
    %v6678 = vpop.f32.mrf.mxu0
    %6679 = vmatprep.mubr.f32.mxu0 0.0
    %6680 = vmatmul.mubr.f32.gmra.mxu0 %v6540
    %v6681 = vpop.f32.mrf.mxu0
    %v6682 = vadd.f32 0.0, %v6681
    %v6683 = vpop.f32.mrf.mxu0
    %6684 = vmatprep.mubr.f32.mxu0 0.0
    %6685 = vmatmul.mubr.f32.gmra.mxu0 %v6543
    %v6686 = vpop.f32.mrf.mxu0
    %v6687 = vadd.f32 0.0, %v6686
    %v6688 = vpop.f32.mrf.mxu0
    %6689 = vdwg.mxu0
    %v6690 = vadd.f32 %v6264, %v6612
    %v6691 = vadd.f32 %v6269, %v6617
    %v6692 = vadd.f32 %v6274, %v6622
    %v6693 = vadd.f32 %v6279, %v6627
    %v6694 = vadd.f32 %v6284, %v6632
    %v6695 = vadd.f32 %v6289, %v6637
    %v6696 = vadd.f32 %v6294, %v6642
    %v6697 = vadd.f32 %v6299, %v6647
    %v6698 = vadd.f32 %v6304, %v6652
    %v6699 = vadd.f32 %v6309, %v6657
    %v6700 = vadd.f32 %v6314, %v6662
    %v6701 = vadd.f32 %v6319, %v6667
    %v6702 = vadd.f32 %v6324, %v6672
    %v6703 = vadd.f32 %v6329, %v6677
    %v6704 = vadd.f32 %v6334, %v6682
    %v6705 = vadd.f32 %v6339, %v6687
    %s6706 = scalar_lea.vmem %s10, 384
    %v6707 = vld [vmem:[%s6706] sm:$0xff]
    %v6708 = vld [vmem:[%s6706 + $0x8] sm:$0xff]
    %v6709 = vld [vmem:[%s6706 + $0x10] sm:$0xff]
    %v6710 = vld [vmem:[%s6706 + $0x18] sm:$0xff]
    %v6711 = vld [vmem:[%s6706 + $0x20] sm:$0xff]
    %v6712 = vld [vmem:[%s6706 + $0x28] sm:$0xff]
    %v6713 = vld [vmem:[%s6706 + $0x30] sm:$0xff]
    %v6714 = vld [vmem:[%s6706 + $0x38] sm:$0xff]
    %v6715 = vld [vmem:[%s6706 + $0x40] sm:$0xff]
    %v6716 = vld [vmem:[%s6706 + $0x48] sm:$0xff]
    %v6717 = vld [vmem:[%s6706 + $0x50] sm:$0xff]
    %v6718 = vld [vmem:[%s6706 + $0x58] sm:$0xff]
    %v6719 = vld [vmem:[%s6706 + $0x60] sm:$0xff]
    %v6720 = vld [vmem:[%s6706 + $0x68] sm:$0xff]
    %v6721 = vld [vmem:[%s6706 + $0x70] sm:$0xff]
    %v6722 = vld [vmem:[%s6706 + $0x78] sm:$0xff]
    %s6723 = scalar_lea.vmem %s6, 768
    %v6724 = vld [vmem:[%s6723] sm:$0xff]
    %v6725 = vld [vmem:[%s6723 + $0x8] sm:$0xff]
    %v6726 = vld [vmem:[%s6723 + $0x10] sm:$0xff]
    %v6727 = vld [vmem:[%s6723 + $0x18] sm:$0xff]
    %v6728 = vld [vmem:[%s6723 + $0x20] sm:$0xff]
    %v6729 = vld [vmem:[%s6723 + $0x28] sm:$0xff]
    %v6730 = vld [vmem:[%s6723 + $0x30] sm:$0xff]
    %v6731 = vld [vmem:[%s6723 + $0x38] sm:$0xff]
    %v6732 = vld [vmem:[%s6723 + $0x40] sm:$0xff]
    %v6733 = vld [vmem:[%s6723 + $0x48] sm:$0xff]
    %v6734 = vld [vmem:[%s6723 + $0x50] sm:$0xff]
    %v6735 = vld [vmem:[%s6723 + $0x58] sm:$0xff]
    %v6736 = vld [vmem:[%s6723 + $0x60] sm:$0xff]
    %v6737 = vld [vmem:[%s6723 + $0x68] sm:$0xff]
    %v6738 = vld [vmem:[%s6723 + $0x70] sm:$0xff]
    %v6739 = vld [vmem:[%s6723 + $0x78] sm:$0xff]
    %v6740 = vld [vmem:[%s6723 + $0x80] sm:$0xff]
    %v6741 = vld [vmem:[%s6723 + $0x88] sm:$0xff]
    %v6742 = vld [vmem:[%s6723 + $0x90] sm:$0xff]
    %v6743 = vld [vmem:[%s6723 + $0x98] sm:$0xff]
    %v6744 = vld [vmem:[%s6723 + $0xa0] sm:$0xff]
    %v6745 = vld [vmem:[%s6723 + $0xa8] sm:$0xff]
    %v6746 = vld [vmem:[%s6723 + $0xb0] sm:$0xff]
    %v6747 = vld [vmem:[%s6723 + $0xb8] sm:$0xff]
    %v6748 = vld [vmem:[%s6723 + $0xc0] sm:$0xff]
    %v6749 = vld [vmem:[%s6723 + $0xc8] sm:$0xff]
    %v6750 = vld [vmem:[%s6723 + $0xd0] sm:$0xff]
    %v6751 = vld [vmem:[%s6723 + $0xd8] sm:$0xff]
    %v6752 = vld [vmem:[%s6723 + $0xe0] sm:$0xff]
    %v6753 = vld [vmem:[%s6723 + $0xe8] sm:$0xff]
    %v6754 = vld [vmem:[%s6723 + $0xf0] sm:$0xff]
    %v6755 = vld [vmem:[%s6723 + $0xf8] sm:$0xff]
    %6756 = vmatprep.subr.mxu0 0.0
    %6757 = vmatpush1.msra.mxu0 %v6739
    %6758 = vmatprep.subr.mxu0 0.0
    %6759 = vmatpush1.msra.mxu0 %v6738
    %6760 = vmatprep.subr.mxu0 0.0
    %6761 = vmatpush1.msra.mxu0 %v6737
    %6762 = vmatprep.subr.mxu0 0.0
    %6763 = vmatpush1.msra.mxu0 %v6736
    %6764 = vmatprep.subr.mxu0 0.0
    %6765 = vmatpush1.msra.mxu0 %v6735
    %6766 = vmatprep.subr.mxu0 0.0
    %6767 = vmatpush1.msra.mxu0 %v6734
    %6768 = vmatprep.subr.mxu0 0.0
    %6769 = vmatpush1.msra.mxu0 %v6733
    %6770 = vmatprep.subr.mxu0 0.0
    %6771 = vmatpush1.msra.mxu0 %v6732
    %6772 = vmatprep.subr.mxu0 0.0
    %6773 = vmatpush1.msra.mxu0 %v6731
    %6774 = vmatprep.subr.mxu0 0.0
    %6775 = vmatpush1.msra.mxu0 %v6730
    %6776 = vmatprep.subr.mxu0 0.0
    %6777 = vmatpush1.msra.mxu0 %v6729
    %6778 = vmatprep.subr.mxu0 0.0
    %6779 = vmatpush1.msra.mxu0 %v6728
    %6780 = vmatprep.subr.mxu0 0.0
    %6781 = vmatpush1.msra.mxu0 %v6727
    %6782 = vmatprep.subr.mxu0 0.0
    %6783 = vmatpush1.msra.mxu0 %v6726
    %6784 = vmatprep.subr.mxu0 0.0
    %6785 = vmatpush1.msra.mxu0 %v6725
    %6786 = vmatprep.subr.mxu0 0.0
    %6787 = vmatpush1.msra.mxu0 %v6724
    %6788 = vmatprep.subr.mxu0 0.0
    %6789 = vmatpush2.msra.mxu0 %v6755
    %6790 = vmatprep.subr.mxu0 0.0
    %6791 = vmatpush2.msra.mxu0 %v6754
    %6792 = vmatprep.subr.mxu0 0.0
    %6793 = vmatpush2.msra.mxu0 %v6753
    %6794 = vmatprep.subr.mxu0 0.0
    %6795 = vmatpush2.msra.mxu0 %v6752
    %6796 = vmatprep.subr.mxu0 0.0
    %6797 = vmatpush2.msra.mxu0 %v6751
    %6798 = vmatprep.subr.mxu0 0.0
    %6799 = vmatpush2.msra.mxu0 %v6750
    %6800 = vmatprep.subr.mxu0 0.0
    %6801 = vmatpush2.msra.mxu0 %v6749
    %6802 = vmatprep.subr.mxu0 0.0
    %6803 = vmatpush2.msra.mxu0 %v6748
    %6804 = vmatprep.subr.mxu0 0.0
    %6805 = vmatpush2.msra.mxu0 %v6747
    %6806 = vmatprep.subr.mxu0 0.0
    %6807 = vmatpush2.msra.mxu0 %v6746
    %6808 = vmatprep.subr.mxu0 0.0
    %6809 = vmatpush2.msra.mxu0 %v6745
    %6810 = vmatprep.subr.mxu0 0.0
    %6811 = vmatpush2.msra.mxu0 %v6744
    %6812 = vmatprep.subr.mxu0 0.0
    %6813 = vmatpush2.msra.mxu0 %v6743
    %6814 = vmatprep.subr.mxu0 0.0
    %6815 = vmatpush2.msra.mxu0 %v6742
    %6816 = vmatprep.subr.mxu0 0.0
    %6817 = vmatpush2.msra.mxu0 %v6741
    %6818 = vmatprep.subr.mxu0 0.0
    %6819 = vmatpush2.msra.mxu0 %v6740
    %6820 = vmatprep.mubr.f32.mxu0 %v5633
    %6821 = vmatmul.mubr.f32.gmra.mxu0 %v5632
    %v6822 = vpop.f32.mrf.mxu0
    %v6823 = vadd.f32 0.0, %v6822
    %v6824 = vpop.f32.mrf.mxu0
    %6825 = vmatprep.mubr.f32.mxu0 %v5635
    %6826 = vmatmul.mubr.f32.gmra.mxu0 %v5634
    %v6827 = vpop.f32.mrf.mxu0
    %v6828 = vadd.f32 0.0, %v6827
    %v6829 = vpop.f32.mrf.mxu0
    %6830 = vmatprep.mubr.f32.mxu0 %v5637
    %6831 = vmatmul.mubr.f32.gmra.mxu0 %v5636
    %v6832 = vpop.f32.mrf.mxu0
    %v6833 = vadd.f32 0.0, %v6832
    %v6834 = vpop.f32.mrf.mxu0
    %6835 = vmatprep.mubr.f32.mxu0 %v5639
    %6836 = vmatmul.mubr.f32.gmra.mxu0 %v5638
    %v6837 = vpop.f32.mrf.mxu0
    %v6838 = vadd.f32 0.0, %v6837
    %v6839 = vpop.f32.mrf.mxu0
    %6840 = vmatprep.mubr.f32.mxu0 %v5641
    %6841 = vmatmul.mubr.f32.gmra.mxu0 %v5640
    %v6842 = vpop.f32.mrf.mxu0
    %v6843 = vadd.f32 0.0, %v6842
    %v6844 = vpop.f32.mrf.mxu0
    %6845 = vmatprep.mubr.f32.mxu0 %v5643
    %6846 = vmatmul.mubr.f32.gmra.mxu0 %v5642
    %v6847 = vpop.f32.mrf.mxu0
    %v6848 = vadd.f32 0.0, %v6847
    %v6849 = vpop.f32.mrf.mxu0
    %6850 = vmatprep.mubr.f32.mxu0 %v5645
    %6851 = vmatmul.mubr.f32.gmra.mxu0 %v5644
    %v6852 = vpop.f32.mrf.mxu0
    %v6853 = vadd.f32 0.0, %v6852
    %v6854 = vpop.f32.mrf.mxu0
    %6855 = vmatprep.mubr.f32.mxu0 %v5647
    %6856 = vmatmul.mubr.f32.gmra.mxu0 %v5646
    %v6857 = vpop.f32.mrf.mxu0
    %v6858 = vadd.f32 0.0, %v6857
    %v6859 = vpop.f32.mrf.mxu0
    %6860 = vdwg.mxu0
    %v6862 = vsel %vm5241, %v6707, 0
    %v6865 = vsel %vm5241, %v6708, 0
    %v6868 = vsel %vm5241, %v6709, 0
    %v6871 = vsel %vm5241, %v6710, 0
    %v6874 = vsel %vm5241, %v6711, 0
    %v6877 = vsel %vm5241, %v6712, 0
    %v6880 = vsel %vm5241, %v6713, 0
    %v6883 = vsel %vm5241, %v6714, 0
    %v6886 = vsel %vm5241, %v6715, 0
    %v6889 = vsel %vm5241, %v6716, 0
    %v6892 = vsel %vm5241, %v6717, 0
    %v6895 = vsel %vm5241, %v6718, 0
    %v6898 = vsel %vm5241, %v6719, 0
    %v6901 = vsel %vm5241, %v6720, 0
    %v6904 = vsel %vm5241, %v6721, 0
    %v6907 = vsel %vm5241, %v6722, 0
    %6909 = vmatprep.subr.mxu0 0.0
    %6910 = vmatpush1.msra.mxu0 0.0
    %6911 = vmatprep.subr.mxu0 0.0
    %6912 = vmatpush1.msra.mxu0 0.0
    %6913 = vmatprep.subr.mxu0 0.0
    %6914 = vmatpush1.msra.mxu0 0.0
    %6915 = vmatprep.subr.mxu0 0.0
    %6916 = vmatpush1.msra.mxu0 0.0
    %6917 = vmatprep.subr.mxu0 0.0
    %6918 = vmatpush1.msra.mxu0 0.0
    %6919 = vmatprep.subr.mxu0 0.0
    %6920 = vmatpush1.msra.mxu0 0.0
    %6921 = vmatprep.subr.mxu0 0.0
    %6922 = vmatpush1.msra.mxu0 0.0
    %6923 = vmatprep.subr.mxu0 0.0
    %6924 = vmatpush1.msra.mxu0 0.0
    %6925 = vmatprep.subr.mxu0 0.0
    %6926 = vmatpush1.msra.mxu0 %v6858
    %6927 = vmatprep.subr.mxu0 0.0
    %6928 = vmatpush1.msra.mxu0 %v6853
    %6929 = vmatprep.subr.mxu0 0.0
    %6930 = vmatpush1.msra.mxu0 %v6848
    %6931 = vmatprep.subr.mxu0 0.0
    %6932 = vmatpush1.msra.mxu0 %v6843
    %6933 = vmatprep.subr.mxu0 0.0
    %6934 = vmatpush1.msra.mxu0 %v6838
    %6935 = vmatprep.subr.mxu0 0.0
    %6936 = vmatpush1.msra.mxu0 %v6833
    %6937 = vmatprep.subr.mxu0 0.0
    %6938 = vmatpush1.msra.mxu0 %v6828
    %6939 = vmatprep.subr.mxu0 0.0
    %6940 = vmatpush1.msra.mxu0 %v6823
    %6941 = vmatprep.subr.mxu0 0.0
    %6942 = vmatpush2.msra.mxu0 0.0
    %6943 = vmatprep.subr.mxu0 0.0
    %6944 = vmatpush2.msra.mxu0 0.0
    %6945 = vmatprep.subr.mxu0 0.0
    %6946 = vmatpush2.msra.mxu0 0.0
    %6947 = vmatprep.subr.mxu0 0.0
    %6948 = vmatpush2.msra.mxu0 0.0
    %6949 = vmatprep.subr.mxu0 0.0
    %6950 = vmatpush2.msra.mxu0 0.0
    %6951 = vmatprep.subr.mxu0 0.0
    %6952 = vmatpush2.msra.mxu0 0.0
    %6953 = vmatprep.subr.mxu0 0.0
    %6954 = vmatpush2.msra.mxu0 0.0
    %6955 = vmatprep.subr.mxu0 0.0
    %6956 = vmatpush2.msra.mxu0 0.0
    %6957 = vmatprep.subr.mxu0 0.0
    %6958 = vmatpush2.msra.mxu0 0.0
    %6959 = vmatprep.subr.mxu0 0.0
    %6960 = vmatpush2.msra.mxu0 0.0
    %6961 = vmatprep.subr.mxu0 0.0
    %6962 = vmatpush2.msra.mxu0 0.0
    %6963 = vmatprep.subr.mxu0 0.0
    %6964 = vmatpush2.msra.mxu0 0.0
    %6965 = vmatprep.subr.mxu0 0.0
    %6966 = vmatpush2.msra.mxu0 0.0
    %6967 = vmatprep.subr.mxu0 0.0
    %6968 = vmatpush2.msra.mxu0 0.0
    %6969 = vmatprep.subr.mxu0 0.0
    %6970 = vmatpush2.msra.mxu0 0.0
    %6971 = vmatprep.subr.mxu0 0.0
    %6972 = vmatpush2.msra.mxu0 0.0
    %6973 = vmatprep.mubr.f32.mxu0 0.0
    %6974 = vmatmul.mubr.f32.gmra.mxu0 %v6862
    %v6975 = vpop.f32.mrf.mxu0
    %v6976 = vadd.f32 0.0, %v6975
    %v6977 = vpop.f32.mrf.mxu0
    %6978 = vmatprep.mubr.f32.mxu0 0.0
    %6979 = vmatmul.mubr.f32.gmra.mxu0 %v6865
    %v6980 = vpop.f32.mrf.mxu0
    %v6981 = vadd.f32 0.0, %v6980
    %v6982 = vpop.f32.mrf.mxu0
    %6983 = vmatprep.mubr.f32.mxu0 0.0
    %6984 = vmatmul.mubr.f32.gmra.mxu0 %v6868
    %v6985 = vpop.f32.mrf.mxu0
    %v6986 = vadd.f32 0.0, %v6985
    %v6987 = vpop.f32.mrf.mxu0
    %6988 = vmatprep.mubr.f32.mxu0 0.0
    %6989 = vmatmul.mubr.f32.gmra.mxu0 %v6871
    %v6990 = vpop.f32.mrf.mxu0
    %v6991 = vadd.f32 0.0, %v6990
    %v6992 = vpop.f32.mrf.mxu0
    %6993 = vmatprep.mubr.f32.mxu0 0.0
    %6994 = vmatmul.mubr.f32.gmra.mxu0 %v6874
    %v6995 = vpop.f32.mrf.mxu0
    %v6996 = vadd.f32 0.0, %v6995
    %v6997 = vpop.f32.mrf.mxu0
    %6998 = vmatprep.mubr.f32.mxu0 0.0
    %6999 = vmatmul.mubr.f32.gmra.mxu0 %v6877
    %v7000 = vpop.f32.mrf.mxu0
    %v7001 = vadd.f32 0.0, %v7000
    %v7002 = vpop.f32.mrf.mxu0
    %7003 = vmatprep.mubr.f32.mxu0 0.0
    %7004 = vmatmul.mubr.f32.gmra.mxu0 %v6880
    %v7005 = vpop.f32.mrf.mxu0
    %v7006 = vadd.f32 0.0, %v7005
    %v7007 = vpop.f32.mrf.mxu0
    %7008 = vmatprep.mubr.f32.mxu0 0.0
    %7009 = vmatmul.mubr.f32.gmra.mxu0 %v6883
    %v7010 = vpop.f32.mrf.mxu0
    %v7011 = vadd.f32 0.0, %v7010
    %v7012 = vpop.f32.mrf.mxu0
    %7013 = vmatprep.mubr.f32.mxu0 0.0
    %7014 = vmatmul.mubr.f32.gmra.mxu0 %v6886
    %v7015 = vpop.f32.mrf.mxu0
    %v7016 = vadd.f32 0.0, %v7015
    %v7017 = vpop.f32.mrf.mxu0
    %7018 = vmatprep.mubr.f32.mxu0 0.0
    %7019 = vmatmul.mubr.f32.gmra.mxu0 %v6889
    %v7020 = vpop.f32.mrf.mxu0
    %v7021 = vadd.f32 0.0, %v7020
    %v7022 = vpop.f32.mrf.mxu0
    %7023 = vmatprep.mubr.f32.mxu0 0.0
    %7024 = vmatmul.mubr.f32.gmra.mxu0 %v6892
    %v7025 = vpop.f32.mrf.mxu0
    %v7026 = vadd.f32 0.0, %v7025
    %v7027 = vpop.f32.mrf.mxu0
    %7028 = vmatprep.mubr.f32.mxu0 0.0
    %7029 = vmatmul.mubr.f32.gmra.mxu0 %v6895
    %v7030 = vpop.f32.mrf.mxu0
    %v7031 = vadd.f32 0.0, %v7030
    %v7032 = vpop.f32.mrf.mxu0
    %7033 = vmatprep.mubr.f32.mxu0 0.0
    %7034 = vmatmul.mubr.f32.gmra.mxu0 %v6898
    %v7035 = vpop.f32.mrf.mxu0
    %v7036 = vadd.f32 0.0, %v7035
    %v7037 = vpop.f32.mrf.mxu0
    %7038 = vmatprep.mubr.f32.mxu0 0.0
    %7039 = vmatmul.mubr.f32.gmra.mxu0 %v6901
    %v7040 = vpop.f32.mrf.mxu0
    %v7041 = vadd.f32 0.0, %v7040
    %v7042 = vpop.f32.mrf.mxu0
    %7043 = vmatprep.mubr.f32.mxu0 0.0
    %7044 = vmatmul.mubr.f32.gmra.mxu0 %v6904
    %v7045 = vpop.f32.mrf.mxu0
    %v7046 = vadd.f32 0.0, %v7045
    %v7047 = vpop.f32.mrf.mxu0
    %7048 = vmatprep.mubr.f32.mxu0 0.0
    %7049 = vmatmul.mubr.f32.gmra.mxu0 %v6907
    %v7050 = vpop.f32.mrf.mxu0
    %v7051 = vadd.f32 0.0, %v7050
    %v7052 = vpop.f32.mrf.mxu0
    %7053 = vdwg.mxu0
    %v7054 = vadd.f32 %v6690, %v6976
    %v7055 = vadd.f32 %v6691, %v6981
    %v7056 = vadd.f32 %v6692, %v6986
    %v7057 = vadd.f32 %v6693, %v6991
    %v7058 = vadd.f32 %v6694, %v6996
    %v7059 = vadd.f32 %v6695, %v7001
    %v7060 = vadd.f32 %v6696, %v7006
    %v7061 = vadd.f32 %v6697, %v7011
    %v7062 = vadd.f32 %v6698, %v7016
    %v7063 = vadd.f32 %v6699, %v7021
    %v7064 = vadd.f32 %v6700, %v7026
    %v7065 = vadd.f32 %v6701, %v7031
    %v7066 = vadd.f32 %v6702, %v7036
    %v7067 = vadd.f32 %v6703, %v7041
    %v7068 = vadd.f32 %v6704, %v7046
    %v7069 = vadd.f32 %v6705, %v7051
    %v7070 = vld [vmem:[#allocation2] sm:$0x1]
    %v7072 = vlaneseq
    %v7073 = vshrl.u32 %v7072, 7
    %v7074 = vsub.s32 0, %v7073
    %v7075 = vrot.slane %v7070, %v7074
    %7076 = vset.pattern.permute.xlu0 0
    %7077 = vperm.xlu0 %7076, %v7075
    %v7078 = vpop.permute.xlu0 %7077
    %v7080 = vadd.f32 %v7054, %v7078
    %v7081 = vadd.f32 %v7055, %v7078
    %v7082 = vadd.f32 %v7056, %v7078
    %v7083 = vadd.f32 %v7057, %v7078
    %v7084 = vadd.f32 %v7058, %v7078
    %v7085 = vadd.f32 %v7059, %v7078
    %v7086 = vadd.f32 %v7060, %v7078
    %v7087 = vadd.f32 %v7061, %v7078
    %v7088 = vadd.f32 %v7062, %v7078
    %v7089 = vadd.f32 %v7063, %v7078
    %v7090 = vadd.f32 %v7064, %v7078
    %v7091 = vadd.f32 %v7065, %v7078
    %v7092 = vadd.f32 %v7066, %v7078
    %v7093 = vadd.f32 %v7067, %v7078
    %v7094 = vadd.f32 %v7068, %v7078
    %v7095 = vadd.f32 %v7069, %v7078
    %v7096 = vtanh.pop %v7080
    %v7097 = vtanh.pop %v7081
    %v7098 = vtanh.pop %v7082
    %v7099 = vtanh.pop %v7083
    %v7100 = vtanh.pop %v7084
    %v7101 = vtanh.pop %v7085
    %v7102 = vtanh.pop %v7086
    %v7103 = vtanh.pop %v7087
    %v7104 = vtanh.pop %v7088
    %v7105 = vtanh.pop %v7089
    %v7106 = vtanh.pop %v7090
    %v7107 = vtanh.pop %v7091
    %v7108 = vtanh.pop %v7092
    %v7109 = vtanh.pop %v7093
    %v7110 = vtanh.pop %v7094
    %v7111 = vtanh.pop %v7095
    %7112 = vst.msk [vmem:[#allocation3] sm:$0xff] %vm5241, %v7096
    %7113 = vst.msk [vmem:[#allocation3 + $0x8] sm:$0xff] %vm5241, %v7097
    %7114 = vst.msk [vmem:[#allocation3 + $0x10] sm:$0xff] %vm5241, %v7098
    %7115 = vst.msk [vmem:[#allocation3 + $0x18] sm:$0xff] %vm5241, %v7099
    %7116 = vst.msk [vmem:[#allocation3 + $0x20] sm:$0xff] %vm5241, %v7100
    %7117 = vst.msk [vmem:[#allocation3 + $0x28] sm:$0xff] %vm5241, %v7101
    %7118 = vst.msk [vmem:[#allocation3 + $0x30] sm:$0xff] %vm5241, %v7102
    %7119 = vst.msk [vmem:[#allocation3 + $0x38] sm:$0xff] %vm5241, %v7103
    %7120 = vst.msk [vmem:[#allocation3 + $0x40] sm:$0xff] %vm5241, %v7104
    %7121 = vst.msk [vmem:[#allocation3 + $0x48] sm:$0xff] %vm5241, %v7105
    %7122 = vst.msk [vmem:[#allocation3 + $0x50] sm:$0xff] %vm5241, %v7106
    %7123 = vst.msk [vmem:[#allocation3 + $0x58] sm:$0xff] %vm5241, %v7107
    %7124 = vst.msk [vmem:[#allocation3 + $0x60] sm:$0xff] %vm5241, %v7108
    %7125 = vst.msk [vmem:[#allocation3 + $0x68] sm:$0xff] %vm5241, %v7109
    %7126 = vst.msk [vmem:[#allocation3 + $0x70] sm:$0xff] %vm5241, %v7110
    %7127 = vst.msk [vmem:[#allocation3 + $0x78] sm:$0xff] %vm5241, %v7111
    // Predicated region
    $region58: #{generator_forward.1} parent=1 // pred_check
      _
    $region59: #{generator_forward.1} parent=1 // pred_check_branch
      %7129 = sbr.rel (0) target = $region61
    $region60: #{generator_forward.1} parent=1 // pred_region
      %s7131 = ssub.s32 2048, 2048
      %7132 = vsyncadd [#allocation4], %s7131
      %s7133 = sshll.u32 [#allocation3], 4
      %s7134 = int_to_ptr.vmem [resolvable:$true] %s7133
      %7139 = dma.vmem_to_hbm [thread:$0]  %s7134, 2048, %s14, [#allocation4], 128, 128, 8
    $region61: #{generator_forward.1} parent=1 // pred_fallthru
      _
    // Predicated region
    $region62: #{generator_forward.1} parent=1 // pred_check
      _
    $region63: #{generator_forward.1} parent=1 // pred_check_branch
      %7141 = sbr.rel (0) target = $region65
    $region64: #{generator_forward.1} parent=1 // pred_region
      %7142 = dma.done [#allocation4], 2048
    $region65: #{generator_forward.1} parent=1 // pred_fallthru
      _
    %7143 = vsyncpa [#allocation4], 1

</llo_original>
